<compile_context>
chip_gen: v7x
topology: tpu7x:2x2x1
jax: 0.10.0
libtpu: 0.0.40
codegen_flags: <defaults>
</compile_context>

<pallas_src>
import numpy as np
import jax
import jax.numpy as jnp
from jax.experimental import pallas as pl
from jax.experimental.pallas import tpu as pltpu

COUT = 64                                    # resnet18 branch output channels
RESNET18_IN_C = (64, 128, 256, 512)
RESNET18_SCALES = (4, 8, 16, 32)


# --------------------- bilinear interpolation factors (host, numpy) ----------------

def _bilinear_1d_matrix(in_size: int, scale: int) -> np.ndarray:
    """1-D bilinear interp matrix matching PyTorch Upsample(align_corners=False)."""
    out_size = in_size * scale
    i = np.arange(out_size, dtype=np.float64)
    src = np.clip((i + 0.5) / scale - 0.5, 0.0, None)
    i0 = np.minimum(np.floor(src).astype(np.int64), in_size - 1)
    i1 = np.minimum(i0 + 1, in_size - 1)
    frac = src - i0
    m = np.zeros((out_size, in_size), dtype=np.float64)
    m[np.arange(out_size), i0] += 1.0 - frac
    m[np.arange(out_size), i1] += frac
    return m.astype(np.float32)


# ------------------------------- Pallas kernel ------------------------------------

def _make_kernel(branch_dims, wh_mats, hout, wout, out_dtype):
    """branch_dims: ((cin, hin, win), ...); wh_mats: host numpy (hout, hin) per branch."""
    nb = len(branch_dims)

    def kernel(*refs):
        xs = refs[0:nb]              # (1, Cin_k, Pin_k)  per-image NCHW, spatial flattened
        wcs = refs[nb:2 * nb]        # (Cout, Cin_k)      1x1 conv weight (OIHW squeezed)
        bs = refs[2 * nb:3 * nb]     # (Cout, 1)          conv bias
        wwts = refs[3 * nb:4 * nb]   # (Win_k, Wout)      width interp matrix (transposed)
        o_ref = refs[4 * nb]         # (1, Cout, Pout)    lane-dense output block

        j = pl.program_id(1)         # branch id (minor grid axis)

        for k, (cin, hin, win) in enumerate(branch_dims):
            @pl.when(j == k)
            def _(k=k, hin=hin, win=win):
                x = xs[k][0]                                             # (Cin, Pin)
                # 1x1 conv (transposed layout): (Cout, Cin) @ (Cin, Pin), fp32 accumulate.
                y = jnp.dot(wcs[k][...], x,
                            preferred_element_type=jnp.float32)          # (Cout, Pin)
                y = y + bs[k][...]                                        # + (Cout, 1)

                # Width pass of the separable bilinear upsample: per input row,
                # (Cout, Win) @ (Win, Wout).  Static lane slices, no reshapes.
                wwt = wwts[k][...]                                        # (Win, Wout) fp32
                zrows = []
                for hi in range(hin):
                    yrow = y[:, hi * win:(hi + 1) * win]                  # (Cout, Win)
                    if win == 1:
                        zrows.append(yrow * wwt)                          # broadcast multiply
                    else:
                        zrows.append(jnp.dot(yrow, wwt,
                                             preferred_element_type=jnp.float32))

                # Height pass fused with the output stores.  Bilinear row weights have
                # <= 2 non-zeros and depend only on static shapes -> baked in as scalar
                # constants (pure VPU fma work in otherwise-free slots).
                wh = wh_mats[k]                                           # host numpy
                for ho in range(hout):
                    acc = None
                    for hi in range(hin):
                        wv = float(wh[ho, hi])
                        if wv == 0.0:
                            continue
                        term = zrows[hi] if wv == 1.0 else zrows[hi] * wv
                        acc = term if acc is None else acc + term
                    o_ref[0, :, pl.ds(ho * wout, wout)] = acc.astype(out_dtype)

    return kernel


# ------------------------------ params / forward -----------------------------------

def init_params(key, in_channels=RESNET18_IN_C, out_c=COUT):
    params = []
    for i, cin in enumerate(in_channels):
        kw, kb = jax.random.split(jax.random.fold_in(key, i))
        bound = 1.0 / np.sqrt(cin)
        w = jax.random.uniform(kw, (out_c, cin), jnp.float32, -bound, bound)
        b = jax.random.uniform(kb, (out_c,), jnp.float32, -bound, bound)
        params.append({'w': w, 'b': b})
    return params


def up_cat_branch(params, x1, x2, x3, x4, *, scales=RESNET18_SCALES,
                  compute_dtype=jnp.float32):
    """upCatBranch forward: four (1x1 conv + bilinear upsample) branches fused into one
    Pallas kernel writing the channel-concatenated NCHW output directly."""
    xs = (x1, x2, x3, x4)
    nb = len(xs)
    assert len(params) == nb and len(scales) == nb
    n = x1.shape[0]
    cout = params[0]['w'].shape[0]
    hout = x1.shape[2] * scales[0]
    wout = x1.shape[3] * scales[0]
    pout = hout * wout
    itemsize = jnp.dtype(compute_dtype).itemsize

    branch_dims, x_flat, wcs, bs, wwts, wh_mats = [], [], [], [], [], []
    flops, bytes_acc = 0, 0
    for x, p, s in zip(xs, params, scales):
        _, cin, hin, win = x.shape
        assert hin * s == hout and win * s == wout, "branches must upsample to a common size"
        assert p['w'].shape == (cout, cin)
        branch_dims.append((cin, hin, win))
        x_flat.append(x.reshape(n, cin, hin * win).astype(compute_dtype))   # metadata reshape
        wcs.append(p['w'].astype(compute_dtype))
        bs.append(p['b'].reshape(cout, 1).astype(jnp.float32))
        wwts.append(jnp.asarray(_bilinear_1d_matrix(win, s).T))             # (Win, Wout)
        wh_mats.append(_bilinear_1d_matrix(hin, s))                         # host constants
        flops += 2 * n * cout * (cin * hin * win        # 1x1 conv
                                 + hin * win * wout     # width pass
                                 + 2 * hout * wout)     # height pass (<=2 taps/row)
        bytes_acc += (x.size + p['w'].size) * itemsize + (p['b'].size + win * wout) * 4
    bytes_acc += n * nb * cout * pout * 4                                   # output

    kernel = _make_kernel(tuple(branch_dims), tuple(wh_mats), hout, wout, jnp.float32)

    in_specs = (
        [pl.BlockSpec((1, cin, hin * win), lambda i, j: (i, 0, 0))
         for (cin, hin, win) in branch_dims]
        + [pl.BlockSpec(w.shape, lambda i, j: (0, 0)) for w in wcs]
        + [pl.BlockSpec(b.shape, lambda i, j: (0, 0)) for b in bs]
        + [pl.BlockSpec(w.shape, lambda i, j: (0, 0)) for w in wwts]
    )
    out_spec = pl.BlockSpec((1, cout, pout), lambda i, j: (i, j, 0))

    out = pl.pallas_call(
        kernel,
        out_shape=jax.ShapeDtypeStruct((n, nb * cout, pout), jnp.float32),
        grid=(n, nb),
        in_specs=in_specs,
        out_specs=out_spec,
        compiler_params=pltpu.CompilerParams(
            dimension_semantics=("parallel", "parallel")),
        cost_estimate=pl.CostEstimate(flops=int(flops), transcendentals=0,
                                      bytes_accessed=int(bytes_acc)),
    )(*x_flat, *wcs, *bs, *wwts)

    # (N, 4*Cout, Pout) -> NCHW: pure metadata reshape, no data movement.
    return out.reshape(n, nb * cout, hout, wout)


# -------------------------- independent float64 reference ---------------------------

def _reference_np(params, xs, scales):
    outs = []
    for x, p, s in zip(xs, params, scales):
        xn = np.asarray(x, dtype=np.float64)
        w = np.asarray(p['w'], dtype=np.float64)
        b = np.asarray(p['b'], dtype=np.float64)
        _, _, h, wdim = xn.shape
        y = np.einsum('oc,nchw->nohw', w, xn) + b[None, :, None, None]
        ww = _bilinear_1d_matrix(wdim, s).astype(np.float64)     # (Wout, Win)
        wh = _bilinear_1d_matrix(h, s).astype(np.float64)        # (Hout, Hin)
        z = np.einsum('Ww,nohw->nohW', ww, y)
        outs.append(np.einsum('Hh,nohW->noHW', wh, z))
    return np.concatenate(outs, axis=1)


# --------------------------------------- main ---------------------------------------

if __name__ == "__main__":
    key = jax.random.PRNGKey(0)
    pkey, xkey = jax.random.split(key)
    params = init_params(pkey)

    # Small resnet18-style feature pyramid: batch=2, common output spatial 32x32.
    N, base = 2, 32
    xs = []
    for i, (s, cin) in enumerate(zip(RESNET18_SCALES, RESNET18_IN_C)):
        h = base // s
        xs.append(jax.random.normal(jax.random.fold_in(xkey, i),
                                    (N, cin, h, h), dtype=jnp.float32))

    fwd = jax.jit(up_cat_branch, static_argnames=("scales", "compute_dtype"))

    # fp32 operand path.
    out = jax.block_until_ready(fwd(params, *xs, scales=RESNET18_SCALES,
                                    compute_dtype=jnp.float32))
    assert out.shape == (N, 4 * COUT, base, base), out.shape

    ref = _reference_np(params, xs, RESNET18_SCALES)
    np.testing.assert_allclose(np.asarray(out, dtype=np.float64), ref,
                               rtol=2e-2, atol=2e-2)

    # bf16 operand path (fp32 accumulation, fp32 interp weights), looser tolerance.
    out_bf16 = jax.block_until_ready(fwd(params, *xs, scales=RESNET18_SCALES,
                                         compute_dtype=jnp.bfloat16))
    np.testing.assert_allclose(np.asarray(out_bf16, dtype=np.float64), ref,
                               rtol=6e-2, atol=6e-2)

    print("KERNEL_OK")
</pallas_src>

<mosaic_0001>
module attributes {stable_mosaic.version = 11 : i64} {
  func.func @kernel(%arg0: i32, %arg1: i32, %arg2: memref<1x64x64xf32, #tpu.memory_space<vmem>>, %arg3: memref<1x128x16xf32, #tpu.memory_space<vmem>>, %arg4: memref<1x256x4xf32, #tpu.memory_space<vmem>>, %arg5: memref<1x512x1xf32, #tpu.memory_space<vmem>>, %arg6: memref<64x64xf32, #tpu.memory_space<vmem>>, %arg7: memref<64x128xf32, #tpu.memory_space<vmem>>, %arg8: memref<64x256xf32, #tpu.memory_space<vmem>>, %arg9: memref<64x512xf32, #tpu.memory_space<vmem>>, %arg10: memref<64x1xf32, #tpu.memory_space<vmem>>, %arg11: memref<64x1xf32, #tpu.memory_space<vmem>>, %arg12: memref<64x1xf32, #tpu.memory_space<vmem>>, %arg13: memref<64x1xf32, #tpu.memory_space<vmem>>, %arg14: memref<8x32xf32, #tpu.memory_space<vmem>>, %arg15: memref<4x32xf32, #tpu.memory_space<vmem>>, %arg16: memref<2x32xf32, #tpu.memory_space<vmem>>, %arg17: memref<1x32xf32, #tpu.memory_space<vmem>>, %arg18: memref<1x64x1024xf32, #tpu.memory_space<vmem>>) attributes {dimension_semantics = [#tpu.dimension_semantics<parallel>, #tpu.dimension_semantics<parallel>], iteration_bounds = array<i64: 2, 4>, scalar_prefetch = 0 : i64, scratch_operands = 0 : i64, tpu.core_type = #tpu.core_type<tc>, window_params = [{transform_indices = @transform_0, window_bounds = array<i64: 1, 64, 64>}, {transform_indices = @transform_1, window_bounds = array<i64: 1, 128, 16>}, {transform_indices = @transform_2, window_bounds = array<i64: 1, 256, 4>}, {transform_indices = @transform_3, window_bounds = array<i64: 1, 512, 1>}, {pipeline_mode = #tpu.pipeline_mode<synchronous>, transform_indices = @transform_4, window_bounds = array<i64: 64, 64>}, {pipeline_mode = #tpu.pipeline_mode<synchronous>, transform_indices = @transform_5, window_bounds = array<i64: 64, 128>}, {pipeline_mode = #tpu.pipeline_mode<synchronous>, transform_indices = @transform_6, window_bounds = array<i64: 64, 256>}, {pipeline_mode = #tpu.pipeline_mode<synchronous>, transform_indices = @transform_7, window_bounds = array<i64: 64, 512>}, {pipeline_mode = #tpu.pipeline_mode<synchronous>, transform_indices = @transform_8, window_bounds = array<i64: 64, 1>}, {pipeline_mode = #tpu.pipeline_mode<synchronous>, transform_indices = @transform_9, window_bounds = array<i64: 64, 1>}, {pipeline_mode = #tpu.pipeline_mode<synchronous>, transform_indices = @transform_10, window_bounds = array<i64: 64, 1>}, {pipeline_mode = #tpu.pipeline_mode<synchronous>, transform_indices = @transform_11, window_bounds = array<i64: 64, 1>}, {pipeline_mode = #tpu.pipeline_mode<synchronous>, transform_indices = @transform_12, window_bounds = array<i64: 8, 32>}, {pipeline_mode = #tpu.pipeline_mode<synchronous>, transform_indices = @transform_13, window_bounds = array<i64: 4, 32>}, {pipeline_mode = #tpu.pipeline_mode<synchronous>, transform_indices = @transform_14, window_bounds = array<i64: 2, 32>}, {pipeline_mode = #tpu.pipeline_mode<synchronous>, transform_indices = @transform_15, window_bounds = array<i64: 1, 32>}, {transform_indices = @transform_16, window_bounds = array<i64: 1, 64, 1024>}]} {
    %c0_i32 = arith.constant 0 : i32
    %0 = arith.cmpi eq, %arg1, %c0_i32 : i32
    %1 = arith.extui %0 : i1 to i32
    %c0_i32_0 = arith.constant 0 : i32
    %2 = arith.cmpi ne, %1, %c0_i32_0 : i32
    scf.if %2 {
      %c0 = arith.constant 0 : index
      %c0_4 = arith.constant 0 : index
      %c0_5 = arith.constant 0 : index
      %12 = vector.load %arg2[%c0, %c0_4, %c0_5] : memref<1x64x64xf32, #tpu.memory_space<vmem>>, vector<1x64x64xf32>
      %13 = vector.shape_cast %12 : vector<1x64x64xf32> to vector<64x64xf32>
      %c0_6 = arith.constant 0 : index
      %c0_7 = arith.constant 0 : index
      %14 = vector.load %arg6[%c0_6, %c0_7] : memref<64x64xf32, #tpu.memory_space<vmem>>, vector<64x64xf32>
      %cst = arith.constant dense<0.000000e+00> : vector<64x64xf32>
      %15 = tpu.matmul %14, %13, %cst {dimension_numbers = #tpu.dot_dimension_numbers<[1], [0], [0], [1], [0, 0, 1, 1], [], []>} : vector<64x64xf32>, vector<64x64xf32>, vector<64x64xf32> -> vector<64x64xf32>
      %c0_8 = arith.constant 0 : index
      %c0_9 = arith.constant 0 : index
      %16 = vector.load %arg10[%c0_8, %c0_9] : memref<64x1xf32, #tpu.memory_space<vmem>>, vector<64x1xf32>
      %17 = vector.broadcast %16 : vector<64x1xf32> to vector<64x64xf32>
      %18 = arith.addf %15, %17 : vector<64x64xf32>
      %c0_10 = arith.constant 0 : index
      %c0_11 = arith.constant 0 : index
      %19 = vector.load %arg14[%c0_10, %c0_11] : memref<8x32xf32, #tpu.memory_space<vmem>>, vector<8x32xf32>
      %20 = vector.extract_strided_slice %18 {offsets = [0, 0], sizes = [64, 8], strides = [1, 1]} : vector<64x64xf32> to vector<64x8xf32>
      %cst_12 = arith.constant dense<0.000000e+00> : vector<64x32xf32>
      %21 = tpu.matmul %20, %19, %cst_12 {dimension_numbers = #tpu.dot_dimension_numbers<[1], [0], [0], [1], [0, 0, 1, 1], [], []>} : vector<64x8xf32>, vector<8x32xf32>, vector<64x32xf32> -> vector<64x32xf32>
      %22 = vector.extract_strided_slice %18 {offsets = [0, 8], sizes = [64, 8], strides = [1, 1]} : vector<64x64xf32> to vector<64x8xf32>
      %cst_13 = arith.constant dense<0.000000e+00> : vector<64x32xf32>
      %23 = tpu.matmul %22, %19, %cst_13 {dimension_numbers = #tpu.dot_dimension_numbers<[1], [0], [0], [1], [0, 0, 1, 1], [], []>} : vector<64x8xf32>, vector<8x32xf32>, vector<64x32xf32> -> vector<64x32xf32>
      %24 = vector.extract_strided_slice %18 {offsets = [0, 16], sizes = [64, 8], strides = [1, 1]} : vector<64x64xf32> to vector<64x8xf32>
      %cst_14 = arith.constant dense<0.000000e+00> : vector<64x32xf32>
      %25 = tpu.matmul %24, %19, %cst_14 {dimension_numbers = #tpu.dot_dimension_numbers<[1], [0], [0], [1], [0, 0, 1, 1], [], []>} : vector<64x8xf32>, vector<8x32xf32>, vector<64x32xf32> -> vector<64x32xf32>
      %26 = vector.extract_strided_slice %18 {offsets = [0, 24], sizes = [64, 8], strides = [1, 1]} : vector<64x64xf32> to vector<64x8xf32>
      %cst_15 = arith.constant dense<0.000000e+00> : vector<64x32xf32>
      %27 = tpu.matmul %26, %19, %cst_15 {dimension_numbers = #tpu.dot_dimension_numbers<[1], [0], [0], [1], [0, 0, 1, 1], [], []>} : vector<64x8xf32>, vector<8x32xf32>, vector<64x32xf32> -> vector<64x32xf32>
      %28 = vector.extract_strided_slice %18 {offsets = [0, 32], sizes = [64, 8], strides = [1, 1]} : vector<64x64xf32> to vector<64x8xf32>
      %cst_16 = arith.constant dense<0.000000e+00> : vector<64x32xf32>
      %29 = tpu.matmul %28, %19, %cst_16 {dimension_numbers = #tpu.dot_dimension_numbers<[1], [0], [0], [1], [0, 0, 1, 1], [], []>} : vector<64x8xf32>, vector<8x32xf32>, vector<64x32xf32> -> vector<64x32xf32>
      %30 = vector.extract_strided_slice %18 {offsets = [0, 40], sizes = [64, 8], strides = [1, 1]} : vector<64x64xf32> to vector<64x8xf32>
      %cst_17 = arith.constant dense<0.000000e+00> : vector<64x32xf32>
      %31 = tpu.matmul %30, %19, %cst_17 {dimension_numbers = #tpu.dot_dimension_numbers<[1], [0], [0], [1], [0, 0, 1, 1], [], []>} : vector<64x8xf32>, vector<8x32xf32>, vector<64x32xf32> -> vector<64x32xf32>
      %32 = vector.extract_strided_slice %18 {offsets = [0, 48], sizes = [64, 8], strides = [1, 1]} : vector<64x64xf32> to vector<64x8xf32>
      %cst_18 = arith.constant dense<0.000000e+00> : vector<64x32xf32>
      %33 = tpu.matmul %32, %19, %cst_18 {dimension_numbers = #tpu.dot_dimension_numbers<[1], [0], [0], [1], [0, 0, 1, 1], [], []>} : vector<64x8xf32>, vector<8x32xf32>, vector<64x32xf32> -> vector<64x32xf32>
      %34 = vector.extract_strided_slice %18 {offsets = [0, 56], sizes = [64, 8], strides = [1, 1]} : vector<64x64xf32> to vector<64x8xf32>
      %cst_19 = arith.constant dense<0.000000e+00> : vector<64x32xf32>
      %35 = tpu.matmul %34, %19, %cst_19 {dimension_numbers = #tpu.dot_dimension_numbers<[1], [0], [0], [1], [0, 0, 1, 1], [], []>} : vector<64x8xf32>, vector<8x32xf32>, vector<64x32xf32> -> vector<64x32xf32>
      %c0_20 = arith.constant 0 : index
      %c0_21 = arith.constant 0 : index
      %c0_22 = arith.constant 0 : index
      %36 = vector.load %arg18[%c0_20, %c0_21, %c0_22] : memref<1x64x1024xf32, #tpu.memory_space<vmem>>, vector<1x64x32xf32>
      %37 = vector.shape_cast %36 : vector<1x64x32xf32> to vector<64x32xf32>
      %38 = vector.shape_cast %21 : vector<64x32xf32> to vector<1x64x32xf32>
      tpu.vector_store %arg18[%c0_20, %c0_21, %c0_22], %38 {strides = array<i32>} : memref<1x64x1024xf32, #tpu.memory_space<vmem>>, vector<1x64x32xf32>,
      %c0_23 = arith.constant 0 : index
      %c0_24 = arith.constant 0 : index
      %c32 = arith.constant 32 : index
      %39 = vector.load %arg18[%c0_23, %c0_24, %c32] : memref<1x64x1024xf32, #tpu.memory_space<vmem>>, vector<1x64x32xf32>
      %40 = vector.shape_cast %39 : vector<1x64x32xf32> to vector<64x32xf32>
      %41 = vector.shape_cast %21 : vector<64x32xf32> to vector<1x64x32xf32>
      tpu.vector_store %arg18[%c0_23, %c0_24, %c32], %41 {strides = array<i32>} : memref<1x64x1024xf32, #tpu.memory_space<vmem>>, vector<1x64x32xf32>,
      %cst_25 = arith.constant 8.750000e-01 : f32
      %42 = vector.broadcast %cst_25 : f32 to vector<64x32xf32>
      %43 = arith.mulf %21, %42 : vector<64x32xf32>
      %cst_26 = arith.constant 1.250000e-01 : f32
      %44 = vector.broadcast %cst_26 : f32 to vector<64x32xf32>
      %45 = arith.mulf %23, %44 : vector<64x32xf32>
      %46 = arith.addf %43, %45 : vector<64x32xf32>
      %c0_27 = arith.constant 0 : index
      %c0_28 = arith.constant 0 : index
      %c64 = arith.constant 64 : index
      %47 = vector.load %arg18[%c0_27, %c0_28, %c64] : memref<1x64x1024xf32, #tpu.memory_space<vmem>>, vector<1x64x32xf32>
      %48 = vector.shape_cast %47 : vector<1x64x32xf32> to vector<64x32xf32>
      %49 = vector.shape_cast %46 : vector<64x32xf32> to vector<1x64x32xf32>
      tpu.vector_store %arg18[%c0_27, %c0_28, %c64], %49 {strides = array<i32>} : memref<1x64x1024xf32, #tpu.memory_space<vmem>>, vector<1x64x32xf32>,
      %cst_29 = arith.constant 6.250000e-01 : f32
      %50 = vector.broadcast %cst_29 : f32 to vector<64x32xf32>
      %51 = arith.mulf %21, %50 : vector<64x32xf32>
      %cst_30 = arith.constant 3.750000e-01 : f32
      %52 = vector.broadcast %cst_30 : f32 to vector<64x32xf32>
      %53 = arith.mulf %23, %52 : vector<64x32xf32>
      %54 = arith.addf %51, %53 : vector<64x32xf32>
      %c0_31 = arith.constant 0 : index
      %c0_32 = arith.constant 0 : index
      %c96 = arith.constant 96 : index
      %55 = vector.load %arg18[%c0_31, %c0_32, %c96] : memref<1x64x1024xf32, #tpu.memory_space<vmem>>, vector<1x64x32xf32>
      %56 = vector.shape_cast %55 : vector<1x64x32xf32> to vector<64x32xf32>
      %57 = vector.shape_cast %54 : vector<64x32xf32> to vector<1x64x32xf32>
      tpu.vector_store %arg18[%c0_31, %c0_32, %c96], %57 {strides = array<i32>} : memref<1x64x1024xf32, #tpu.memory_space<vmem>>, vector<1x64x32xf32>,
      %cst_33 = arith.constant 3.750000e-01 : f32
      %58 = vector.broadcast %cst_33 : f32 to vector<64x32xf32>
      %59 = arith.mulf %21, %58 : vector<64x32xf32>
      %cst_34 = arith.constant 6.250000e-01 : f32
      %60 = vector.broadcast %cst_34 : f32 to vector<64x32xf32>
      %61 = arith.mulf %23, %60 : vector<64x32xf32>
      %62 = arith.addf %59, %61 : vector<64x32xf32>
      %c0_35 = arith.constant 0 : index
      %c0_36 = arith.constant 0 : index
      %c128 = arith.constant 128 : index
      %63 = vector.load %arg18[%c0_35, %c0_36, %c128] : memref<1x64x1024xf32, #tpu.memory_space<vmem>>, vector<1x64x32xf32>
      %64 = vector.shape_cast %63 : vector<1x64x32xf32> to vector<64x32xf32>
      %65 = vector.shape_cast %62 : vector<64x32xf32> to vector<1x64x32xf32>
      tpu.vector_store %arg18[%c0_35, %c0_36, %c128], %65 {strides = array<i32>} : memref<1x64x1024xf32, #tpu.memory_space<vmem>>, vector<1x64x32xf32>,
      %cst_37 = arith.constant 1.250000e-01 : f32
      %66 = vector.broadcast %cst_37 : f32 to vector<64x32xf32>
      %67 = arith.mulf %21, %66 : vector<64x32xf32>
      %cst_38 = arith.constant 8.750000e-01 : f32
      %68 = vector.broadcast %cst_38 : f32 to vector<64x32xf32>
      %69 = arith.mulf %23, %68 : vector<64x32xf32>
      %70 = arith.addf %67, %69 : vector<64x32xf32>
      %c0_39 = arith.constant 0 : index
      %c0_40 = arith.constant 0 : index
      %c160 = arith.constant 160 : index
      %71 = vector.load %arg18[%c0_39, %c0_40, %c160] : memref<1x64x1024xf32, #tpu.memory_space<vmem>>, vector<1x64x32xf32>
      %72 = vector.shape_cast %71 : vector<1x64x32xf32> to vector<64x32xf32>
      %73 = vector.shape_cast %70 : vector<64x32xf32> to vector<1x64x32xf32>
      tpu.vector_store %arg18[%c0_39, %c0_40, %c160], %73 {strides = array<i32>} : memref<1x64x1024xf32, #tpu.memory_space<vmem>>, vector<1x64x32xf32>,
      %cst_41 = arith.constant 8.750000e-01 : f32
      %74 = vector.broadcast %cst_41 : f32 to vector<64x32xf32>
      %75 = arith.mulf %23, %74 : vector<64x32xf32>
      %cst_42 = arith.constant 1.250000e-01 : f32
      %76 = vector.broadcast %cst_42 : f32 to vector<64x32xf32>
      %77 = arith.mulf %25, %76 : vector<64x32xf32>
      %78 = arith.addf %75, %77 : vector<64x32xf32>
      %c0_43 = arith.constant 0 : index
      %c0_44 = arith.constant 0 : index
      %c192 = arith.constant 192 : index
      %79 = vector.load %arg18[%c0_43, %c0_44, %c192] : memref<1x64x1024xf32, #tpu.memory_space<vmem>>, vector<1x64x32xf32>
      %80 = vector.shape_cast %79 : vector<1x64x32xf32> to vector<64x32xf32>
      %81 = vector.shape_cast %78 : vector<64x32xf32> to vector<1x64x32xf32>
      tpu.vector_store %arg18[%c0_43, %c0_44, %c192], %81 {strides = array<i32>} : memref<1x64x1024xf32, #tpu.memory_space<vmem>>, vector<1x64x32xf32>,
      %cst_45 = arith.constant 6.250000e-01 : f32
      %82 = vector.broadcast %cst_45 : f32 to vector<64x32xf32>
      %83 = arith.mulf %23, %82 : vector<64x32xf32>
      %cst_46 = arith.constant 3.750000e-01 : f32
      %84 = vector.broadcast %cst_46 : f32 to vector<64x32xf32>
      %85 = arith.mulf %25, %84 : vector<64x32xf32>
      %86 = arith.addf %83, %85 : vector<64x32xf32>
      %c0_47 = arith.constant 0 : index
      %c0_48 = arith.constant 0 : index
      %c224 = arith.constant 224 : index
      %87 = vector.load %arg18[%c0_47, %c0_48, %c224] : memref<1x64x1024xf32, #tpu.memory_space<vmem>>, vector<1x64x32xf32>
      %88 = vector.shape_cast %87 : vector<1x64x32xf32> to vector<64x32xf32>
      %89 = vector.shape_cast %86 : vector<64x32xf32> to vector<1x64x32xf32>
      tpu.vector_store %arg18[%c0_47, %c0_48, %c224], %89 {strides = array<i32>} : memref<1x64x1024xf32, #tpu.memory_space<vmem>>, vector<1x64x32xf32>,
      %cst_49 = arith.constant 3.750000e-01 : f32
      %90 = vector.broadcast %cst_49 : f32 to vector<64x32xf32>
      %91 = arith.mulf %23, %90 : vector<64x32xf32>
      %cst_50 = arith.constant 6.250000e-01 : f32
      %92 = vector.broadcast %cst_50 : f32 to vector<64x32xf32>
      %93 = arith.mulf %25, %92 : vector<64x32xf32>
      %94 = arith.addf %91, %93 : vector<64x32xf32>
      %c0_51 = arith.constant 0 : index
      %c0_52 = arith.constant 0 : index
      %c256 = arith.constant 256 : index
      %95 = vector.load %arg18[%c0_51, %c0_52, %c256] : memref<1x64x1024xf32, #tpu.memory_space<vmem>>, vector<1x64x32xf32>
      %96 = vector.shape_cast %95 : vector<1x64x32xf32> to vector<64x32xf32>
      %97 = vector.shape_cast %94 : vector<64x32xf32> to vector<1x64x32xf32>
      tpu.vector_store %arg18[%c0_51, %c0_52, %c256], %97 {strides = array<i32>} : memref<1x64x1024xf32, #tpu.memory_space<vmem>>, vector<1x64x32xf32>,
      %cst_53 = arith.constant 1.250000e-01 : f32
      %98 = vector.broadcast %cst_53 : f32 to vector<64x32xf32>
      %99 = arith.mulf %23, %98 : vector<64x32xf32>
      %cst_54 = arith.constant 8.750000e-01 : f32
      %100 = vector.broadcast %cst_54 : f32 to vector<64x32xf32>
      %101 = arith.mulf %25, %100 : vector<64x32xf32>
      %102 = arith.addf %99, %101 : vector<64x32xf32>
      %c0_55 = arith.constant 0 : index
      %c0_56 = arith.constant 0 : index
      %c288 = arith.constant 288 : index
      %103 = vector.load %arg18[%c0_55, %c0_56, %c288] : memref<1x64x1024xf32, #tpu.memory_space<vmem>>, vector<1x64x32xf32>
      %104 = vector.shape_cast %103 : vector<1x64x32xf32> to vector<64x32xf32>
      %105 = vector.shape_cast %102 : vector<64x32xf32> to vector<1x64x32xf32>
      tpu.vector_store %arg18[%c0_55, %c0_56, %c288], %105 {strides = array<i32>} : memref<1x64x1024xf32, #tpu.memory_space<vmem>>, vector<1x64x32xf32>,
      %cst_57 = arith.constant 8.750000e-01 : f32
      %106 = vector.broadcast %cst_57 : f32 to vector<64x32xf32>
      %107 = arith.mulf %25, %106 : vector<64x32xf32>
      %cst_58 = arith.constant 1.250000e-01 : f32
      %108 = vector.broadcast %cst_58 : f32 to vector<64x32xf32>
      %109 = arith.mulf %27, %108 : vector<64x32xf32>
      %110 = arith.addf %107, %109 : vector<64x32xf32>
      %c0_59 = arith.constant 0 : index
      %c0_60 = arith.constant 0 : index
      %c320 = arith.constant 320 : index
      %111 = vector.load %arg18[%c0_59, %c0_60, %c320] : memref<1x64x1024xf32, #tpu.memory_space<vmem>>, vector<1x64x32xf32>
      %112 = vector.shape_cast %111 : vector<1x64x32xf32> to vector<64x32xf32>
      %113 = vector.shape_cast %110 : vector<64x32xf32> to vector<1x64x32xf32>
      tpu.vector_store %arg18[%c0_59, %c0_60, %c320], %113 {strides = array<i32>} : memref<1x64x1024xf32, #tpu.memory_space<vmem>>, vector<1x64x32xf32>,
      %cst_61 = arith.constant 6.250000e-01 : f32
      %114 = vector.broadcast %cst_61 : f32 to vector<64x32xf32>
      %115 = arith.mulf %25, %114 : vector<64x32xf32>
      %cst_62 = arith.constant 3.750000e-01 : f32
      %116 = vector.broadcast %cst_62 : f32 to vector<64x32xf32>
      %117 = arith.mulf %27, %116 : vector<64x32xf32>
      %118 = arith.addf %115, %117 : vector<64x32xf32>
      %c0_63 = arith.constant 0 : index
      %c0_64 = arith.constant 0 : index
      %c352 = arith.constant 352 : index
      %119 = vector.load %arg18[%c0_63, %c0_64, %c352] : memref<1x64x1024xf32, #tpu.memory_space<vmem>>, vector<1x64x32xf32>
      %120 = vector.shape_cast %119 : vector<1x64x32xf32> to vector<64x32xf32>
      %121 = vector.shape_cast %118 : vector<64x32xf32> to vector<1x64x32xf32>
      tpu.vector_store %arg18[%c0_63, %c0_64, %c352], %121 {strides = array<i32>} : memref<1x64x1024xf32, #tpu.memory_space<vmem>>, vector<1x64x32xf32>,
      %cst_65 = arith.constant 3.750000e-01 : f32
      %122 = vector.broadcast %cst_65 : f32 to vector<64x32xf32>
      %123 = arith.mulf %25, %122 : vector<64x32xf32>
      %cst_66 = arith.constant 6.250000e-01 : f32
      %124 = vector.broadcast %cst_66 : f32 to vector<64x32xf32>
      %125 = arith.mulf %27, %124 : vector<64x32xf32>
      %126 = arith.addf %123, %125 : vector<64x32xf32>
      %c0_67 = arith.constant 0 : index
      %c0_68 = arith.constant 0 : index
      %c384 = arith.constant 384 : index
      %127 = vector.load %arg18[%c0_67, %c0_68, %c384] : memref<1x64x1024xf32, #tpu.memory_space<vmem>>, vector<1x64x32xf32>
      %128 = vector.shape_cast %127 : vector<1x64x32xf32> to vector<64x32xf32>
      %129 = vector.shape_cast %126 : vector<64x32xf32> to vector<1x64x32xf32>
      tpu.vector_store %arg18[%c0_67, %c0_68, %c384], %129 {strides = array<i32>} : memref<1x64x1024xf32, #tpu.memory_space<vmem>>, vector<1x64x32xf32>,
      %cst_69 = arith.constant 1.250000e-01 : f32
      %130 = vector.broadcast %cst_69 : f32 to vector<64x32xf32>
      %131 = arith.mulf %25, %130 : vector<64x32xf32>
      %cst_70 = arith.constant 8.750000e-01 : f32
      %132 = vector.broadcast %cst_70 : f32 to vector<64x32xf32>
      %133 = arith.mulf %27, %132 : vector<64x32xf32>
      %134 = arith.addf %131, %133 : vector<64x32xf32>
      %c0_71 = arith.constant 0 : index
      %c0_72 = arith.constant 0 : index
      %c416 = arith.constant 416 : index
      %135 = vector.load %arg18[%c0_71, %c0_72, %c416] : memref<1x64x1024xf32, #tpu.memory_space<vmem>>, vector<1x64x32xf32>
      %136 = vector.shape_cast %135 : vector<1x64x32xf32> to vector<64x32xf32>
      %137 = vector.shape_cast %134 : vector<64x32xf32> to vector<1x64x32xf32>
      tpu.vector_store %arg18[%c0_71, %c0_72, %c416], %137 {strides = array<i32>} : memref<1x64x1024xf32, #tpu.memory_space<vmem>>, vector<1x64x32xf32>,
      %cst_73 = arith.constant 8.750000e-01 : f32
      %138 = vector.broadcast %cst_73 : f32 to vector<64x32xf32>
      %139 = arith.mulf %27, %138 : vector<64x32xf32>
      %cst_74 = arith.constant 1.250000e-01 : f32
      %140 = vector.broadcast %cst_74 : f32 to vector<64x32xf32>
      %141 = arith.mulf %29, %140 : vector<64x32xf32>
      %142 = arith.addf %139, %141 : vector<64x32xf32>
      %c0_75 = arith.constant 0 : index
      %c0_76 = arith.constant 0 : index
      %c448 = arith.constant 448 : index
      %143 = vector.load %arg18[%c0_75, %c0_76, %c448] : memref<1x64x1024xf32, #tpu.memory_space<vmem>>, vector<1x64x32xf32>
      %144 = vector.shape_cast %143 : vector<1x64x32xf32> to vector<64x32xf32>
      %145 = vector.shape_cast %142 : vector<64x32xf32> to vector<1x64x32xf32>
      tpu.vector_store %arg18[%c0_75, %c0_76, %c448], %145 {strides = array<i32>} : memref<1x64x1024xf32, #tpu.memory_space<vmem>>, vector<1x64x32xf32>,
      %cst_77 = arith.constant 6.250000e-01 : f32
      %146 = vector.broadcast %cst_77 : f32 to vector<64x32xf32>
      %147 = arith.mulf %27, %146 : vector<64x32xf32>
      %cst_78 = arith.constant 3.750000e-01 : f32
      %148 = vector.broadcast %cst_78 : f32 to vector<64x32xf32>
      %149 = arith.mulf %29, %148 : vector<64x32xf32>
      %150 = arith.addf %147, %149 : vector<64x32xf32>
      %c0_79 = arith.constant 0 : index
      %c0_80 = arith.constant 0 : index
      %c480 = arith.constant 480 : index
      %151 = vector.load %arg18[%c0_79, %c0_80, %c480] : memref<1x64x1024xf32, #tpu.memory_space<vmem>>, vector<1x64x32xf32>
      %152 = vector.shape_cast %151 : vector<1x64x32xf32> to vector<64x32xf32>
      %153 = vector.shape_cast %150 : vector<64x32xf32> to vector<1x64x32xf32>
      tpu.vector_store %arg18[%c0_79, %c0_80, %c480], %153 {strides = array<i32>} : memref<1x64x1024xf32, #tpu.memory_space<vmem>>, vector<1x64x32xf32>,
      %cst_81 = arith.constant 3.750000e-01 : f32
      %154 = vector.broadcast %cst_81 : f32 to vector<64x32xf32>
      %155 = arith.mulf %27, %154 : vector<64x32xf32>
      %cst_82 = arith.constant 6.250000e-01 : f32
      %156 = vector.broadcast %cst_82 : f32 to vector<64x32xf32>
      %157 = arith.mulf %29, %156 : vector<64x32xf32>
      %158 = arith.addf %155, %157 : vector<64x32xf32>
      %c0_83 = arith.constant 0 : index
      %c0_84 = arith.constant 0 : index
      %c512 = arith.constant 512 : index
      %159 = vector.load %arg18[%c0_83, %c0_84, %c512] : memref<1x64x1024xf32, #tpu.memory_space<vmem>>, vector<1x64x32xf32>
      %160 = vector.shape_cast %159 : vector<1x64x32xf32> to vector<64x32xf32>
      %161 = vector.shape_cast %158 : vector<64x32xf32> to vector<1x64x32xf32>
      tpu.vector_store %arg18[%c0_83, %c0_84, %c512], %161 {strides = array<i32>} : memref<1x64x1024xf32, #tpu.memory_space<vmem>>, vector<1x64x32xf32>,
      %cst_85 = arith.constant 1.250000e-01 : f32
      %162 = vector.broadcast %cst_85 : f32 to vector<64x32xf32>
      %163 = arith.mulf %27, %162 : vector<64x32xf32>
      %cst_86 = arith.constant 8.750000e-01 : f32
      %164 = vector.broadcast %cst_86 : f32 to vector<64x32xf32>
      %165 = arith.mulf %29, %164 : vector<64x32xf32>
      %166 = arith.addf %163, %165 : vector<64x32xf32>
      %c0_87 = arith.constant 0 : index
      %c0_88 = arith.constant 0 : index
      %c544 = arith.constant 544 : index
      %167 = vector.load %arg18[%c0_87, %c0_88, %c544] : memref<1x64x1024xf32, #tpu.memory_space<vmem>>, vector<1x64x32xf32>
      %168 = vector.shape_cast %167 : vector<1x64x32xf32> to vector<64x32xf32>
      %169 = vector.shape_cast %166 : vector<64x32xf32> to vector<1x64x32xf32>
      tpu.vector_store %arg18[%c0_87, %c0_88, %c544], %169 {strides = array<i32>} : memref<1x64x1024xf32, #tpu.memory_space<vmem>>, vector<1x64x32xf32>,
      %cst_89 = arith.constant 8.750000e-01 : f32
      %170 = vector.broadcast %cst_89 : f32 to vector<64x32xf32>
      %171 = arith.mulf %29, %170 : vector<64x32xf32>
      %cst_90 = arith.constant 1.250000e-01 : f32
      %172 = vector.broadcast %cst_90 : f32 to vector<64x32xf32>
      %173 = arith.mulf %31, %172 : vector<64x32xf32>
      %174 = arith.addf %171, %173 : vector<64x32xf32>
      %c0_91 = arith.constant 0 : index
      %c0_92 = arith.constant 0 : index
      %c576 = arith.constant 576 : index
      %175 = vector.load %arg18[%c0_91, %c0_92, %c576] : memref<1x64x1024xf32, #tpu.memory_space<vmem>>, vector<1x64x32xf32>
      %176 = vector.shape_cast %175 : vector<1x64x32xf32> to vector<64x32xf32>
      %177 = vector.shape_cast %174 : vector<64x32xf32> to vector<1x64x32xf32>
      tpu.vector_store %arg18[%c0_91, %c0_92, %c576], %177 {strides = array<i32>} : memref<1x64x1024xf32, #tpu.memory_space<vmem>>, vector<1x64x32xf32>,
      %cst_93 = arith.constant 6.250000e-01 : f32
      %178 = vector.broadcast %cst_93 : f32 to vector<64x32xf32>
      %179 = arith.mulf %29, %178 : vector<64x32xf32>
      %cst_94 = arith.constant 3.750000e-01 : f32
      %180 = vector.broadcast %cst_94 : f32 to vector<64x32xf32>
      %181 = arith.mulf %31, %180 : vector<64x32xf32>
      %182 = arith.addf %179, %181 : vector<64x32xf32>
      %c0_95 = arith.constant 0 : index
      %c0_96 = arith.constant 0 : index
      %c608 = arith.constant 608 : index
      %183 = vector.load %arg18[%c0_95, %c0_96, %c608] : memref<1x64x1024xf32, #tpu.memory_space<vmem>>, vector<1x64x32xf32>
      %184 = vector.shape_cast %183 : vector<1x64x32xf32> to vector<64x32xf32>
      %185 = vector.shape_cast %182 : vector<64x32xf32> to vector<1x64x32xf32>
      tpu.vector_store %arg18[%c0_95, %c0_96, %c608], %185 {strides = array<i32>} : memref<1x64x1024xf32, #tpu.memory_space<vmem>>, vector<1x64x32xf32>,
      %cst_97 = arith.constant 3.750000e-01 : f32
      %186 = vector.broadcast %cst_97 : f32 to vector<64x32xf32>
      %187 = arith.mulf %29, %186 : vector<64x32xf32>
      %cst_98 = arith.constant 6.250000e-01 : f32
      %188 = vector.broadcast %cst_98 : f32 to vector<64x32xf32>
      %189 = arith.mulf %31, %188 : vector<64x32xf32>
      %190 = arith.addf %187, %189 : vector<64x32xf32>
      %c0_99 = arith.constant 0 : index
      %c0_100 = arith.constant 0 : index
      %c640 = arith.constant 640 : index
      %191 = vector.load %arg18[%c0_99, %c0_100, %c640] : memref<1x64x1024xf32, #tpu.memory_space<vmem>>, vector<1x64x32xf32>
      %192 = vector.shape_cast %191 : vector<1x64x32xf32> to vector<64x32xf32>
      %193 = vector.shape_cast %190 : vector<64x32xf32> to vector<1x64x32xf32>
      tpu.vector_store %arg18[%c0_99, %c0_100, %c640], %193 {strides = array<i32>} : memref<1x64x1024xf32, #tpu.memory_space<vmem>>, vector<1x64x32xf32>,
      %cst_101 = arith.constant 1.250000e-01 : f32
      %194 = vector.broadcast %cst_101 : f32 to vector<64x32xf32>
      %195 = arith.mulf %29, %194 : vector<64x32xf32>
      %cst_102 = arith.constant 8.750000e-01 : f32
      %196 = vector.broadcast %cst_102 : f32 to vector<64x32xf32>
      %197 = arith.mulf %31, %196 : vector<64x32xf32>
      %198 = arith.addf %195, %197 : vector<64x32xf32>
      %c0_103 = arith.constant 0 : index
      %c0_104 = arith.constant 0 : index
      %c672 = arith.constant 672 : index
      %199 = vector.load %arg18[%c0_103, %c0_104, %c672] : memref<1x64x1024xf32, #tpu.memory_space<vmem>>, vector<1x64x32xf32>
      %200 = vector.shape_cast %199 : vector<1x64x32xf32> to vector<64x32xf32>
      %201 = vector.shape_cast %198 : vector<64x32xf32> to vector<1x64x32xf32>
      tpu.vector_store %arg18[%c0_103, %c0_104, %c672], %201 {strides = array<i32>} : memref<1x64x1024xf32, #tpu.memory_space<vmem>>, vector<1x64x32xf32>,
      %cst_105 = arith.constant 8.750000e-01 : f32
      %202 = vector.broadcast %cst_105 : f32 to vector<64x32xf32>
      %203 = arith.mulf %31, %202 : vector<64x32xf32>
      %cst_106 = arith.constant 1.250000e-01 : f32
      %204 = vector.broadcast %cst_106 : f32 to vector<64x32xf32>
      %205 = arith.mulf %33, %204 : vector<64x32xf32>
      %206 = arith.addf %203, %205 : vector<64x32xf32>
      %c0_107 = arith.constant 0 : index
      %c0_108 = arith.constant 0 : index
      %c704 = arith.constant 704 : index
      %207 = vector.load %arg18[%c0_107, %c0_108, %c704] : memref<1x64x1024xf32, #tpu.memory_space<vmem>>, vector<1x64x32xf32>
      %208 = vector.shape_cast %207 : vector<1x64x32xf32> to vector<64x32xf32>
      %209 = vector.shape_cast %206 : vector<64x32xf32> to vector<1x64x32xf32>
      tpu.vector_store %arg18[%c0_107, %c0_108, %c704], %209 {strides = array<i32>} : memref<1x64x1024xf32, #tpu.memory_space<vmem>>, vector<1x64x32xf32>,
      %cst_109 = arith.constant 6.250000e-01 : f32
      %210 = vector.broadcast %cst_109 : f32 to vector<64x32xf32>
      %211 = arith.mulf %31, %210 : vector<64x32xf32>
      %cst_110 = arith.constant 3.750000e-01 : f32
      %212 = vector.broadcast %cst_110 : f32 to vector<64x32xf32>
      %213 = arith.mulf %33, %212 : vector<64x32xf32>
      %214 = arith.addf %211, %213 : vector<64x32xf32>
      %c0_111 = arith.constant 0 : index
      %c0_112 = arith.constant 0 : index
      %c736 = arith.constant 736 : index
      %215 = vector.load %arg18[%c0_111, %c0_112, %c736] : memref<1x64x1024xf32, #tpu.memory_space<vmem>>, vector<1x64x32xf32>
      %216 = vector.shape_cast %215 : vector<1x64x32xf32> to vector<64x32xf32>
      %217 = vector.shape_cast %214 : vector<64x32xf32> to vector<1x64x32xf32>
      tpu.vector_store %arg18[%c0_111, %c0_112, %c736], %217 {strides = array<i32>} : memref<1x64x1024xf32, #tpu.memory_space<vmem>>, vector<1x64x32xf32>,
      %cst_113 = arith.constant 3.750000e-01 : f32
      %218 = vector.broadcast %cst_113 : f32 to vector<64x32xf32>
      %219 = arith.mulf %31, %218 : vector<64x32xf32>
      %cst_114 = arith.constant 6.250000e-01 : f32
      %220 = vector.broadcast %cst_114 : f32 to vector<64x32xf32>
      %221 = arith.mulf %33, %220 : vector<64x32xf32>
      %222 = arith.addf %219, %221 : vector<64x32xf32>
      %c0_115 = arith.constant 0 : index
      %c0_116 = arith.constant 0 : index
      %c768 = arith.constant 768 : index
      %223 = vector.load %arg18[%c0_115, %c0_116, %c768] : memref<1x64x1024xf32, #tpu.memory_space<vmem>>, vector<1x64x32xf32>
      %224 = vector.shape_cast %223 : vector<1x64x32xf32> to vector<64x32xf32>
      %225 = vector.shape_cast %222 : vector<64x32xf32> to vector<1x64x32xf32>
      tpu.vector_store %arg18[%c0_115, %c0_116, %c768], %225 {strides = array<i32>} : memref<1x64x1024xf32, #tpu.memory_space<vmem>>, vector<1x64x32xf32>,
      %cst_117 = arith.constant 1.250000e-01 : f32
      %226 = vector.broadcast %cst_117 : f32 to vector<64x32xf32>
      %227 = arith.mulf %31, %226 : vector<64x32xf32>
      %cst_118 = arith.constant 8.750000e-01 : f32
      %228 = vector.broadcast %cst_118 : f32 to vector<64x32xf32>
      %229 = arith.mulf %33, %228 : vector<64x32xf32>
      %230 = arith.addf %227, %229 : vector<64x32xf32>
      %c0_119 = arith.constant 0 : index
      %c0_120 = arith.constant 0 : index
      %c800 = arith.constant 800 : index
      %231 = vector.load %arg18[%c0_119, %c0_120, %c800] : memref<1x64x1024xf32, #tpu.memory_space<vmem>>, vector<1x64x32xf32>
      %232 = vector.shape_cast %231 : vector<1x64x32xf32> to vector<64x32xf32>
      %233 = vector.shape_cast %230 : vector<64x32xf32> to vector<1x64x32xf32>
      tpu.vector_store %arg18[%c0_119, %c0_120, %c800], %233 {strides = array<i32>} : memref<1x64x1024xf32, #tpu.memory_space<vmem>>, vector<1x64x32xf32>,
      %cst_121 = arith.constant 8.750000e-01 : f32
      %234 = vector.broadcast %cst_121 : f32 to vector<64x32xf32>
      %235 = arith.mulf %33, %234 : vector<64x32xf32>
      %cst_122 = arith.constant 1.250000e-01 : f32
      %236 = vector.broadcast %cst_122 : f32 to vector<64x32xf32>
      %237 = arith.mulf %35, %236 : vector<64x32xf32>
      %238 = arith.addf %235, %237 : vector<64x32xf32>
      %c0_123 = arith.constant 0 : index
      %c0_124 = arith.constant 0 : index
      %c832 = arith.constant 832 : index
      %239 = vector.load %arg18[%c0_123, %c0_124, %c832] : memref<1x64x1024xf32, #tpu.memory_space<vmem>>, vector<1x64x32xf32>
      %240 = vector.shape_cast %239 : vector<1x64x32xf32> to vector<64x32xf32>
      %241 = vector.shape_cast %238 : vector<64x32xf32> to vector<1x64x32xf32>
      tpu.vector_store %arg18[%c0_123, %c0_124, %c832], %241 {strides = array<i32>} : memref<1x64x1024xf32, #tpu.memory_space<vmem>>, vector<1x64x32xf32>,
      %cst_125 = arith.constant 6.250000e-01 : f32
      %242 = vector.broadcast %cst_125 : f32 to vector<64x32xf32>
      %243 = arith.mulf %33, %242 : vector<64x32xf32>
      %cst_126 = arith.constant 3.750000e-01 : f32
      %244 = vector.broadcast %cst_126 : f32 to vector<64x32xf32>
      %245 = arith.mulf %35, %244 : vector<64x32xf32>
      %246 = arith.addf %243, %245 : vector<64x32xf32>
      %c0_127 = arith.constant 0 : index
      %c0_128 = arith.constant 0 : index
      %c864 = arith.constant 864 : index
      %247 = vector.load %arg18[%c0_127, %c0_128, %c864] : memref<1x64x1024xf32, #tpu.memory_space<vmem>>, vector<1x64x32xf32>
      %248 = vector.shape_cast %247 : vector<1x64x32xf32> to vector<64x32xf32>
      %249 = vector.shape_cast %246 : vector<64x32xf32> to vector<1x64x32xf32>
      tpu.vector_store %arg18[%c0_127, %c0_128, %c864], %249 {strides = array<i32>} : memref<1x64x1024xf32, #tpu.memory_space<vmem>>, vector<1x64x32xf32>,
      %cst_129 = arith.constant 3.750000e-01 : f32
      %250 = vector.broadcast %cst_129 : f32 to vector<64x32xf32>
      %251 = arith.mulf %33, %250 : vector<64x32xf32>
      %cst_130 = arith.constant 6.250000e-01 : f32
      %252 = vector.broadcast %cst_130 : f32 to vector<64x32xf32>
      %253 = arith.mulf %35, %252 : vector<64x32xf32>
      %254 = arith.addf %251, %253 : vector<64x32xf32>
      %c0_131 = arith.constant 0 : index
      %c0_132 = arith.constant 0 : index
      %c896 = arith.constant 896 : index
      %255 = vector.load %arg18[%c0_131, %c0_132, %c896] : memref<1x64x1024xf32, #tpu.memory_space<vmem>>, vector<1x64x32xf32>
      %256 = vector.shape_cast %255 : vector<1x64x32xf32> to vector<64x32xf32>
      %257 = vector.shape_cast %254 : vector<64x32xf32> to vector<1x64x32xf32>
      tpu.vector_store %arg18[%c0_131, %c0_132, %c896], %257 {strides = array<i32>} : memref<1x64x1024xf32, #tpu.memory_space<vmem>>, vector<1x64x32xf32>,
      %cst_133 = arith.constant 1.250000e-01 : f32
      %258 = vector.broadcast %cst_133 : f32 to vector<64x32xf32>
      %259 = arith.mulf %33, %258 : vector<64x32xf32>
      %cst_134 = arith.constant 8.750000e-01 : f32
      %260 = vector.broadcast %cst_134 : f32 to vector<64x32xf32>
      %261 = arith.mulf %35, %260 : vector<64x32xf32>
      %262 = arith.addf %259, %261 : vector<64x32xf32>
      %c0_135 = arith.constant 0 : index
      %c0_136 = arith.constant 0 : index
      %c928 = arith.constant 928 : index
      %263 = vector.load %arg18[%c0_135, %c0_136, %c928] : memref<1x64x1024xf32, #tpu.memory_space<vmem>>, vector<1x64x32xf32>
      %264 = vector.shape_cast %263 : vector<1x64x32xf32> to vector<64x32xf32>
      %265 = vector.shape_cast %262 : vector<64x32xf32> to vector<1x64x32xf32>
      tpu.vector_store %arg18[%c0_135, %c0_136, %c928], %265 {strides = array<i32>} : memref<1x64x1024xf32, #tpu.memory_space<vmem>>, vector<1x64x32xf32>,
      %c0_137 = arith.constant 0 : index
      %c0_138 = arith.constant 0 : index
      %c960 = arith.constant 960 : index
      %266 = vector.load %arg18[%c0_137, %c0_138, %c960] : memref<1x64x1024xf32, #tpu.memory_space<vmem>>, vector<1x64x32xf32>
      %267 = vector.shape_cast %266 : vector<1x64x32xf32> to vector<64x32xf32>
      %268 = vector.shape_cast %35 : vector<64x32xf32> to vector<1x64x32xf32>
      tpu.vector_store %arg18[%c0_137, %c0_138, %c960], %268 {strides = array<i32>} : memref<1x64x1024xf32, #tpu.memory_space<vmem>>, vector<1x64x32xf32>,
      %c0_139 = arith.constant 0 : index
      %c0_140 = arith.constant 0 : index
      %c992 = arith.constant 992 : index
      %269 = vector.load %arg18[%c0_139, %c0_140, %c992] : memref<1x64x1024xf32, #tpu.memory_space<vmem>>, vector<1x64x32xf32>
      %270 = vector.shape_cast %269 : vector<1x64x32xf32> to vector<64x32xf32>
      %271 = vector.shape_cast %35 : vector<64x32xf32> to vector<1x64x32xf32>
      tpu.vector_store %arg18[%c0_139, %c0_140, %c992], %271 {strides = array<i32>} : memref<1x64x1024xf32, #tpu.memory_space<vmem>>, vector<1x64x32xf32>,
    } else {
    }
    %c1_i32 = arith.constant 1 : i32
    %3 = arith.cmpi eq, %arg1, %c1_i32 : i32
    %4 = arith.extui %3 : i1 to i32
    %c0_i32_1 = arith.constant 0 : i32
    %5 = arith.cmpi ne, %4, %c0_i32_1 : i32
    scf.if %5 {
      %c0 = arith.constant 0 : index
      %c0_4 = arith.constant 0 : index
      %c0_5 = arith.constant 0 : index
      %12 = vector.load %arg3[%c0, %c0_4, %c0_5] : memref<1x128x16xf32, #tpu.memory_space<vmem>>, vector<1x128x16xf32>
      %13 = vector.shape_cast %12 : vector<1x128x16xf32> to vector<128x16xf32>
      %c0_6 = arith.constant 0 : index
      %c0_7 = arith.constant 0 : index
      %14 = vector.load %arg7[%c0_6, %c0_7] : memref<64x128xf32, #tpu.memory_space<vmem>>, vector<64x128xf32>
      %cst = arith.constant dense<0.000000e+00> : vector<64x16xf32>
      %15 = tpu.matmul %14, %13, %cst {dimension_numbers = #tpu.dot_dimension_numbers<[1], [0], [0], [1], [0, 0, 1, 1], [], []>} : vector<64x128xf32>, vector<128x16xf32>, vector<64x16xf32> -> vector<64x16xf32>
      %c0_8 = arith.constant 0 : index
      %c0_9 = arith.constant 0 : index
      %16 = vector.load %arg11[%c0_8, %c0_9] : memref<64x1xf32, #tpu.memory_space<vmem>>, vector<64x1xf32>
      %17 = vector.broadcast %16 : vector<64x1xf32> to vector<64x16xf32>
      %18 = arith.addf %15, %17 : vector<64x16xf32>
      %c0_10 = arith.constant 0 : index
      %c0_11 = arith.constant 0 : index
      %19 = vector.load %arg15[%c0_10, %c0_11] : memref<4x32xf32, #tpu.memory_space<vmem>>, vector<4x32xf32>
      %20 = vector.extract_strided_slice %18 {offsets = [0, 0], sizes = [64, 4], strides = [1, 1]} : vector<64x16xf32> to vector<64x4xf32>
      %cst_12 = arith.constant dense<0.000000e+00> : vector<64x32xf32>
      %21 = tpu.matmul %20, %19, %cst_12 {dimension_numbers = #tpu.dot_dimension_numbers<[1], [0], [0], [1], [0, 0, 1, 1], [], []>} : vector<64x4xf32>, vector<4x32xf32>, vector<64x32xf32> -> vector<64x32xf32>
      %22 = vector.extract_strided_slice %18 {offsets = [0, 4], sizes = [64, 4], strides = [1, 1]} : vector<64x16xf32> to vector<64x4xf32>
      %cst_13 = arith.constant dense<0.000000e+00> : vector<64x32xf32>
      %23 = tpu.matmul %22, %19, %cst_13 {dimension_numbers = #tpu.dot_dimension_numbers<[1], [0], [0], [1], [0, 0, 1, 1], [], []>} : vector<64x4xf32>, vector<4x32xf32>, vector<64x32xf32> -> vector<64x32xf32>
      %24 = vector.extract_strided_slice %18 {offsets = [0, 8], sizes = [64, 4], strides = [1, 1]} : vector<64x16xf32> to vector<64x4xf32>
      %cst_14 = arith.constant dense<0.000000e+00> : vector<64x32xf32>
      %25 = tpu.matmul %24, %19, %cst_14 {dimension_numbers = #tpu.dot_dimension_numbers<[1], [0], [0], [1], [0, 0, 1, 1], [], []>} : vector<64x4xf32>, vector<4x32xf32>, vector<64x32xf32> -> vector<64x32xf32>
      %26 = vector.extract_strided_slice %18 {offsets = [0, 12], sizes = [64, 4], strides = [1, 1]} : vector<64x16xf32> to vector<64x4xf32>
      %cst_15 = arith.constant dense<0.000000e+00> : vector<64x32xf32>
      %27 = tpu.matmul %26, %19, %cst_15 {dimension_numbers = #tpu.dot_dimension_numbers<[1], [0], [0], [1], [0, 0, 1, 1], [], []>} : vector<64x4xf32>, vector<4x32xf32>, vector<64x32xf32> -> vector<64x32xf32>
      %c0_16 = arith.constant 0 : index
      %c0_17 = arith.constant 0 : index
      %c0_18 = arith.constant 0 : index
      %28 = vector.load %arg18[%c0_16, %c0_17, %c0_18] : memref<1x64x1024xf32, #tpu.memory_space<vmem>>, vector<1x64x32xf32>
      %29 = vector.shape_cast %28 : vector<1x64x32xf32> to vector<64x32xf32>
      %30 = vector.shape_cast %21 : vector<64x32xf32> to vector<1x64x32xf32>
      tpu.vector_store %arg18[%c0_16, %c0_17, %c0_18], %30 {strides = array<i32>} : memref<1x64x1024xf32, #tpu.memory_space<vmem>>, vector<1x64x32xf32>,
      %c0_19 = arith.constant 0 : index
      %c0_20 = arith.constant 0 : index
      %c32 = arith.constant 32 : index
      %31 = vector.load %arg18[%c0_19, %c0_20, %c32] : memref<1x64x1024xf32, #tpu.memory_space<vmem>>, vector<1x64x32xf32>
      %32 = vector.shape_cast %31 : vector<1x64x32xf32> to vector<64x32xf32>
      %33 = vector.shape_cast %21 : vector<64x32xf32> to vector<1x64x32xf32>
      tpu.vector_store %arg18[%c0_19, %c0_20, %c32], %33 {strides = array<i32>} : memref<1x64x1024xf32, #tpu.memory_space<vmem>>, vector<1x64x32xf32>,
      %c0_21 = arith.constant 0 : index
      %c0_22 = arith.constant 0 : index
      %c64 = arith.constant 64 : index
      %34 = vector.load %arg18[%c0_21, %c0_22, %c64] : memref<1x64x1024xf32, #tpu.memory_space<vmem>>, vector<1x64x32xf32>
      %35 = vector.shape_cast %34 : vector<1x64x32xf32> to vector<64x32xf32>
      %36 = vector.shape_cast %21 : vector<64x32xf32> to vector<1x64x32xf32>
      tpu.vector_store %arg18[%c0_21, %c0_22, %c64], %36 {strides = array<i32>} : memref<1x64x1024xf32, #tpu.memory_space<vmem>>, vector<1x64x32xf32>,
      %c0_23 = arith.constant 0 : index
      %c0_24 = arith.constant 0 : index
      %c96 = arith.constant 96 : index
      %37 = vector.load %arg18[%c0_23, %c0_24, %c96] : memref<1x64x1024xf32, #tpu.memory_space<vmem>>, vector<1x64x32xf32>
      %38 = vector.shape_cast %37 : vector<1x64x32xf32> to vector<64x32xf32>
      %39 = vector.shape_cast %21 : vector<64x32xf32> to vector<1x64x32xf32>
      tpu.vector_store %arg18[%c0_23, %c0_24, %c96], %39 {strides = array<i32>} : memref<1x64x1024xf32, #tpu.memory_space<vmem>>, vector<1x64x32xf32>,
      %cst_25 = arith.constant 9.375000e-01 : f32
      %40 = vector.broadcast %cst_25 : f32 to vector<64x32xf32>
      %41 = arith.mulf %21, %40 : vector<64x32xf32>
      %cst_26 = arith.constant 6.250000e-02 : f32
      %42 = vector.broadcast %cst_26 : f32 to vector<64x32xf32>
      %43 = arith.mulf %23, %42 : vector<64x32xf32>
      %44 = arith.addf %41, %43 : vector<64x32xf32>
      %c0_27 = arith.constant 0 : index
      %c0_28 = arith.constant 0 : index
      %c128 = arith.constant 128 : index
      %45 = vector.load %arg18[%c0_27, %c0_28, %c128] : memref<1x64x1024xf32, #tpu.memory_space<vmem>>, vector<1x64x32xf32>
      %46 = vector.shape_cast %45 : vector<1x64x32xf32> to vector<64x32xf32>
      %47 = vector.shape_cast %44 : vector<64x32xf32> to vector<1x64x32xf32>
      tpu.vector_store %arg18[%c0_27, %c0_28, %c128], %47 {strides = array<i32>} : memref<1x64x1024xf32, #tpu.memory_space<vmem>>, vector<1x64x32xf32>,
      %cst_29 = arith.constant 8.125000e-01 : f32
      %48 = vector.broadcast %cst_29 : f32 to vector<64x32xf32>
      %49 = arith.mulf %21, %48 : vector<64x32xf32>
      %cst_30 = arith.constant 1.875000e-01 : f32
      %50 = vector.broadcast %cst_30 : f32 to vector<64x32xf32>
      %51 = arith.mulf %23, %50 : vector<64x32xf32>
      %52 = arith.addf %49, %51 : vector<64x32xf32>
      %c0_31 = arith.constant 0 : index
      %c0_32 = arith.constant 0 : index
      %c160 = arith.constant 160 : index
      %53 = vector.load %arg18[%c0_31, %c0_32, %c160] : memref<1x64x1024xf32, #tpu.memory_space<vmem>>, vector<1x64x32xf32>
      %54 = vector.shape_cast %53 : vector<1x64x32xf32> to vector<64x32xf32>
      %55 = vector.shape_cast %52 : vector<64x32xf32> to vector<1x64x32xf32>
      tpu.vector_store %arg18[%c0_31, %c0_32, %c160], %55 {strides = array<i32>} : memref<1x64x1024xf32, #tpu.memory_space<vmem>>, vector<1x64x32xf32>,
      %cst_33 = arith.constant 6.875000e-01 : f32
      %56 = vector.broadcast %cst_33 : f32 to vector<64x32xf32>
      %57 = arith.mulf %21, %56 : vector<64x32xf32>
      %cst_34 = arith.constant 3.125000e-01 : f32
      %58 = vector.broadcast %cst_34 : f32 to vector<64x32xf32>
      %59 = arith.mulf %23, %58 : vector<64x32xf32>
      %60 = arith.addf %57, %59 : vector<64x32xf32>
      %c0_35 = arith.constant 0 : index
      %c0_36 = arith.constant 0 : index
      %c192 = arith.constant 192 : index
      %61 = vector.load %arg18[%c0_35, %c0_36, %c192] : memref<1x64x1024xf32, #tpu.memory_space<vmem>>, vector<1x64x32xf32>
      %62 = vector.shape_cast %61 : vector<1x64x32xf32> to vector<64x32xf32>
      %63 = vector.shape_cast %60 : vector<64x32xf32> to vector<1x64x32xf32>
      tpu.vector_store %arg18[%c0_35, %c0_36, %c192], %63 {strides = array<i32>} : memref<1x64x1024xf32, #tpu.memory_space<vmem>>, vector<1x64x32xf32>,
      %cst_37 = arith.constant 5.625000e-01 : f32
      %64 = vector.broadcast %cst_37 : f32 to vector<64x32xf32>
      %65 = arith.mulf %21, %64 : vector<64x32xf32>
      %cst_38 = arith.constant 4.375000e-01 : f32
      %66 = vector.broadcast %cst_38 : f32 to vector<64x32xf32>
      %67 = arith.mulf %23, %66 : vector<64x32xf32>
      %68 = arith.addf %65, %67 : vector<64x32xf32>
      %c0_39 = arith.constant 0 : index
      %c0_40 = arith.constant 0 : index
      %c224 = arith.constant 224 : index
      %69 = vector.load %arg18[%c0_39, %c0_40, %c224] : memref<1x64x1024xf32, #tpu.memory_space<vmem>>, vector<1x64x32xf32>
      %70 = vector.shape_cast %69 : vector<1x64x32xf32> to vector<64x32xf32>
      %71 = vector.shape_cast %68 : vector<64x32xf32> to vector<1x64x32xf32>
      tpu.vector_store %arg18[%c0_39, %c0_40, %c224], %71 {strides = array<i32>} : memref<1x64x1024xf32, #tpu.memory_space<vmem>>, vector<1x64x32xf32>,
      %cst_41 = arith.constant 4.375000e-01 : f32
      %72 = vector.broadcast %cst_41 : f32 to vector<64x32xf32>
      %73 = arith.mulf %21, %72 : vector<64x32xf32>
      %cst_42 = arith.constant 5.625000e-01 : f32
      %74 = vector.broadcast %cst_42 : f32 to vector<64x32xf32>
      %75 = arith.mulf %23, %74 : vector<64x32xf32>
      %76 = arith.addf %73, %75 : vector<64x32xf32>
      %c0_43 = arith.constant 0 : index
      %c0_44 = arith.constant 0 : index
      %c256 = arith.constant 256 : index
      %77 = vector.load %arg18[%c0_43, %c0_44, %c256] : memref<1x64x1024xf32, #tpu.memory_space<vmem>>, vector<1x64x32xf32>
      %78 = vector.shape_cast %77 : vector<1x64x32xf32> to vector<64x32xf32>
      %79 = vector.shape_cast %76 : vector<64x32xf32> to vector<1x64x32xf32>
      tpu.vector_store %arg18[%c0_43, %c0_44, %c256], %79 {strides = array<i32>} : memref<1x64x1024xf32, #tpu.memory_space<vmem>>, vector<1x64x32xf32>,
      %cst_45 = arith.constant 3.125000e-01 : f32
      %80 = vector.broadcast %cst_45 : f32 to vector<64x32xf32>
      %81 = arith.mulf %21, %80 : vector<64x32xf32>
      %cst_46 = arith.constant 6.875000e-01 : f32
      %82 = vector.broadcast %cst_46 : f32 to vector<64x32xf32>
      %83 = arith.mulf %23, %82 : vector<64x32xf32>
      %84 = arith.addf %81, %83 : vector<64x32xf32>
      %c0_47 = arith.constant 0 : index
      %c0_48 = arith.constant 0 : index
      %c288 = arith.constant 288 : index
      %85 = vector.load %arg18[%c0_47, %c0_48, %c288] : memref<1x64x1024xf32, #tpu.memory_space<vmem>>, vector<1x64x32xf32>
      %86 = vector.shape_cast %85 : vector<1x64x32xf32> to vector<64x32xf32>
      %87 = vector.shape_cast %84 : vector<64x32xf32> to vector<1x64x32xf32>
      tpu.vector_store %arg18[%c0_47, %c0_48, %c288], %87 {strides = array<i32>} : memref<1x64x1024xf32, #tpu.memory_space<vmem>>, vector<1x64x32xf32>,
      %cst_49 = arith.constant 1.875000e-01 : f32
      %88 = vector.broadcast %cst_49 : f32 to vector<64x32xf32>
      %89 = arith.mulf %21, %88 : vector<64x32xf32>
      %cst_50 = arith.constant 8.125000e-01 : f32
      %90 = vector.broadcast %cst_50 : f32 to vector<64x32xf32>
      %91 = arith.mulf %23, %90 : vector<64x32xf32>
      %92 = arith.addf %89, %91 : vector<64x32xf32>
      %c0_51 = arith.constant 0 : index
      %c0_52 = arith.constant 0 : index
      %c320 = arith.constant 320 : index
      %93 = vector.load %arg18[%c0_51, %c0_52, %c320] : memref<1x64x1024xf32, #tpu.memory_space<vmem>>, vector<1x64x32xf32>
      %94 = vector.shape_cast %93 : vector<1x64x32xf32> to vector<64x32xf32>
      %95 = vector.shape_cast %92 : vector<64x32xf32> to vector<1x64x32xf32>
      tpu.vector_store %arg18[%c0_51, %c0_52, %c320], %95 {strides = array<i32>} : memref<1x64x1024xf32, #tpu.memory_space<vmem>>, vector<1x64x32xf32>,
      %cst_53 = arith.constant 6.250000e-02 : f32
      %96 = vector.broadcast %cst_53 : f32 to vector<64x32xf32>
      %97 = arith.mulf %21, %96 : vector<64x32xf32>
      %cst_54 = arith.constant 9.375000e-01 : f32
      %98 = vector.broadcast %cst_54 : f32 to vector<64x32xf32>
      %99 = arith.mulf %23, %98 : vector<64x32xf32>
      %100 = arith.addf %97, %99 : vector<64x32xf32>
      %c0_55 = arith.constant 0 : index
      %c0_56 = arith.constant 0 : index
      %c352 = arith.constant 352 : index
      %101 = vector.load %arg18[%c0_55, %c0_56, %c352] : memref<1x64x1024xf32, #tpu.memory_space<vmem>>, vector<1x64x32xf32>
      %102 = vector.shape_cast %101 : vector<1x64x32xf32> to vector<64x32xf32>
      %103 = vector.shape_cast %100 : vector<64x32xf32> to vector<1x64x32xf32>
      tpu.vector_store %arg18[%c0_55, %c0_56, %c352], %103 {strides = array<i32>} : memref<1x64x1024xf32, #tpu.memory_space<vmem>>, vector<1x64x32xf32>,
      %cst_57 = arith.constant 9.375000e-01 : f32
      %104 = vector.broadcast %cst_57 : f32 to vector<64x32xf32>
      %105 = arith.mulf %23, %104 : vector<64x32xf32>
      %cst_58 = arith.constant 6.250000e-02 : f32
      %106 = vector.broadcast %cst_58 : f32 to vector<64x32xf32>
      %107 = arith.mulf %25, %106 : vector<64x32xf32>
      %108 = arith.addf %105, %107 : vector<64x32xf32>
      %c0_59 = arith.constant 0 : index
      %c0_60 = arith.constant 0 : index
      %c384 = arith.constant 384 : index
      %109 = vector.load %arg18[%c0_59, %c0_60, %c384] : memref<1x64x1024xf32, #tpu.memory_space<vmem>>, vector<1x64x32xf32>
      %110 = vector.shape_cast %109 : vector<1x64x32xf32> to vector<64x32xf32>
      %111 = vector.shape_cast %108 : vector<64x32xf32> to vector<1x64x32xf32>
      tpu.vector_store %arg18[%c0_59, %c0_60, %c384], %111 {strides = array<i32>} : memref<1x64x1024xf32, #tpu.memory_space<vmem>>, vector<1x64x32xf32>,
      %cst_61 = arith.constant 8.125000e-01 : f32
      %112 = vector.broadcast %cst_61 : f32 to vector<64x32xf32>
      %113 = arith.mulf %23, %112 : vector<64x32xf32>
      %cst_62 = arith.constant 1.875000e-01 : f32
      %114 = vector.broadcast %cst_62 : f32 to vector<64x32xf32>
      %115 = arith.mulf %25, %114 : vector<64x32xf32>
      %116 = arith.addf %113, %115 : vector<64x32xf32>
      %c0_63 = arith.constant 0 : index
      %c0_64 = arith.constant 0 : index
      %c416 = arith.constant 416 : index
      %117 = vector.load %arg18[%c0_63, %c0_64, %c416] : memref<1x64x1024xf32, #tpu.memory_space<vmem>>, vector<1x64x32xf32>
      %118 = vector.shape_cast %117 : vector<1x64x32xf32> to vector<64x32xf32>
      %119 = vector.shape_cast %116 : vector<64x32xf32> to vector<1x64x32xf32>
      tpu.vector_store %arg18[%c0_63, %c0_64, %c416], %119 {strides = array<i32>} : memref<1x64x1024xf32, #tpu.memory_space<vmem>>, vector<1x64x32xf32>,
      %cst_65 = arith.constant 6.875000e-01 : f32
      %120 = vector.broadcast %cst_65 : f32 to vector<64x32xf32>
      %121 = arith.mulf %23, %120 : vector<64x32xf32>
      %cst_66 = arith.constant 3.125000e-01 : f32
      %122 = vector.broadcast %cst_66 : f32 to vector<64x32xf32>
      %123 = arith.mulf %25, %122 : vector<64x32xf32>
      %124 = arith.addf %121, %123 : vector<64x32xf32>
      %c0_67 = arith.constant 0 : index
      %c0_68 = arith.constant 0 : index
      %c448 = arith.constant 448 : index
      %125 = vector.load %arg18[%c0_67, %c0_68, %c448] : memref<1x64x1024xf32, #tpu.memory_space<vmem>>, vector<1x64x32xf32>
      %126 = vector.shape_cast %125 : vector<1x64x32xf32> to vector<64x32xf32>
      %127 = vector.shape_cast %124 : vector<64x32xf32> to vector<1x64x32xf32>
      tpu.vector_store %arg18[%c0_67, %c0_68, %c448], %127 {strides = array<i32>} : memref<1x64x1024xf32, #tpu.memory_space<vmem>>, vector<1x64x32xf32>,
      %cst_69 = arith.constant 5.625000e-01 : f32
      %128 = vector.broadcast %cst_69 : f32 to vector<64x32xf32>
      %129 = arith.mulf %23, %128 : vector<64x32xf32>
      %cst_70 = arith.constant 4.375000e-01 : f32
      %130 = vector.broadcast %cst_70 : f32 to vector<64x32xf32>
      %131 = arith.mulf %25, %130 : vector<64x32xf32>
      %132 = arith.addf %129, %131 : vector<64x32xf32>
      %c0_71 = arith.constant 0 : index
      %c0_72 = arith.constant 0 : index
      %c480 = arith.constant 480 : index
      %133 = vector.load %arg18[%c0_71, %c0_72, %c480] : memref<1x64x1024xf32, #tpu.memory_space<vmem>>, vector<1x64x32xf32>
      %134 = vector.shape_cast %133 : vector<1x64x32xf32> to vector<64x32xf32>
      %135 = vector.shape_cast %132 : vector<64x32xf32> to vector<1x64x32xf32>
      tpu.vector_store %arg18[%c0_71, %c0_72, %c480], %135 {strides = array<i32>} : memref<1x64x1024xf32, #tpu.memory_space<vmem>>, vector<1x64x32xf32>,
      %cst_73 = arith.constant 4.375000e-01 : f32
      %136 = vector.broadcast %cst_73 : f32 to vector<64x32xf32>
      %137 = arith.mulf %23, %136 : vector<64x32xf32>
      %cst_74 = arith.constant 5.625000e-01 : f32
      %138 = vector.broadcast %cst_74 : f32 to vector<64x32xf32>
      %139 = arith.mulf %25, %138 : vector<64x32xf32>
      %140 = arith.addf %137, %139 : vector<64x32xf32>
      %c0_75 = arith.constant 0 : index
      %c0_76 = arith.constant 0 : index
      %c512 = arith.constant 512 : index
      %141 = vector.load %arg18[%c0_75, %c0_76, %c512] : memref<1x64x1024xf32, #tpu.memory_space<vmem>>, vector<1x64x32xf32>
      %142 = vector.shape_cast %141 : vector<1x64x32xf32> to vector<64x32xf32>
      %143 = vector.shape_cast %140 : vector<64x32xf32> to vector<1x64x32xf32>
      tpu.vector_store %arg18[%c0_75, %c0_76, %c512], %143 {strides = array<i32>} : memref<1x64x1024xf32, #tpu.memory_space<vmem>>, vector<1x64x32xf32>,
      %cst_77 = arith.constant 3.125000e-01 : f32
      %144 = vector.broadcast %cst_77 : f32 to vector<64x32xf32>
      %145 = arith.mulf %23, %144 : vector<64x32xf32>
      %cst_78 = arith.constant 6.875000e-01 : f32
      %146 = vector.broadcast %cst_78 : f32 to vector<64x32xf32>
      %147 = arith.mulf %25, %146 : vector<64x32xf32>
      %148 = arith.addf %145, %147 : vector<64x32xf32>
      %c0_79 = arith.constant 0 : index
      %c0_80 = arith.constant 0 : index
      %c544 = arith.constant 544 : index
      %149 = vector.load %arg18[%c0_79, %c0_80, %c544] : memref<1x64x1024xf32, #tpu.memory_space<vmem>>, vector<1x64x32xf32>
      %150 = vector.shape_cast %149 : vector<1x64x32xf32> to vector<64x32xf32>
      %151 = vector.shape_cast %148 : vector<64x32xf32> to vector<1x64x32xf32>
      tpu.vector_store %arg18[%c0_79, %c0_80, %c544], %151 {strides = array<i32>} : memref<1x64x1024xf32, #tpu.memory_space<vmem>>, vector<1x64x32xf32>,
      %cst_81 = arith.constant 1.875000e-01 : f32
      %152 = vector.broadcast %cst_81 : f32 to vector<64x32xf32>
      %153 = arith.mulf %23, %152 : vector<64x32xf32>
      %cst_82 = arith.constant 8.125000e-01 : f32
      %154 = vector.broadcast %cst_82 : f32 to vector<64x32xf32>
      %155 = arith.mulf %25, %154 : vector<64x32xf32>
      %156 = arith.addf %153, %155 : vector<64x32xf32>
      %c0_83 = arith.constant 0 : index
      %c0_84 = arith.constant 0 : index
      %c576 = arith.constant 576 : index
      %157 = vector.load %arg18[%c0_83, %c0_84, %c576] : memref<1x64x1024xf32, #tpu.memory_space<vmem>>, vector<1x64x32xf32>
      %158 = vector.shape_cast %157 : vector<1x64x32xf32> to vector<64x32xf32>
      %159 = vector.shape_cast %156 : vector<64x32xf32> to vector<1x64x32xf32>
      tpu.vector_store %arg18[%c0_83, %c0_84, %c576], %159 {strides = array<i32>} : memref<1x64x1024xf32, #tpu.memory_space<vmem>>, vector<1x64x32xf32>,
      %cst_85 = arith.constant 6.250000e-02 : f32
      %160 = vector.broadcast %cst_85 : f32 to vector<64x32xf32>
      %161 = arith.mulf %23, %160 : vector<64x32xf32>
      %cst_86 = arith.constant 9.375000e-01 : f32
      %162 = vector.broadcast %cst_86 : f32 to vector<64x32xf32>
      %163 = arith.mulf %25, %162 : vector<64x32xf32>
      %164 = arith.addf %161, %163 : vector<64x32xf32>
      %c0_87 = arith.constant 0 : index
      %c0_88 = arith.constant 0 : index
      %c608 = arith.constant 608 : index
      %165 = vector.load %arg18[%c0_87, %c0_88, %c608] : memref<1x64x1024xf32, #tpu.memory_space<vmem>>, vector<1x64x32xf32>
      %166 = vector.shape_cast %165 : vector<1x64x32xf32> to vector<64x32xf32>
      %167 = vector.shape_cast %164 : vector<64x32xf32> to vector<1x64x32xf32>
      tpu.vector_store %arg18[%c0_87, %c0_88, %c608], %167 {strides = array<i32>} : memref<1x64x1024xf32, #tpu.memory_space<vmem>>, vector<1x64x32xf32>,
      %cst_89 = arith.constant 9.375000e-01 : f32
      %168 = vector.broadcast %cst_89 : f32 to vector<64x32xf32>
      %169 = arith.mulf %25, %168 : vector<64x32xf32>
      %cst_90 = arith.constant 6.250000e-02 : f32
      %170 = vector.broadcast %cst_90 : f32 to vector<64x32xf32>
      %171 = arith.mulf %27, %170 : vector<64x32xf32>
      %172 = arith.addf %169, %171 : vector<64x32xf32>
      %c0_91 = arith.constant 0 : index
      %c0_92 = arith.constant 0 : index
      %c640 = arith.constant 640 : index
      %173 = vector.load %arg18[%c0_91, %c0_92, %c640] : memref<1x64x1024xf32, #tpu.memory_space<vmem>>, vector<1x64x32xf32>
      %174 = vector.shape_cast %173 : vector<1x64x32xf32> to vector<64x32xf32>
      %175 = vector.shape_cast %172 : vector<64x32xf32> to vector<1x64x32xf32>
      tpu.vector_store %arg18[%c0_91, %c0_92, %c640], %175 {strides = array<i32>} : memref<1x64x1024xf32, #tpu.memory_space<vmem>>, vector<1x64x32xf32>,
      %cst_93 = arith.constant 8.125000e-01 : f32
      %176 = vector.broadcast %cst_93 : f32 to vector<64x32xf32>
      %177 = arith.mulf %25, %176 : vector<64x32xf32>
      %cst_94 = arith.constant 1.875000e-01 : f32
      %178 = vector.broadcast %cst_94 : f32 to vector<64x32xf32>
      %179 = arith.mulf %27, %178 : vector<64x32xf32>
      %180 = arith.addf %177, %179 : vector<64x32xf32>
      %c0_95 = arith.constant 0 : index
      %c0_96 = arith.constant 0 : index
      %c672 = arith.constant 672 : index
      %181 = vector.load %arg18[%c0_95, %c0_96, %c672] : memref<1x64x1024xf32, #tpu.memory_space<vmem>>, vector<1x64x32xf32>
      %182 = vector.shape_cast %181 : vector<1x64x32xf32> to vector<64x32xf32>
      %183 = vector.shape_cast %180 : vector<64x32xf32> to vector<1x64x32xf32>
      tpu.vector_store %arg18[%c0_95, %c0_96, %c672], %183 {strides = array<i32>} : memref<1x64x1024xf32, #tpu.memory_space<vmem>>, vector<1x64x32xf32>,
      %cst_97 = arith.constant 6.875000e-01 : f32
      %184 = vector.broadcast %cst_97 : f32 to vector<64x32xf32>
      %185 = arith.mulf %25, %184 : vector<64x32xf32>
      %cst_98 = arith.constant 3.125000e-01 : f32
      %186 = vector.broadcast %cst_98 : f32 to vector<64x32xf32>
      %187 = arith.mulf %27, %186 : vector<64x32xf32>
      %188 = arith.addf %185, %187 : vector<64x32xf32>
      %c0_99 = arith.constant 0 : index
      %c0_100 = arith.constant 0 : index
      %c704 = arith.constant 704 : index
      %189 = vector.load %arg18[%c0_99, %c0_100, %c704] : memref<1x64x1024xf32, #tpu.memory_space<vmem>>, vector<1x64x32xf32>
      %190 = vector.shape_cast %189 : vector<1x64x32xf32> to vector<64x32xf32>
      %191 = vector.shape_cast %188 : vector<64x32xf32> to vector<1x64x32xf32>
      tpu.vector_store %arg18[%c0_99, %c0_100, %c704], %191 {strides = array<i32>} : memref<1x64x1024xf32, #tpu.memory_space<vmem>>, vector<1x64x32xf32>,
      %cst_101 = arith.constant 5.625000e-01 : f32
      %192 = vector.broadcast %cst_101 : f32 to vector<64x32xf32>
      %193 = arith.mulf %25, %192 : vector<64x32xf32>
      %cst_102 = arith.constant 4.375000e-01 : f32
      %194 = vector.broadcast %cst_102 : f32 to vector<64x32xf32>
      %195 = arith.mulf %27, %194 : vector<64x32xf32>
      %196 = arith.addf %193, %195 : vector<64x32xf32>
      %c0_103 = arith.constant 0 : index
      %c0_104 = arith.constant 0 : index
      %c736 = arith.constant 736 : index
      %197 = vector.load %arg18[%c0_103, %c0_104, %c736] : memref<1x64x1024xf32, #tpu.memory_space<vmem>>, vector<1x64x32xf32>
      %198 = vector.shape_cast %197 : vector<1x64x32xf32> to vector<64x32xf32>
      %199 = vector.shape_cast %196 : vector<64x32xf32> to vector<1x64x32xf32>
      tpu.vector_store %arg18[%c0_103, %c0_104, %c736], %199 {strides = array<i32>} : memref<1x64x1024xf32, #tpu.memory_space<vmem>>, vector<1x64x32xf32>,
      %cst_105 = arith.constant 4.375000e-01 : f32
      %200 = vector.broadcast %cst_105 : f32 to vector<64x32xf32>
      %201 = arith.mulf %25, %200 : vector<64x32xf32>
      %cst_106 = arith.constant 5.625000e-01 : f32
      %202 = vector.broadcast %cst_106 : f32 to vector<64x32xf32>
      %203 = arith.mulf %27, %202 : vector<64x32xf32>
      %204 = arith.addf %201, %203 : vector<64x32xf32>
      %c0_107 = arith.constant 0 : index
      %c0_108 = arith.constant 0 : index
      %c768 = arith.constant 768 : index
      %205 = vector.load %arg18[%c0_107, %c0_108, %c768] : memref<1x64x1024xf32, #tpu.memory_space<vmem>>, vector<1x64x32xf32>
      %206 = vector.shape_cast %205 : vector<1x64x32xf32> to vector<64x32xf32>
      %207 = vector.shape_cast %204 : vector<64x32xf32> to vector<1x64x32xf32>
      tpu.vector_store %arg18[%c0_107, %c0_108, %c768], %207 {strides = array<i32>} : memref<1x64x1024xf32, #tpu.memory_space<vmem>>, vector<1x64x32xf32>,
      %cst_109 = arith.constant 3.125000e-01 : f32
      %208 = vector.broadcast %cst_109 : f32 to vector<64x32xf32>
      %209 = arith.mulf %25, %208 : vector<64x32xf32>
      %cst_110 = arith.constant 6.875000e-01 : f32
      %210 = vector.broadcast %cst_110 : f32 to vector<64x32xf32>
      %211 = arith.mulf %27, %210 : vector<64x32xf32>
      %212 = arith.addf %209, %211 : vector<64x32xf32>
      %c0_111 = arith.constant 0 : index
      %c0_112 = arith.constant 0 : index
      %c800 = arith.constant 800 : index
      %213 = vector.load %arg18[%c0_111, %c0_112, %c800] : memref<1x64x1024xf32, #tpu.memory_space<vmem>>, vector<1x64x32xf32>
      %214 = vector.shape_cast %213 : vector<1x64x32xf32> to vector<64x32xf32>
      %215 = vector.shape_cast %212 : vector<64x32xf32> to vector<1x64x32xf32>
      tpu.vector_store %arg18[%c0_111, %c0_112, %c800], %215 {strides = array<i32>} : memref<1x64x1024xf32, #tpu.memory_space<vmem>>, vector<1x64x32xf32>,
      %cst_113 = arith.constant 1.875000e-01 : f32
      %216 = vector.broadcast %cst_113 : f32 to vector<64x32xf32>
      %217 = arith.mulf %25, %216 : vector<64x32xf32>
      %cst_114 = arith.constant 8.125000e-01 : f32
      %218 = vector.broadcast %cst_114 : f32 to vector<64x32xf32>
      %219 = arith.mulf %27, %218 : vector<64x32xf32>
      %220 = arith.addf %217, %219 : vector<64x32xf32>
      %c0_115 = arith.constant 0 : index
      %c0_116 = arith.constant 0 : index
      %c832 = arith.constant 832 : index
      %221 = vector.load %arg18[%c0_115, %c0_116, %c832] : memref<1x64x1024xf32, #tpu.memory_space<vmem>>, vector<1x64x32xf32>
      %222 = vector.shape_cast %221 : vector<1x64x32xf32> to vector<64x32xf32>
      %223 = vector.shape_cast %220 : vector<64x32xf32> to vector<1x64x32xf32>
      tpu.vector_store %arg18[%c0_115, %c0_116, %c832], %223 {strides = array<i32>} : memref<1x64x1024xf32, #tpu.memory_space<vmem>>, vector<1x64x32xf32>,
      %cst_117 = arith.constant 6.250000e-02 : f32
      %224 = vector.broadcast %cst_117 : f32 to vector<64x32xf32>
      %225 = arith.mulf %25, %224 : vector<64x32xf32>
      %cst_118 = arith.constant 9.375000e-01 : f32
      %226 = vector.broadcast %cst_118 : f32 to vector<64x32xf32>
      %227 = arith.mulf %27, %226 : vector<64x32xf32>
      %228 = arith.addf %225, %227 : vector<64x32xf32>
      %c0_119 = arith.constant 0 : index
      %c0_120 = arith.constant 0 : index
      %c864 = arith.constant 864 : index
      %229 = vector.load %arg18[%c0_119, %c0_120, %c864] : memref<1x64x1024xf32, #tpu.memory_space<vmem>>, vector<1x64x32xf32>
      %230 = vector.shape_cast %229 : vector<1x64x32xf32> to vector<64x32xf32>
      %231 = vector.shape_cast %228 : vector<64x32xf32> to vector<1x64x32xf32>
      tpu.vector_store %arg18[%c0_119, %c0_120, %c864], %231 {strides = array<i32>} : memref<1x64x1024xf32, #tpu.memory_space<vmem>>, vector<1x64x32xf32>,
      %c0_121 = arith.constant 0 : index
      %c0_122 = arith.constant 0 : index
      %c896 = arith.constant 896 : index
      %232 = vector.load %arg18[%c0_121, %c0_122, %c896] : memref<1x64x1024xf32, #tpu.memory_space<vmem>>, vector<1x64x32xf32>
      %233 = vector.shape_cast %232 : vector<1x64x32xf32> to vector<64x32xf32>
      %234 = vector.shape_cast %27 : vector<64x32xf32> to vector<1x64x32xf32>
      tpu.vector_store %arg18[%c0_121, %c0_122, %c896], %234 {strides = array<i32>} : memref<1x64x1024xf32, #tpu.memory_space<vmem>>, vector<1x64x32xf32>,
      %c0_123 = arith.constant 0 : index
      %c0_124 = arith.constant 0 : index
      %c928 = arith.constant 928 : index
      %235 = vector.load %arg18[%c0_123, %c0_124, %c928] : memref<1x64x1024xf32, #tpu.memory_space<vmem>>, vector<1x64x32xf32>
      %236 = vector.shape_cast %235 : vector<1x64x32xf32> to vector<64x32xf32>
      %237 = vector.shape_cast %27 : vector<64x32xf32> to vector<1x64x32xf32>
      tpu.vector_store %arg18[%c0_123, %c0_124, %c928], %237 {strides = array<i32>} : memref<1x64x1024xf32, #tpu.memory_space<vmem>>, vector<1x64x32xf32>,
      %c0_125 = arith.constant 0 : index
      %c0_126 = arith.constant 0 : index
      %c960 = arith.constant 960 : index
      %238 = vector.load %arg18[%c0_125, %c0_126, %c960] : memref<1x64x1024xf32, #tpu.memory_space<vmem>>, vector<1x64x32xf32>
      %239 = vector.shape_cast %238 : vector<1x64x32xf32> to vector<64x32xf32>
      %240 = vector.shape_cast %27 : vector<64x32xf32> to vector<1x64x32xf32>
      tpu.vector_store %arg18[%c0_125, %c0_126, %c960], %240 {strides = array<i32>} : memref<1x64x1024xf32, #tpu.memory_space<vmem>>, vector<1x64x32xf32>,
      %c0_127 = arith.constant 0 : index
      %c0_128 = arith.constant 0 : index
      %c992 = arith.constant 992 : index
      %241 = vector.load %arg18[%c0_127, %c0_128, %c992] : memref<1x64x1024xf32, #tpu.memory_space<vmem>>, vector<1x64x32xf32>
      %242 = vector.shape_cast %241 : vector<1x64x32xf32> to vector<64x32xf32>
      %243 = vector.shape_cast %27 : vector<64x32xf32> to vector<1x64x32xf32>
      tpu.vector_store %arg18[%c0_127, %c0_128, %c992], %243 {strides = array<i32>} : memref<1x64x1024xf32, #tpu.memory_space<vmem>>, vector<1x64x32xf32>,
    } else {
    }
    %c2_i32 = arith.constant 2 : i32
    %6 = arith.cmpi eq, %arg1, %c2_i32 : i32
    %7 = arith.extui %6 : i1 to i32
    %c0_i32_2 = arith.constant 0 : i32
    %8 = arith.cmpi ne, %7, %c0_i32_2 : i32
    scf.if %8 {
      %c0 = arith.constant 0 : index
      %c0_4 = arith.constant 0 : index
      %c0_5 = arith.constant 0 : index
      %12 = vector.load %arg4[%c0, %c0_4, %c0_5] : memref<1x256x4xf32, #tpu.memory_space<vmem>>, vector<1x256x4xf32>
      %13 = vector.shape_cast %12 : vector<1x256x4xf32> to vector<256x4xf32>
      %c0_6 = arith.constant 0 : index
      %c0_7 = arith.constant 0 : index
      %14 = vector.load %arg8[%c0_6, %c0_7] : memref<64x256xf32, #tpu.memory_space<vmem>>, vector<64x256xf32>
      %cst = arith.constant dense<0.000000e+00> : vector<64x4xf32>
      %15 = tpu.matmul %14, %13, %cst {dimension_numbers = #tpu.dot_dimension_numbers<[1], [0], [0], [1], [0, 0, 1, 1], [], []>} : vector<64x256xf32>, vector<256x4xf32>, vector<64x4xf32> -> vector<64x4xf32>
      %c0_8 = arith.constant 0 : index
      %c0_9 = arith.constant 0 : index
      %16 = vector.load %arg12[%c0_8, %c0_9] : memref<64x1xf32, #tpu.memory_space<vmem>>, vector<64x1xf32>
      %17 = vector.broadcast %16 : vector<64x1xf32> to vector<64x4xf32>
      %18 = arith.addf %15, %17 : vector<64x4xf32>
      %c0_10 = arith.constant 0 : index
      %c0_11 = arith.constant 0 : index
      %19 = vector.load %arg16[%c0_10, %c0_11] : memref<2x32xf32, #tpu.memory_space<vmem>>, vector<2x32xf32>
      %20 = vector.extract_strided_slice %18 {offsets = [0, 0], sizes = [64, 2], strides = [1, 1]} : vector<64x4xf32> to vector<64x2xf32>
      %cst_12 = arith.constant dense<0.000000e+00> : vector<64x32xf32>
      %21 = tpu.matmul %20, %19, %cst_12 {dimension_numbers = #tpu.dot_dimension_numbers<[1], [0], [0], [1], [0, 0, 1, 1], [], []>} : vector<64x2xf32>, vector<2x32xf32>, vector<64x32xf32> -> vector<64x32xf32>
      %22 = vector.extract_strided_slice %18 {offsets = [0, 2], sizes = [64, 2], strides = [1, 1]} : vector<64x4xf32> to vector<64x2xf32>
      %cst_13 = arith.constant dense<0.000000e+00> : vector<64x32xf32>
      %23 = tpu.matmul %22, %19, %cst_13 {dimension_numbers = #tpu.dot_dimension_numbers<[1], [0], [0], [1], [0, 0, 1, 1], [], []>} : vector<64x2xf32>, vector<2x32xf32>, vector<64x32xf32> -> vector<64x32xf32>
      %c0_14 = arith.constant 0 : index
      %c0_15 = arith.constant 0 : index
      %c0_16 = arith.constant 0 : index
      %24 = vector.load %arg18[%c0_14, %c0_15, %c0_16] : memref<1x64x1024xf32, #tpu.memory_space<vmem>>, vector<1x64x32xf32>
      %25 = vector.shape_cast %24 : vector<1x64x32xf32> to vector<64x32xf32>
      %26 = vector.shape_cast %21 : vector<64x32xf32> to vector<1x64x32xf32>
      tpu.vector_store %arg18[%c0_14, %c0_15, %c0_16], %26 {strides = array<i32>} : memref<1x64x1024xf32, #tpu.memory_space<vmem>>, vector<1x64x32xf32>,
      %c0_17 = arith.constant 0 : index
      %c0_18 = arith.constant 0 : index
      %c32 = arith.constant 32 : index
      %27 = vector.load %arg18[%c0_17, %c0_18, %c32] : memref<1x64x1024xf32, #tpu.memory_space<vmem>>, vector<1x64x32xf32>
      %28 = vector.shape_cast %27 : vector<1x64x32xf32> to vector<64x32xf32>
      %29 = vector.shape_cast %21 : vector<64x32xf32> to vector<1x64x32xf32>
      tpu.vector_store %arg18[%c0_17, %c0_18, %c32], %29 {strides = array<i32>} : memref<1x64x1024xf32, #tpu.memory_space<vmem>>, vector<1x64x32xf32>,
      %c0_19 = arith.constant 0 : index
      %c0_20 = arith.constant 0 : index
      %c64 = arith.constant 64 : index
      %30 = vector.load %arg18[%c0_19, %c0_20, %c64] : memref<1x64x1024xf32, #tpu.memory_space<vmem>>, vector<1x64x32xf32>
      %31 = vector.shape_cast %30 : vector<1x64x32xf32> to vector<64x32xf32>
      %32 = vector.shape_cast %21 : vector<64x32xf32> to vector<1x64x32xf32>
      tpu.vector_store %arg18[%c0_19, %c0_20, %c64], %32 {strides = array<i32>} : memref<1x64x1024xf32, #tpu.memory_space<vmem>>, vector<1x64x32xf32>,
      %c0_21 = arith.constant 0 : index
      %c0_22 = arith.constant 0 : index
      %c96 = arith.constant 96 : index
      %33 = vector.load %arg18[%c0_21, %c0_22, %c96] : memref<1x64x1024xf32, #tpu.memory_space<vmem>>, vector<1x64x32xf32>
      %34 = vector.shape_cast %33 : vector<1x64x32xf32> to vector<64x32xf32>
      %35 = vector.shape_cast %21 : vector<64x32xf32> to vector<1x64x32xf32>
      tpu.vector_store %arg18[%c0_21, %c0_22, %c96], %35 {strides = array<i32>} : memref<1x64x1024xf32, #tpu.memory_space<vmem>>, vector<1x64x32xf32>,
      %c0_23 = arith.constant 0 : index
      %c0_24 = arith.constant 0 : index
      %c128 = arith.constant 128 : index
      %36 = vector.load %arg18[%c0_23, %c0_24, %c128] : memref<1x64x1024xf32, #tpu.memory_space<vmem>>, vector<1x64x32xf32>
      %37 = vector.shape_cast %36 : vector<1x64x32xf32> to vector<64x32xf32>
      %38 = vector.shape_cast %21 : vector<64x32xf32> to vector<1x64x32xf32>
      tpu.vector_store %arg18[%c0_23, %c0_24, %c128], %38 {strides = array<i32>} : memref<1x64x1024xf32, #tpu.memory_space<vmem>>, vector<1x64x32xf32>,
      %c0_25 = arith.constant 0 : index
      %c0_26 = arith.constant 0 : index
      %c160 = arith.constant 160 : index
      %39 = vector.load %arg18[%c0_25, %c0_26, %c160] : memref<1x64x1024xf32, #tpu.memory_space<vmem>>, vector<1x64x32xf32>
      %40 = vector.shape_cast %39 : vector<1x64x32xf32> to vector<64x32xf32>
      %41 = vector.shape_cast %21 : vector<64x32xf32> to vector<1x64x32xf32>
      tpu.vector_store %arg18[%c0_25, %c0_26, %c160], %41 {strides = array<i32>} : memref<1x64x1024xf32, #tpu.memory_space<vmem>>, vector<1x64x32xf32>,
      %c0_27 = arith.constant 0 : index
      %c0_28 = arith.constant 0 : index
      %c192 = arith.constant 192 : index
      %42 = vector.load %arg18[%c0_27, %c0_28, %c192] : memref<1x64x1024xf32, #tpu.memory_space<vmem>>, vector<1x64x32xf32>
      %43 = vector.shape_cast %42 : vector<1x64x32xf32> to vector<64x32xf32>
      %44 = vector.shape_cast %21 : vector<64x32xf32> to vector<1x64x32xf32>
      tpu.vector_store %arg18[%c0_27, %c0_28, %c192], %44 {strides = array<i32>} : memref<1x64x1024xf32, #tpu.memory_space<vmem>>, vector<1x64x32xf32>,
      %c0_29 = arith.constant 0 : index
      %c0_30 = arith.constant 0 : index
      %c224 = arith.constant 224 : index
      %45 = vector.load %arg18[%c0_29, %c0_30, %c224] : memref<1x64x1024xf32, #tpu.memory_space<vmem>>, vector<1x64x32xf32>
      %46 = vector.shape_cast %45 : vector<1x64x32xf32> to vector<64x32xf32>
      %47 = vector.shape_cast %21 : vector<64x32xf32> to vector<1x64x32xf32>
      tpu.vector_store %arg18[%c0_29, %c0_30, %c224], %47 {strides = array<i32>} : memref<1x64x1024xf32, #tpu.memory_space<vmem>>, vector<1x64x32xf32>,
      %cst_31 = arith.constant 9.687500e-01 : f32
      %48 = vector.broadcast %cst_31 : f32 to vector<64x32xf32>
      %49 = arith.mulf %21, %48 : vector<64x32xf32>
      %cst_32 = arith.constant 3.125000e-02 : f32
      %50 = vector.broadcast %cst_32 : f32 to vector<64x32xf32>
      %51 = arith.mulf %23, %50 : vector<64x32xf32>
      %52 = arith.addf %49, %51 : vector<64x32xf32>
      %c0_33 = arith.constant 0 : index
      %c0_34 = arith.constant 0 : index
      %c256 = arith.constant 256 : index
      %53 = vector.load %arg18[%c0_33, %c0_34, %c256] : memref<1x64x1024xf32, #tpu.memory_space<vmem>>, vector<1x64x32xf32>
      %54 = vector.shape_cast %53 : vector<1x64x32xf32> to vector<64x32xf32>
      %55 = vector.shape_cast %52 : vector<64x32xf32> to vector<1x64x32xf32>
      tpu.vector_store %arg18[%c0_33, %c0_34, %c256], %55 {strides = array<i32>} : memref<1x64x1024xf32, #tpu.memory_space<vmem>>, vector<1x64x32xf32>,
      %cst_35 = arith.constant 9.062500e-01 : f32
      %56 = vector.broadcast %cst_35 : f32 to vector<64x32xf32>
      %57 = arith.mulf %21, %56 : vector<64x32xf32>
      %cst_36 = arith.constant 9.375000e-02 : f32
      %58 = vector.broadcast %cst_36 : f32 to vector<64x32xf32>
      %59 = arith.mulf %23, %58 : vector<64x32xf32>
      %60 = arith.addf %57, %59 : vector<64x32xf32>
      %c0_37 = arith.constant 0 : index
      %c0_38 = arith.constant 0 : index
      %c288 = arith.constant 288 : index
      %61 = vector.load %arg18[%c0_37, %c0_38, %c288] : memref<1x64x1024xf32, #tpu.memory_space<vmem>>, vector<1x64x32xf32>
      %62 = vector.shape_cast %61 : vector<1x64x32xf32> to vector<64x32xf32>
      %63 = vector.shape_cast %60 : vector<64x32xf32> to vector<1x64x32xf32>
      tpu.vector_store %arg18[%c0_37, %c0_38, %c288], %63 {strides = array<i32>} : memref<1x64x1024xf32, #tpu.memory_space<vmem>>, vector<1x64x32xf32>,
      %cst_39 = arith.constant 8.437500e-01 : f32
      %64 = vector.broadcast %cst_39 : f32 to vector<64x32xf32>
      %65 = arith.mulf %21, %64 : vector<64x32xf32>
      %cst_40 = arith.constant 1.562500e-01 : f32
      %66 = vector.broadcast %cst_40 : f32 to vector<64x32xf32>
      %67 = arith.mulf %23, %66 : vector<64x32xf32>
      %68 = arith.addf %65, %67 : vector<64x32xf32>
      %c0_41 = arith.constant 0 : index
      %c0_42 = arith.constant 0 : index
      %c320 = arith.constant 320 : index
      %69 = vector.load %arg18[%c0_41, %c0_42, %c320] : memref<1x64x1024xf32, #tpu.memory_space<vmem>>, vector<1x64x32xf32>
      %70 = vector.shape_cast %69 : vector<1x64x32xf32> to vector<64x32xf32>
      %71 = vector.shape_cast %68 : vector<64x32xf32> to vector<1x64x32xf32>
      tpu.vector_store %arg18[%c0_41, %c0_42, %c320], %71 {strides = array<i32>} : memref<1x64x1024xf32, #tpu.memory_space<vmem>>, vector<1x64x32xf32>,
      %cst_43 = arith.constant 7.812500e-01 : f32
      %72 = vector.broadcast %cst_43 : f32 to vector<64x32xf32>
      %73 = arith.mulf %21, %72 : vector<64x32xf32>
      %cst_44 = arith.constant 2.187500e-01 : f32
      %74 = vector.broadcast %cst_44 : f32 to vector<64x32xf32>
      %75 = arith.mulf %23, %74 : vector<64x32xf32>
      %76 = arith.addf %73, %75 : vector<64x32xf32>
      %c0_45 = arith.constant 0 : index
      %c0_46 = arith.constant 0 : index
      %c352 = arith.constant 352 : index
      %77 = vector.load %arg18[%c0_45, %c0_46, %c352] : memref<1x64x1024xf32, #tpu.memory_space<vmem>>, vector<1x64x32xf32>
      %78 = vector.shape_cast %77 : vector<1x64x32xf32> to vector<64x32xf32>
      %79 = vector.shape_cast %76 : vector<64x32xf32> to vector<1x64x32xf32>
      tpu.vector_store %arg18[%c0_45, %c0_46, %c352], %79 {strides = array<i32>} : memref<1x64x1024xf32, #tpu.memory_space<vmem>>, vector<1x64x32xf32>,
      %cst_47 = arith.constant 7.187500e-01 : f32
      %80 = vector.broadcast %cst_47 : f32 to vector<64x32xf32>
      %81 = arith.mulf %21, %80 : vector<64x32xf32>
      %cst_48 = arith.constant 2.812500e-01 : f32
      %82 = vector.broadcast %cst_48 : f32 to vector<64x32xf32>
      %83 = arith.mulf %23, %82 : vector<64x32xf32>
      %84 = arith.addf %81, %83 : vector<64x32xf32>
      %c0_49 = arith.constant 0 : index
      %c0_50 = arith.constant 0 : index
      %c384 = arith.constant 384 : index
      %85 = vector.load %arg18[%c0_49, %c0_50, %c384] : memref<1x64x1024xf32, #tpu.memory_space<vmem>>, vector<1x64x32xf32>
      %86 = vector.shape_cast %85 : vector<1x64x32xf32> to vector<64x32xf32>
      %87 = vector.shape_cast %84 : vector<64x32xf32> to vector<1x64x32xf32>
      tpu.vector_store %arg18[%c0_49, %c0_50, %c384], %87 {strides = array<i32>} : memref<1x64x1024xf32, #tpu.memory_space<vmem>>, vector<1x64x32xf32>,
      %cst_51 = arith.constant 6.562500e-01 : f32
      %88 = vector.broadcast %cst_51 : f32 to vector<64x32xf32>
      %89 = arith.mulf %21, %88 : vector<64x32xf32>
      %cst_52 = arith.constant 3.437500e-01 : f32
      %90 = vector.broadcast %cst_52 : f32 to vector<64x32xf32>
      %91 = arith.mulf %23, %90 : vector<64x32xf32>
      %92 = arith.addf %89, %91 : vector<64x32xf32>
      %c0_53 = arith.constant 0 : index
      %c0_54 = arith.constant 0 : index
      %c416 = arith.constant 416 : index
      %93 = vector.load %arg18[%c0_53, %c0_54, %c416] : memref<1x64x1024xf32, #tpu.memory_space<vmem>>, vector<1x64x32xf32>
      %94 = vector.shape_cast %93 : vector<1x64x32xf32> to vector<64x32xf32>
      %95 = vector.shape_cast %92 : vector<64x32xf32> to vector<1x64x32xf32>
      tpu.vector_store %arg18[%c0_53, %c0_54, %c416], %95 {strides = array<i32>} : memref<1x64x1024xf32, #tpu.memory_space<vmem>>, vector<1x64x32xf32>,
      %cst_55 = arith.constant 5.937500e-01 : f32
      %96 = vector.broadcast %cst_55 : f32 to vector<64x32xf32>
      %97 = arith.mulf %21, %96 : vector<64x32xf32>
      %cst_56 = arith.constant 4.062500e-01 : f32
      %98 = vector.broadcast %cst_56 : f32 to vector<64x32xf32>
      %99 = arith.mulf %23, %98 : vector<64x32xf32>
      %100 = arith.addf %97, %99 : vector<64x32xf32>
      %c0_57 = arith.constant 0 : index
      %c0_58 = arith.constant 0 : index
      %c448 = arith.constant 448 : index
      %101 = vector.load %arg18[%c0_57, %c0_58, %c448] : memref<1x64x1024xf32, #tpu.memory_space<vmem>>, vector<1x64x32xf32>
      %102 = vector.shape_cast %101 : vector<1x64x32xf32> to vector<64x32xf32>
      %103 = vector.shape_cast %100 : vector<64x32xf32> to vector<1x64x32xf32>
      tpu.vector_store %arg18[%c0_57, %c0_58, %c448], %103 {strides = array<i32>} : memref<1x64x1024xf32, #tpu.memory_space<vmem>>, vector<1x64x32xf32>,
      %cst_59 = arith.constant 5.312500e-01 : f32
      %104 = vector.broadcast %cst_59 : f32 to vector<64x32xf32>
      %105 = arith.mulf %21, %104 : vector<64x32xf32>
      %cst_60 = arith.constant 4.687500e-01 : f32
      %106 = vector.broadcast %cst_60 : f32 to vector<64x32xf32>
      %107 = arith.mulf %23, %106 : vector<64x32xf32>
      %108 = arith.addf %105, %107 : vector<64x32xf32>
      %c0_61 = arith.constant 0 : index
      %c0_62 = arith.constant 0 : index
      %c480 = arith.constant 480 : index
      %109 = vector.load %arg18[%c0_61, %c0_62, %c480] : memref<1x64x1024xf32, #tpu.memory_space<vmem>>, vector<1x64x32xf32>
      %110 = vector.shape_cast %109 : vector<1x64x32xf32> to vector<64x32xf32>
      %111 = vector.shape_cast %108 : vector<64x32xf32> to vector<1x64x32xf32>
      tpu.vector_store %arg18[%c0_61, %c0_62, %c480], %111 {strides = array<i32>} : memref<1x64x1024xf32, #tpu.memory_space<vmem>>, vector<1x64x32xf32>,
      %cst_63 = arith.constant 4.687500e-01 : f32
      %112 = vector.broadcast %cst_63 : f32 to vector<64x32xf32>
      %113 = arith.mulf %21, %112 : vector<64x32xf32>
      %cst_64 = arith.constant 5.312500e-01 : f32
      %114 = vector.broadcast %cst_64 : f32 to vector<64x32xf32>
      %115 = arith.mulf %23, %114 : vector<64x32xf32>
      %116 = arith.addf %113, %115 : vector<64x32xf32>
      %c0_65 = arith.constant 0 : index
      %c0_66 = arith.constant 0 : index
      %c512 = arith.constant 512 : index
      %117 = vector.load %arg18[%c0_65, %c0_66, %c512] : memref<1x64x1024xf32, #tpu.memory_space<vmem>>, vector<1x64x32xf32>
      %118 = vector.shape_cast %117 : vector<1x64x32xf32> to vector<64x32xf32>
      %119 = vector.shape_cast %116 : vector<64x32xf32> to vector<1x64x32xf32>
      tpu.vector_store %arg18[%c0_65, %c0_66, %c512], %119 {strides = array<i32>} : memref<1x64x1024xf32, #tpu.memory_space<vmem>>, vector<1x64x32xf32>,
      %cst_67 = arith.constant 4.062500e-01 : f32
      %120 = vector.broadcast %cst_67 : f32 to vector<64x32xf32>
      %121 = arith.mulf %21, %120 : vector<64x32xf32>
      %cst_68 = arith.constant 5.937500e-01 : f32
      %122 = vector.broadcast %cst_68 : f32 to vector<64x32xf32>
      %123 = arith.mulf %23, %122 : vector<64x32xf32>
      %124 = arith.addf %121, %123 : vector<64x32xf32>
      %c0_69 = arith.constant 0 : index
      %c0_70 = arith.constant 0 : index
      %c544 = arith.constant 544 : index
      %125 = vector.load %arg18[%c0_69, %c0_70, %c544] : memref<1x64x1024xf32, #tpu.memory_space<vmem>>, vector<1x64x32xf32>
      %126 = vector.shape_cast %125 : vector<1x64x32xf32> to vector<64x32xf32>
      %127 = vector.shape_cast %124 : vector<64x32xf32> to vector<1x64x32xf32>
      tpu.vector_store %arg18[%c0_69, %c0_70, %c544], %127 {strides = array<i32>} : memref<1x64x1024xf32, #tpu.memory_space<vmem>>, vector<1x64x32xf32>,
      %cst_71 = arith.constant 3.437500e-01 : f32
      %128 = vector.broadcast %cst_71 : f32 to vector<64x32xf32>
      %129 = arith.mulf %21, %128 : vector<64x32xf32>
      %cst_72 = arith.constant 6.562500e-01 : f32
      %130 = vector.broadcast %cst_72 : f32 to vector<64x32xf32>
      %131 = arith.mulf %23, %130 : vector<64x32xf32>
      %132 = arith.addf %129, %131 : vector<64x32xf32>
      %c0_73 = arith.constant 0 : index
      %c0_74 = arith.constant 0 : index
      %c576 = arith.constant 576 : index
      %133 = vector.load %arg18[%c0_73, %c0_74, %c576] : memref<1x64x1024xf32, #tpu.memory_space<vmem>>, vector<1x64x32xf32>
      %134 = vector.shape_cast %133 : vector<1x64x32xf32> to vector<64x32xf32>
      %135 = vector.shape_cast %132 : vector<64x32xf32> to vector<1x64x32xf32>
      tpu.vector_store %arg18[%c0_73, %c0_74, %c576], %135 {strides = array<i32>} : memref<1x64x1024xf32, #tpu.memory_space<vmem>>, vector<1x64x32xf32>,
      %cst_75 = arith.constant 2.812500e-01 : f32
      %136 = vector.broadcast %cst_75 : f32 to vector<64x32xf32>
      %137 = arith.mulf %21, %136 : vector<64x32xf32>
      %cst_76 = arith.constant 7.187500e-01 : f32
      %138 = vector.broadcast %cst_76 : f32 to vector<64x32xf32>
      %139 = arith.mulf %23, %138 : vector<64x32xf32>
      %140 = arith.addf %137, %139 : vector<64x32xf32>
      %c0_77 = arith.constant 0 : index
      %c0_78 = arith.constant 0 : index
      %c608 = arith.constant 608 : index
      %141 = vector.load %arg18[%c0_77, %c0_78, %c608] : memref<1x64x1024xf32, #tpu.memory_space<vmem>>, vector<1x64x32xf32>
      %142 = vector.shape_cast %141 : vector<1x64x32xf32> to vector<64x32xf32>
      %143 = vector.shape_cast %140 : vector<64x32xf32> to vector<1x64x32xf32>
      tpu.vector_store %arg18[%c0_77, %c0_78, %c608], %143 {strides = array<i32>} : memref<1x64x1024xf32, #tpu.memory_space<vmem>>, vector<1x64x32xf32>,
      %cst_79 = arith.constant 2.187500e-01 : f32
      %144 = vector.broadcast %cst_79 : f32 to vector<64x32xf32>
      %145 = arith.mulf %21, %144 : vector<64x32xf32>
      %cst_80 = arith.constant 7.812500e-01 : f32
      %146 = vector.broadcast %cst_80 : f32 to vector<64x32xf32>
      %147 = arith.mulf %23, %146 : vector<64x32xf32>
      %148 = arith.addf %145, %147 : vector<64x32xf32>
      %c0_81 = arith.constant 0 : index
      %c0_82 = arith.constant 0 : index
      %c640 = arith.constant 640 : index
      %149 = vector.load %arg18[%c0_81, %c0_82, %c640] : memref<1x64x1024xf32, #tpu.memory_space<vmem>>, vector<1x64x32xf32>
      %150 = vector.shape_cast %149 : vector<1x64x32xf32> to vector<64x32xf32>
      %151 = vector.shape_cast %148 : vector<64x32xf32> to vector<1x64x32xf32>
      tpu.vector_store %arg18[%c0_81, %c0_82, %c640], %151 {strides = array<i32>} : memref<1x64x1024xf32, #tpu.memory_space<vmem>>, vector<1x64x32xf32>,
      %cst_83 = arith.constant 1.562500e-01 : f32
      %152 = vector.broadcast %cst_83 : f32 to vector<64x32xf32>
      %153 = arith.mulf %21, %152 : vector<64x32xf32>
      %cst_84 = arith.constant 8.437500e-01 : f32
      %154 = vector.broadcast %cst_84 : f32 to vector<64x32xf32>
      %155 = arith.mulf %23, %154 : vector<64x32xf32>
      %156 = arith.addf %153, %155 : vector<64x32xf32>
      %c0_85 = arith.constant 0 : index
      %c0_86 = arith.constant 0 : index
      %c672 = arith.constant 672 : index
      %157 = vector.load %arg18[%c0_85, %c0_86, %c672] : memref<1x64x1024xf32, #tpu.memory_space<vmem>>, vector<1x64x32xf32>
      %158 = vector.shape_cast %157 : vector<1x64x32xf32> to vector<64x32xf32>
      %159 = vector.shape_cast %156 : vector<64x32xf32> to vector<1x64x32xf32>
      tpu.vector_store %arg18[%c0_85, %c0_86, %c672], %159 {strides = array<i32>} : memref<1x64x1024xf32, #tpu.memory_space<vmem>>, vector<1x64x32xf32>,
      %cst_87 = arith.constant 9.375000e-02 : f32
      %160 = vector.broadcast %cst_87 : f32 to vector<64x32xf32>
      %161 = arith.mulf %21, %160 : vector<64x32xf32>
      %cst_88 = arith.constant 9.062500e-01 : f32
      %162 = vector.broadcast %cst_88 : f32 to vector<64x32xf32>
      %163 = arith.mulf %23, %162 : vector<64x32xf32>
      %164 = arith.addf %161, %163 : vector<64x32xf32>
      %c0_89 = arith.constant 0 : index
      %c0_90 = arith.constant 0 : index
      %c704 = arith.constant 704 : index
      %165 = vector.load %arg18[%c0_89, %c0_90, %c704] : memref<1x64x1024xf32, #tpu.memory_space<vmem>>, vector<1x64x32xf32>
      %166 = vector.shape_cast %165 : vector<1x64x32xf32> to vector<64x32xf32>
      %167 = vector.shape_cast %164 : vector<64x32xf32> to vector<1x64x32xf32>
      tpu.vector_store %arg18[%c0_89, %c0_90, %c704], %167 {strides = array<i32>} : memref<1x64x1024xf32, #tpu.memory_space<vmem>>, vector<1x64x32xf32>,
      %cst_91 = arith.constant 3.125000e-02 : f32
      %168 = vector.broadcast %cst_91 : f32 to vector<64x32xf32>
      %169 = arith.mulf %21, %168 : vector<64x32xf32>
      %cst_92 = arith.constant 9.687500e-01 : f32
      %170 = vector.broadcast %cst_92 : f32 to vector<64x32xf32>
      %171 = arith.mulf %23, %170 : vector<64x32xf32>
      %172 = arith.addf %169, %171 : vector<64x32xf32>
      %c0_93 = arith.constant 0 : index
      %c0_94 = arith.constant 0 : index
      %c736 = arith.constant 736 : index
      %173 = vector.load %arg18[%c0_93, %c0_94, %c736] : memref<1x64x1024xf32, #tpu.memory_space<vmem>>, vector<1x64x32xf32>
      %174 = vector.shape_cast %173 : vector<1x64x32xf32> to vector<64x32xf32>
      %175 = vector.shape_cast %172 : vector<64x32xf32> to vector<1x64x32xf32>
      tpu.vector_store %arg18[%c0_93, %c0_94, %c736], %175 {strides = array<i32>} : memref<1x64x1024xf32, #tpu.memory_space<vmem>>, vector<1x64x32xf32>,
      %c0_95 = arith.constant 0 : index
      %c0_96 = arith.constant 0 : index
      %c768 = arith.constant 768 : index
      %176 = vector.load %arg18[%c0_95, %c0_96, %c768] : memref<1x64x1024xf32, #tpu.memory_space<vmem>>, vector<1x64x32xf32>
      %177 = vector.shape_cast %176 : vector<1x64x32xf32> to vector<64x32xf32>
      %178 = vector.shape_cast %23 : vector<64x32xf32> to vector<1x64x32xf32>
      tpu.vector_store %arg18[%c0_95, %c0_96, %c768], %178 {strides = array<i32>} : memref<1x64x1024xf32, #tpu.memory_space<vmem>>, vector<1x64x32xf32>,
      %c0_97 = arith.constant 0 : index
      %c0_98 = arith.constant 0 : index
      %c800 = arith.constant 800 : index
      %179 = vector.load %arg18[%c0_97, %c0_98, %c800] : memref<1x64x1024xf32, #tpu.memory_space<vmem>>, vector<1x64x32xf32>
      %180 = vector.shape_cast %179 : vector<1x64x32xf32> to vector<64x32xf32>
      %181 = vector.shape_cast %23 : vector<64x32xf32> to vector<1x64x32xf32>
      tpu.vector_store %arg18[%c0_97, %c0_98, %c800], %181 {strides = array<i32>} : memref<1x64x1024xf32, #tpu.memory_space<vmem>>, vector<1x64x32xf32>,
      %c0_99 = arith.constant 0 : index
      %c0_100 = arith.constant 0 : index
      %c832 = arith.constant 832 : index
      %182 = vector.load %arg18[%c0_99, %c0_100, %c832] : memref<1x64x1024xf32, #tpu.memory_space<vmem>>, vector<1x64x32xf32>
      %183 = vector.shape_cast %182 : vector<1x64x32xf32> to vector<64x32xf32>
      %184 = vector.shape_cast %23 : vector<64x32xf32> to vector<1x64x32xf32>
      tpu.vector_store %arg18[%c0_99, %c0_100, %c832], %184 {strides = array<i32>} : memref<1x64x1024xf32, #tpu.memory_space<vmem>>, vector<1x64x32xf32>,
      %c0_101 = arith.constant 0 : index
      %c0_102 = arith.constant 0 : index
      %c864 = arith.constant 864 : index
      %185 = vector.load %arg18[%c0_101, %c0_102, %c864] : memref<1x64x1024xf32, #tpu.memory_space<vmem>>, vector<1x64x32xf32>
      %186 = vector.shape_cast %185 : vector<1x64x32xf32> to vector<64x32xf32>
      %187 = vector.shape_cast %23 : vector<64x32xf32> to vector<1x64x32xf32>
      tpu.vector_store %arg18[%c0_101, %c0_102, %c864], %187 {strides = array<i32>} : memref<1x64x1024xf32, #tpu.memory_space<vmem>>, vector<1x64x32xf32>,
      %c0_103 = arith.constant 0 : index
      %c0_104 = arith.constant 0 : index
      %c896 = arith.constant 896 : index
      %188 = vector.load %arg18[%c0_103, %c0_104, %c896] : memref<1x64x1024xf32, #tpu.memory_space<vmem>>, vector<1x64x32xf32>
      %189 = vector.shape_cast %188 : vector<1x64x32xf32> to vector<64x32xf32>
      %190 = vector.shape_cast %23 : vector<64x32xf32> to vector<1x64x32xf32>
      tpu.vector_store %arg18[%c0_103, %c0_104, %c896], %190 {strides = array<i32>} : memref<1x64x1024xf32, #tpu.memory_space<vmem>>, vector<1x64x32xf32>,
      %c0_105 = arith.constant 0 : index
      %c0_106 = arith.constant 0 : index
      %c928 = arith.constant 928 : index
      %191 = vector.load %arg18[%c0_105, %c0_106, %c928] : memref<1x64x1024xf32, #tpu.memory_space<vmem>>, vector<1x64x32xf32>
      %192 = vector.shape_cast %191 : vector<1x64x32xf32> to vector<64x32xf32>
      %193 = vector.shape_cast %23 : vector<64x32xf32> to vector<1x64x32xf32>
      tpu.vector_store %arg18[%c0_105, %c0_106, %c928], %193 {strides = array<i32>} : memref<1x64x1024xf32, #tpu.memory_space<vmem>>, vector<1x64x32xf32>,
      %c0_107 = arith.constant 0 : index
      %c0_108 = arith.constant 0 : index
      %c960 = arith.constant 960 : index
      %194 = vector.load %arg18[%c0_107, %c0_108, %c960] : memref<1x64x1024xf32, #tpu.memory_space<vmem>>, vector<1x64x32xf32>
      %195 = vector.shape_cast %194 : vector<1x64x32xf32> to vector<64x32xf32>
      %196 = vector.shape_cast %23 : vector<64x32xf32> to vector<1x64x32xf32>
      tpu.vector_store %arg18[%c0_107, %c0_108, %c960], %196 {strides = array<i32>} : memref<1x64x1024xf32, #tpu.memory_space<vmem>>, vector<1x64x32xf32>,
      %c0_109 = arith.constant 0 : index
      %c0_110 = arith.constant 0 : index
      %c992 = arith.constant 992 : index
      %197 = vector.load %arg18[%c0_109, %c0_110, %c992] : memref<1x64x1024xf32, #tpu.memory_space<vmem>>, vector<1x64x32xf32>
      %198 = vector.shape_cast %197 : vector<1x64x32xf32> to vector<64x32xf32>
      %199 = vector.shape_cast %23 : vector<64x32xf32> to vector<1x64x32xf32>
      tpu.vector_store %arg18[%c0_109, %c0_110, %c992], %199 {strides = array<i32>} : memref<1x64x1024xf32, #tpu.memory_space<vmem>>, vector<1x64x32xf32>,
    } else {
    }
    %c3_i32 = arith.constant 3 : i32
    %9 = arith.cmpi eq, %arg1, %c3_i32 : i32
    %10 = arith.extui %9 : i1 to i32
    %c0_i32_3 = arith.constant 0 : i32
    %11 = arith.cmpi ne, %10, %c0_i32_3 : i32
    scf.if %11 {
      %c0 = arith.constant 0 : index
      %c0_4 = arith.constant 0 : index
      %c0_5 = arith.constant 0 : index
      %12 = vector.load %arg5[%c0, %c0_4, %c0_5] : memref<1x512x1xf32, #tpu.memory_space<vmem>>, vector<1x512x1xf32>
      %13 = vector.shape_cast %12 : vector<1x512x1xf32> to vector<512x1xf32>
      %c0_6 = arith.constant 0 : index
      %c0_7 = arith.constant 0 : index
      %14 = vector.load %arg9[%c0_6, %c0_7] : memref<64x512xf32, #tpu.memory_space<vmem>>, vector<64x512xf32>
      %cst = arith.constant dense<0.000000e+00> : vector<64x1xf32>
      %15 = tpu.matmul %14, %13, %cst {dimension_numbers = #tpu.dot_dimension_numbers<[1], [0], [0], [1], [0, 0, 1, 1], [], []>} : vector<64x512xf32>, vector<512x1xf32>, vector<64x1xf32> -> vector<64x1xf32>
      %c0_8 = arith.constant 0 : index
      %c0_9 = arith.constant 0 : index
      %16 = vector.load %arg13[%c0_8, %c0_9] : memref<64x1xf32, #tpu.memory_space<vmem>>, vector<64x1xf32>
      %17 = arith.addf %15, %16 : vector<64x1xf32>
      %c0_10 = arith.constant 0 : index
      %c0_11 = arith.constant 0 : index
      %18 = vector.load %arg17[%c0_10, %c0_11] : memref<1x32xf32, #tpu.memory_space<vmem>>, vector<1x32xf32>
      %19 = vector.broadcast %17 : vector<64x1xf32> to vector<64x32xf32>
      %20 = vector.broadcast %18 : vector<1x32xf32> to vector<64x32xf32>
      %21 = arith.mulf %19, %20 : vector<64x32xf32>
      %c0_12 = arith.constant 0 : index
      %c0_13 = arith.constant 0 : index
      %c0_14 = arith.constant 0 : index
      %22 = vector.load %arg18[%c0_12, %c0_13, %c0_14] : memref<1x64x1024xf32, #tpu.memory_space<vmem>>, vector<1x64x32xf32>
      %23 = vector.shape_cast %22 : vector<1x64x32xf32> to vector<64x32xf32>
      %24 = vector.shape_cast %21 : vector<64x32xf32> to vector<1x64x32xf32>
      tpu.vector_store %arg18[%c0_12, %c0_13, %c0_14], %24 {strides = array<i32>} : memref<1x64x1024xf32, #tpu.memory_space<vmem>>, vector<1x64x32xf32>,
      %c0_15 = arith.constant 0 : index
      %c0_16 = arith.constant 0 : index
      %c32 = arith.constant 32 : index
      %25 = vector.load %arg18[%c0_15, %c0_16, %c32] : memref<1x64x1024xf32, #tpu.memory_space<vmem>>, vector<1x64x32xf32>
      %26 = vector.shape_cast %25 : vector<1x64x32xf32> to vector<64x32xf32>
      %27 = vector.shape_cast %21 : vector<64x32xf32> to vector<1x64x32xf32>
      tpu.vector_store %arg18[%c0_15, %c0_16, %c32], %27 {strides = array<i32>} : memref<1x64x1024xf32, #tpu.memory_space<vmem>>, vector<1x64x32xf32>,
      %c0_17 = arith.constant 0 : index
      %c0_18 = arith.constant 0 : index
      %c64 = arith.constant 64 : index
      %28 = vector.load %arg18[%c0_17, %c0_18, %c64] : memref<1x64x1024xf32, #tpu.memory_space<vmem>>, vector<1x64x32xf32>
      %29 = vector.shape_cast %28 : vector<1x64x32xf32> to vector<64x32xf32>
      %30 = vector.shape_cast %21 : vector<64x32xf32> to vector<1x64x32xf32>
      tpu.vector_store %arg18[%c0_17, %c0_18, %c64], %30 {strides = array<i32>} : memref<1x64x1024xf32, #tpu.memory_space<vmem>>, vector<1x64x32xf32>,
      %c0_19 = arith.constant 0 : index
      %c0_20 = arith.constant 0 : index
      %c96 = arith.constant 96 : index
      %31 = vector.load %arg18[%c0_19, %c0_20, %c96] : memref<1x64x1024xf32, #tpu.memory_space<vmem>>, vector<1x64x32xf32>
      %32 = vector.shape_cast %31 : vector<1x64x32xf32> to vector<64x32xf32>
      %33 = vector.shape_cast %21 : vector<64x32xf32> to vector<1x64x32xf32>
      tpu.vector_store %arg18[%c0_19, %c0_20, %c96], %33 {strides = array<i32>} : memref<1x64x1024xf32, #tpu.memory_space<vmem>>, vector<1x64x32xf32>,
      %c0_21 = arith.constant 0 : index
      %c0_22 = arith.constant 0 : index
      %c128 = arith.constant 128 : index
      %34 = vector.load %arg18[%c0_21, %c0_22, %c128] : memref<1x64x1024xf32, #tpu.memory_space<vmem>>, vector<1x64x32xf32>
      %35 = vector.shape_cast %34 : vector<1x64x32xf32> to vector<64x32xf32>
      %36 = vector.shape_cast %21 : vector<64x32xf32> to vector<1x64x32xf32>
      tpu.vector_store %arg18[%c0_21, %c0_22, %c128], %36 {strides = array<i32>} : memref<1x64x1024xf32, #tpu.memory_space<vmem>>, vector<1x64x32xf32>,
      %c0_23 = arith.constant 0 : index
      %c0_24 = arith.constant 0 : index
      %c160 = arith.constant 160 : index
      %37 = vector.load %arg18[%c0_23, %c0_24, %c160] : memref<1x64x1024xf32, #tpu.memory_space<vmem>>, vector<1x64x32xf32>
      %38 = vector.shape_cast %37 : vector<1x64x32xf32> to vector<64x32xf32>
      %39 = vector.shape_cast %21 : vector<64x32xf32> to vector<1x64x32xf32>
      tpu.vector_store %arg18[%c0_23, %c0_24, %c160], %39 {strides = array<i32>} : memref<1x64x1024xf32, #tpu.memory_space<vmem>>, vector<1x64x32xf32>,
      %c0_25 = arith.constant 0 : index
      %c0_26 = arith.constant 0 : index
      %c192 = arith.constant 192 : index
      %40 = vector.load %arg18[%c0_25, %c0_26, %c192] : memref<1x64x1024xf32, #tpu.memory_space<vmem>>, vector<1x64x32xf32>
      %41 = vector.shape_cast %40 : vector<1x64x32xf32> to vector<64x32xf32>
      %42 = vector.shape_cast %21 : vector<64x32xf32> to vector<1x64x32xf32>
      tpu.vector_store %arg18[%c0_25, %c0_26, %c192], %42 {strides = array<i32>} : memref<1x64x1024xf32, #tpu.memory_space<vmem>>, vector<1x64x32xf32>,
      %c0_27 = arith.constant 0 : index
      %c0_28 = arith.constant 0 : index
      %c224 = arith.constant 224 : index
      %43 = vector.load %arg18[%c0_27, %c0_28, %c224] : memref<1x64x1024xf32, #tpu.memory_space<vmem>>, vector<1x64x32xf32>
      %44 = vector.shape_cast %43 : vector<1x64x32xf32> to vector<64x32xf32>
      %45 = vector.shape_cast %21 : vector<64x32xf32> to vector<1x64x32xf32>
      tpu.vector_store %arg18[%c0_27, %c0_28, %c224], %45 {strides = array<i32>} : memref<1x64x1024xf32, #tpu.memory_space<vmem>>, vector<1x64x32xf32>,
      %c0_29 = arith.constant 0 : index
      %c0_30 = arith.constant 0 : index
      %c256 = arith.constant 256 : index
      %46 = vector.load %arg18[%c0_29, %c0_30, %c256] : memref<1x64x1024xf32, #tpu.memory_space<vmem>>, vector<1x64x32xf32>
      %47 = vector.shape_cast %46 : vector<1x64x32xf32> to vector<64x32xf32>
      %48 = vector.shape_cast %21 : vector<64x32xf32> to vector<1x64x32xf32>
      tpu.vector_store %arg18[%c0_29, %c0_30, %c256], %48 {strides = array<i32>} : memref<1x64x1024xf32, #tpu.memory_space<vmem>>, vector<1x64x32xf32>,
      %c0_31 = arith.constant 0 : index
      %c0_32 = arith.constant 0 : index
      %c288 = arith.constant 288 : index
      %49 = vector.load %arg18[%c0_31, %c0_32, %c288] : memref<1x64x1024xf32, #tpu.memory_space<vmem>>, vector<1x64x32xf32>
      %50 = vector.shape_cast %49 : vector<1x64x32xf32> to vector<64x32xf32>
      %51 = vector.shape_cast %21 : vector<64x32xf32> to vector<1x64x32xf32>
      tpu.vector_store %arg18[%c0_31, %c0_32, %c288], %51 {strides = array<i32>} : memref<1x64x1024xf32, #tpu.memory_space<vmem>>, vector<1x64x32xf32>,
      %c0_33 = arith.constant 0 : index
      %c0_34 = arith.constant 0 : index
      %c320 = arith.constant 320 : index
      %52 = vector.load %arg18[%c0_33, %c0_34, %c320] : memref<1x64x1024xf32, #tpu.memory_space<vmem>>, vector<1x64x32xf32>
      %53 = vector.shape_cast %52 : vector<1x64x32xf32> to vector<64x32xf32>
      %54 = vector.shape_cast %21 : vector<64x32xf32> to vector<1x64x32xf32>
      tpu.vector_store %arg18[%c0_33, %c0_34, %c320], %54 {strides = array<i32>} : memref<1x64x1024xf32, #tpu.memory_space<vmem>>, vector<1x64x32xf32>,
      %c0_35 = arith.constant 0 : index
      %c0_36 = arith.constant 0 : index
      %c352 = arith.constant 352 : index
      %55 = vector.load %arg18[%c0_35, %c0_36, %c352] : memref<1x64x1024xf32, #tpu.memory_space<vmem>>, vector<1x64x32xf32>
      %56 = vector.shape_cast %55 : vector<1x64x32xf32> to vector<64x32xf32>
      %57 = vector.shape_cast %21 : vector<64x32xf32> to vector<1x64x32xf32>
      tpu.vector_store %arg18[%c0_35, %c0_36, %c352], %57 {strides = array<i32>} : memref<1x64x1024xf32, #tpu.memory_space<vmem>>, vector<1x64x32xf32>,
      %c0_37 = arith.constant 0 : index
      %c0_38 = arith.constant 0 : index
      %c384 = arith.constant 384 : index
      %58 = vector.load %arg18[%c0_37, %c0_38, %c384] : memref<1x64x1024xf32, #tpu.memory_space<vmem>>, vector<1x64x32xf32>
      %59 = vector.shape_cast %58 : vector<1x64x32xf32> to vector<64x32xf32>
      %60 = vector.shape_cast %21 : vector<64x32xf32> to vector<1x64x32xf32>
      tpu.vector_store %arg18[%c0_37, %c0_38, %c384], %60 {strides = array<i32>} : memref<1x64x1024xf32, #tpu.memory_space<vmem>>, vector<1x64x32xf32>,
      %c0_39 = arith.constant 0 : index
      %c0_40 = arith.constant 0 : index
      %c416 = arith.constant 416 : index
      %61 = vector.load %arg18[%c0_39, %c0_40, %c416] : memref<1x64x1024xf32, #tpu.memory_space<vmem>>, vector<1x64x32xf32>
      %62 = vector.shape_cast %61 : vector<1x64x32xf32> to vector<64x32xf32>
      %63 = vector.shape_cast %21 : vector<64x32xf32> to vector<1x64x32xf32>
      tpu.vector_store %arg18[%c0_39, %c0_40, %c416], %63 {strides = array<i32>} : memref<1x64x1024xf32, #tpu.memory_space<vmem>>, vector<1x64x32xf32>,
      %c0_41 = arith.constant 0 : index
      %c0_42 = arith.constant 0 : index
      %c448 = arith.constant 448 : index
      %64 = vector.load %arg18[%c0_41, %c0_42, %c448] : memref<1x64x1024xf32, #tpu.memory_space<vmem>>, vector<1x64x32xf32>
      %65 = vector.shape_cast %64 : vector<1x64x32xf32> to vector<64x32xf32>
      %66 = vector.shape_cast %21 : vector<64x32xf32> to vector<1x64x32xf32>
      tpu.vector_store %arg18[%c0_41, %c0_42, %c448], %66 {strides = array<i32>} : memref<1x64x1024xf32, #tpu.memory_space<vmem>>, vector<1x64x32xf32>,
      %c0_43 = arith.constant 0 : index
      %c0_44 = arith.constant 0 : index
      %c480 = arith.constant 480 : index
      %67 = vector.load %arg18[%c0_43, %c0_44, %c480] : memref<1x64x1024xf32, #tpu.memory_space<vmem>>, vector<1x64x32xf32>
      %68 = vector.shape_cast %67 : vector<1x64x32xf32> to vector<64x32xf32>
      %69 = vector.shape_cast %21 : vector<64x32xf32> to vector<1x64x32xf32>
      tpu.vector_store %arg18[%c0_43, %c0_44, %c480], %69 {strides = array<i32>} : memref<1x64x1024xf32, #tpu.memory_space<vmem>>, vector<1x64x32xf32>,
      %c0_45 = arith.constant 0 : index
      %c0_46 = arith.constant 0 : index
      %c512 = arith.constant 512 : index
      %70 = vector.load %arg18[%c0_45, %c0_46, %c512] : memref<1x64x1024xf32, #tpu.memory_space<vmem>>, vector<1x64x32xf32>
      %71 = vector.shape_cast %70 : vector<1x64x32xf32> to vector<64x32xf32>
      %72 = vector.shape_cast %21 : vector<64x32xf32> to vector<1x64x32xf32>
      tpu.vector_store %arg18[%c0_45, %c0_46, %c512], %72 {strides = array<i32>} : memref<1x64x1024xf32, #tpu.memory_space<vmem>>, vector<1x64x32xf32>,
      %c0_47 = arith.constant 0 : index
      %c0_48 = arith.constant 0 : index
      %c544 = arith.constant 544 : index
      %73 = vector.load %arg18[%c0_47, %c0_48, %c544] : memref<1x64x1024xf32, #tpu.memory_space<vmem>>, vector<1x64x32xf32>
      %74 = vector.shape_cast %73 : vector<1x64x32xf32> to vector<64x32xf32>
      %75 = vector.shape_cast %21 : vector<64x32xf32> to vector<1x64x32xf32>
      tpu.vector_store %arg18[%c0_47, %c0_48, %c544], %75 {strides = array<i32>} : memref<1x64x1024xf32, #tpu.memory_space<vmem>>, vector<1x64x32xf32>,
      %c0_49 = arith.constant 0 : index
      %c0_50 = arith.constant 0 : index
      %c576 = arith.constant 576 : index
      %76 = vector.load %arg18[%c0_49, %c0_50, %c576] : memref<1x64x1024xf32, #tpu.memory_space<vmem>>, vector<1x64x32xf32>
      %77 = vector.shape_cast %76 : vector<1x64x32xf32> to vector<64x32xf32>
      %78 = vector.shape_cast %21 : vector<64x32xf32> to vector<1x64x32xf32>
      tpu.vector_store %arg18[%c0_49, %c0_50, %c576], %78 {strides = array<i32>} : memref<1x64x1024xf32, #tpu.memory_space<vmem>>, vector<1x64x32xf32>,
      %c0_51 = arith.constant 0 : index
      %c0_52 = arith.constant 0 : index
      %c608 = arith.constant 608 : index
      %79 = vector.load %arg18[%c0_51, %c0_52, %c608] : memref<1x64x1024xf32, #tpu.memory_space<vmem>>, vector<1x64x32xf32>
      %80 = vector.shape_cast %79 : vector<1x64x32xf32> to vector<64x32xf32>
      %81 = vector.shape_cast %21 : vector<64x32xf32> to vector<1x64x32xf32>
      tpu.vector_store %arg18[%c0_51, %c0_52, %c608], %81 {strides = array<i32>} : memref<1x64x1024xf32, #tpu.memory_space<vmem>>, vector<1x64x32xf32>,
      %c0_53 = arith.constant 0 : index
      %c0_54 = arith.constant 0 : index
      %c640 = arith.constant 640 : index
      %82 = vector.load %arg18[%c0_53, %c0_54, %c640] : memref<1x64x1024xf32, #tpu.memory_space<vmem>>, vector<1x64x32xf32>
      %83 = vector.shape_cast %82 : vector<1x64x32xf32> to vector<64x32xf32>
      %84 = vector.shape_cast %21 : vector<64x32xf32> to vector<1x64x32xf32>
      tpu.vector_store %arg18[%c0_53, %c0_54, %c640], %84 {strides = array<i32>} : memref<1x64x1024xf32, #tpu.memory_space<vmem>>, vector<1x64x32xf32>,
      %c0_55 = arith.constant 0 : index
      %c0_56 = arith.constant 0 : index
      %c672 = arith.constant 672 : index
      %85 = vector.load %arg18[%c0_55, %c0_56, %c672] : memref<1x64x1024xf32, #tpu.memory_space<vmem>>, vector<1x64x32xf32>
      %86 = vector.shape_cast %85 : vector<1x64x32xf32> to vector<64x32xf32>
      %87 = vector.shape_cast %21 : vector<64x32xf32> to vector<1x64x32xf32>
      tpu.vector_store %arg18[%c0_55, %c0_56, %c672], %87 {strides = array<i32>} : memref<1x64x1024xf32, #tpu.memory_space<vmem>>, vector<1x64x32xf32>,
      %c0_57 = arith.constant 0 : index
      %c0_58 = arith.constant 0 : index
      %c704 = arith.constant 704 : index
      %88 = vector.load %arg18[%c0_57, %c0_58, %c704] : memref<1x64x1024xf32, #tpu.memory_space<vmem>>, vector<1x64x32xf32>
      %89 = vector.shape_cast %88 : vector<1x64x32xf32> to vector<64x32xf32>
      %90 = vector.shape_cast %21 : vector<64x32xf32> to vector<1x64x32xf32>
      tpu.vector_store %arg18[%c0_57, %c0_58, %c704], %90 {strides = array<i32>} : memref<1x64x1024xf32, #tpu.memory_space<vmem>>, vector<1x64x32xf32>,
      %c0_59 = arith.constant 0 : index
      %c0_60 = arith.constant 0 : index
      %c736 = arith.constant 736 : index
      %91 = vector.load %arg18[%c0_59, %c0_60, %c736] : memref<1x64x1024xf32, #tpu.memory_space<vmem>>, vector<1x64x32xf32>
      %92 = vector.shape_cast %91 : vector<1x64x32xf32> to vector<64x32xf32>
      %93 = vector.shape_cast %21 : vector<64x32xf32> to vector<1x64x32xf32>
      tpu.vector_store %arg18[%c0_59, %c0_60, %c736], %93 {strides = array<i32>} : memref<1x64x1024xf32, #tpu.memory_space<vmem>>, vector<1x64x32xf32>,
      %c0_61 = arith.constant 0 : index
      %c0_62 = arith.constant 0 : index
      %c768 = arith.constant 768 : index
      %94 = vector.load %arg18[%c0_61, %c0_62, %c768] : memref<1x64x1024xf32, #tpu.memory_space<vmem>>, vector<1x64x32xf32>
      %95 = vector.shape_cast %94 : vector<1x64x32xf32> to vector<64x32xf32>
      %96 = vector.shape_cast %21 : vector<64x32xf32> to vector<1x64x32xf32>
      tpu.vector_store %arg18[%c0_61, %c0_62, %c768], %96 {strides = array<i32>} : memref<1x64x1024xf32, #tpu.memory_space<vmem>>, vector<1x64x32xf32>,
      %c0_63 = arith.constant 0 : index
      %c0_64 = arith.constant 0 : index
      %c800 = arith.constant 800 : index
      %97 = vector.load %arg18[%c0_63, %c0_64, %c800] : memref<1x64x1024xf32, #tpu.memory_space<vmem>>, vector<1x64x32xf32>
      %98 = vector.shape_cast %97 : vector<1x64x32xf32> to vector<64x32xf32>
      %99 = vector.shape_cast %21 : vector<64x32xf32> to vector<1x64x32xf32>
      tpu.vector_store %arg18[%c0_63, %c0_64, %c800], %99 {strides = array<i32>} : memref<1x64x1024xf32, #tpu.memory_space<vmem>>, vector<1x64x32xf32>,
      %c0_65 = arith.constant 0 : index
      %c0_66 = arith.constant 0 : index
      %c832 = arith.constant 832 : index
      %100 = vector.load %arg18[%c0_65, %c0_66, %c832] : memref<1x64x1024xf32, #tpu.memory_space<vmem>>, vector<1x64x32xf32>
      %101 = vector.shape_cast %100 : vector<1x64x32xf32> to vector<64x32xf32>
      %102 = vector.shape_cast %21 : vector<64x32xf32> to vector<1x64x32xf32>
      tpu.vector_store %arg18[%c0_65, %c0_66, %c832], %102 {strides = array<i32>} : memref<1x64x1024xf32, #tpu.memory_space<vmem>>, vector<1x64x32xf32>,
      %c0_67 = arith.constant 0 : index
      %c0_68 = arith.constant 0 : index
      %c864 = arith.constant 864 : index
      %103 = vector.load %arg18[%c0_67, %c0_68, %c864] : memref<1x64x1024xf32, #tpu.memory_space<vmem>>, vector<1x64x32xf32>
      %104 = vector.shape_cast %103 : vector<1x64x32xf32> to vector<64x32xf32>
      %105 = vector.shape_cast %21 : vector<64x32xf32> to vector<1x64x32xf32>
      tpu.vector_store %arg18[%c0_67, %c0_68, %c864], %105 {strides = array<i32>} : memref<1x64x1024xf32, #tpu.memory_space<vmem>>, vector<1x64x32xf32>,
      %c0_69 = arith.constant 0 : index
      %c0_70 = arith.constant 0 : index
      %c896 = arith.constant 896 : index
      %106 = vector.load %arg18[%c0_69, %c0_70, %c896] : memref<1x64x1024xf32, #tpu.memory_space<vmem>>, vector<1x64x32xf32>
      %107 = vector.shape_cast %106 : vector<1x64x32xf32> to vector<64x32xf32>
      %108 = vector.shape_cast %21 : vector<64x32xf32> to vector<1x64x32xf32>
      tpu.vector_store %arg18[%c0_69, %c0_70, %c896], %108 {strides = array<i32>} : memref<1x64x1024xf32, #tpu.memory_space<vmem>>, vector<1x64x32xf32>,
      %c0_71 = arith.constant 0 : index
      %c0_72 = arith.constant 0 : index
      %c928 = arith.constant 928 : index
      %109 = vector.load %arg18[%c0_71, %c0_72, %c928] : memref<1x64x1024xf32, #tpu.memory_space<vmem>>, vector<1x64x32xf32>
      %110 = vector.shape_cast %109 : vector<1x64x32xf32> to vector<64x32xf32>
      %111 = vector.shape_cast %21 : vector<64x32xf32> to vector<1x64x32xf32>
      tpu.vector_store %arg18[%c0_71, %c0_72, %c928], %111 {strides = array<i32>} : memref<1x64x1024xf32, #tpu.memory_space<vmem>>, vector<1x64x32xf32>,
      %c0_73 = arith.constant 0 : index
      %c0_74 = arith.constant 0 : index
      %c960 = arith.constant 960 : index
      %112 = vector.load %arg18[%c0_73, %c0_74, %c960] : memref<1x64x1024xf32, #tpu.memory_space<vmem>>, vector<1x64x32xf32>
      %113 = vector.shape_cast %112 : vector<1x64x32xf32> to vector<64x32xf32>
      %114 = vector.shape_cast %21 : vector<64x32xf32> to vector<1x64x32xf32>
      tpu.vector_store %arg18[%c0_73, %c0_74, %c960], %114 {strides = array<i32>} : memref<1x64x1024xf32, #tpu.memory_space<vmem>>, vector<1x64x32xf32>,
      %c0_75 = arith.constant 0 : index
      %c0_76 = arith.constant 0 : index
      %c992 = arith.constant 992 : index
      %115 = vector.load %arg18[%c0_75, %c0_76, %c992] : memref<1x64x1024xf32, #tpu.memory_space<vmem>>, vector<1x64x32xf32>
      %116 = vector.shape_cast %115 : vector<1x64x32xf32> to vector<64x32xf32>
      %117 = vector.shape_cast %21 : vector<64x32xf32> to vector<1x64x32xf32>
      tpu.vector_store %arg18[%c0_75, %c0_76, %c992], %117 {strides = array<i32>} : memref<1x64x1024xf32, #tpu.memory_space<vmem>>, vector<1x64x32xf32>,
    } else {
    }
    return
  }
  func.func @transform_0(%arg0: i32, %arg1: i32) -> (i32, i32, i32) {
    %c0_i32 = arith.constant 0 : i32
    %c0_i32_0 = arith.constant 0 : i32
    %c0_i32_1 = arith.constant 0 : i32
    return %arg0, %c0_i32, %c0_i32_0 : i32, i32, i32
  }
  func.func @transform_1(%arg0: i32, %arg1: i32) -> (i32, i32, i32) {
    %c0_i32 = arith.constant 0 : i32
    %c0_i32_0 = arith.constant 0 : i32
    %c0_i32_1 = arith.constant 0 : i32
    return %arg0, %c0_i32, %c0_i32_0 : i32, i32, i32
  }
  func.func @transform_2(%arg0: i32, %arg1: i32) -> (i32, i32, i32) {
    %c0_i32 = arith.constant 0 : i32
    %c0_i32_0 = arith.constant 0 : i32
    %c0_i32_1 = arith.constant 0 : i32
    return %arg0, %c0_i32, %c0_i32_0 : i32, i32, i32
  }
  func.func @transform_3(%arg0: i32, %arg1: i32) -> (i32, i32, i32) {
    %c0_i32 = arith.constant 0 : i32
    %c0_i32_0 = arith.constant 0 : i32
    %c0_i32_1 = arith.constant 0 : i32
    return %arg0, %c0_i32, %c0_i32_0 : i32, i32, i32
  }
  func.func @transform_4(%arg0: i32, %arg1: i32) -> (i32, i32) {
    %c0_i32 = arith.constant 0 : i32
    %c0_i32_0 = arith.constant 0 : i32
    %c0_i32_1 = arith.constant 0 : i32
    return %c0_i32, %c0_i32_0 : i32, i32
  }
  func.func @transform_5(%arg0: i32, %arg1: i32) -> (i32, i32) {
    %c0_i32 = arith.constant 0 : i32
    %c0_i32_0 = arith.constant 0 : i32
    %c0_i32_1 = arith.constant 0 : i32
    return %c0_i32, %c0_i32_0 : i32, i32
  }
  func.func @transform_6(%arg0: i32, %arg1: i32) -> (i32, i32) {
    %c0_i32 = arith.constant 0 : i32
    %c0_i32_0 = arith.constant 0 : i32
    %c0_i32_1 = arith.constant 0 : i32
    return %c0_i32, %c0_i32_0 : i32, i32
  }
  func.func @transform_7(%arg0: i32, %arg1: i32) -> (i32, i32) {
    %c0_i32 = arith.constant 0 : i32
    %c0_i32_0 = arith.constant 0 : i32
    %c0_i32_1 = arith.constant 0 : i32
    return %c0_i32, %c0_i32_0 : i32, i32
  }
  func.func @transform_8(%arg0: i32, %arg1: i32) -> (i32, i32) {
    %c0_i32 = arith.constant 0 : i32
    %c0_i32_0 = arith.constant 0 : i32
    %c0_i32_1 = arith.constant 0 : i32
    return %c0_i32, %c0_i32_0 : i32, i32
  }
  func.func @transform_9(%arg0: i32, %arg1: i32) -> (i32, i32) {
    %c0_i32 = arith.constant 0 : i32
    %c0_i32_0 = arith.constant 0 : i32
    %c0_i32_1 = arith.constant 0 : i32
    return %c0_i32, %c0_i32_0 : i32, i32
  }
  func.func @transform_10(%arg0: i32, %arg1: i32) -> (i32, i32) {
    %c0_i32 = arith.constant 0 : i32
    %c0_i32_0 = arith.constant 0 : i32
    %c0_i32_1 = arith.constant 0 : i32
    return %c0_i32, %c0_i32_0 : i32, i32
  }
  func.func @transform_11(%arg0: i32, %arg1: i32) -> (i32, i32) {
    %c0_i32 = arith.constant 0 : i32
    %c0_i32_0 = arith.constant 0 : i32
    %c0_i32_1 = arith.constant 0 : i32
    return %c0_i32, %c0_i32_0 : i32, i32
  }
  func.func @transform_12(%arg0: i32, %arg1: i32) -> (i32, i32) {
    %c0_i32 = arith.constant 0 : i32
    %c0_i32_0 = arith.constant 0 : i32
    %c0_i32_1 = arith.constant 0 : i32
    return %c0_i32, %c0_i32_0 : i32, i32
  }
  func.func @transform_13(%arg0: i32, %arg1: i32) -> (i32, i32) {
    %c0_i32 = arith.constant 0 : i32
    %c0_i32_0 = arith.constant 0 : i32
    %c0_i32_1 = arith.constant 0 : i32
    return %c0_i32, %c0_i32_0 : i32, i32
  }
  func.func @transform_14(%arg0: i32, %arg1: i32) -> (i32, i32) {
    %c0_i32 = arith.constant 0 : i32
    %c0_i32_0 = arith.constant 0 : i32
    %c0_i32_1 = arith.constant 0 : i32
    return %c0_i32, %c0_i32_0 : i32, i32
  }
  func.func @transform_15(%arg0: i32, %arg1: i32) -> (i32, i32) {
    %c0_i32 = arith.constant 0 : i32
    %c0_i32_0 = arith.constant 0 : i32
    %c0_i32_1 = arith.constant 0 : i32
    return %c0_i32, %c0_i32_0 : i32, i32
  }
  func.func @transform_16(%arg0: i32, %arg1: i32) -> (i32, i32, i32) {
    %c0_i32 = arith.constant 0 : i32
    %c0_i32_0 = arith.constant 0 : i32
    return %arg0, %arg1, %c0_i32 : i32, i32, i32
  }
}

</mosaic_0001>

<llo_original>
// kernel: up_cat_branch.1
$region0: #{up_cat_branch.1}
  #allocation0 [shape = 'u32[]', space=smem, size = 0x4, offset = 0x4, fixed_abs, tag = 'smem constant byte address 0x4 - core index']
  #allocation1 [shape = 'u32[144,128]{1,0:T(1,128)}', space=vmem, size = 0x12000, scoped, tag = 'internal scratch']
  %s0 = inlined_call_operand.vmem [shape: f32[2,64,64], index: 0, kind: input, shape index: {}]
  %s1 = inlined_call_operand.vmem [shape: f32[2,128,16], index: 1, kind: input, shape index: {}]
  %s2 = inlined_call_operand.vmem [shape: f32[2,256,4], index: 2, kind: input, shape index: {}]
  %s3 = inlined_call_operand.vmem [shape: f32[2,512,1], index: 3, kind: input, shape index: {}]
  %s4 = inlined_call_operand.hbm [shape: f32[64,64], index: 4, kind: input, shape index: {}]
  %s5 = inlined_call_operand.hbm [shape: f32[64,128], index: 5, kind: input, shape index: {}]
  %s6 = inlined_call_operand.hbm [shape: f32[64,256], index: 6, kind: input, shape index: {}]
  %s7 = inlined_call_operand.hbm [shape: f32[64,512], index: 7, kind: input, shape index: {}]
  %s8 = inlined_call_operand.vmem [shape: f32[64,1], index: 8, kind: input, shape index: {}]
  %s9 = inlined_call_operand.vmem [shape: f32[64,1], index: 9, kind: input, shape index: {}]
  %s10 = inlined_call_operand.vmem [shape: f32[64,1], index: 10, kind: input, shape index: {}]
  %s11 = inlined_call_operand.vmem [shape: f32[64,1], index: 11, kind: input, shape index: {}]
  %s12 = inlined_call_operand.hbm [shape: f32[8,32], index: 12, kind: input, shape index: {}]
  %s13 = inlined_call_operand.hbm [shape: f32[4,32], index: 13, kind: input, shape index: {}]
  %s14 = inlined_call_operand.hbm [shape: f32[2,32], index: 14, kind: input, shape index: {}]
  %s15 = inlined_call_operand.vmem [shape: f32[1,32], index: 15, kind: input, shape index: {}]
  %s16 = inlined_call_operand.vmem [shape: f32[2,256,1024], index: 16, kind: output, shape index: {}]
  %s17 = sld [smem:[#allocation0]]
  $region141: #{up_cat_branch.1} parent=0
    _
  %s19 = ssub.s32 1, %s17
  %s20 = scalar_select 0, %s19, %s17
  $region1: #{up_cat_branch.1} parent=0
    #allocation2 [shape = 'u8[32768]{0}', space=vmem, size = 0x8000, scoped, tag = 'input window, operand 4, single buffered']
    #allocation3 [shape = 's32[2]{0}', space=sflag, size = 0x8, scoped, tag = 'scoped memory for up_cat_branch.1']
    #allocation4 [shape = 'u8[32768]{0}', space=vmem, size = 0x8000, scoped, tag = 'input window, operand 5, single buffered']
    #allocation5 [shape = 's32[1]{0}', space=sflag, size = 0x4, scoped, tag = 'scoped memory for up_cat_branch.1']
    #allocation6 [shape = 'u8[65536]{0}', space=vmem, size = 0x10000, scoped, tag = 'input window, operand 6, single buffered']
    #allocation7 [shape = 'u8[131072]{0}', space=vmem, size = 0x20000, scoped, tag = 'input window, operand 7, single buffered']
    #allocation8 [shape = 's32[1]{0}', space=sflag, size = 0x4, scoped, tag = 'scoped memory for up_cat_branch.1']
    #allocation9 [shape = 'u8[4096]{0}', space=vmem, size = 0x1000, scoped, tag = 'input window, operand 12, single buffered']
    #allocation10 [shape = 'u8[2048]{0}', space=vmem, size = 0x800, scoped, tag = 'input window, operand 13, single buffered']
    #allocation11 [shape = 's32[1]{0}', space=sflag, size = 0x4, scoped, tag = 'scoped memory for up_cat_branch.1']
    #allocation12 [shape = 'u8[1024]{0}', space=vmem, size = 0x400, scoped, tag = 'input window, operand 14, single buffered']
    %21 = vsyncpa [#allocation3], 0
    %22 = vsyncpa [#allocation5], 0
    %23 = vsyncpa [#allocation8], 0
    %24 = vsyncpa [#allocation11], 0
    loop: start=0, step=1, limit=10
    $region2: #{up_cat_branch.1} parent=1 // loop_pre_header
      _
    $region3: #{up_cat_branch.1} parent=1 // loop_header
      %s26 = sphi 0, %s30
      %p27 = scmp.ge.s32.totalorder %s26, 10
      %s33 = sphi 0, %s45
      %s34 = sphi 0, %s41
      %s35 = sphi 0, %s33
      %s36 = sphi 0, %s34
      %s37 = sphi 0, %s35
      %s38 = sphi 0, %s36
      %s48 = sphi 0, %s50
      %s51 = sphi 0, %s48
      %s52 = sphi 0, %s51
      %s68 = sphi 0, %s52
      %s74 = sphi 0, %s76
      %s77 = sphi 0, %s74
      %s78 = sphi 0, %s77
      %s94 = sphi 0, %s78
      %s100 = sphi 0, %s102
      %s103 = sphi 0, %s100
      %s104 = sphi 0, %s103
      %s120 = sphi 0, %s104
      %s126 = sphi 0, %s128
      %s129 = sphi 0, %s126
      %s130 = sphi 0, %s129
      %s146 = sphi 0, %s130
      %s150 = sphi 0, %s150
      %s152 = sphi 0, %s150
      %s153 = sphi 0, %s152
      %s167 = sphi 0, %s153
      %s171 = sphi 0, %s171
      %s173 = sphi 0, %s171
      %s174 = sphi 0, %s173
      %s188 = sphi 0, %s174
      %s192 = sphi 0, %s192
      %s194 = sphi 0, %s192
      %s195 = sphi 0, %s194
      %s209 = sphi 0, %s195
      %s213 = sphi 0, %s213
      %s215 = sphi 0, %s213
      %s216 = sphi 0, %s215
      %s230 = sphi 0, %s216
      %s234 = sphi 0, %s234
      %s236 = sphi 0, %s234
      %s237 = sphi 0, %s236
      %s251 = sphi 0, %s237
      %s255 = sphi 0, %s255
      %s257 = sphi 0, %s255
      %s258 = sphi 0, %s257
      %s272 = sphi 0, %s258
      %s276 = sphi 0, %s276
      %s278 = sphi 0, %s276
      %s279 = sphi 0, %s278
      %s293 = sphi 0, %s279
      %s297 = sphi 0, %s297
      %s299 = sphi 0, %s297
      %s300 = sphi 0, %s299
      %s314 = sphi 0, %s300
      %s318 = sphi 0, %s318
      %s320 = sphi 0, %s318
      %s321 = sphi 0, %s320
      %s335 = sphi 0, %s321
      %s339 = sphi 0, %s339
      %s341 = sphi 0, %s339
      %s342 = sphi 0, %s341
      %s356 = sphi 0, %s342
      %s360 = sphi 0, %s360
      %s362 = sphi 0, %s360
      %s363 = sphi 0, %s362
      %s377 = sphi 0, %s363
      %s381 = sphi 0, %s381
      %s383 = sphi 0, %s381
      %s384 = sphi 0, %s383
      %s398 = sphi 0, %s384
      %s406 = sphi 0, %s408
      %s409 = sphi 0, %s406
      %s410 = sphi 0, %s409
      %s426 = sphi 0, %s410
    $region4: #{up_cat_branch.1} parent=1 // loop_header_branch
      %29 = sbr.rel (%p27) target = $region8
    $region5: #{up_cat_branch.1} parent=1 // loop_body
      %s31 = ssub.s32 %s26, 1
      %s32 = ssub.s32 %s26, 2
      %s39 = sadd.s32 1, %s34
      %p40 = scmp.ge.s32.totalorder %s39, 4
      %s41 = scalar_select %p40, 0, %s39
      %s42 = sadd.s32 1, %s33
      %s43 = scalar_select %p40, %s42, %s33
      %p44 = scmp.ge.s32.totalorder %s43, 2
      %s45 = scalar_select %p44, 0, %s43
      %s46 = ssub.s32 %s33, %s45
      %p47 = scmp.eq.s32.totalorder %s46, 0
      %s49 = sadd.s32 %s48, 1
      %s50 = scalar_select %p47, %s48, %s49
      %p53 = pneg %p47
      %p54 = scmp.eq.s32.totalorder %s26, 7
      %p55 = por %p53, %p54
      %p56 = scmp.ne.s32.totalorder %s48, %s51
      %p57 = scmp.eq.s32.totalorder %s26, 0
      %p58 = por %p56, %p57
      %p59 = scmp.ne.s32.totalorder %s48, %s51
      %p60 = scmp.eq.s32.totalorder %s31, 7
      %p61 = por %p59, %p60
      %p62 = scmp.ne.s32.totalorder %s51, %s52
      %p63 = scmp.eq.s32.totalorder %s31, 0
      %p64 = por %p62, %p63
      %p65 = scmp.ne.s32.totalorder %s51, %s52
      %p66 = scmp.eq.s32.totalorder %s32, 7
      %p67 = por %p65, %p66
      %p69 = scmp.ne.s32.totalorder %s52, %s68
      %p70 = scmp.eq.s32.totalorder %s32, 0
      %p71 = por %p69, %p70
      %s72 = ssub.s32 %s33, %s45
      %p73 = scmp.eq.s32.totalorder %s72, 0
      %s75 = sadd.s32 %s74, 1
      %s76 = scalar_select %p73, %s74, %s75
      %p79 = pneg %p73
      %p80 = scmp.eq.s32.totalorder %s26, 7
      %p81 = por %p79, %p80
      %p82 = scmp.ne.s32.totalorder %s74, %s77
      %p83 = scmp.eq.s32.totalorder %s26, 0
      %p84 = por %p82, %p83
      %p85 = scmp.ne.s32.totalorder %s74, %s77
      %p86 = scmp.eq.s32.totalorder %s31, 7
      %p87 = por %p85, %p86
      %p88 = scmp.ne.s32.totalorder %s77, %s78
      %p89 = scmp.eq.s32.totalorder %s31, 0
      %p90 = por %p88, %p89
      %p91 = scmp.ne.s32.totalorder %s77, %s78
      %p92 = scmp.eq.s32.totalorder %s32, 7
      %p93 = por %p91, %p92
      %p95 = scmp.ne.s32.totalorder %s78, %s94
      %p96 = scmp.eq.s32.totalorder %s32, 0
      %p97 = por %p95, %p96
      %s98 = ssub.s32 %s33, %s45
      %p99 = scmp.eq.s32.totalorder %s98, 0
      %s101 = sadd.s32 %s100, 1
      %s102 = scalar_select %p99, %s100, %s101
      %p105 = pneg %p99
      %p106 = scmp.eq.s32.totalorder %s26, 7
      %p107 = por %p105, %p106
      %p108 = scmp.ne.s32.totalorder %s100, %s103
      %p109 = scmp.eq.s32.totalorder %s26, 0
      %p110 = por %p108, %p109
      %p111 = scmp.ne.s32.totalorder %s100, %s103
      %p112 = scmp.eq.s32.totalorder %s31, 7
      %p113 = por %p111, %p112
      %p114 = scmp.ne.s32.totalorder %s103, %s104
      %p115 = scmp.eq.s32.totalorder %s31, 0
      %p116 = por %p114, %p115
      %p117 = scmp.ne.s32.totalorder %s103, %s104
      %p118 = scmp.eq.s32.totalorder %s32, 7
      %p119 = por %p117, %p118
      %p121 = scmp.ne.s32.totalorder %s104, %s120
      %p122 = scmp.eq.s32.totalorder %s32, 0
      %p123 = por %p121, %p122
      %s124 = ssub.s32 %s33, %s45
      %p125 = scmp.eq.s32.totalorder %s124, 0
      %s127 = sadd.s32 %s126, 1
      %s128 = scalar_select %p125, %s126, %s127
      %p131 = pneg %p125
      %p132 = scmp.eq.s32.totalorder %s26, 7
      %p133 = por %p131, %p132
      %p134 = scmp.ne.s32.totalorder %s126, %s129
      %p135 = scmp.eq.s32.totalorder %s26, 0
      %p136 = por %p134, %p135
      %p137 = scmp.ne.s32.totalorder %s126, %s129
      %p138 = scmp.eq.s32.totalorder %s31, 7
      %p139 = por %p137, %p138
      %p140 = scmp.ne.s32.totalorder %s129, %s130
      %p141 = scmp.eq.s32.totalorder %s31, 0
      %p142 = por %p140, %p141
      %p143 = scmp.ne.s32.totalorder %s129, %s130
      %p144 = scmp.eq.s32.totalorder %s32, 7
      %p145 = por %p143, %p144
      %p147 = scmp.ne.s32.totalorder %s130, %s146
      %p148 = scmp.eq.s32.totalorder %s32, 0
      %p149 = por %p147, %p148
      %s151 = sadd.s32 %s150, 1
      %p154 = scmp.eq.s32.totalorder %s26, 7
      %p155 = scmp.ne.s32.totalorder %s150, %s152
      %p156 = scmp.eq.s32.totalorder %s26, 0
      %p157 = por %p155, %p156
      %p158 = scmp.ne.s32.totalorder %s150, %s152
      %p159 = scmp.eq.s32.totalorder %s31, 7
      %p160 = por %p158, %p159
      %p161 = scmp.ne.s32.totalorder %s152, %s153
      %p162 = scmp.eq.s32.totalorder %s31, 0
      %p163 = por %p161, %p162
      %p164 = scmp.ne.s32.totalorder %s152, %s153
      %p165 = scmp.eq.s32.totalorder %s32, 7
      %p166 = por %p164, %p165
      %p168 = scmp.ne.s32.totalorder %s153, %s167
      %p169 = scmp.eq.s32.totalorder %s32, 0
      %p170 = por %p168, %p169
      %s172 = sadd.s32 %s171, 1
      %p175 = scmp.eq.s32.totalorder %s26, 7
      %p176 = scmp.ne.s32.totalorder %s171, %s173
      %p177 = scmp.eq.s32.totalorder %s26, 0
      %p178 = por %p176, %p177
      %p179 = scmp.ne.s32.totalorder %s171, %s173
      %p180 = scmp.eq.s32.totalorder %s31, 7
      %p181 = por %p179, %p180
      %p182 = scmp.ne.s32.totalorder %s173, %s174
      %p183 = scmp.eq.s32.totalorder %s31, 0
      %p184 = por %p182, %p183
      %p185 = scmp.ne.s32.totalorder %s173, %s174
      %p186 = scmp.eq.s32.totalorder %s32, 7
      %p187 = por %p185, %p186
      %p189 = scmp.ne.s32.totalorder %s174, %s188
      %p190 = scmp.eq.s32.totalorder %s32, 0
      %p191 = por %p189, %p190
      %s193 = sadd.s32 %s192, 1
      %p196 = scmp.eq.s32.totalorder %s26, 7
      %p197 = scmp.ne.s32.totalorder %s192, %s194
      %p198 = scmp.eq.s32.totalorder %s26, 0
      %p199 = por %p197, %p198
      %p200 = scmp.ne.s32.totalorder %s192, %s194
      %p201 = scmp.eq.s32.totalorder %s31, 7
      %p202 = por %p200, %p201
      %p203 = scmp.ne.s32.totalorder %s194, %s195
      %p204 = scmp.eq.s32.totalorder %s31, 0
      %p205 = por %p203, %p204
      %p206 = scmp.ne.s32.totalorder %s194, %s195
      %p207 = scmp.eq.s32.totalorder %s32, 7
      %p208 = por %p206, %p207
      %p210 = scmp.ne.s32.totalorder %s195, %s209
      %p211 = scmp.eq.s32.totalorder %s32, 0
      %p212 = por %p210, %p211
      %s214 = sadd.s32 %s213, 1
      %p217 = scmp.eq.s32.totalorder %s26, 7
      %p218 = scmp.ne.s32.totalorder %s213, %s215
      %p219 = scmp.eq.s32.totalorder %s26, 0
      %p220 = por %p218, %p219
      %p221 = scmp.ne.s32.totalorder %s213, %s215
      %p222 = scmp.eq.s32.totalorder %s31, 7
      %p223 = por %p221, %p222
      %p224 = scmp.ne.s32.totalorder %s215, %s216
      %p225 = scmp.eq.s32.totalorder %s31, 0
      %p226 = por %p224, %p225
      %p227 = scmp.ne.s32.totalorder %s215, %s216
      %p228 = scmp.eq.s32.totalorder %s32, 7
      %p229 = por %p227, %p228
      %p231 = scmp.ne.s32.totalorder %s216, %s230
      %p232 = scmp.eq.s32.totalorder %s32, 0
      %p233 = por %p231, %p232
      %s235 = sadd.s32 %s234, 1
      %p238 = scmp.eq.s32.totalorder %s26, 7
      %p239 = scmp.ne.s32.totalorder %s234, %s236
      %p240 = scmp.eq.s32.totalorder %s26, 0
      %p241 = por %p239, %p240
      %p242 = scmp.ne.s32.totalorder %s234, %s236
      %p243 = scmp.eq.s32.totalorder %s31, 7
      %p244 = por %p242, %p243
      %p245 = scmp.ne.s32.totalorder %s236, %s237
      %p246 = scmp.eq.s32.totalorder %s31, 0
      %p247 = por %p245, %p246
      %p248 = scmp.ne.s32.totalorder %s236, %s237
      %p249 = scmp.eq.s32.totalorder %s32, 7
      %p250 = por %p248, %p249
      %p252 = scmp.ne.s32.totalorder %s237, %s251
      %p253 = scmp.eq.s32.totalorder %s32, 0
      %p254 = por %p252, %p253
      %s256 = sadd.s32 %s255, 1
      %p259 = scmp.eq.s32.totalorder %s26, 7
      %p260 = scmp.ne.s32.totalorder %s255, %s257
      %p261 = scmp.eq.s32.totalorder %s26, 0
      %p262 = por %p260, %p261
      %p263 = scmp.ne.s32.totalorder %s255, %s257
      %p264 = scmp.eq.s32.totalorder %s31, 7
      %p265 = por %p263, %p264
      %p266 = scmp.ne.s32.totalorder %s257, %s258
      %p267 = scmp.eq.s32.totalorder %s31, 0
      %p268 = por %p266, %p267
      %p269 = scmp.ne.s32.totalorder %s257, %s258
      %p270 = scmp.eq.s32.totalorder %s32, 7
      %p271 = por %p269, %p270
      %p273 = scmp.ne.s32.totalorder %s258, %s272
      %p274 = scmp.eq.s32.totalorder %s32, 0
      %p275 = por %p273, %p274
      %s277 = sadd.s32 %s276, 1
      %p280 = scmp.eq.s32.totalorder %s26, 7
      %p281 = scmp.ne.s32.totalorder %s276, %s278
      %p282 = scmp.eq.s32.totalorder %s26, 0
      %p283 = por %p281, %p282
      %p284 = scmp.ne.s32.totalorder %s276, %s278
      %p285 = scmp.eq.s32.totalorder %s31, 7
      %p286 = por %p284, %p285
      %p287 = scmp.ne.s32.totalorder %s278, %s279
      %p288 = scmp.eq.s32.totalorder %s31, 0
      %p289 = por %p287, %p288
      %p290 = scmp.ne.s32.totalorder %s278, %s279
      %p291 = scmp.eq.s32.totalorder %s32, 7
      %p292 = por %p290, %p291
      %p294 = scmp.ne.s32.totalorder %s279, %s293
      %p295 = scmp.eq.s32.totalorder %s32, 0
      %p296 = por %p294, %p295
      %s298 = sadd.s32 %s297, 1
      %p301 = scmp.eq.s32.totalorder %s26, 7
      %p302 = scmp.ne.s32.totalorder %s297, %s299
      %p303 = scmp.eq.s32.totalorder %s26, 0
      %p304 = por %p302, %p303
      %p305 = scmp.ne.s32.totalorder %s297, %s299
      %p306 = scmp.eq.s32.totalorder %s31, 7
      %p307 = por %p305, %p306
      %p308 = scmp.ne.s32.totalorder %s299, %s300
      %p309 = scmp.eq.s32.totalorder %s31, 0
      %p310 = por %p308, %p309
      %p311 = scmp.ne.s32.totalorder %s299, %s300
      %p312 = scmp.eq.s32.totalorder %s32, 7
      %p313 = por %p311, %p312
      %p315 = scmp.ne.s32.totalorder %s300, %s314
      %p316 = scmp.eq.s32.totalorder %s32, 0
      %p317 = por %p315, %p316
      %s319 = sadd.s32 %s318, 1
      %p322 = scmp.eq.s32.totalorder %s26, 7
      %p323 = scmp.ne.s32.totalorder %s318, %s320
      %p324 = scmp.eq.s32.totalorder %s26, 0
      %p325 = por %p323, %p324
      %p326 = scmp.ne.s32.totalorder %s318, %s320
      %p327 = scmp.eq.s32.totalorder %s31, 7
      %p328 = por %p326, %p327
      %p329 = scmp.ne.s32.totalorder %s320, %s321
      %p330 = scmp.eq.s32.totalorder %s31, 0
      %p331 = por %p329, %p330
      %p332 = scmp.ne.s32.totalorder %s320, %s321
      %p333 = scmp.eq.s32.totalorder %s32, 7
      %p334 = por %p332, %p333
      %p336 = scmp.ne.s32.totalorder %s321, %s335
      %p337 = scmp.eq.s32.totalorder %s32, 0
      %p338 = por %p336, %p337
      %s340 = sadd.s32 %s339, 1
      %p343 = scmp.eq.s32.totalorder %s26, 7
      %p344 = scmp.ne.s32.totalorder %s339, %s341
      %p345 = scmp.eq.s32.totalorder %s26, 0
      %p346 = por %p344, %p345
      %p347 = scmp.ne.s32.totalorder %s339, %s341
      %p348 = scmp.eq.s32.totalorder %s31, 7
      %p349 = por %p347, %p348
      %p350 = scmp.ne.s32.totalorder %s341, %s342
      %p351 = scmp.eq.s32.totalorder %s31, 0
      %p352 = por %p350, %p351
      %p353 = scmp.ne.s32.totalorder %s341, %s342
      %p354 = scmp.eq.s32.totalorder %s32, 7
      %p355 = por %p353, %p354
      %p357 = scmp.ne.s32.totalorder %s342, %s356
      %p358 = scmp.eq.s32.totalorder %s32, 0
      %p359 = por %p357, %p358
      %s361 = sadd.s32 %s360, 1
      %p364 = scmp.eq.s32.totalorder %s26, 7
      %p365 = scmp.ne.s32.totalorder %s360, %s362
      %p366 = scmp.eq.s32.totalorder %s26, 0
      %p367 = por %p365, %p366
      %p368 = scmp.ne.s32.totalorder %s360, %s362
      %p369 = scmp.eq.s32.totalorder %s31, 7
      %p370 = por %p368, %p369
      %p371 = scmp.ne.s32.totalorder %s362, %s363
      %p372 = scmp.eq.s32.totalorder %s31, 0
      %p373 = por %p371, %p372
      %p374 = scmp.ne.s32.totalorder %s362, %s363
      %p375 = scmp.eq.s32.totalorder %s32, 7
      %p376 = por %p374, %p375
      %p378 = scmp.ne.s32.totalorder %s363, %s377
      %p379 = scmp.eq.s32.totalorder %s32, 0
      %p380 = por %p378, %p379
      %s382 = sadd.s32 %s381, 1
      %p385 = scmp.eq.s32.totalorder %s26, 7
      %p386 = scmp.ne.s32.totalorder %s381, %s383
      %p387 = scmp.eq.s32.totalorder %s26, 0
      %p388 = por %p386, %p387
      %p389 = scmp.ne.s32.totalorder %s381, %s383
      %p390 = scmp.eq.s32.totalorder %s31, 7
      %p391 = por %p389, %p390
      %p392 = scmp.ne.s32.totalorder %s383, %s384
      %p393 = scmp.eq.s32.totalorder %s31, 0
      %p394 = por %p392, %p393
      %p395 = scmp.ne.s32.totalorder %s383, %s384
      %p396 = scmp.eq.s32.totalorder %s32, 7
      %p397 = por %p395, %p396
      %p399 = scmp.ne.s32.totalorder %s384, %s398
      %p400 = scmp.eq.s32.totalorder %s32, 0
      %p401 = por %p399, %p400
      %s402 = ssub.s32 %s33, %s45
      %s403 = ssub.s32 %s34, %s41
      %s404 = sor.u32 %s402, %s403
      %p405 = scmp.eq.s32.totalorder %s404, 0
      %s407 = sadd.s32 %s406, 1
      %s408 = scalar_select %p405, %s406, %s407
      %p411 = pneg %p405
      %p412 = scmp.eq.s32.totalorder %s26, 7
      %p413 = por %p411, %p412
      %p414 = scmp.ne.s32.totalorder %s406, %s409
      %p415 = scmp.eq.s32.totalorder %s26, 0
      %p416 = por %p414, %p415
      %p417 = scmp.ne.s32.totalorder %s406, %s409
      %p418 = scmp.eq.s32.totalorder %s31, 7
      %p419 = por %p417, %p418
      %p420 = scmp.ne.s32.totalorder %s409, %s410
      %p421 = scmp.eq.s32.totalorder %s31, 0
      %p422 = por %p420, %p421
      %p423 = scmp.ne.s32.totalorder %s409, %s410
      %p424 = scmp.eq.s32.totalorder %s32, 7
      %p425 = por %p423, %p424
      %p427 = scmp.ne.s32.totalorder %s410, %s426
      %p428 = scmp.eq.s32.totalorder %s32, 0
      %p429 = por %p427, %p428
      %p430 = scmp.le.s32.totalorder 1, %s26
      %p431 = scmp.lt.s32.totalorder %s26, 9
      %p432 = pnand %p430, %p431
      %p433 = pneg %p432
      // Predicated region
      $region9: #{up_cat_branch.1} parent=5 // pred_check
        _
      $region10: #{up_cat_branch.1} parent=5 // pred_check_branch
        %435 = sbr.rel (%p432) target = $region12
      $region11: #{up_cat_branch.1} parent=5 // pred_region
        %s436 = ssub.s32 %s26, 1
        // Predicated region
        $region13: #{up_cat_branch.1} parent=11 // pred_check
          %p437 = pneg %p163
        $region14: #{up_cat_branch.1} parent=11 // pred_check_branch
          %439 = sbr.rel (%p437) target = $region16
        $region15: #{up_cat_branch.1} parent=11 // pred_region
          %s441 = ssub.s32 1024, 1024
          %442 = vsyncadd [#allocation3], %s441
          %s443 = sshll.u32 [#allocation2], 4
          %s444 = int_to_ptr.vmem [resolvable:$true] %s443
          %449 = dma.hbm_to_vmem [thread:$0]  %s4, 1024, %s444, [#allocation3], 128, 128, 8
        $region16: #{up_cat_branch.1} parent=11 // pred_fallthru
          _
        // Predicated region
        $region17: #{up_cat_branch.1} parent=11 // pred_check
          %p450 = pneg %p184
        $region18: #{up_cat_branch.1} parent=11 // pred_check_branch
          %452 = sbr.rel (%p450) target = $region20
        $region19: #{up_cat_branch.1} parent=11 // pred_region
          %s454 = ssub.s32 1024, 1024
          %455 = vsyncadd [#allocation5], %s454
          %s456 = sshll.u32 [#allocation4], 4
          %s457 = int_to_ptr.vmem [resolvable:$true] %s456
          %462 = dma.hbm_to_vmem [thread:$0]  %s5, 1024, %s457, [#allocation5], 128, 128, 8
        $region20: #{up_cat_branch.1} parent=11 // pred_fallthru
          _
        // Predicated region
        $region21: #{up_cat_branch.1} parent=11 // pred_check
          %p463 = pneg %p205
        $region22: #{up_cat_branch.1} parent=11 // pred_check_branch
          %465 = sbr.rel (%p463) target = $region24
        $region23: #{up_cat_branch.1} parent=11 // pred_region
          %s467 = ssub.s32 2048, 2048
          %468 = vsyncadd [#allocation5], %s467
          %s469 = sshll.u32 [#allocation6], 4
          %s470 = int_to_ptr.vmem [resolvable:$true] %s469
          %475 = dma.hbm_to_vmem [thread:$0]  %s6, 2048, %s470, [#allocation5], 256, 256, 16
        $region24: #{up_cat_branch.1} parent=11 // pred_fallthru
          _
        // Predicated region
        $region25: #{up_cat_branch.1} parent=11 // pred_check
          %p476 = pneg %p226
        $region26: #{up_cat_branch.1} parent=11 // pred_check_branch
          %478 = sbr.rel (%p476) target = $region28
        $region27: #{up_cat_branch.1} parent=11 // pred_region
          %s480 = ssub.s32 4096, 4096
          %481 = vsyncadd [#allocation8], %s480
          %s482 = sshll.u32 [#allocation7], 4
          %s483 = int_to_ptr.vmem [resolvable:$true] %s482
          %488 = dma.hbm_to_vmem [thread:$0]  %s7, 4096, %s483, [#allocation8], 512, 512, 32
        $region28: #{up_cat_branch.1} parent=11 // pred_fallthru
          _
        // Predicated region
        $region29: #{up_cat_branch.1} parent=11 // pred_check
          %p489 = pneg %p247
        $region30: #{up_cat_branch.1} parent=11 // pred_check_branch
          %491 = sbr.rel (%p489) target = $region32
        $region31: #{up_cat_branch.1} parent=11 // pred_region
          _
        $region32: #{up_cat_branch.1} parent=11 // pred_fallthru
          _
        // Predicated region
        $region33: #{up_cat_branch.1} parent=11 // pred_check
          %p492 = pneg %p268
        $region34: #{up_cat_branch.1} parent=11 // pred_check_branch
          %494 = sbr.rel (%p492) target = $region36
        $region35: #{up_cat_branch.1} parent=11 // pred_region
          _
        $region36: #{up_cat_branch.1} parent=11 // pred_fallthru
          _
        // Predicated region
        $region37: #{up_cat_branch.1} parent=11 // pred_check
          %p495 = pneg %p289
        $region38: #{up_cat_branch.1} parent=11 // pred_check_branch
          %497 = sbr.rel (%p495) target = $region40
        $region39: #{up_cat_branch.1} parent=11 // pred_region
          _
        $region40: #{up_cat_branch.1} parent=11 // pred_fallthru
          _
        // Predicated region
        $region41: #{up_cat_branch.1} parent=11 // pred_check
          %p498 = pneg %p310
        $region42: #{up_cat_branch.1} parent=11 // pred_check_branch
          %500 = sbr.rel (%p498) target = $region44
        $region43: #{up_cat_branch.1} parent=11 // pred_region
          _
        $region44: #{up_cat_branch.1} parent=11 // pred_fallthru
          _
        // Predicated region
        $region45: #{up_cat_branch.1} parent=11 // pred_check
          %p501 = pneg %p331
        $region46: #{up_cat_branch.1} parent=11 // pred_check_branch
          %503 = sbr.rel (%p501) target = $region48
        $region47: #{up_cat_branch.1} parent=11 // pred_region
          %s505 = ssub.s32 128, 128
          %506 = vsyncadd [#allocation8], %s505
          %s508 = sshll.u32 [#allocation9], 4
          %s509 = int_to_ptr.vmem [resolvable:$true] %s508
          %511 = dma.hbm_to_vmem [thread:$0]  %s12, 128, %s509, [#allocation8]
        $region48: #{up_cat_branch.1} parent=11 // pred_fallthru
          _
        // Predicated region
        $region49: #{up_cat_branch.1} parent=11 // pred_check
          %p512 = pneg %p352
        $region50: #{up_cat_branch.1} parent=11 // pred_check_branch
          %514 = sbr.rel (%p512) target = $region52
        $region51: #{up_cat_branch.1} parent=11 // pred_region
          %s516 = ssub.s32 64, 64
          %517 = vsyncadd [#allocation11], %s516
          %s519 = sshll.u32 [#allocation10], 4
          %s520 = int_to_ptr.vmem [resolvable:$true] %s519
          %522 = dma.hbm_to_vmem [thread:$0]  %s13, 64, %s520, [#allocation11]
        $region52: #{up_cat_branch.1} parent=11 // pred_fallthru
          _
        // Predicated region
        $region53: #{up_cat_branch.1} parent=11 // pred_check
          %p523 = pneg %p373
        $region54: #{up_cat_branch.1} parent=11 // pred_check_branch
          %525 = sbr.rel (%p523) target = $region56
        $region55: #{up_cat_branch.1} parent=11 // pred_region
          %s527 = ssub.s32 32, 32
          %528 = vsyncadd [#allocation11], %s527
          %s530 = sshll.u32 [#allocation12], 4
          %s531 = int_to_ptr.vmem [resolvable:$true] %s530
          %533 = dma.hbm_to_vmem [thread:$0]  %s14, 32, %s531, [#allocation11]
        $region56: #{up_cat_branch.1} parent=11 // pred_fallthru
          _
        // Predicated region
        $region57: #{up_cat_branch.1} parent=11 // pred_check
          %p534 = pneg %p394
        $region58: #{up_cat_branch.1} parent=11 // pred_check_branch
          %536 = sbr.rel (%p534) target = $region60
        $region59: #{up_cat_branch.1} parent=11 // pred_region
          _
        $region60: #{up_cat_branch.1} parent=11 // pred_fallthru
          _
      $region12: #{up_cat_branch.1} parent=5 // pred_fallthru
        _
      %p537 = scmp.lt.s32.totalorder %s26, 8
      // Predicated region
      $region61: #{up_cat_branch.1} parent=5 // pred_check
        %p538 = pneg %p537
      $region62: #{up_cat_branch.1} parent=5 // pred_check_branch
        %540 = sbr.rel (%p538) target = $region64
      $region63: #{up_cat_branch.1} parent=5 // pred_region
        // Predicated region
        $region65: #{up_cat_branch.1} parent=63 // pred_check
          %p541 = pneg %p58
        $region66: #{up_cat_branch.1} parent=63 // pred_check_branch
          %543 = sbr.rel (%p541) target = $region68
        $region67: #{up_cat_branch.1} parent=63 // pred_region
          %p544 = scmp.lt.s32.totalorder %s33, 1
          %s545 = scalar_select %p544, %s33, 1
          %s546 = smul.addr %s545, 8
          %s547 = smul.addr %s546, 8
          %s548 = scalar_lea.vmem %s0, %s547
        $region68: #{up_cat_branch.1} parent=63 // pred_fallthru
          _
        // Predicated region
        $region69: #{up_cat_branch.1} parent=63 // pred_check
          %p549 = pneg %p84
        $region70: #{up_cat_branch.1} parent=63 // pred_check_branch
          %551 = sbr.rel (%p549) target = $region72
        $region71: #{up_cat_branch.1} parent=63 // pred_region
          %p552 = scmp.lt.s32.totalorder %s33, 1
          %s553 = scalar_select %p552, %s33, 1
          %s554 = smul.addr %s553, 16
          %s555 = smul.addr %s554, 8
          %s556 = scalar_lea.vmem %s1, %s555
        $region72: #{up_cat_branch.1} parent=63 // pred_fallthru
          _
        // Predicated region
        $region73: #{up_cat_branch.1} parent=63 // pred_check
          %p557 = pneg %p110
        $region74: #{up_cat_branch.1} parent=63 // pred_check_branch
          %559 = sbr.rel (%p557) target = $region76
        $region75: #{up_cat_branch.1} parent=63 // pred_region
          %p560 = scmp.lt.s32.totalorder %s33, 1
          %s561 = scalar_select %p560, %s33, 1
          %s562 = smul.addr %s561, 32
          %s563 = smul.addr %s562, 8
          %s564 = scalar_lea.vmem %s2, %s563
        $region76: #{up_cat_branch.1} parent=63 // pred_fallthru
          _
        // Predicated region
        $region77: #{up_cat_branch.1} parent=63 // pred_check
          %p565 = pneg %p136
        $region78: #{up_cat_branch.1} parent=63 // pred_check_branch
          %567 = sbr.rel (%p565) target = $region80
        $region79: #{up_cat_branch.1} parent=63 // pred_region
          %p568 = scmp.lt.s32.totalorder %s33, 1
          %s569 = scalar_select %p568, %s33, 1
          %s570 = smul.addr %s569, 64
          %s571 = smul.addr %s570, 8
          %s572 = scalar_lea.vmem %s3, %s571
        $region80: #{up_cat_branch.1} parent=63 // pred_fallthru
          _
      $region64: #{up_cat_branch.1} parent=5 // pred_fallthru
        _
      %p573 = scmp.le.s32.totalorder 1, %s26
      %p574 = scmp.lt.s32.totalorder %s26, 9
      %p575 = pnand %p573, %p574
      %p576 = pneg %p575
      // Predicated region
      $region81: #{up_cat_branch.1} parent=5 // pred_check
        _
      $region82: #{up_cat_branch.1} parent=5 // pred_check_branch
        %578 = sbr.rel (%p575) target = $region84
      $region83: #{up_cat_branch.1} parent=5 // pred_region
        %s579 = ssub.s32 %s26, 1
        // Predicated region
        $region85: #{up_cat_branch.1} parent=83 // pred_check
          %p580 = pneg %p163
        $region86: #{up_cat_branch.1} parent=83 // pred_check_branch
          %582 = sbr.rel (%p580) target = $region88
        $region87: #{up_cat_branch.1} parent=83 // pred_region
          %583 = dma.done [#allocation3], 1024
        $region88: #{up_cat_branch.1} parent=83 // pred_fallthru
          _
        // Predicated region
        $region89: #{up_cat_branch.1} parent=83 // pred_check
          %p584 = pneg %p184
        $region90: #{up_cat_branch.1} parent=83 // pred_check_branch
          %586 = sbr.rel (%p584) target = $region92
        $region91: #{up_cat_branch.1} parent=83 // pred_region
          %587 = dma.done [#allocation5], 1024
        $region92: #{up_cat_branch.1} parent=83 // pred_fallthru
          _
        // Predicated region
        $region93: #{up_cat_branch.1} parent=83 // pred_check
          %p588 = pneg %p205
        $region94: #{up_cat_branch.1} parent=83 // pred_check_branch
          %590 = sbr.rel (%p588) target = $region96
        $region95: #{up_cat_branch.1} parent=83 // pred_region
          %591 = dma.done [#allocation5], 2048
        $region96: #{up_cat_branch.1} parent=83 // pred_fallthru
          _
        // Predicated region
        $region97: #{up_cat_branch.1} parent=83 // pred_check
          %p592 = pneg %p226
        $region98: #{up_cat_branch.1} parent=83 // pred_check_branch
          %594 = sbr.rel (%p592) target = $region100
        $region99: #{up_cat_branch.1} parent=83 // pred_region
          %595 = dma.done [#allocation8], 4096
        $region100: #{up_cat_branch.1} parent=83 // pred_fallthru
          _
        // Predicated region
        $region101: #{up_cat_branch.1} parent=83 // pred_check
          %p596 = pneg %p331
        $region102: #{up_cat_branch.1} parent=83 // pred_check_branch
          %598 = sbr.rel (%p596) target = $region104
        $region103: #{up_cat_branch.1} parent=83 // pred_region
          %599 = dma.done [#allocation8], 128
        $region104: #{up_cat_branch.1} parent=83 // pred_fallthru
          _
        // Predicated region
        $region105: #{up_cat_branch.1} parent=83 // pred_check
          %p600 = pneg %p352
        $region106: #{up_cat_branch.1} parent=83 // pred_check_branch
          %602 = sbr.rel (%p600) target = $region108
        $region107: #{up_cat_branch.1} parent=83 // pred_region
          %603 = dma.done [#allocation11], 64
        $region108: #{up_cat_branch.1} parent=83 // pred_fallthru
          _
        // Predicated region
        $region109: #{up_cat_branch.1} parent=83 // pred_check
          %p604 = pneg %p373
        $region110: #{up_cat_branch.1} parent=83 // pred_check_branch
          %606 = sbr.rel (%p604) target = $region112
        $region111: #{up_cat_branch.1} parent=83 // pred_region
          %607 = dma.done [#allocation11], 32
        $region112: #{up_cat_branch.1} parent=83 // pred_fallthru
          _
        %p608 = scmp.lt.s32.totalorder %s35, 1
        %s609 = scalar_select %p608, %s35, 1
        %s610 = smul.addr %s609, 8
        %s611 = smul.addr %s610, 8
        %s612 = scalar_lea.vmem %s0, %s611
        %p613 = pneg %p64
        %p614 = pneg %p61
        %p615 = scmp.lt.s32.totalorder %s35, 1
        %s616 = scalar_select %p615, %s35, 1
        %s617 = smul.addr %s616, 16
        %s618 = smul.addr %s617, 8
        %s619 = scalar_lea.vmem %s1, %s618
        %p620 = pneg %p90
        %p621 = pneg %p87
        %p622 = scmp.lt.s32.totalorder %s35, 1
        %s623 = scalar_select %p622, %s35, 1
        %s624 = smul.addr %s623, 32
        %s625 = smul.addr %s624, 8
        %s626 = scalar_lea.vmem %s2, %s625
        %p627 = pneg %p116
        %p628 = pneg %p113
        %p629 = scmp.lt.s32.totalorder %s35, 1
        %s630 = scalar_select %p629, %s35, 1
        %s631 = smul.addr %s630, 64
        %s632 = smul.addr %s631, 8
        %s633 = scalar_lea.vmem %s3, %s632
        %p634 = pneg %p142
        %p635 = pneg %p139
        %p636 = pneg %p163
        %p637 = pneg %p160
        %p638 = pneg %p184
        %p639 = pneg %p181
        %p640 = pneg %p205
        %p641 = pneg %p202
        %p642 = pneg %p226
        %p643 = pneg %p223
        %p644 = pneg %p247
        %p645 = pneg %p244
        %p646 = pneg %p268
        %p647 = pneg %p265
        %p648 = pneg %p289
        %p649 = pneg %p286
        %p650 = pneg %p310
        %p651 = pneg %p307
        %p652 = pneg %p331
        %p653 = pneg %p328
        %p654 = pneg %p352
        %p655 = pneg %p349
        %p656 = pneg %p373
        %p657 = pneg %p370
        %p658 = pneg %p394
        %p659 = pneg %p391
        %p660 = pneg %p422
        %p661 = pneg %p419
        %s662 = smul.u32 8, %s36
        %p663 = scmp.lt.s32.totalorder %s35, 1
        %s664 = scalar_select %p663, %s35, 1
        %p665 = scmp.lt.s32.totalorder %s662, 31
        %s666 = scalar_select %p665, %s662, 31
        %s667 = smul.addr %s666, 8
        %s668 = smul.addr %s664, 256
        %s669 = sadd.s32 %s667, %s668
        %s670 = smul.addr %s669, 8
        %s671 = scalar_lea.vmem %s16, %s670
        %p672 = scmp.lt.s32.totalorder %s35, 1
        %s673 = scalar_select %p672, %s35, 1
        %s674 = smul.addr %s673, 8
        %s675 = smul.addr %s674, 8
        %s676 = scalar_lea.vmem %s0, %s675
        %p677 = scmp.lt.s32.totalorder %s35, 1
        %s678 = scalar_select %p677, %s35, 1
        %s679 = smul.addr %s678, 16
        %s680 = smul.addr %s679, 8
        %s681 = scalar_lea.vmem %s1, %s680
        %p682 = scmp.lt.s32.totalorder %s35, 1
        %s683 = scalar_select %p682, %s35, 1
        %s684 = smul.addr %s683, 32
        %s685 = smul.addr %s684, 8
        %s686 = scalar_lea.vmem %s2, %s685
        %p687 = scmp.lt.s32.totalorder %s35, 1
        %s688 = scalar_select %p687, %s35, 1
        %s689 = smul.addr %s688, 64
        %s690 = smul.addr %s689, 8
        %s691 = scalar_lea.vmem %s3, %s690
        %s692 = smul.u32 8, %s36
        %p693 = scmp.lt.s32.totalorder %s35, 1
        %s694 = scalar_select %p693, %s35, 1
        %p695 = scmp.lt.s32.totalorder %s692, 31
        %s696 = scalar_select %p695, %s692, 31
        %s697 = smul.addr %s696, 8
        %s698 = smul.addr %s694, 256
        %s699 = sadd.s32 %s697, %s698
        %s700 = smul.addr %s699, 8
        %s701 = scalar_lea.vmem %s16, %s700
        %s702 = smul.u32 8, %s36
        %p703 = scmp.eq.s32.totalorder %s36, 0
        // Predicated region
        $region113: #{up_cat_branch.1} parent=83 // pred_check
          %p704 = pneg %p703
        $region114: #{up_cat_branch.1} parent=83 // pred_check_branch
          %706 = sbr.rel (%p704) target = $region116
        $region115: #{up_cat_branch.1} parent=83 // pred_region
          %v707 = vld [vmem:[%s676] sm:$0xff]
          %v708 = vld [vmem:[%s676 + $0x8] sm:$0xff]
          %v709 = vld [vmem:[%s676 + $0x10] sm:$0xff]
          %v710 = vld [vmem:[%s676 + $0x18] sm:$0xff]
          %v711 = vld [vmem:[%s676 + $0x20] sm:$0xff]
          %v712 = vld [vmem:[%s676 + $0x28] sm:$0xff]
          %v713 = vld [vmem:[%s676 + $0x30] sm:$0xff]
          %v714 = vld [vmem:[%s676 + $0x38] sm:$0xff]
          %v715 = vld [vmem:[#allocation2] sm:$0xff]
          %v716 = vld [vmem:[#allocation2 + $0x8] sm:$0xff]
          %v717 = vld [vmem:[#allocation2 + $0x10] sm:$0xff]
          %v718 = vld [vmem:[#allocation2 + $0x18] sm:$0xff]
          %v719 = vld [vmem:[#allocation2 + $0x20] sm:$0xff]
          %v720 = vld [vmem:[#allocation2 + $0x28] sm:$0xff]
          %v721 = vld [vmem:[#allocation2 + $0x30] sm:$0xff]
          %v722 = vld [vmem:[#allocation2 + $0x38] sm:$0xff]
          %v723 = vld [vmem:[%s8] sm:$0xff]
          %v724 = vld [vmem:[%s8 + $0x8] sm:$0xff]
          %v725 = vld [vmem:[%s8 + $0x10] sm:$0xff]
          %v726 = vld [vmem:[%s8 + $0x18] sm:$0xff]
          %v727 = vld [vmem:[%s8 + $0x20] sm:$0xff]
          %v728 = vld [vmem:[%s8 + $0x28] sm:$0xff]
          %v729 = vld [vmem:[%s8 + $0x30] sm:$0xff]
          %v730 = vld [vmem:[%s8 + $0x38] sm:$0xff]
          %732 = vset.pattern.permute.xlu0 0
          %733 = vperm.xlu0 %732, %v723
          %v734 = vpop.permute.xlu0 %733
          %737 = vset.pattern.permute.xlu0 0
          %738 = vperm.xlu0 %737, %v724
          %v739 = vpop.permute.xlu0 %738
          %742 = vset.pattern.permute.xlu0 0
          %743 = vperm.xlu0 %742, %v725
          %v744 = vpop.permute.xlu0 %743
          %747 = vset.pattern.permute.xlu0 0
          %748 = vperm.xlu0 %747, %v726
          %v749 = vpop.permute.xlu0 %748
          %752 = vset.pattern.permute.xlu0 0
          %753 = vperm.xlu0 %752, %v727
          %v754 = vpop.permute.xlu0 %753
          %757 = vset.pattern.permute.xlu0 0
          %758 = vperm.xlu0 %757, %v728
          %v759 = vpop.permute.xlu0 %758
          %762 = vset.pattern.permute.xlu0 0
          %763 = vperm.xlu0 %762, %v729
          %v764 = vpop.permute.xlu0 %763
          %767 = vset.pattern.permute.xlu0 0
          %768 = vperm.xlu0 %767, %v730
          %v769 = vpop.permute.xlu0 %768
          %vm771 = vcmask 523264
          %v773 = vsel %vm771, %v715, 0
          %v776 = vsel %vm771, %v716, 0
          %v779 = vsel %vm771, %v717, 0
          %v782 = vsel %vm771, %v718, 0
          %v785 = vsel %vm771, %v719, 0
          %v788 = vsel %vm771, %v720, 0
          %v791 = vsel %vm771, %v721, 0
          %v794 = vsel %vm771, %v722, 0
          %796 = vmatprep.subr.mxu0 0.0
          %797 = vmatpush1.msra.mxu0 %v707
          %798 = vmatprep.subr.mxu0 0.0
          %799 = vmatpush1.msra.mxu0 %v708
          %800 = vmatprep.subr.mxu0 0.0
          %801 = vmatpush1.msra.mxu0 %v709
          %802 = vmatprep.subr.mxu0 0.0
          %803 = vmatpush1.msra.mxu0 %v710
          %804 = vmatprep.subr.mxu0 0.0
          %805 = vmatpush1.msra.mxu0 %v711
          %806 = vmatprep.subr.mxu0 0.0
          %807 = vmatpush1.msra.mxu0 %v712
          %808 = vmatprep.subr.mxu0 0.0
          %809 = vmatpush1.msra.mxu0 %v713
          %810 = vmatprep.subr.mxu0 0.0
          %811 = vmatpush1.msra.mxu0 %v714
          %812 = vmatprep.subr.mxu0 0.0
          %813 = vmatpush1.msra.mxu0 0.0
          %814 = vmatprep.subr.mxu0 0.0
          %815 = vmatpush1.msra.mxu0 0.0
          %816 = vmatprep.subr.mxu0 0.0
          %817 = vmatpush1.msra.mxu0 0.0
          %818 = vmatprep.subr.mxu0 0.0
          %819 = vmatpush1.msra.mxu0 0.0
          %820 = vmatprep.subr.mxu0 0.0
          %821 = vmatpush1.msra.mxu0 0.0
          %822 = vmatprep.subr.mxu0 0.0
          %823 = vmatpush1.msra.mxu0 0.0
          %824 = vmatprep.subr.mxu0 0.0
          %825 = vmatpush1.msra.mxu0 0.0
          %826 = vmatprep.subr.mxu0 0.0
          %827 = vmatpush1.msra.mxu0 0.0
          %828 = vmatprep.subr.mxu0 0.0
          %829 = vmatpush1.msra.mxu0 0.0
          %830 = vmatprep.subr.mxu0 0.0
          %831 = vmatpush1.msra.mxu0 0.0
          %832 = vmatprep.subr.mxu0 0.0
          %833 = vmatpush1.msra.mxu0 0.0
          %834 = vmatprep.subr.mxu0 0.0
          %835 = vmatpush1.msra.mxu0 0.0
          %836 = vmatprep.subr.mxu0 0.0
          %837 = vmatpush1.msra.mxu0 0.0
          %838 = vmatprep.subr.mxu0 0.0
          %839 = vmatpush1.msra.mxu0 0.0
          %840 = vmatprep.subr.mxu0 0.0
          %841 = vmatpush1.msra.mxu0 0.0
          %842 = vmatprep.subr.mxu0 0.0
          %843 = vmatpush1.msra.mxu0 0.0
          %844 = vmatprep.subr.mxu0 0.0
          %845 = vmatpush1.msra.mxu0 0.0
          %846 = vmatprep.subr.mxu0 0.0
          %847 = vmatpush1.msra.mxu0 0.0
          %848 = vmatprep.subr.mxu0 0.0
          %849 = vmatpush1.msra.mxu0 0.0
          %850 = vmatprep.subr.mxu0 0.0
          %851 = vmatpush1.msra.mxu0 0.0
          %852 = vmatprep.subr.mxu0 0.0
          %853 = vmatpush1.msra.mxu0 0.0
          %854 = vmatprep.subr.mxu0 0.0
          %855 = vmatpush1.msra.mxu0 0.0
          %856 = vmatprep.subr.mxu0 0.0
          %857 = vmatpush1.msra.mxu0 0.0
          %858 = vmatprep.subr.mxu0 0.0
          %859 = vmatpush1.msra.mxu0 0.0
          %860 = vmatprep.mubr.f32.mxu0 0.0
          %861 = vmatmul.mubr.f32.gmra.mrb[0].mxu0 %v773
          %v862 = vpop.f32.mrb[0].mxu0
          %v863 = vadd.f32 %v734, %v862
          %v864 = vpop.f32.mrb[0].mxu0
          %865 = vmatprep.mubr.f32.mxu0 0.0
          %866 = vmatmul.mubr.f32.gmra.mrb[0].mxu0 %v776
          %v867 = vpop.f32.mrb[0].mxu0
          %v868 = vadd.f32 %v739, %v867
          %v869 = vpop.f32.mrb[0].mxu0
          %870 = vmatprep.mubr.f32.mxu0 0.0
          %871 = vmatmul.mubr.f32.gmra.mrb[0].mxu0 %v779
          %v872 = vpop.f32.mrb[0].mxu0
          %v873 = vadd.f32 %v744, %v872
          %v874 = vpop.f32.mrb[0].mxu0
          %875 = vmatprep.mubr.f32.mxu0 0.0
          %876 = vmatmul.mubr.f32.gmra.mrb[0].mxu0 %v782
          %v877 = vpop.f32.mrb[0].mxu0
          %v878 = vadd.f32 %v749, %v877
          %v879 = vpop.f32.mrb[0].mxu0
          %880 = vmatprep.mubr.f32.mxu0 0.0
          %881 = vmatmul.mubr.f32.gmra.mrb[0].mxu0 %v785
          %v882 = vpop.f32.mrb[0].mxu0
          %v883 = vadd.f32 %v754, %v882
          %v884 = vpop.f32.mrb[0].mxu0
          %885 = vmatprep.mubr.f32.mxu0 0.0
          %886 = vmatmul.mubr.f32.gmra.mrb[0].mxu0 %v788
          %v887 = vpop.f32.mrb[0].mxu0
          %v888 = vadd.f32 %v759, %v887
          %v889 = vpop.f32.mrb[0].mxu0
          %890 = vmatprep.mubr.f32.mxu0 0.0
          %891 = vmatmul.mubr.f32.gmra.mrb[0].mxu0 %v791
          %v892 = vpop.f32.mrb[0].mxu0
          %v893 = vadd.f32 %v764, %v892
          %v894 = vpop.f32.mrb[0].mxu0
          %895 = vmatprep.mubr.f32.mxu0 0.0
          %896 = vmatmul.mubr.f32.gmra.mrb[0].mxu0 %v794
          %v897 = vpop.f32.mrb[0].mxu0
          %v898 = vadd.f32 %v769, %v897
          %v899 = vpop.f32.mrb[0].mxu0
          %900 = vdwg.mxu0
          %v901 = vld [vmem:[#allocation9] sm:$0xff]
          %vm902 = vcmask 64512
          %v904 = vsel %vm902, %v863, 0
          %v907 = vsel %vm902, %v868, 0
          %v910 = vsel %vm902, %v873, 0
          %v913 = vsel %vm902, %v878, 0
          %v916 = vsel %vm902, %v883, 0
          %v919 = vsel %vm902, %v888, 0
          %v922 = vsel %vm902, %v893, 0
          %v925 = vsel %vm902, %v898, 0
          %927 = vmatprep.subr.mxu0 0.0
          %928 = vmatpush1.msra.mxu0 %v901
          %929 = vmatprep.subr.mxu0 0.0
          %930 = vmatpush1.msra.mxu0 0.0
          %931 = vmatprep.subr.mxu0 0.0
          %932 = vmatpush1.msra.mxu0 0.0
          %933 = vmatprep.subr.mxu0 0.0
          %934 = vmatpush1.msra.mxu0 0.0
          %935 = vmatprep.subr.mxu0 0.0
          %936 = vmatpush1.msra.mxu0 0.0
          %937 = vmatprep.subr.mxu0 0.0
          %938 = vmatpush1.msra.mxu0 0.0
          %939 = vmatprep.subr.mxu0 0.0
          %940 = vmatpush1.msra.mxu0 0.0
          %941 = vmatprep.subr.mxu0 0.0
          %942 = vmatpush1.msra.mxu0 0.0
          %943 = vmatprep.subr.mxu0 0.0
          %944 = vmatpush1.msra.mxu0 0.0
          %945 = vmatprep.subr.mxu0 0.0
          %946 = vmatpush1.msra.mxu0 0.0
          %947 = vmatprep.subr.mxu0 0.0
          %948 = vmatpush1.msra.mxu0 0.0
          %949 = vmatprep.subr.mxu0 0.0
          %950 = vmatpush1.msra.mxu0 0.0
          %951 = vmatprep.subr.mxu0 0.0
          %952 = vmatpush1.msra.mxu0 0.0
          %953 = vmatprep.subr.mxu0 0.0
          %954 = vmatpush1.msra.mxu0 0.0
          %955 = vmatprep.subr.mxu0 0.0
          %956 = vmatpush1.msra.mxu0 0.0
          %957 = vmatprep.subr.mxu0 0.0
          %958 = vmatpush1.msra.mxu0 0.0
          %959 = vmatprep.subr.mxu0 0.0
          %960 = vmatpush1.msra.mxu0 0.0
          %961 = vmatprep.subr.mxu0 0.0
          %962 = vmatpush1.msra.mxu0 0.0
          %963 = vmatprep.subr.mxu0 0.0
          %964 = vmatpush1.msra.mxu0 0.0
          %965 = vmatprep.subr.mxu0 0.0
          %966 = vmatpush1.msra.mxu0 0.0
          %967 = vmatprep.subr.mxu0 0.0
          %968 = vmatpush1.msra.mxu0 0.0
          %969 = vmatprep.subr.mxu0 0.0
          %970 = vmatpush1.msra.mxu0 0.0
          %971 = vmatprep.subr.mxu0 0.0
          %972 = vmatpush1.msra.mxu0 0.0
          %973 = vmatprep.subr.mxu0 0.0
          %974 = vmatpush1.msra.mxu0 0.0
          %975 = vmatprep.subr.mxu0 0.0
          %976 = vmatpush1.msra.mxu0 0.0
          %977 = vmatprep.subr.mxu0 0.0
          %978 = vmatpush1.msra.mxu0 0.0
          %979 = vmatprep.subr.mxu0 0.0
          %980 = vmatpush1.msra.mxu0 0.0
          %981 = vmatprep.subr.mxu0 0.0
          %982 = vmatpush1.msra.mxu0 0.0
          %983 = vmatprep.subr.mxu0 0.0
          %984 = vmatpush1.msra.mxu0 0.0
          %985 = vmatprep.subr.mxu0 0.0
          %986 = vmatpush1.msra.mxu0 0.0
          %987 = vmatprep.subr.mxu0 0.0
          %988 = vmatpush1.msra.mxu0 0.0
          %989 = vmatprep.subr.mxu0 0.0
          %990 = vmatpush1.msra.mxu0 0.0
          %991 = vmatprep.mubr.f32.mxu0 0.0
          %992 = vmatmul.mubr.f32.gmra.mrb[0].mxu0 %v904
          %v993 = vpop.f32.mrb[0].mxu0
          %v994 = vadd.f32 0.0, %v993
          %v995 = vpop.f32.mrb[0].mxu0
          %996 = vmatprep.mubr.f32.mxu0 0.0
          %997 = vmatmul.mubr.f32.gmra.mrb[0].mxu0 %v907
          %v998 = vpop.f32.mrb[0].mxu0
          %v999 = vadd.f32 0.0, %v998
          %v1000 = vpop.f32.mrb[0].mxu0
          %1001 = vmatprep.mubr.f32.mxu0 0.0
          %1002 = vmatmul.mubr.f32.gmra.mrb[0].mxu0 %v910
          %v1003 = vpop.f32.mrb[0].mxu0
          %v1004 = vadd.f32 0.0, %v1003
          %v1005 = vpop.f32.mrb[0].mxu0
          %1006 = vmatprep.mubr.f32.mxu0 0.0
          %1007 = vmatmul.mubr.f32.gmra.mrb[0].mxu0 %v913
          %v1008 = vpop.f32.mrb[0].mxu0
          %v1009 = vadd.f32 0.0, %v1008
          %v1010 = vpop.f32.mrb[0].mxu0
          %1011 = vmatprep.mubr.f32.mxu0 0.0
          %1012 = vmatmul.mubr.f32.gmra.mrb[0].mxu0 %v916
          %v1013 = vpop.f32.mrb[0].mxu0
          %v1014 = vadd.f32 0.0, %v1013
          %v1015 = vpop.f32.mrb[0].mxu0
          %1016 = vmatprep.mubr.f32.mxu0 0.0
          %1017 = vmatmul.mubr.f32.gmra.mrb[0].mxu0 %v919
          %v1018 = vpop.f32.mrb[0].mxu0
          %v1019 = vadd.f32 0.0, %v1018
          %v1020 = vpop.f32.mrb[0].mxu0
          %1021 = vmatprep.mubr.f32.mxu0 0.0
          %1022 = vmatmul.mubr.f32.gmra.mrb[0].mxu0 %v922
          %v1023 = vpop.f32.mrb[0].mxu0
          %v1024 = vadd.f32 0.0, %v1023
          %v1025 = vpop.f32.mrb[0].mxu0
          %1026 = vmatprep.mubr.f32.mxu0 0.0
          %1027 = vmatmul.mubr.f32.gmra.mrb[0].mxu0 %v925
          %v1028 = vpop.f32.mrb[0].mxu0
          %v1029 = vadd.f32 0.0, %v1028
          %v1030 = vpop.f32.mrb[0].mxu0
          %1031 = vdwg.mxu0
          %1032 = vrot.lane.b32.xlu0 %v863, 120
          %v1033 = vpop.permute.xlu0 %1032
          %1034 = vrot.lane.b32.xlu0 %v868, 120
          %v1035 = vpop.permute.xlu0 %1034
          %1036 = vrot.lane.b32.xlu0 %v873, 120
          %v1037 = vpop.permute.xlu0 %1036
          %1038 = vrot.lane.b32.xlu0 %v878, 120
          %v1039 = vpop.permute.xlu0 %1038
          %1040 = vrot.lane.b32.xlu0 %v883, 120
          %v1041 = vpop.permute.xlu0 %1040
          %1042 = vrot.lane.b32.xlu0 %v888, 120
          %v1043 = vpop.permute.xlu0 %1042
          %1044 = vrot.lane.b32.xlu0 %v893, 120
          %v1045 = vpop.permute.xlu0 %1044
          %1046 = vrot.lane.b32.xlu0 %v898, 120
          %v1047 = vpop.permute.xlu0 %1046
          %v1048 = vsel %vm902, %v1033, 0
          %v1050 = vsel %vm902, %v1035, 0
          %v1052 = vsel %vm902, %v1037, 0
          %v1054 = vsel %vm902, %v1039, 0
          %v1056 = vsel %vm902, %v1041, 0
          %v1058 = vsel %vm902, %v1043, 0
          %v1060 = vsel %vm902, %v1045, 0
          %v1062 = vsel %vm902, %v1047, 0
          %1064 = vmatprep.subr.mxu0 0.0
          %1065 = vmatpush1.msra.mxu0 %v901
          %1066 = vmatprep.subr.mxu0 0.0
          %1067 = vmatpush1.msra.mxu0 0.0
          %1068 = vmatprep.subr.mxu0 0.0
          %1069 = vmatpush1.msra.mxu0 0.0
          %1070 = vmatprep.subr.mxu0 0.0
          %1071 = vmatpush1.msra.mxu0 0.0
          %1072 = vmatprep.subr.mxu0 0.0
          %1073 = vmatpush1.msra.mxu0 0.0
          %1074 = vmatprep.subr.mxu0 0.0
          %1075 = vmatpush1.msra.mxu0 0.0
          %1076 = vmatprep.subr.mxu0 0.0
          %1077 = vmatpush1.msra.mxu0 0.0
          %1078 = vmatprep.subr.mxu0 0.0
          %1079 = vmatpush1.msra.mxu0 0.0
          %1080 = vmatprep.subr.mxu0 0.0
          %1081 = vmatpush1.msra.mxu0 0.0
          %1082 = vmatprep.subr.mxu0 0.0
          %1083 = vmatpush1.msra.mxu0 0.0
          %1084 = vmatprep.subr.mxu0 0.0
          %1085 = vmatpush1.msra.mxu0 0.0
          %1086 = vmatprep.subr.mxu0 0.0
          %1087 = vmatpush1.msra.mxu0 0.0
          %1088 = vmatprep.subr.mxu0 0.0
          %1089 = vmatpush1.msra.mxu0 0.0
          %1090 = vmatprep.subr.mxu0 0.0
          %1091 = vmatpush1.msra.mxu0 0.0
          %1092 = vmatprep.subr.mxu0 0.0
          %1093 = vmatpush1.msra.mxu0 0.0
          %1094 = vmatprep.subr.mxu0 0.0
          %1095 = vmatpush1.msra.mxu0 0.0
          %1096 = vmatprep.subr.mxu0 0.0
          %1097 = vmatpush1.msra.mxu0 0.0
          %1098 = vmatprep.subr.mxu0 0.0
          %1099 = vmatpush1.msra.mxu0 0.0
          %1100 = vmatprep.subr.mxu0 0.0
          %1101 = vmatpush1.msra.mxu0 0.0
          %1102 = vmatprep.subr.mxu0 0.0
          %1103 = vmatpush1.msra.mxu0 0.0
          %1104 = vmatprep.subr.mxu0 0.0
          %1105 = vmatpush1.msra.mxu0 0.0
          %1106 = vmatprep.subr.mxu0 0.0
          %1107 = vmatpush1.msra.mxu0 0.0
          %1108 = vmatprep.subr.mxu0 0.0
          %1109 = vmatpush1.msra.mxu0 0.0
          %1110 = vmatprep.subr.mxu0 0.0
          %1111 = vmatpush1.msra.mxu0 0.0
          %1112 = vmatprep.subr.mxu0 0.0
          %1113 = vmatpush1.msra.mxu0 0.0
          %1114 = vmatprep.subr.mxu0 0.0
          %1115 = vmatpush1.msra.mxu0 0.0
          %1116 = vmatprep.subr.mxu0 0.0
          %1117 = vmatpush1.msra.mxu0 0.0
          %1118 = vmatprep.subr.mxu0 0.0
          %1119 = vmatpush1.msra.mxu0 0.0
          %1120 = vmatprep.subr.mxu0 0.0
          %1121 = vmatpush1.msra.mxu0 0.0
          %1122 = vmatprep.subr.mxu0 0.0
          %1123 = vmatpush1.msra.mxu0 0.0
          %1124 = vmatprep.subr.mxu0 0.0
          %1125 = vmatpush1.msra.mxu0 0.0
          %1126 = vmatprep.subr.mxu0 0.0
          %1127 = vmatpush1.msra.mxu0 0.0
          %1128 = vmatprep.mubr.f32.mxu0 0.0
          %1129 = vmatmul.mubr.f32.gmra.mrb[0].mxu0 %v1048
          %v1130 = vpop.f32.mrb[0].mxu0
          %v1131 = vadd.f32 0.0, %v1130
          %v1132 = vpop.f32.mrb[0].mxu0
          %1133 = vmatprep.mubr.f32.mxu0 0.0
          %1134 = vmatmul.mubr.f32.gmra.mrb[0].mxu0 %v1050
          %v1135 = vpop.f32.mrb[0].mxu0
          %v1136 = vadd.f32 0.0, %v1135
          %v1137 = vpop.f32.mrb[0].mxu0
          %1138 = vmatprep.mubr.f32.mxu0 0.0
          %1139 = vmatmul.mubr.f32.gmra.mrb[0].mxu0 %v1052
          %v1140 = vpop.f32.mrb[0].mxu0
          %v1141 = vadd.f32 0.0, %v1140
          %v1142 = vpop.f32.mrb[0].mxu0
          %1143 = vmatprep.mubr.f32.mxu0 0.0
          %1144 = vmatmul.mubr.f32.gmra.mrb[0].mxu0 %v1054
          %v1145 = vpop.f32.mrb[0].mxu0
          %v1146 = vadd.f32 0.0, %v1145
          %v1147 = vpop.f32.mrb[0].mxu0
          %1148 = vmatprep.mubr.f32.mxu0 0.0
          %1149 = vmatmul.mubr.f32.gmra.mrb[0].mxu0 %v1056
          %v1150 = vpop.f32.mrb[0].mxu0
          %v1151 = vadd.f32 0.0, %v1150
          %v1152 = vpop.f32.mrb[0].mxu0
          %1153 = vmatprep.mubr.f32.mxu0 0.0
          %1154 = vmatmul.mubr.f32.gmra.mrb[0].mxu0 %v1058
          %v1155 = vpop.f32.mrb[0].mxu0
          %v1156 = vadd.f32 0.0, %v1155
          %v1157 = vpop.f32.mrb[0].mxu0
          %1158 = vmatprep.mubr.f32.mxu0 0.0
          %1159 = vmatmul.mubr.f32.gmra.mrb[0].mxu0 %v1060
          %v1160 = vpop.f32.mrb[0].mxu0
          %v1161 = vadd.f32 0.0, %v1160
          %v1162 = vpop.f32.mrb[0].mxu0
          %1163 = vmatprep.mubr.f32.mxu0 0.0
          %1164 = vmatmul.mubr.f32.gmra.mrb[0].mxu0 %v1062
          %v1165 = vpop.f32.mrb[0].mxu0
          %v1166 = vadd.f32 0.0, %v1165
          %v1167 = vpop.f32.mrb[0].mxu0
          %1168 = vdwg.mxu0
          %1169 = vrot.lane.b32.xlu0 %v863, 112
          %v1170 = vpop.permute.xlu0 %1169
          %1171 = vrot.lane.b32.xlu0 %v868, 112
          %v1172 = vpop.permute.xlu0 %1171
          %1173 = vrot.lane.b32.xlu0 %v873, 112
          %v1174 = vpop.permute.xlu0 %1173
          %1175 = vrot.lane.b32.xlu0 %v878, 112
          %v1176 = vpop.permute.xlu0 %1175
          %1177 = vrot.lane.b32.xlu0 %v883, 112
          %v1178 = vpop.permute.xlu0 %1177
          %1179 = vrot.lane.b32.xlu0 %v888, 112
          %v1180 = vpop.permute.xlu0 %1179
          %1181 = vrot.lane.b32.xlu0 %v893, 112
          %v1182 = vpop.permute.xlu0 %1181
          %1183 = vrot.lane.b32.xlu0 %v898, 112
          %v1184 = vpop.permute.xlu0 %1183
          %v1185 = vsel %vm902, %v1170, 0
          %v1187 = vsel %vm902, %v1172, 0
          %v1189 = vsel %vm902, %v1174, 0
          %v1191 = vsel %vm902, %v1176, 0
          %v1193 = vsel %vm902, %v1178, 0
          %v1195 = vsel %vm902, %v1180, 0
          %v1197 = vsel %vm902, %v1182, 0
          %v1199 = vsel %vm902, %v1184, 0
          %1201 = vmatprep.subr.mxu0 0.0
          %1202 = vmatpush1.msra.mxu0 %v901
          %1203 = vmatprep.subr.mxu0 0.0
          %1204 = vmatpush1.msra.mxu0 0.0
          %1205 = vmatprep.subr.mxu0 0.0
          %1206 = vmatpush1.msra.mxu0 0.0
          %1207 = vmatprep.subr.mxu0 0.0
          %1208 = vmatpush1.msra.mxu0 0.0
          %1209 = vmatprep.subr.mxu0 0.0
          %1210 = vmatpush1.msra.mxu0 0.0
          %1211 = vmatprep.subr.mxu0 0.0
          %1212 = vmatpush1.msra.mxu0 0.0
          %1213 = vmatprep.subr.mxu0 0.0
          %1214 = vmatpush1.msra.mxu0 0.0
          %1215 = vmatprep.subr.mxu0 0.0
          %1216 = vmatpush1.msra.mxu0 0.0
          %1217 = vmatprep.subr.mxu0 0.0
          %1218 = vmatpush1.msra.mxu0 0.0
          %1219 = vmatprep.subr.mxu0 0.0
          %1220 = vmatpush1.msra.mxu0 0.0
          %1221 = vmatprep.subr.mxu0 0.0
          %1222 = vmatpush1.msra.mxu0 0.0
          %1223 = vmatprep.subr.mxu0 0.0
          %1224 = vmatpush1.msra.mxu0 0.0
          %1225 = vmatprep.subr.mxu0 0.0
          %1226 = vmatpush1.msra.mxu0 0.0
          %1227 = vmatprep.subr.mxu0 0.0
          %1228 = vmatpush1.msra.mxu0 0.0
          %1229 = vmatprep.subr.mxu0 0.0
          %1230 = vmatpush1.msra.mxu0 0.0
          %1231 = vmatprep.subr.mxu0 0.0
          %1232 = vmatpush1.msra.mxu0 0.0
          %1233 = vmatprep.subr.mxu0 0.0
          %1234 = vmatpush1.msra.mxu0 0.0
          %1235 = vmatprep.subr.mxu0 0.0
          %1236 = vmatpush1.msra.mxu0 0.0
          %1237 = vmatprep.subr.mxu0 0.0
          %1238 = vmatpush1.msra.mxu0 0.0
          %1239 = vmatprep.subr.mxu0 0.0
          %1240 = vmatpush1.msra.mxu0 0.0
          %1241 = vmatprep.subr.mxu0 0.0
          %1242 = vmatpush1.msra.mxu0 0.0
          %1243 = vmatprep.subr.mxu0 0.0
          %1244 = vmatpush1.msra.mxu0 0.0
          %1245 = vmatprep.subr.mxu0 0.0
          %1246 = vmatpush1.msra.mxu0 0.0
          %1247 = vmatprep.subr.mxu0 0.0
          %1248 = vmatpush1.msra.mxu0 0.0
          %1249 = vmatprep.subr.mxu0 0.0
          %1250 = vmatpush1.msra.mxu0 0.0
          %1251 = vmatprep.subr.mxu0 0.0
          %1252 = vmatpush1.msra.mxu0 0.0
          %1253 = vmatprep.subr.mxu0 0.0
          %1254 = vmatpush1.msra.mxu0 0.0
          %1255 = vmatprep.subr.mxu0 0.0
          %1256 = vmatpush1.msra.mxu0 0.0
          %1257 = vmatprep.subr.mxu0 0.0
          %1258 = vmatpush1.msra.mxu0 0.0
          %1259 = vmatprep.subr.mxu0 0.0
          %1260 = vmatpush1.msra.mxu0 0.0
          %1261 = vmatprep.subr.mxu0 0.0
          %1262 = vmatpush1.msra.mxu0 0.0
          %1263 = vmatprep.subr.mxu0 0.0
          %1264 = vmatpush1.msra.mxu0 0.0
          %1265 = vmatprep.mubr.f32.mxu0 0.0
          %1266 = vmatmul.mubr.f32.gmra.mrb[0].mxu0 %v1185
          %v1267 = vpop.f32.mrb[0].mxu0
          %v1268 = vadd.f32 0.0, %v1267
          %v1269 = vpop.f32.mrb[0].mxu0
          %1270 = vmatprep.mubr.f32.mxu0 0.0
          %1271 = vmatmul.mubr.f32.gmra.mrb[0].mxu0 %v1187
          %v1272 = vpop.f32.mrb[0].mxu0
          %v1273 = vadd.f32 0.0, %v1272
          %v1274 = vpop.f32.mrb[0].mxu0
          %1275 = vmatprep.mubr.f32.mxu0 0.0
          %1276 = vmatmul.mubr.f32.gmra.mrb[0].mxu0 %v1189
          %v1277 = vpop.f32.mrb[0].mxu0
          %v1278 = vadd.f32 0.0, %v1277
          %v1279 = vpop.f32.mrb[0].mxu0
          %1280 = vmatprep.mubr.f32.mxu0 0.0
          %1281 = vmatmul.mubr.f32.gmra.mrb[0].mxu0 %v1191
          %v1282 = vpop.f32.mrb[0].mxu0
          %v1283 = vadd.f32 0.0, %v1282
          %v1284 = vpop.f32.mrb[0].mxu0
          %1285 = vmatprep.mubr.f32.mxu0 0.0
          %1286 = vmatmul.mubr.f32.gmra.mrb[0].mxu0 %v1193
          %v1287 = vpop.f32.mrb[0].mxu0
          %v1288 = vadd.f32 0.0, %v1287
          %v1289 = vpop.f32.mrb[0].mxu0
          %1290 = vmatprep.mubr.f32.mxu0 0.0
          %1291 = vmatmul.mubr.f32.gmra.mrb[0].mxu0 %v1195
          %v1292 = vpop.f32.mrb[0].mxu0
          %v1293 = vadd.f32 0.0, %v1292
          %v1294 = vpop.f32.mrb[0].mxu0
          %1295 = vmatprep.mubr.f32.mxu0 0.0
          %1296 = vmatmul.mubr.f32.gmra.mrb[0].mxu0 %v1197
          %v1297 = vpop.f32.mrb[0].mxu0
          %v1298 = vadd.f32 0.0, %v1297
          %v1299 = vpop.f32.mrb[0].mxu0
          %1300 = vmatprep.mubr.f32.mxu0 0.0
          %1301 = vmatmul.mubr.f32.gmra.mrb[0].mxu0 %v1199
          %v1302 = vpop.f32.mrb[0].mxu0
          %v1303 = vadd.f32 0.0, %v1302
          %v1304 = vpop.f32.mrb[0].mxu0
          %1305 = vdwg.mxu0
          %1306 = vrot.lane.b32.xlu0 %v863, 104
          %v1307 = vpop.permute.xlu0 %1306
          %1308 = vrot.lane.b32.xlu0 %v868, 104
          %v1309 = vpop.permute.xlu0 %1308
          %1310 = vrot.lane.b32.xlu0 %v873, 104
          %v1311 = vpop.permute.xlu0 %1310
          %1312 = vrot.lane.b32.xlu0 %v878, 104
          %v1313 = vpop.permute.xlu0 %1312
          %1314 = vrot.lane.b32.xlu0 %v883, 104
          %v1315 = vpop.permute.xlu0 %1314
          %1316 = vrot.lane.b32.xlu0 %v888, 104
          %v1317 = vpop.permute.xlu0 %1316
          %1318 = vrot.lane.b32.xlu0 %v893, 104
          %v1319 = vpop.permute.xlu0 %1318
          %1320 = vrot.lane.b32.xlu0 %v898, 104
          %v1321 = vpop.permute.xlu0 %1320
          %v1322 = vsel %vm902, %v1307, 0
          %v1324 = vsel %vm902, %v1309, 0
          %v1326 = vsel %vm902, %v1311, 0
          %v1328 = vsel %vm902, %v1313, 0
          %v1330 = vsel %vm902, %v1315, 0
          %v1332 = vsel %vm902, %v1317, 0
          %v1334 = vsel %vm902, %v1319, 0
          %v1336 = vsel %vm902, %v1321, 0
          %1338 = vmatprep.subr.mxu0 0.0
          %1339 = vmatpush1.msra.mxu0 %v901
          %1340 = vmatprep.subr.mxu0 0.0
          %1341 = vmatpush1.msra.mxu0 0.0
          %1342 = vmatprep.subr.mxu0 0.0
          %1343 = vmatpush1.msra.mxu0 0.0
          %1344 = vmatprep.subr.mxu0 0.0
          %1345 = vmatpush1.msra.mxu0 0.0
          %1346 = vmatprep.subr.mxu0 0.0
          %1347 = vmatpush1.msra.mxu0 0.0
          %1348 = vmatprep.subr.mxu0 0.0
          %1349 = vmatpush1.msra.mxu0 0.0
          %1350 = vmatprep.subr.mxu0 0.0
          %1351 = vmatpush1.msra.mxu0 0.0
          %1352 = vmatprep.subr.mxu0 0.0
          %1353 = vmatpush1.msra.mxu0 0.0
          %1354 = vmatprep.subr.mxu0 0.0
          %1355 = vmatpush1.msra.mxu0 0.0
          %1356 = vmatprep.subr.mxu0 0.0
          %1357 = vmatpush1.msra.mxu0 0.0
          %1358 = vmatprep.subr.mxu0 0.0
          %1359 = vmatpush1.msra.mxu0 0.0
          %1360 = vmatprep.subr.mxu0 0.0
          %1361 = vmatpush1.msra.mxu0 0.0
          %1362 = vmatprep.subr.mxu0 0.0
          %1363 = vmatpush1.msra.mxu0 0.0
          %1364 = vmatprep.subr.mxu0 0.0
          %1365 = vmatpush1.msra.mxu0 0.0
          %1366 = vmatprep.subr.mxu0 0.0
          %1367 = vmatpush1.msra.mxu0 0.0
          %1368 = vmatprep.subr.mxu0 0.0
          %1369 = vmatpush1.msra.mxu0 0.0
          %1370 = vmatprep.subr.mxu0 0.0
          %1371 = vmatpush1.msra.mxu0 0.0
          %1372 = vmatprep.subr.mxu0 0.0
          %1373 = vmatpush1.msra.mxu0 0.0
          %1374 = vmatprep.subr.mxu0 0.0
          %1375 = vmatpush1.msra.mxu0 0.0
          %1376 = vmatprep.subr.mxu0 0.0
          %1377 = vmatpush1.msra.mxu0 0.0
          %1378 = vmatprep.subr.mxu0 0.0
          %1379 = vmatpush1.msra.mxu0 0.0
          %1380 = vmatprep.subr.mxu0 0.0
          %1381 = vmatpush1.msra.mxu0 0.0
          %1382 = vmatprep.subr.mxu0 0.0
          %1383 = vmatpush1.msra.mxu0 0.0
          %1384 = vmatprep.subr.mxu0 0.0
          %1385 = vmatpush1.msra.mxu0 0.0
          %1386 = vmatprep.subr.mxu0 0.0
          %1387 = vmatpush1.msra.mxu0 0.0
          %1388 = vmatprep.subr.mxu0 0.0
          %1389 = vmatpush1.msra.mxu0 0.0
          %1390 = vmatprep.subr.mxu0 0.0
          %1391 = vmatpush1.msra.mxu0 0.0
          %1392 = vmatprep.subr.mxu0 0.0
          %1393 = vmatpush1.msra.mxu0 0.0
          %1394 = vmatprep.subr.mxu0 0.0
          %1395 = vmatpush1.msra.mxu0 0.0
          %1396 = vmatprep.subr.mxu0 0.0
          %1397 = vmatpush1.msra.mxu0 0.0
          %1398 = vmatprep.subr.mxu0 0.0
          %1399 = vmatpush1.msra.mxu0 0.0
          %1400 = vmatprep.subr.mxu0 0.0
          %1401 = vmatpush1.msra.mxu0 0.0
          %1402 = vmatprep.mubr.f32.mxu0 0.0
          %1403 = vmatmul.mubr.f32.gmra.mrb[0].mxu0 %v1322
          %v1404 = vpop.f32.mrb[0].mxu0
          %v1405 = vadd.f32 0.0, %v1404
          %v1406 = vpop.f32.mrb[0].mxu0
          %1407 = vmatprep.mubr.f32.mxu0 0.0
          %1408 = vmatmul.mubr.f32.gmra.mrb[0].mxu0 %v1324
          %v1409 = vpop.f32.mrb[0].mxu0
          %v1410 = vadd.f32 0.0, %v1409
          %v1411 = vpop.f32.mrb[0].mxu0
          %1412 = vmatprep.mubr.f32.mxu0 0.0
          %1413 = vmatmul.mubr.f32.gmra.mrb[0].mxu0 %v1326
          %v1414 = vpop.f32.mrb[0].mxu0
          %v1415 = vadd.f32 0.0, %v1414
          %v1416 = vpop.f32.mrb[0].mxu0
          %1417 = vmatprep.mubr.f32.mxu0 0.0
          %1418 = vmatmul.mubr.f32.gmra.mrb[0].mxu0 %v1328
          %v1419 = vpop.f32.mrb[0].mxu0
          %v1420 = vadd.f32 0.0, %v1419
          %v1421 = vpop.f32.mrb[0].mxu0
          %1422 = vmatprep.mubr.f32.mxu0 0.0
          %1423 = vmatmul.mubr.f32.gmra.mrb[0].mxu0 %v1330
          %v1424 = vpop.f32.mrb[0].mxu0
          %v1425 = vadd.f32 0.0, %v1424
          %v1426 = vpop.f32.mrb[0].mxu0
          %1427 = vmatprep.mubr.f32.mxu0 0.0
          %1428 = vmatmul.mubr.f32.gmra.mrb[0].mxu0 %v1332
          %v1429 = vpop.f32.mrb[0].mxu0
          %v1430 = vadd.f32 0.0, %v1429
          %v1431 = vpop.f32.mrb[0].mxu0
          %1432 = vmatprep.mubr.f32.mxu0 0.0
          %1433 = vmatmul.mubr.f32.gmra.mrb[0].mxu0 %v1334
          %v1434 = vpop.f32.mrb[0].mxu0
          %v1435 = vadd.f32 0.0, %v1434
          %v1436 = vpop.f32.mrb[0].mxu0
          %1437 = vmatprep.mubr.f32.mxu0 0.0
          %1438 = vmatmul.mubr.f32.gmra.mrb[0].mxu0 %v1336
          %v1439 = vpop.f32.mrb[0].mxu0
          %v1440 = vadd.f32 0.0, %v1439
          %v1441 = vpop.f32.mrb[0].mxu0
          %1442 = vdwg.mxu0
          %1443 = vrot.lane.b32.xlu0 %v863, 96
          %v1444 = vpop.permute.xlu0 %1443
          %1445 = vrot.lane.b32.xlu0 %v868, 96
          %v1446 = vpop.permute.xlu0 %1445
          %1447 = vrot.lane.b32.xlu0 %v873, 96
          %v1448 = vpop.permute.xlu0 %1447
          %1449 = vrot.lane.b32.xlu0 %v878, 96
          %v1450 = vpop.permute.xlu0 %1449
          %1451 = vrot.lane.b32.xlu0 %v883, 96
          %v1452 = vpop.permute.xlu0 %1451
          %1453 = vrot.lane.b32.xlu0 %v888, 96
          %v1454 = vpop.permute.xlu0 %1453
          %1455 = vrot.lane.b32.xlu0 %v893, 96
          %v1456 = vpop.permute.xlu0 %1455
          %1457 = vrot.lane.b32.xlu0 %v898, 96
          %v1458 = vpop.permute.xlu0 %1457
          %v1459 = vsel %vm902, %v1444, 0
          %v1461 = vsel %vm902, %v1446, 0
          %v1463 = vsel %vm902, %v1448, 0
          %v1465 = vsel %vm902, %v1450, 0
          %v1467 = vsel %vm902, %v1452, 0
          %v1469 = vsel %vm902, %v1454, 0
          %v1471 = vsel %vm902, %v1456, 0
          %v1473 = vsel %vm902, %v1458, 0
          %1475 = vmatprep.subr.mxu0 0.0
          %1476 = vmatpush1.msra.mxu0 %v901
          %1477 = vmatprep.subr.mxu0 0.0
          %1478 = vmatpush1.msra.mxu0 0.0
          %1479 = vmatprep.subr.mxu0 0.0
          %1480 = vmatpush1.msra.mxu0 0.0
          %1481 = vmatprep.subr.mxu0 0.0
          %1482 = vmatpush1.msra.mxu0 0.0
          %1483 = vmatprep.subr.mxu0 0.0
          %1484 = vmatpush1.msra.mxu0 0.0
          %1485 = vmatprep.subr.mxu0 0.0
          %1486 = vmatpush1.msra.mxu0 0.0
          %1487 = vmatprep.subr.mxu0 0.0
          %1488 = vmatpush1.msra.mxu0 0.0
          %1489 = vmatprep.subr.mxu0 0.0
          %1490 = vmatpush1.msra.mxu0 0.0
          %1491 = vmatprep.subr.mxu0 0.0
          %1492 = vmatpush1.msra.mxu0 0.0
          %1493 = vmatprep.subr.mxu0 0.0
          %1494 = vmatpush1.msra.mxu0 0.0
          %1495 = vmatprep.subr.mxu0 0.0
          %1496 = vmatpush1.msra.mxu0 0.0
          %1497 = vmatprep.subr.mxu0 0.0
          %1498 = vmatpush1.msra.mxu0 0.0
          %1499 = vmatprep.subr.mxu0 0.0
          %1500 = vmatpush1.msra.mxu0 0.0
          %1501 = vmatprep.subr.mxu0 0.0
          %1502 = vmatpush1.msra.mxu0 0.0
          %1503 = vmatprep.subr.mxu0 0.0
          %1504 = vmatpush1.msra.mxu0 0.0
          %1505 = vmatprep.subr.mxu0 0.0
          %1506 = vmatpush1.msra.mxu0 0.0
          %1507 = vmatprep.subr.mxu0 0.0
          %1508 = vmatpush1.msra.mxu0 0.0
          %1509 = vmatprep.subr.mxu0 0.0
          %1510 = vmatpush1.msra.mxu0 0.0
          %1511 = vmatprep.subr.mxu0 0.0
          %1512 = vmatpush1.msra.mxu0 0.0
          %1513 = vmatprep.subr.mxu0 0.0
          %1514 = vmatpush1.msra.mxu0 0.0
          %1515 = vmatprep.subr.mxu0 0.0
          %1516 = vmatpush1.msra.mxu0 0.0
          %1517 = vmatprep.subr.mxu0 0.0
          %1518 = vmatpush1.msra.mxu0 0.0
          %1519 = vmatprep.subr.mxu0 0.0
          %1520 = vmatpush1.msra.mxu0 0.0
          %1521 = vmatprep.subr.mxu0 0.0
          %1522 = vmatpush1.msra.mxu0 0.0
          %1523 = vmatprep.subr.mxu0 0.0
          %1524 = vmatpush1.msra.mxu0 0.0
          %1525 = vmatprep.subr.mxu0 0.0
          %1526 = vmatpush1.msra.mxu0 0.0
          %1527 = vmatprep.subr.mxu0 0.0
          %1528 = vmatpush1.msra.mxu0 0.0
          %1529 = vmatprep.subr.mxu0 0.0
          %1530 = vmatpush1.msra.mxu0 0.0
          %1531 = vmatprep.subr.mxu0 0.0
          %1532 = vmatpush1.msra.mxu0 0.0
          %1533 = vmatprep.subr.mxu0 0.0
          %1534 = vmatpush1.msra.mxu0 0.0
          %1535 = vmatprep.subr.mxu0 0.0
          %1536 = vmatpush1.msra.mxu0 0.0
          %1537 = vmatprep.subr.mxu0 0.0
          %1538 = vmatpush1.msra.mxu0 0.0
          %1539 = vmatprep.mubr.f32.mxu0 0.0
          %1540 = vmatmul.mubr.f32.gmra.mrb[0].mxu0 %v1459
          %v1541 = vpop.f32.mrb[0].mxu0
          %v1542 = vadd.f32 0.0, %v1541
          %v1543 = vpop.f32.mrb[0].mxu0
          %1544 = vmatprep.mubr.f32.mxu0 0.0
          %1545 = vmatmul.mubr.f32.gmra.mrb[0].mxu0 %v1461
          %v1546 = vpop.f32.mrb[0].mxu0
          %v1547 = vadd.f32 0.0, %v1546
          %v1548 = vpop.f32.mrb[0].mxu0
          %1549 = vmatprep.mubr.f32.mxu0 0.0
          %1550 = vmatmul.mubr.f32.gmra.mrb[0].mxu0 %v1463
          %v1551 = vpop.f32.mrb[0].mxu0
          %v1552 = vadd.f32 0.0, %v1551
          %v1553 = vpop.f32.mrb[0].mxu0
          %1554 = vmatprep.mubr.f32.mxu0 0.0
          %1555 = vmatmul.mubr.f32.gmra.mrb[0].mxu0 %v1465
          %v1556 = vpop.f32.mrb[0].mxu0
          %v1557 = vadd.f32 0.0, %v1556
          %v1558 = vpop.f32.mrb[0].mxu0
          %1559 = vmatprep.mubr.f32.mxu0 0.0
          %1560 = vmatmul.mubr.f32.gmra.mrb[0].mxu0 %v1467
          %v1561 = vpop.f32.mrb[0].mxu0
          %v1562 = vadd.f32 0.0, %v1561
          %v1563 = vpop.f32.mrb[0].mxu0
          %1564 = vmatprep.mubr.f32.mxu0 0.0
          %1565 = vmatmul.mubr.f32.gmra.mrb[0].mxu0 %v1469
          %v1566 = vpop.f32.mrb[0].mxu0
          %v1567 = vadd.f32 0.0, %v1566
          %v1568 = vpop.f32.mrb[0].mxu0
          %1569 = vmatprep.mubr.f32.mxu0 0.0
          %1570 = vmatmul.mubr.f32.gmra.mrb[0].mxu0 %v1471
          %v1571 = vpop.f32.mrb[0].mxu0
          %v1572 = vadd.f32 0.0, %v1571
          %v1573 = vpop.f32.mrb[0].mxu0
          %1574 = vmatprep.mubr.f32.mxu0 0.0
          %1575 = vmatmul.mubr.f32.gmra.mrb[0].mxu0 %v1473
          %v1576 = vpop.f32.mrb[0].mxu0
          %v1577 = vadd.f32 0.0, %v1576
          %v1578 = vpop.f32.mrb[0].mxu0
          %1579 = vdwg.mxu0
          %1580 = vrot.lane.b32.xlu0 %v863, 88
          %v1581 = vpop.permute.xlu0 %1580
          %1582 = vrot.lane.b32.xlu0 %v868, 88
          %v1583 = vpop.permute.xlu0 %1582
          %1584 = vrot.lane.b32.xlu0 %v873, 88
          %v1585 = vpop.permute.xlu0 %1584
          %1586 = vrot.lane.b32.xlu0 %v878, 88
          %v1587 = vpop.permute.xlu0 %1586
          %1588 = vrot.lane.b32.xlu0 %v883, 88
          %v1589 = vpop.permute.xlu0 %1588
          %1590 = vrot.lane.b32.xlu0 %v888, 88
          %v1591 = vpop.permute.xlu0 %1590
          %1592 = vrot.lane.b32.xlu0 %v893, 88
          %v1593 = vpop.permute.xlu0 %1592
          %1594 = vrot.lane.b32.xlu0 %v898, 88
          %v1595 = vpop.permute.xlu0 %1594
          %v1596 = vsel %vm902, %v1581, 0
          %v1598 = vsel %vm902, %v1583, 0
          %v1600 = vsel %vm902, %v1585, 0
          %v1602 = vsel %vm902, %v1587, 0
          %v1604 = vsel %vm902, %v1589, 0
          %v1606 = vsel %vm902, %v1591, 0
          %v1608 = vsel %vm902, %v1593, 0
          %v1610 = vsel %vm902, %v1595, 0
          %1612 = vmatprep.subr.mxu0 0.0
          %1613 = vmatpush1.msra.mxu0 %v901
          %1614 = vmatprep.subr.mxu0 0.0
          %1615 = vmatpush1.msra.mxu0 0.0
          %1616 = vmatprep.subr.mxu0 0.0
          %1617 = vmatpush1.msra.mxu0 0.0
          %1618 = vmatprep.subr.mxu0 0.0
          %1619 = vmatpush1.msra.mxu0 0.0
          %1620 = vmatprep.subr.mxu0 0.0
          %1621 = vmatpush1.msra.mxu0 0.0
          %1622 = vmatprep.subr.mxu0 0.0
          %1623 = vmatpush1.msra.mxu0 0.0
          %1624 = vmatprep.subr.mxu0 0.0
          %1625 = vmatpush1.msra.mxu0 0.0
          %1626 = vmatprep.subr.mxu0 0.0
          %1627 = vmatpush1.msra.mxu0 0.0
          %1628 = vmatprep.subr.mxu0 0.0
          %1629 = vmatpush1.msra.mxu0 0.0
          %1630 = vmatprep.subr.mxu0 0.0
          %1631 = vmatpush1.msra.mxu0 0.0
          %1632 = vmatprep.subr.mxu0 0.0
          %1633 = vmatpush1.msra.mxu0 0.0
          %1634 = vmatprep.subr.mxu0 0.0
          %1635 = vmatpush1.msra.mxu0 0.0
          %1636 = vmatprep.subr.mxu0 0.0
          %1637 = vmatpush1.msra.mxu0 0.0
          %1638 = vmatprep.subr.mxu0 0.0
          %1639 = vmatpush1.msra.mxu0 0.0
          %1640 = vmatprep.subr.mxu0 0.0
          %1641 = vmatpush1.msra.mxu0 0.0
          %1642 = vmatprep.subr.mxu0 0.0
          %1643 = vmatpush1.msra.mxu0 0.0
          %1644 = vmatprep.subr.mxu0 0.0
          %1645 = vmatpush1.msra.mxu0 0.0
          %1646 = vmatprep.subr.mxu0 0.0
          %1647 = vmatpush1.msra.mxu0 0.0
          %1648 = vmatprep.subr.mxu0 0.0
          %1649 = vmatpush1.msra.mxu0 0.0
          %1650 = vmatprep.subr.mxu0 0.0
          %1651 = vmatpush1.msra.mxu0 0.0
          %1652 = vmatprep.subr.mxu0 0.0
          %1653 = vmatpush1.msra.mxu0 0.0
          %1654 = vmatprep.subr.mxu0 0.0
          %1655 = vmatpush1.msra.mxu0 0.0
          %1656 = vmatprep.subr.mxu0 0.0
          %1657 = vmatpush1.msra.mxu0 0.0
          %1658 = vmatprep.subr.mxu0 0.0
          %1659 = vmatpush1.msra.mxu0 0.0
          %1660 = vmatprep.subr.mxu0 0.0
          %1661 = vmatpush1.msra.mxu0 0.0
          %1662 = vmatprep.subr.mxu0 0.0
          %1663 = vmatpush1.msra.mxu0 0.0
          %1664 = vmatprep.subr.mxu0 0.0
          %1665 = vmatpush1.msra.mxu0 0.0
          %1666 = vmatprep.subr.mxu0 0.0
          %1667 = vmatpush1.msra.mxu0 0.0
          %1668 = vmatprep.subr.mxu0 0.0
          %1669 = vmatpush1.msra.mxu0 0.0
          %1670 = vmatprep.subr.mxu0 0.0
          %1671 = vmatpush1.msra.mxu0 0.0
          %1672 = vmatprep.subr.mxu0 0.0
          %1673 = vmatpush1.msra.mxu0 0.0
          %1674 = vmatprep.subr.mxu0 0.0
          %1675 = vmatpush1.msra.mxu0 0.0
          %1676 = vmatprep.mubr.f32.mxu0 0.0
          %1677 = vmatmul.mubr.f32.gmra.mrb[0].mxu0 %v1596
          %v1678 = vpop.f32.mrb[0].mxu0
          %v1679 = vadd.f32 0.0, %v1678
          %v1680 = vpop.f32.mrb[0].mxu0
          %1681 = vmatprep.mubr.f32.mxu0 0.0
          %1682 = vmatmul.mubr.f32.gmra.mrb[0].mxu0 %v1598
          %v1683 = vpop.f32.mrb[0].mxu0
          %v1684 = vadd.f32 0.0, %v1683
          %v1685 = vpop.f32.mrb[0].mxu0
          %1686 = vmatprep.mubr.f32.mxu0 0.0
          %1687 = vmatmul.mubr.f32.gmra.mrb[0].mxu0 %v1600
          %v1688 = vpop.f32.mrb[0].mxu0
          %v1689 = vadd.f32 0.0, %v1688
          %v1690 = vpop.f32.mrb[0].mxu0
          %1691 = vmatprep.mubr.f32.mxu0 0.0
          %1692 = vmatmul.mubr.f32.gmra.mrb[0].mxu0 %v1602
          %v1693 = vpop.f32.mrb[0].mxu0
          %v1694 = vadd.f32 0.0, %v1693
          %v1695 = vpop.f32.mrb[0].mxu0
          %1696 = vmatprep.mubr.f32.mxu0 0.0
          %1697 = vmatmul.mubr.f32.gmra.mrb[0].mxu0 %v1604
          %v1698 = vpop.f32.mrb[0].mxu0
          %v1699 = vadd.f32 0.0, %v1698
          %v1700 = vpop.f32.mrb[0].mxu0
          %1701 = vmatprep.mubr.f32.mxu0 0.0
          %1702 = vmatmul.mubr.f32.gmra.mrb[0].mxu0 %v1606
          %v1703 = vpop.f32.mrb[0].mxu0
          %v1704 = vadd.f32 0.0, %v1703
          %v1705 = vpop.f32.mrb[0].mxu0
          %1706 = vmatprep.mubr.f32.mxu0 0.0
          %1707 = vmatmul.mubr.f32.gmra.mrb[0].mxu0 %v1608
          %v1708 = vpop.f32.mrb[0].mxu0
          %v1709 = vadd.f32 0.0, %v1708
          %v1710 = vpop.f32.mrb[0].mxu0
          %1711 = vmatprep.mubr.f32.mxu0 0.0
          %1712 = vmatmul.mubr.f32.gmra.mrb[0].mxu0 %v1610
          %v1713 = vpop.f32.mrb[0].mxu0
          %v1714 = vadd.f32 0.0, %v1713
          %v1715 = vpop.f32.mrb[0].mxu0
          %1716 = vdwg.mxu0
          %1717 = vrot.lane.b32.xlu0 %v863, 80
          %v1718 = vpop.permute.xlu0 %1717
          %1719 = vrot.lane.b32.xlu0 %v868, 80
          %v1720 = vpop.permute.xlu0 %1719
          %1721 = vrot.lane.b32.xlu0 %v873, 80
          %v1722 = vpop.permute.xlu0 %1721
          %1723 = vrot.lane.b32.xlu0 %v878, 80
          %v1724 = vpop.permute.xlu0 %1723
          %1725 = vrot.lane.b32.xlu0 %v883, 80
          %v1726 = vpop.permute.xlu0 %1725
          %1727 = vrot.lane.b32.xlu0 %v888, 80
          %v1728 = vpop.permute.xlu0 %1727
          %1729 = vrot.lane.b32.xlu0 %v893, 80
          %v1730 = vpop.permute.xlu0 %1729
          %1731 = vrot.lane.b32.xlu0 %v898, 80
          %v1732 = vpop.permute.xlu0 %1731
          %v1733 = vsel %vm902, %v1718, 0
          %v1735 = vsel %vm902, %v1720, 0
          %v1737 = vsel %vm902, %v1722, 0
          %v1739 = vsel %vm902, %v1724, 0
          %v1741 = vsel %vm902, %v1726, 0
          %v1743 = vsel %vm902, %v1728, 0
          %v1745 = vsel %vm902, %v1730, 0
          %v1747 = vsel %vm902, %v1732, 0
          %1749 = vmatprep.subr.mxu0 0.0
          %1750 = vmatpush1.msra.mxu0 %v901
          %1751 = vmatprep.subr.mxu0 0.0
          %1752 = vmatpush1.msra.mxu0 0.0
          %1753 = vmatprep.subr.mxu0 0.0
          %1754 = vmatpush1.msra.mxu0 0.0
          %1755 = vmatprep.subr.mxu0 0.0
          %1756 = vmatpush1.msra.mxu0 0.0
          %1757 = vmatprep.subr.mxu0 0.0
          %1758 = vmatpush1.msra.mxu0 0.0
          %1759 = vmatprep.subr.mxu0 0.0
          %1760 = vmatpush1.msra.mxu0 0.0
          %1761 = vmatprep.subr.mxu0 0.0
          %1762 = vmatpush1.msra.mxu0 0.0
          %1763 = vmatprep.subr.mxu0 0.0
          %1764 = vmatpush1.msra.mxu0 0.0
          %1765 = vmatprep.subr.mxu0 0.0
          %1766 = vmatpush1.msra.mxu0 0.0
          %1767 = vmatprep.subr.mxu0 0.0
          %1768 = vmatpush1.msra.mxu0 0.0
          %1769 = vmatprep.subr.mxu0 0.0
          %1770 = vmatpush1.msra.mxu0 0.0
          %1771 = vmatprep.subr.mxu0 0.0
          %1772 = vmatpush1.msra.mxu0 0.0
          %1773 = vmatprep.subr.mxu0 0.0
          %1774 = vmatpush1.msra.mxu0 0.0
          %1775 = vmatprep.subr.mxu0 0.0
          %1776 = vmatpush1.msra.mxu0 0.0
          %1777 = vmatprep.subr.mxu0 0.0
          %1778 = vmatpush1.msra.mxu0 0.0
          %1779 = vmatprep.subr.mxu0 0.0
          %1780 = vmatpush1.msra.mxu0 0.0
          %1781 = vmatprep.subr.mxu0 0.0
          %1782 = vmatpush1.msra.mxu0 0.0
          %1783 = vmatprep.subr.mxu0 0.0
          %1784 = vmatpush1.msra.mxu0 0.0
          %1785 = vmatprep.subr.mxu0 0.0
          %1786 = vmatpush1.msra.mxu0 0.0
          %1787 = vmatprep.subr.mxu0 0.0
          %1788 = vmatpush1.msra.mxu0 0.0
          %1789 = vmatprep.subr.mxu0 0.0
          %1790 = vmatpush1.msra.mxu0 0.0
          %1791 = vmatprep.subr.mxu0 0.0
          %1792 = vmatpush1.msra.mxu0 0.0
          %1793 = vmatprep.subr.mxu0 0.0
          %1794 = vmatpush1.msra.mxu0 0.0
          %1795 = vmatprep.subr.mxu0 0.0
          %1796 = vmatpush1.msra.mxu0 0.0
          %1797 = vmatprep.subr.mxu0 0.0
          %1798 = vmatpush1.msra.mxu0 0.0
          %1799 = vmatprep.subr.mxu0 0.0
          %1800 = vmatpush1.msra.mxu0 0.0
          %1801 = vmatprep.subr.mxu0 0.0
          %1802 = vmatpush1.msra.mxu0 0.0
          %1803 = vmatprep.subr.mxu0 0.0
          %1804 = vmatpush1.msra.mxu0 0.0
          %1805 = vmatprep.subr.mxu0 0.0
          %1806 = vmatpush1.msra.mxu0 0.0
          %1807 = vmatprep.subr.mxu0 0.0
          %1808 = vmatpush1.msra.mxu0 0.0
          %1809 = vmatprep.subr.mxu0 0.0
          %1810 = vmatpush1.msra.mxu0 0.0
          %1811 = vmatprep.subr.mxu0 0.0
          %1812 = vmatpush1.msra.mxu0 0.0
          %1813 = vmatprep.mubr.f32.mxu0 0.0
          %1814 = vmatmul.mubr.f32.gmra.mrb[0].mxu0 %v1733
          %v1815 = vpop.f32.mrb[0].mxu0
          %v1816 = vadd.f32 0.0, %v1815
          %v1817 = vpop.f32.mrb[0].mxu0
          %1818 = vmatprep.mubr.f32.mxu0 0.0
          %1819 = vmatmul.mubr.f32.gmra.mrb[0].mxu0 %v1735
          %v1820 = vpop.f32.mrb[0].mxu0
          %v1821 = vadd.f32 0.0, %v1820
          %v1822 = vpop.f32.mrb[0].mxu0
          %1823 = vmatprep.mubr.f32.mxu0 0.0
          %1824 = vmatmul.mubr.f32.gmra.mrb[0].mxu0 %v1737
          %v1825 = vpop.f32.mrb[0].mxu0
          %v1826 = vadd.f32 0.0, %v1825
          %v1827 = vpop.f32.mrb[0].mxu0
          %1828 = vmatprep.mubr.f32.mxu0 0.0
          %1829 = vmatmul.mubr.f32.gmra.mrb[0].mxu0 %v1739
          %v1830 = vpop.f32.mrb[0].mxu0
          %v1831 = vadd.f32 0.0, %v1830
          %v1832 = vpop.f32.mrb[0].mxu0
          %1833 = vmatprep.mubr.f32.mxu0 0.0
          %1834 = vmatmul.mubr.f32.gmra.mrb[0].mxu0 %v1741
          %v1835 = vpop.f32.mrb[0].mxu0
          %v1836 = vadd.f32 0.0, %v1835
          %v1837 = vpop.f32.mrb[0].mxu0
          %1838 = vmatprep.mubr.f32.mxu0 0.0
          %1839 = vmatmul.mubr.f32.gmra.mrb[0].mxu0 %v1743
          %v1840 = vpop.f32.mrb[0].mxu0
          %v1841 = vadd.f32 0.0, %v1840
          %v1842 = vpop.f32.mrb[0].mxu0
          %1843 = vmatprep.mubr.f32.mxu0 0.0
          %1844 = vmatmul.mubr.f32.gmra.mrb[0].mxu0 %v1745
          %v1845 = vpop.f32.mrb[0].mxu0
          %v1846 = vadd.f32 0.0, %v1845
          %v1847 = vpop.f32.mrb[0].mxu0
          %1848 = vmatprep.mubr.f32.mxu0 0.0
          %1849 = vmatmul.mubr.f32.gmra.mrb[0].mxu0 %v1747
          %v1850 = vpop.f32.mrb[0].mxu0
          %v1851 = vadd.f32 0.0, %v1850
          %v1852 = vpop.f32.mrb[0].mxu0
          %1853 = vdwg.mxu0
          %1854 = vrot.lane.b32.xlu0 %v863, 72
          %v1855 = vpop.permute.xlu0 %1854
          %1856 = vrot.lane.b32.xlu0 %v868, 72
          %v1857 = vpop.permute.xlu0 %1856
          %1858 = vrot.lane.b32.xlu0 %v873, 72
          %v1859 = vpop.permute.xlu0 %1858
          %1860 = vrot.lane.b32.xlu0 %v878, 72
          %v1861 = vpop.permute.xlu0 %1860
          %1862 = vrot.lane.b32.xlu0 %v883, 72
          %v1863 = vpop.permute.xlu0 %1862
          %1864 = vrot.lane.b32.xlu0 %v888, 72
          %v1865 = vpop.permute.xlu0 %1864
          %1866 = vrot.lane.b32.xlu0 %v893, 72
          %v1867 = vpop.permute.xlu0 %1866
          %1868 = vrot.lane.b32.xlu0 %v898, 72
          %v1869 = vpop.permute.xlu0 %1868
          %v1870 = vsel %vm902, %v1855, 0
          %v1872 = vsel %vm902, %v1857, 0
          %v1874 = vsel %vm902, %v1859, 0
          %v1876 = vsel %vm902, %v1861, 0
          %v1878 = vsel %vm902, %v1863, 0
          %v1880 = vsel %vm902, %v1865, 0
          %v1882 = vsel %vm902, %v1867, 0
          %v1884 = vsel %vm902, %v1869, 0
          %1886 = vmatprep.subr.mxu0 0.0
          %1887 = vmatpush1.msra.mxu0 %v901
          %1888 = vmatprep.subr.mxu0 0.0
          %1889 = vmatpush1.msra.mxu0 0.0
          %1890 = vmatprep.subr.mxu0 0.0
          %1891 = vmatpush1.msra.mxu0 0.0
          %1892 = vmatprep.subr.mxu0 0.0
          %1893 = vmatpush1.msra.mxu0 0.0
          %1894 = vmatprep.subr.mxu0 0.0
          %1895 = vmatpush1.msra.mxu0 0.0
          %1896 = vmatprep.subr.mxu0 0.0
          %1897 = vmatpush1.msra.mxu0 0.0
          %1898 = vmatprep.subr.mxu0 0.0
          %1899 = vmatpush1.msra.mxu0 0.0
          %1900 = vmatprep.subr.mxu0 0.0
          %1901 = vmatpush1.msra.mxu0 0.0
          %1902 = vmatprep.subr.mxu0 0.0
          %1903 = vmatpush1.msra.mxu0 0.0
          %1904 = vmatprep.subr.mxu0 0.0
          %1905 = vmatpush1.msra.mxu0 0.0
          %1906 = vmatprep.subr.mxu0 0.0
          %1907 = vmatpush1.msra.mxu0 0.0
          %1908 = vmatprep.subr.mxu0 0.0
          %1909 = vmatpush1.msra.mxu0 0.0
          %1910 = vmatprep.subr.mxu0 0.0
          %1911 = vmatpush1.msra.mxu0 0.0
          %1912 = vmatprep.subr.mxu0 0.0
          %1913 = vmatpush1.msra.mxu0 0.0
          %1914 = vmatprep.subr.mxu0 0.0
          %1915 = vmatpush1.msra.mxu0 0.0
          %1916 = vmatprep.subr.mxu0 0.0
          %1917 = vmatpush1.msra.mxu0 0.0
          %1918 = vmatprep.subr.mxu0 0.0
          %1919 = vmatpush1.msra.mxu0 0.0
          %1920 = vmatprep.subr.mxu0 0.0
          %1921 = vmatpush1.msra.mxu0 0.0
          %1922 = vmatprep.subr.mxu0 0.0
          %1923 = vmatpush1.msra.mxu0 0.0
          %1924 = vmatprep.subr.mxu0 0.0
          %1925 = vmatpush1.msra.mxu0 0.0
          %1926 = vmatprep.subr.mxu0 0.0
          %1927 = vmatpush1.msra.mxu0 0.0
          %1928 = vmatprep.subr.mxu0 0.0
          %1929 = vmatpush1.msra.mxu0 0.0
          %1930 = vmatprep.subr.mxu0 0.0
          %1931 = vmatpush1.msra.mxu0 0.0
          %1932 = vmatprep.subr.mxu0 0.0
          %1933 = vmatpush1.msra.mxu0 0.0
          %1934 = vmatprep.subr.mxu0 0.0
          %1935 = vmatpush1.msra.mxu0 0.0
          %1936 = vmatprep.subr.mxu0 0.0
          %1937 = vmatpush1.msra.mxu0 0.0
          %1938 = vmatprep.subr.mxu0 0.0
          %1939 = vmatpush1.msra.mxu0 0.0
          %1940 = vmatprep.subr.mxu0 0.0
          %1941 = vmatpush1.msra.mxu0 0.0
          %1942 = vmatprep.subr.mxu0 0.0
          %1943 = vmatpush1.msra.mxu0 0.0
          %1944 = vmatprep.subr.mxu0 0.0
          %1945 = vmatpush1.msra.mxu0 0.0
          %1946 = vmatprep.subr.mxu0 0.0
          %1947 = vmatpush1.msra.mxu0 0.0
          %1948 = vmatprep.subr.mxu0 0.0
          %1949 = vmatpush1.msra.mxu0 0.0
          %1950 = vmatprep.mubr.f32.mxu0 0.0
          %1951 = vmatmul.mubr.f32.gmra.mrb[0].mxu0 %v1870
          %v1952 = vpop.f32.mrb[0].mxu0
          %v1953 = vadd.f32 0.0, %v1952
          %v1954 = vpop.f32.mrb[0].mxu0
          %1955 = vmatprep.mubr.f32.mxu0 0.0
          %1956 = vmatmul.mubr.f32.gmra.mrb[0].mxu0 %v1872
          %v1957 = vpop.f32.mrb[0].mxu0
          %v1958 = vadd.f32 0.0, %v1957
          %v1959 = vpop.f32.mrb[0].mxu0
          %1960 = vmatprep.mubr.f32.mxu0 0.0
          %1961 = vmatmul.mubr.f32.gmra.mrb[0].mxu0 %v1874
          %v1962 = vpop.f32.mrb[0].mxu0
          %v1963 = vadd.f32 0.0, %v1962
          %v1964 = vpop.f32.mrb[0].mxu0
          %1965 = vmatprep.mubr.f32.mxu0 0.0
          %1966 = vmatmul.mubr.f32.gmra.mrb[0].mxu0 %v1876
          %v1967 = vpop.f32.mrb[0].mxu0
          %v1968 = vadd.f32 0.0, %v1967
          %v1969 = vpop.f32.mrb[0].mxu0
          %1970 = vmatprep.mubr.f32.mxu0 0.0
          %1971 = vmatmul.mubr.f32.gmra.mrb[0].mxu0 %v1878
          %v1972 = vpop.f32.mrb[0].mxu0
          %v1973 = vadd.f32 0.0, %v1972
          %v1974 = vpop.f32.mrb[0].mxu0
          %1975 = vmatprep.mubr.f32.mxu0 0.0
          %1976 = vmatmul.mubr.f32.gmra.mrb[0].mxu0 %v1880
          %v1977 = vpop.f32.mrb[0].mxu0
          %v1978 = vadd.f32 0.0, %v1977
          %v1979 = vpop.f32.mrb[0].mxu0
          %1980 = vmatprep.mubr.f32.mxu0 0.0
          %1981 = vmatmul.mubr.f32.gmra.mrb[0].mxu0 %v1882
          %v1982 = vpop.f32.mrb[0].mxu0
          %v1983 = vadd.f32 0.0, %v1982
          %v1984 = vpop.f32.mrb[0].mxu0
          %1985 = vmatprep.mubr.f32.mxu0 0.0
          %1986 = vmatmul.mubr.f32.gmra.mrb[0].mxu0 %v1884
          %v1987 = vpop.f32.mrb[0].mxu0
          %v1988 = vadd.f32 0.0, %v1987
          %v1989 = vpop.f32.mrb[0].mxu0
          %1990 = vdwg.mxu0
          %vm1991 = vcmask 261120
          %1992 = vst.msk [vmem:[%s701] sm:$0xff] %vm1991, %v994
          %1993 = vst.msk [vmem:[%s701 + $0x40] sm:$0xff] %vm1991, %v999
          %1994 = vst.msk [vmem:[%s701 + $0x80] sm:$0xff] %vm1991, %v1004
          %1995 = vst.msk [vmem:[%s701 + $0xc0] sm:$0xff] %vm1991, %v1009
          %1996 = vst.msk [vmem:[%s701 + $0x100] sm:$0xff] %vm1991, %v1014
          %1997 = vst.msk [vmem:[%s701 + $0x140] sm:$0xff] %vm1991, %v1019
          %1998 = vst.msk [vmem:[%s701 + $0x180] sm:$0xff] %vm1991, %v1024
          %1999 = vst.msk [vmem:[%s701 + $0x1c0] sm:$0xff] %vm1991, %v1029
          %2008 = vrot.lane.b32.xlu0 %v994, 32
          %v2009 = vpop.permute.xlu0 %2008
          %2010 = vrot.lane.b32.xlu0 %v999, 32
          %v2011 = vpop.permute.xlu0 %2010
          %2012 = vrot.lane.b32.xlu0 %v1004, 32
          %v2013 = vpop.permute.xlu0 %2012
          %2014 = vrot.lane.b32.xlu0 %v1009, 32
          %v2015 = vpop.permute.xlu0 %2014
          %2016 = vrot.lane.b32.xlu0 %v1014, 32
          %v2017 = vpop.permute.xlu0 %2016
          %2018 = vrot.lane.b32.xlu0 %v1019, 32
          %v2019 = vpop.permute.xlu0 %2018
          %2020 = vrot.lane.b32.xlu0 %v1024, 32
          %v2021 = vpop.permute.xlu0 %2020
          %2022 = vrot.lane.b32.xlu0 %v1029, 32
          %v2023 = vpop.permute.xlu0 %2022
          %vm2032 = vcmask 523520
          %2033 = vst.msk [vmem:[%s701] sm:$0xff] %vm2032, %v2009
          %2034 = vst.msk [vmem:[%s701 + $0x40] sm:$0xff] %vm2032, %v2011
          %2035 = vst.msk [vmem:[%s701 + $0x80] sm:$0xff] %vm2032, %v2013
          %2036 = vst.msk [vmem:[%s701 + $0xc0] sm:$0xff] %vm2032, %v2015
          %2037 = vst.msk [vmem:[%s701 + $0x100] sm:$0xff] %vm2032, %v2017
          %2038 = vst.msk [vmem:[%s701 + $0x140] sm:$0xff] %vm2032, %v2019
          %2039 = vst.msk [vmem:[%s701 + $0x180] sm:$0xff] %vm2032, %v2021
          %2040 = vst.msk [vmem:[%s701 + $0x1c0] sm:$0xff] %vm2032, %v2023
          %v2041 = vmul.f32 %v994, 0.875
          %v2042 = vmul.f32 %v999, 0.875
          %v2043 = vmul.f32 %v1004, 0.875
          %v2044 = vmul.f32 %v1009, 0.875
          %v2045 = vmul.f32 %v1014, 0.875
          %v2046 = vmul.f32 %v1019, 0.875
          %v2047 = vmul.f32 %v1024, 0.875
          %v2048 = vmul.f32 %v1029, 0.875
          %v2049 = vmul.f32 %v1131, 0.125
          %v2050 = vmul.f32 %v1136, 0.125
          %v2051 = vmul.f32 %v1141, 0.125
          %v2052 = vmul.f32 %v1146, 0.125
          %v2053 = vmul.f32 %v1151, 0.125
          %v2054 = vmul.f32 %v1156, 0.125
          %v2055 = vmul.f32 %v1161, 0.125
          %v2056 = vmul.f32 %v1166, 0.125
          %v2057 = vadd.f32 %v2041, %v2049
          %v2058 = vadd.f32 %v2042, %v2050
          %v2059 = vadd.f32 %v2043, %v2051
          %v2060 = vadd.f32 %v2044, %v2052
          %v2061 = vadd.f32 %v2045, %v2053
          %v2062 = vadd.f32 %v2046, %v2054
          %v2063 = vadd.f32 %v2047, %v2055
          %v2064 = vadd.f32 %v2048, %v2056
          %2073 = vrot.lane.b32.xlu0 %v2057, 64
          %v2074 = vpop.permute.xlu0 %2073
          %2075 = vrot.lane.b32.xlu0 %v2058, 64
          %v2076 = vpop.permute.xlu0 %2075
          %2077 = vrot.lane.b32.xlu0 %v2059, 64
          %v2078 = vpop.permute.xlu0 %2077
          %2079 = vrot.lane.b32.xlu0 %v2060, 64
          %v2080 = vpop.permute.xlu0 %2079
          %2081 = vrot.lane.b32.xlu0 %v2061, 64
          %v2082 = vpop.permute.xlu0 %2081
          %2083 = vrot.lane.b32.xlu0 %v2062, 64
          %v2084 = vpop.permute.xlu0 %2083
          %2085 = vrot.lane.b32.xlu0 %v2063, 64
          %v2086 = vpop.permute.xlu0 %2085
          %2087 = vrot.lane.b32.xlu0 %v2064, 64
          %v2088 = vpop.permute.xlu0 %2087
          %vm2097 = vcmask 785920
          %2098 = vst.msk [vmem:[%s701] sm:$0xff] %vm2097, %v2074
          %2099 = vst.msk [vmem:[%s701 + $0x40] sm:$0xff] %vm2097, %v2076
          %2100 = vst.msk [vmem:[%s701 + $0x80] sm:$0xff] %vm2097, %v2078
          %2101 = vst.msk [vmem:[%s701 + $0xc0] sm:$0xff] %vm2097, %v2080
          %2102 = vst.msk [vmem:[%s701 + $0x100] sm:$0xff] %vm2097, %v2082
          %2103 = vst.msk [vmem:[%s701 + $0x140] sm:$0xff] %vm2097, %v2084
          %2104 = vst.msk [vmem:[%s701 + $0x180] sm:$0xff] %vm2097, %v2086
          %2105 = vst.msk [vmem:[%s701 + $0x1c0] sm:$0xff] %vm2097, %v2088
          %v2106 = vmul.f32 %v994, 0.625
          %v2107 = vmul.f32 %v999, 0.625
          %v2108 = vmul.f32 %v1004, 0.625
          %v2109 = vmul.f32 %v1009, 0.625
          %v2110 = vmul.f32 %v1014, 0.625
          %v2111 = vmul.f32 %v1019, 0.625
          %v2112 = vmul.f32 %v1024, 0.625
          %v2113 = vmul.f32 %v1029, 0.625
          %v2114 = vmul.f32 %v1131, 0.375
          %v2115 = vmul.f32 %v1136, 0.375
          %v2116 = vmul.f32 %v1141, 0.375
          %v2117 = vmul.f32 %v1146, 0.375
          %v2118 = vmul.f32 %v1151, 0.375
          %v2119 = vmul.f32 %v1156, 0.375
          %v2120 = vmul.f32 %v1161, 0.375
          %v2121 = vmul.f32 %v1166, 0.375
          %v2122 = vadd.f32 %v2106, %v2114
          %v2123 = vadd.f32 %v2107, %v2115
          %v2124 = vadd.f32 %v2108, %v2116
          %v2125 = vadd.f32 %v2109, %v2117
          %v2126 = vadd.f32 %v2110, %v2118
          %v2127 = vadd.f32 %v2111, %v2119
          %v2128 = vadd.f32 %v2112, %v2120
          %v2129 = vadd.f32 %v2113, %v2121
          %2138 = vrot.lane.b32.xlu0 %v2122, 96
          %v2139 = vpop.permute.xlu0 %2138
          %2140 = vrot.lane.b32.xlu0 %v2123, 96
          %v2141 = vpop.permute.xlu0 %2140
          %2142 = vrot.lane.b32.xlu0 %v2124, 96
          %v2143 = vpop.permute.xlu0 %2142
          %2144 = vrot.lane.b32.xlu0 %v2125, 96
          %v2145 = vpop.permute.xlu0 %2144
          %2146 = vrot.lane.b32.xlu0 %v2126, 96
          %v2147 = vpop.permute.xlu0 %2146
          %2148 = vrot.lane.b32.xlu0 %v2127, 96
          %v2149 = vpop.permute.xlu0 %2148
          %2150 = vrot.lane.b32.xlu0 %v2128, 96
          %v2151 = vpop.permute.xlu0 %2150
          %2152 = vrot.lane.b32.xlu0 %v2129, 96
          %v2153 = vpop.permute.xlu0 %2152
          %vm2162 = vcmask 1048320
          %2163 = vst.msk [vmem:[%s701] sm:$0xff] %vm2162, %v2139
          %2164 = vst.msk [vmem:[%s701 + $0x40] sm:$0xff] %vm2162, %v2141
          %2165 = vst.msk [vmem:[%s701 + $0x80] sm:$0xff] %vm2162, %v2143
          %2166 = vst.msk [vmem:[%s701 + $0xc0] sm:$0xff] %vm2162, %v2145
          %2167 = vst.msk [vmem:[%s701 + $0x100] sm:$0xff] %vm2162, %v2147
          %2168 = vst.msk [vmem:[%s701 + $0x140] sm:$0xff] %vm2162, %v2149
          %2169 = vst.msk [vmem:[%s701 + $0x180] sm:$0xff] %vm2162, %v2151
          %2170 = vst.msk [vmem:[%s701 + $0x1c0] sm:$0xff] %vm2162, %v2153
          %v2171 = vmul.f32 %v994, 0.375
          %v2172 = vmul.f32 %v999, 0.375
          %v2173 = vmul.f32 %v1004, 0.375
          %v2174 = vmul.f32 %v1009, 0.375
          %v2175 = vmul.f32 %v1014, 0.375
          %v2176 = vmul.f32 %v1019, 0.375
          %v2177 = vmul.f32 %v1024, 0.375
          %v2178 = vmul.f32 %v1029, 0.375
          %v2179 = vmul.f32 %v1131, 0.625
          %v2180 = vmul.f32 %v1136, 0.625
          %v2181 = vmul.f32 %v1141, 0.625
          %v2182 = vmul.f32 %v1146, 0.625
          %v2183 = vmul.f32 %v1151, 0.625
          %v2184 = vmul.f32 %v1156, 0.625
          %v2185 = vmul.f32 %v1161, 0.625
          %v2186 = vmul.f32 %v1166, 0.625
          %v2187 = vadd.f32 %v2171, %v2179
          %v2188 = vadd.f32 %v2172, %v2180
          %v2189 = vadd.f32 %v2173, %v2181
          %v2190 = vadd.f32 %v2174, %v2182
          %v2191 = vadd.f32 %v2175, %v2183
          %v2192 = vadd.f32 %v2176, %v2184
          %v2193 = vadd.f32 %v2177, %v2185
          %v2194 = vadd.f32 %v2178, %v2186
          %2195 = vst.msk [vmem:[%s701 + $0x8] sm:$0xff] %vm1991, %v2187
          %2196 = vst.msk [vmem:[%s701 + $0x48] sm:$0xff] %vm1991, %v2188
          %2197 = vst.msk [vmem:[%s701 + $0x88] sm:$0xff] %vm1991, %v2189
          %2198 = vst.msk [vmem:[%s701 + $0xc8] sm:$0xff] %vm1991, %v2190
          %2199 = vst.msk [vmem:[%s701 + $0x108] sm:$0xff] %vm1991, %v2191
          %2200 = vst.msk [vmem:[%s701 + $0x148] sm:$0xff] %vm1991, %v2192
          %2201 = vst.msk [vmem:[%s701 + $0x188] sm:$0xff] %vm1991, %v2193
          %2202 = vst.msk [vmem:[%s701 + $0x1c8] sm:$0xff] %vm1991, %v2194
          %v2203 = vmul.f32 %v994, 0.125
          %v2204 = vmul.f32 %v999, 0.125
          %v2205 = vmul.f32 %v1004, 0.125
          %v2206 = vmul.f32 %v1009, 0.125
          %v2207 = vmul.f32 %v1014, 0.125
          %v2208 = vmul.f32 %v1019, 0.125
          %v2209 = vmul.f32 %v1024, 0.125
          %v2210 = vmul.f32 %v1029, 0.125
          %v2211 = vmul.f32 %v1131, 0.875
          %v2212 = vmul.f32 %v1136, 0.875
          %v2213 = vmul.f32 %v1141, 0.875
          %v2214 = vmul.f32 %v1146, 0.875
          %v2215 = vmul.f32 %v1151, 0.875
          %v2216 = vmul.f32 %v1156, 0.875
          %v2217 = vmul.f32 %v1161, 0.875
          %v2218 = vmul.f32 %v1166, 0.875
          %v2219 = vadd.f32 %v2203, %v2211
          %v2220 = vadd.f32 %v2204, %v2212
          %v2221 = vadd.f32 %v2205, %v2213
          %v2222 = vadd.f32 %v2206, %v2214
          %v2223 = vadd.f32 %v2207, %v2215
          %v2224 = vadd.f32 %v2208, %v2216
          %v2225 = vadd.f32 %v2209, %v2217
          %v2226 = vadd.f32 %v2210, %v2218
          %2235 = vrot.lane.b32.xlu0 %v2219, 32
          %v2236 = vpop.permute.xlu0 %2235
          %2237 = vrot.lane.b32.xlu0 %v2220, 32
          %v2238 = vpop.permute.xlu0 %2237
          %2239 = vrot.lane.b32.xlu0 %v2221, 32
          %v2240 = vpop.permute.xlu0 %2239
          %2241 = vrot.lane.b32.xlu0 %v2222, 32
          %v2242 = vpop.permute.xlu0 %2241
          %2243 = vrot.lane.b32.xlu0 %v2223, 32
          %v2244 = vpop.permute.xlu0 %2243
          %2245 = vrot.lane.b32.xlu0 %v2224, 32
          %v2246 = vpop.permute.xlu0 %2245
          %2247 = vrot.lane.b32.xlu0 %v2225, 32
          %v2248 = vpop.permute.xlu0 %2247
          %2249 = vrot.lane.b32.xlu0 %v2226, 32
          %v2250 = vpop.permute.xlu0 %2249
          %2259 = vst.msk [vmem:[%s701 + $0x8] sm:$0xff] %vm2032, %v2236
          %2260 = vst.msk [vmem:[%s701 + $0x48] sm:$0xff] %vm2032, %v2238
          %2261 = vst.msk [vmem:[%s701 + $0x88] sm:$0xff] %vm2032, %v2240
          %2262 = vst.msk [vmem:[%s701 + $0xc8] sm:$0xff] %vm2032, %v2242
          %2263 = vst.msk [vmem:[%s701 + $0x108] sm:$0xff] %vm2032, %v2244
          %2264 = vst.msk [vmem:[%s701 + $0x148] sm:$0xff] %vm2032, %v2246
          %2265 = vst.msk [vmem:[%s701 + $0x188] sm:$0xff] %vm2032, %v2248
          %2266 = vst.msk [vmem:[%s701 + $0x1c8] sm:$0xff] %vm2032, %v2250
          %v2267 = vmul.f32 %v1268, 0.125
          %v2268 = vmul.f32 %v1273, 0.125
          %v2269 = vmul.f32 %v1278, 0.125
          %v2270 = vmul.f32 %v1283, 0.125
          %v2271 = vmul.f32 %v1288, 0.125
          %v2272 = vmul.f32 %v1293, 0.125
          %v2273 = vmul.f32 %v1298, 0.125
          %v2274 = vmul.f32 %v1303, 0.125
          %v2275 = vadd.f32 %v2211, %v2267
          %v2276 = vadd.f32 %v2212, %v2268
          %v2277 = vadd.f32 %v2213, %v2269
          %v2278 = vadd.f32 %v2214, %v2270
          %v2279 = vadd.f32 %v2215, %v2271
          %v2280 = vadd.f32 %v2216, %v2272
          %v2281 = vadd.f32 %v2217, %v2273
          %v2282 = vadd.f32 %v2218, %v2274
          %2291 = vrot.lane.b32.xlu0 %v2275, 64
          %v2292 = vpop.permute.xlu0 %2291
          %2293 = vrot.lane.b32.xlu0 %v2276, 64
          %v2294 = vpop.permute.xlu0 %2293
          %2295 = vrot.lane.b32.xlu0 %v2277, 64
          %v2296 = vpop.permute.xlu0 %2295
          %2297 = vrot.lane.b32.xlu0 %v2278, 64
          %v2298 = vpop.permute.xlu0 %2297
          %2299 = vrot.lane.b32.xlu0 %v2279, 64
          %v2300 = vpop.permute.xlu0 %2299
          %2301 = vrot.lane.b32.xlu0 %v2280, 64
          %v2302 = vpop.permute.xlu0 %2301
          %2303 = vrot.lane.b32.xlu0 %v2281, 64
          %v2304 = vpop.permute.xlu0 %2303
          %2305 = vrot.lane.b32.xlu0 %v2282, 64
          %v2306 = vpop.permute.xlu0 %2305
          %2315 = vst.msk [vmem:[%s701 + $0x8] sm:$0xff] %vm2097, %v2292
          %2316 = vst.msk [vmem:[%s701 + $0x48] sm:$0xff] %vm2097, %v2294
          %2317 = vst.msk [vmem:[%s701 + $0x88] sm:$0xff] %vm2097, %v2296
          %2318 = vst.msk [vmem:[%s701 + $0xc8] sm:$0xff] %vm2097, %v2298
          %2319 = vst.msk [vmem:[%s701 + $0x108] sm:$0xff] %vm2097, %v2300
          %2320 = vst.msk [vmem:[%s701 + $0x148] sm:$0xff] %vm2097, %v2302
          %2321 = vst.msk [vmem:[%s701 + $0x188] sm:$0xff] %vm2097, %v2304
          %2322 = vst.msk [vmem:[%s701 + $0x1c8] sm:$0xff] %vm2097, %v2306
          %v2323 = vmul.f32 %v1268, 0.375
          %v2324 = vmul.f32 %v1273, 0.375
          %v2325 = vmul.f32 %v1278, 0.375
          %v2326 = vmul.f32 %v1283, 0.375
          %v2327 = vmul.f32 %v1288, 0.375
          %v2328 = vmul.f32 %v1293, 0.375
          %v2329 = vmul.f32 %v1298, 0.375
          %v2330 = vmul.f32 %v1303, 0.375
          %v2331 = vadd.f32 %v2179, %v2323
          %v2332 = vadd.f32 %v2180, %v2324
          %v2333 = vadd.f32 %v2181, %v2325
          %v2334 = vadd.f32 %v2182, %v2326
          %v2335 = vadd.f32 %v2183, %v2327
          %v2336 = vadd.f32 %v2184, %v2328
          %v2337 = vadd.f32 %v2185, %v2329
          %v2338 = vadd.f32 %v2186, %v2330
          %2347 = vrot.lane.b32.xlu0 %v2331, 96
          %v2348 = vpop.permute.xlu0 %2347
          %2349 = vrot.lane.b32.xlu0 %v2332, 96
          %v2350 = vpop.permute.xlu0 %2349
          %2351 = vrot.lane.b32.xlu0 %v2333, 96
          %v2352 = vpop.permute.xlu0 %2351
          %2353 = vrot.lane.b32.xlu0 %v2334, 96
          %v2354 = vpop.permute.xlu0 %2353
          %2355 = vrot.lane.b32.xlu0 %v2335, 96
          %v2356 = vpop.permute.xlu0 %2355
          %2357 = vrot.lane.b32.xlu0 %v2336, 96
          %v2358 = vpop.permute.xlu0 %2357
          %2359 = vrot.lane.b32.xlu0 %v2337, 96
          %v2360 = vpop.permute.xlu0 %2359
          %2361 = vrot.lane.b32.xlu0 %v2338, 96
          %v2362 = vpop.permute.xlu0 %2361
          %2371 = vst.msk [vmem:[%s701 + $0x8] sm:$0xff] %vm2162, %v2348
          %2372 = vst.msk [vmem:[%s701 + $0x48] sm:$0xff] %vm2162, %v2350
          %2373 = vst.msk [vmem:[%s701 + $0x88] sm:$0xff] %vm2162, %v2352
          %2374 = vst.msk [vmem:[%s701 + $0xc8] sm:$0xff] %vm2162, %v2354
          %2375 = vst.msk [vmem:[%s701 + $0x108] sm:$0xff] %vm2162, %v2356
          %2376 = vst.msk [vmem:[%s701 + $0x148] sm:$0xff] %vm2162, %v2358
          %2377 = vst.msk [vmem:[%s701 + $0x188] sm:$0xff] %vm2162, %v2360
          %2378 = vst.msk [vmem:[%s701 + $0x1c8] sm:$0xff] %vm2162, %v2362
          %v2379 = vmul.f32 %v1268, 0.625
          %v2380 = vmul.f32 %v1273, 0.625
          %v2381 = vmul.f32 %v1278, 0.625
          %v2382 = vmul.f32 %v1283, 0.625
          %v2383 = vmul.f32 %v1288, 0.625
          %v2384 = vmul.f32 %v1293, 0.625
          %v2385 = vmul.f32 %v1298, 0.625
          %v2386 = vmul.f32 %v1303, 0.625
          %v2387 = vadd.f32 %v2114, %v2379
          %v2388 = vadd.f32 %v2115, %v2380
          %v2389 = vadd.f32 %v2116, %v2381
          %v2390 = vadd.f32 %v2117, %v2382
          %v2391 = vadd.f32 %v2118, %v2383
          %v2392 = vadd.f32 %v2119, %v2384
          %v2393 = vadd.f32 %v2120, %v2385
          %v2394 = vadd.f32 %v2121, %v2386
          %2395 = vst.msk [vmem:[%s701 + $0x10] sm:$0xff] %vm1991, %v2387
          %2396 = vst.msk [vmem:[%s701 + $0x50] sm:$0xff] %vm1991, %v2388
          %2397 = vst.msk [vmem:[%s701 + $0x90] sm:$0xff] %vm1991, %v2389
          %2398 = vst.msk [vmem:[%s701 + $0xd0] sm:$0xff] %vm1991, %v2390
          %2399 = vst.msk [vmem:[%s701 + $0x110] sm:$0xff] %vm1991, %v2391
          %2400 = vst.msk [vmem:[%s701 + $0x150] sm:$0xff] %vm1991, %v2392
          %2401 = vst.msk [vmem:[%s701 + $0x190] sm:$0xff] %vm1991, %v2393
          %2402 = vst.msk [vmem:[%s701 + $0x1d0] sm:$0xff] %vm1991, %v2394
          %v2403 = vmul.f32 %v1268, 0.875
          %v2404 = vmul.f32 %v1273, 0.875
          %v2405 = vmul.f32 %v1278, 0.875
          %v2406 = vmul.f32 %v1283, 0.875
          %v2407 = vmul.f32 %v1288, 0.875
          %v2408 = vmul.f32 %v1293, 0.875
          %v2409 = vmul.f32 %v1298, 0.875
          %v2410 = vmul.f32 %v1303, 0.875
          %v2411 = vadd.f32 %v2049, %v2403
          %v2412 = vadd.f32 %v2050, %v2404
          %v2413 = vadd.f32 %v2051, %v2405
          %v2414 = vadd.f32 %v2052, %v2406
          %v2415 = vadd.f32 %v2053, %v2407
          %v2416 = vadd.f32 %v2054, %v2408
          %v2417 = vadd.f32 %v2055, %v2409
          %v2418 = vadd.f32 %v2056, %v2410
          %2427 = vrot.lane.b32.xlu0 %v2411, 32
          %v2428 = vpop.permute.xlu0 %2427
          %2429 = vrot.lane.b32.xlu0 %v2412, 32
          %v2430 = vpop.permute.xlu0 %2429
          %2431 = vrot.lane.b32.xlu0 %v2413, 32
          %v2432 = vpop.permute.xlu0 %2431
          %2433 = vrot.lane.b32.xlu0 %v2414, 32
          %v2434 = vpop.permute.xlu0 %2433
          %2435 = vrot.lane.b32.xlu0 %v2415, 32
          %v2436 = vpop.permute.xlu0 %2435
          %2437 = vrot.lane.b32.xlu0 %v2416, 32
          %v2438 = vpop.permute.xlu0 %2437
          %2439 = vrot.lane.b32.xlu0 %v2417, 32
          %v2440 = vpop.permute.xlu0 %2439
          %2441 = vrot.lane.b32.xlu0 %v2418, 32
          %v2442 = vpop.permute.xlu0 %2441
          %2451 = vst.msk [vmem:[%s701 + $0x10] sm:$0xff] %vm2032, %v2428
          %2452 = vst.msk [vmem:[%s701 + $0x50] sm:$0xff] %vm2032, %v2430
          %2453 = vst.msk [vmem:[%s701 + $0x90] sm:$0xff] %vm2032, %v2432
          %2454 = vst.msk [vmem:[%s701 + $0xd0] sm:$0xff] %vm2032, %v2434
          %2455 = vst.msk [vmem:[%s701 + $0x110] sm:$0xff] %vm2032, %v2436
          %2456 = vst.msk [vmem:[%s701 + $0x150] sm:$0xff] %vm2032, %v2438
          %2457 = vst.msk [vmem:[%s701 + $0x190] sm:$0xff] %vm2032, %v2440
          %2458 = vst.msk [vmem:[%s701 + $0x1d0] sm:$0xff] %vm2032, %v2442
          %v2459 = vmul.f32 %v1405, 0.125
          %v2460 = vmul.f32 %v1410, 0.125
          %v2461 = vmul.f32 %v1415, 0.125
          %v2462 = vmul.f32 %v1420, 0.125
          %v2463 = vmul.f32 %v1425, 0.125
          %v2464 = vmul.f32 %v1430, 0.125
          %v2465 = vmul.f32 %v1435, 0.125
          %v2466 = vmul.f32 %v1440, 0.125
          %v2467 = vadd.f32 %v2403, %v2459
          %v2468 = vadd.f32 %v2404, %v2460
          %v2469 = vadd.f32 %v2405, %v2461
          %v2470 = vadd.f32 %v2406, %v2462
          %v2471 = vadd.f32 %v2407, %v2463
          %v2472 = vadd.f32 %v2408, %v2464
          %v2473 = vadd.f32 %v2409, %v2465
          %v2474 = vadd.f32 %v2410, %v2466
          %2483 = vrot.lane.b32.xlu0 %v2467, 64
          %v2484 = vpop.permute.xlu0 %2483
          %2485 = vrot.lane.b32.xlu0 %v2468, 64
          %v2486 = vpop.permute.xlu0 %2485
          %2487 = vrot.lane.b32.xlu0 %v2469, 64
          %v2488 = vpop.permute.xlu0 %2487
          %2489 = vrot.lane.b32.xlu0 %v2470, 64
          %v2490 = vpop.permute.xlu0 %2489
          %2491 = vrot.lane.b32.xlu0 %v2471, 64
          %v2492 = vpop.permute.xlu0 %2491
          %2493 = vrot.lane.b32.xlu0 %v2472, 64
          %v2494 = vpop.permute.xlu0 %2493
          %2495 = vrot.lane.b32.xlu0 %v2473, 64
          %v2496 = vpop.permute.xlu0 %2495
          %2497 = vrot.lane.b32.xlu0 %v2474, 64
          %v2498 = vpop.permute.xlu0 %2497
          %2507 = vst.msk [vmem:[%s701 + $0x10] sm:$0xff] %vm2097, %v2484
          %2508 = vst.msk [vmem:[%s701 + $0x50] sm:$0xff] %vm2097, %v2486
          %2509 = vst.msk [vmem:[%s701 + $0x90] sm:$0xff] %vm2097, %v2488
          %2510 = vst.msk [vmem:[%s701 + $0xd0] sm:$0xff] %vm2097, %v2490
          %2511 = vst.msk [vmem:[%s701 + $0x110] sm:$0xff] %vm2097, %v2492
          %2512 = vst.msk [vmem:[%s701 + $0x150] sm:$0xff] %vm2097, %v2494
          %2513 = vst.msk [vmem:[%s701 + $0x190] sm:$0xff] %vm2097, %v2496
          %2514 = vst.msk [vmem:[%s701 + $0x1d0] sm:$0xff] %vm2097, %v2498
          %v2515 = vmul.f32 %v1405, 0.375
          %v2516 = vmul.f32 %v1410, 0.375
          %v2517 = vmul.f32 %v1415, 0.375
          %v2518 = vmul.f32 %v1420, 0.375
          %v2519 = vmul.f32 %v1425, 0.375
          %v2520 = vmul.f32 %v1430, 0.375
          %v2521 = vmul.f32 %v1435, 0.375
          %v2522 = vmul.f32 %v1440, 0.375
          %v2523 = vadd.f32 %v2379, %v2515
          %v2524 = vadd.f32 %v2380, %v2516
          %v2525 = vadd.f32 %v2381, %v2517
          %v2526 = vadd.f32 %v2382, %v2518
          %v2527 = vadd.f32 %v2383, %v2519
          %v2528 = vadd.f32 %v2384, %v2520
          %v2529 = vadd.f32 %v2385, %v2521
          %v2530 = vadd.f32 %v2386, %v2522
          %2539 = vrot.lane.b32.xlu0 %v2523, 96
          %v2540 = vpop.permute.xlu0 %2539
          %2541 = vrot.lane.b32.xlu0 %v2524, 96
          %v2542 = vpop.permute.xlu0 %2541
          %2543 = vrot.lane.b32.xlu0 %v2525, 96
          %v2544 = vpop.permute.xlu0 %2543
          %2545 = vrot.lane.b32.xlu0 %v2526, 96
          %v2546 = vpop.permute.xlu0 %2545
          %2547 = vrot.lane.b32.xlu0 %v2527, 96
          %v2548 = vpop.permute.xlu0 %2547
          %2549 = vrot.lane.b32.xlu0 %v2528, 96
          %v2550 = vpop.permute.xlu0 %2549
          %2551 = vrot.lane.b32.xlu0 %v2529, 96
          %v2552 = vpop.permute.xlu0 %2551
          %2553 = vrot.lane.b32.xlu0 %v2530, 96
          %v2554 = vpop.permute.xlu0 %2553
          %2563 = vst.msk [vmem:[%s701 + $0x10] sm:$0xff] %vm2162, %v2540
          %2564 = vst.msk [vmem:[%s701 + $0x50] sm:$0xff] %vm2162, %v2542
          %2565 = vst.msk [vmem:[%s701 + $0x90] sm:$0xff] %vm2162, %v2544
          %2566 = vst.msk [vmem:[%s701 + $0xd0] sm:$0xff] %vm2162, %v2546
          %2567 = vst.msk [vmem:[%s701 + $0x110] sm:$0xff] %vm2162, %v2548
          %2568 = vst.msk [vmem:[%s701 + $0x150] sm:$0xff] %vm2162, %v2550
          %2569 = vst.msk [vmem:[%s701 + $0x190] sm:$0xff] %vm2162, %v2552
          %2570 = vst.msk [vmem:[%s701 + $0x1d0] sm:$0xff] %vm2162, %v2554
          %v2571 = vmul.f32 %v1405, 0.625
          %v2572 = vmul.f32 %v1410, 0.625
          %v2573 = vmul.f32 %v1415, 0.625
          %v2574 = vmul.f32 %v1420, 0.625
          %v2575 = vmul.f32 %v1425, 0.625
          %v2576 = vmul.f32 %v1430, 0.625
          %v2577 = vmul.f32 %v1435, 0.625
          %v2578 = vmul.f32 %v1440, 0.625
          %v2579 = vadd.f32 %v2323, %v2571
          %v2580 = vadd.f32 %v2324, %v2572
          %v2581 = vadd.f32 %v2325, %v2573
          %v2582 = vadd.f32 %v2326, %v2574
          %v2583 = vadd.f32 %v2327, %v2575
          %v2584 = vadd.f32 %v2328, %v2576
          %v2585 = vadd.f32 %v2329, %v2577
          %v2586 = vadd.f32 %v2330, %v2578
          %2587 = vst.msk [vmem:[%s701 + $0x18] sm:$0xff] %vm1991, %v2579
          %2588 = vst.msk [vmem:[%s701 + $0x58] sm:$0xff] %vm1991, %v2580
          %2589 = vst.msk [vmem:[%s701 + $0x98] sm:$0xff] %vm1991, %v2581
          %2590 = vst.msk [vmem:[%s701 + $0xd8] sm:$0xff] %vm1991, %v2582
          %2591 = vst.msk [vmem:[%s701 + $0x118] sm:$0xff] %vm1991, %v2583
          %2592 = vst.msk [vmem:[%s701 + $0x158] sm:$0xff] %vm1991, %v2584
          %2593 = vst.msk [vmem:[%s701 + $0x198] sm:$0xff] %vm1991, %v2585
          %2594 = vst.msk [vmem:[%s701 + $0x1d8] sm:$0xff] %vm1991, %v2586
          %v2595 = vmul.f32 %v1405, 0.875
          %v2596 = vmul.f32 %v1410, 0.875
          %v2597 = vmul.f32 %v1415, 0.875
          %v2598 = vmul.f32 %v1420, 0.875
          %v2599 = vmul.f32 %v1425, 0.875
          %v2600 = vmul.f32 %v1430, 0.875
          %v2601 = vmul.f32 %v1435, 0.875
          %v2602 = vmul.f32 %v1440, 0.875
          %v2603 = vadd.f32 %v2267, %v2595
          %v2604 = vadd.f32 %v2268, %v2596
          %v2605 = vadd.f32 %v2269, %v2597
          %v2606 = vadd.f32 %v2270, %v2598
          %v2607 = vadd.f32 %v2271, %v2599
          %v2608 = vadd.f32 %v2272, %v2600
          %v2609 = vadd.f32 %v2273, %v2601
          %v2610 = vadd.f32 %v2274, %v2602
          %2619 = vrot.lane.b32.xlu0 %v2603, 32
          %v2620 = vpop.permute.xlu0 %2619
          %2621 = vrot.lane.b32.xlu0 %v2604, 32
          %v2622 = vpop.permute.xlu0 %2621
          %2623 = vrot.lane.b32.xlu0 %v2605, 32
          %v2624 = vpop.permute.xlu0 %2623
          %2625 = vrot.lane.b32.xlu0 %v2606, 32
          %v2626 = vpop.permute.xlu0 %2625
          %2627 = vrot.lane.b32.xlu0 %v2607, 32
          %v2628 = vpop.permute.xlu0 %2627
          %2629 = vrot.lane.b32.xlu0 %v2608, 32
          %v2630 = vpop.permute.xlu0 %2629
          %2631 = vrot.lane.b32.xlu0 %v2609, 32
          %v2632 = vpop.permute.xlu0 %2631
          %2633 = vrot.lane.b32.xlu0 %v2610, 32
          %v2634 = vpop.permute.xlu0 %2633
          %2643 = vst.msk [vmem:[%s701 + $0x18] sm:$0xff] %vm2032, %v2620
          %2644 = vst.msk [vmem:[%s701 + $0x58] sm:$0xff] %vm2032, %v2622
          %2645 = vst.msk [vmem:[%s701 + $0x98] sm:$0xff] %vm2032, %v2624
          %2646 = vst.msk [vmem:[%s701 + $0xd8] sm:$0xff] %vm2032, %v2626
          %2647 = vst.msk [vmem:[%s701 + $0x118] sm:$0xff] %vm2032, %v2628
          %2648 = vst.msk [vmem:[%s701 + $0x158] sm:$0xff] %vm2032, %v2630
          %2649 = vst.msk [vmem:[%s701 + $0x198] sm:$0xff] %vm2032, %v2632
          %2650 = vst.msk [vmem:[%s701 + $0x1d8] sm:$0xff] %vm2032, %v2634
          %v2651 = vmul.f32 %v1542, 0.125
          %v2652 = vmul.f32 %v1547, 0.125
          %v2653 = vmul.f32 %v1552, 0.125
          %v2654 = vmul.f32 %v1557, 0.125
          %v2655 = vmul.f32 %v1562, 0.125
          %v2656 = vmul.f32 %v1567, 0.125
          %v2657 = vmul.f32 %v1572, 0.125
          %v2658 = vmul.f32 %v1577, 0.125
          %v2659 = vadd.f32 %v2595, %v2651
          %v2660 = vadd.f32 %v2596, %v2652
          %v2661 = vadd.f32 %v2597, %v2653
          %v2662 = vadd.f32 %v2598, %v2654
          %v2663 = vadd.f32 %v2599, %v2655
          %v2664 = vadd.f32 %v2600, %v2656
          %v2665 = vadd.f32 %v2601, %v2657
          %v2666 = vadd.f32 %v2602, %v2658
          %2675 = vrot.lane.b32.xlu0 %v2659, 64
          %v2676 = vpop.permute.xlu0 %2675
          %2677 = vrot.lane.b32.xlu0 %v2660, 64
          %v2678 = vpop.permute.xlu0 %2677
          %2679 = vrot.lane.b32.xlu0 %v2661, 64
          %v2680 = vpop.permute.xlu0 %2679
          %2681 = vrot.lane.b32.xlu0 %v2662, 64
          %v2682 = vpop.permute.xlu0 %2681
          %2683 = vrot.lane.b32.xlu0 %v2663, 64
          %v2684 = vpop.permute.xlu0 %2683
          %2685 = vrot.lane.b32.xlu0 %v2664, 64
          %v2686 = vpop.permute.xlu0 %2685
          %2687 = vrot.lane.b32.xlu0 %v2665, 64
          %v2688 = vpop.permute.xlu0 %2687
          %2689 = vrot.lane.b32.xlu0 %v2666, 64
          %v2690 = vpop.permute.xlu0 %2689
          %2699 = vst.msk [vmem:[%s701 + $0x18] sm:$0xff] %vm2097, %v2676
          %2700 = vst.msk [vmem:[%s701 + $0x58] sm:$0xff] %vm2097, %v2678
          %2701 = vst.msk [vmem:[%s701 + $0x98] sm:$0xff] %vm2097, %v2680
          %2702 = vst.msk [vmem:[%s701 + $0xd8] sm:$0xff] %vm2097, %v2682
          %2703 = vst.msk [vmem:[%s701 + $0x118] sm:$0xff] %vm2097, %v2684
          %2704 = vst.msk [vmem:[%s701 + $0x158] sm:$0xff] %vm2097, %v2686
          %2705 = vst.msk [vmem:[%s701 + $0x198] sm:$0xff] %vm2097, %v2688
          %2706 = vst.msk [vmem:[%s701 + $0x1d8] sm:$0xff] %vm2097, %v2690
          %v2707 = vmul.f32 %v1542, 0.375
          %v2708 = vmul.f32 %v1547, 0.375
          %v2709 = vmul.f32 %v1552, 0.375
          %v2710 = vmul.f32 %v1557, 0.375
          %v2711 = vmul.f32 %v1562, 0.375
          %v2712 = vmul.f32 %v1567, 0.375
          %v2713 = vmul.f32 %v1572, 0.375
          %v2714 = vmul.f32 %v1577, 0.375
          %v2715 = vadd.f32 %v2571, %v2707
          %v2716 = vadd.f32 %v2572, %v2708
          %v2717 = vadd.f32 %v2573, %v2709
          %v2718 = vadd.f32 %v2574, %v2710
          %v2719 = vadd.f32 %v2575, %v2711
          %v2720 = vadd.f32 %v2576, %v2712
          %v2721 = vadd.f32 %v2577, %v2713
          %v2722 = vadd.f32 %v2578, %v2714
          %2731 = vrot.lane.b32.xlu0 %v2715, 96
          %v2732 = vpop.permute.xlu0 %2731
          %2733 = vrot.lane.b32.xlu0 %v2716, 96
          %v2734 = vpop.permute.xlu0 %2733
          %2735 = vrot.lane.b32.xlu0 %v2717, 96
          %v2736 = vpop.permute.xlu0 %2735
          %2737 = vrot.lane.b32.xlu0 %v2718, 96
          %v2738 = vpop.permute.xlu0 %2737
          %2739 = vrot.lane.b32.xlu0 %v2719, 96
          %v2740 = vpop.permute.xlu0 %2739
          %2741 = vrot.lane.b32.xlu0 %v2720, 96
          %v2742 = vpop.permute.xlu0 %2741
          %2743 = vrot.lane.b32.xlu0 %v2721, 96
          %v2744 = vpop.permute.xlu0 %2743
          %2745 = vrot.lane.b32.xlu0 %v2722, 96
          %v2746 = vpop.permute.xlu0 %2745
          %2755 = vst.msk [vmem:[%s701 + $0x18] sm:$0xff] %vm2162, %v2732
          %2756 = vst.msk [vmem:[%s701 + $0x58] sm:$0xff] %vm2162, %v2734
          %2757 = vst.msk [vmem:[%s701 + $0x98] sm:$0xff] %vm2162, %v2736
          %2758 = vst.msk [vmem:[%s701 + $0xd8] sm:$0xff] %vm2162, %v2738
          %2759 = vst.msk [vmem:[%s701 + $0x118] sm:$0xff] %vm2162, %v2740
          %2760 = vst.msk [vmem:[%s701 + $0x158] sm:$0xff] %vm2162, %v2742
          %2761 = vst.msk [vmem:[%s701 + $0x198] sm:$0xff] %vm2162, %v2744
          %2762 = vst.msk [vmem:[%s701 + $0x1d8] sm:$0xff] %vm2162, %v2746
          %v2763 = vmul.f32 %v1542, 0.625
          %v2764 = vmul.f32 %v1547, 0.625
          %v2765 = vmul.f32 %v1552, 0.625
          %v2766 = vmul.f32 %v1557, 0.625
          %v2767 = vmul.f32 %v1562, 0.625
          %v2768 = vmul.f32 %v1567, 0.625
          %v2769 = vmul.f32 %v1572, 0.625
          %v2770 = vmul.f32 %v1577, 0.625
          %v2771 = vadd.f32 %v2515, %v2763
          %v2772 = vadd.f32 %v2516, %v2764
          %v2773 = vadd.f32 %v2517, %v2765
          %v2774 = vadd.f32 %v2518, %v2766
          %v2775 = vadd.f32 %v2519, %v2767
          %v2776 = vadd.f32 %v2520, %v2768
          %v2777 = vadd.f32 %v2521, %v2769
          %v2778 = vadd.f32 %v2522, %v2770
          %2779 = vst.msk [vmem:[%s701 + $0x20] sm:$0xff] %vm1991, %v2771
          %2780 = vst.msk [vmem:[%s701 + $0x60] sm:$0xff] %vm1991, %v2772
          %2781 = vst.msk [vmem:[%s701 + $0xa0] sm:$0xff] %vm1991, %v2773
          %2782 = vst.msk [vmem:[%s701 + $0xe0] sm:$0xff] %vm1991, %v2774
          %2783 = vst.msk [vmem:[%s701 + $0x120] sm:$0xff] %vm1991, %v2775
          %2784 = vst.msk [vmem:[%s701 + $0x160] sm:$0xff] %vm1991, %v2776
          %2785 = vst.msk [vmem:[%s701 + $0x1a0] sm:$0xff] %vm1991, %v2777
          %2786 = vst.msk [vmem:[%s701 + $0x1e0] sm:$0xff] %vm1991, %v2778
          %v2787 = vmul.f32 %v1542, 0.875
          %v2788 = vmul.f32 %v1547, 0.875
          %v2789 = vmul.f32 %v1552, 0.875
          %v2790 = vmul.f32 %v1557, 0.875
          %v2791 = vmul.f32 %v1562, 0.875
          %v2792 = vmul.f32 %v1567, 0.875
          %v2793 = vmul.f32 %v1572, 0.875
          %v2794 = vmul.f32 %v1577, 0.875
          %v2795 = vadd.f32 %v2459, %v2787
          %v2796 = vadd.f32 %v2460, %v2788
          %v2797 = vadd.f32 %v2461, %v2789
          %v2798 = vadd.f32 %v2462, %v2790
          %v2799 = vadd.f32 %v2463, %v2791
          %v2800 = vadd.f32 %v2464, %v2792
          %v2801 = vadd.f32 %v2465, %v2793
          %v2802 = vadd.f32 %v2466, %v2794
          %2811 = vrot.lane.b32.xlu0 %v2795, 32
          %v2812 = vpop.permute.xlu0 %2811
          %2813 = vrot.lane.b32.xlu0 %v2796, 32
          %v2814 = vpop.permute.xlu0 %2813
          %2815 = vrot.lane.b32.xlu0 %v2797, 32
          %v2816 = vpop.permute.xlu0 %2815
          %2817 = vrot.lane.b32.xlu0 %v2798, 32
          %v2818 = vpop.permute.xlu0 %2817
          %2819 = vrot.lane.b32.xlu0 %v2799, 32
          %v2820 = vpop.permute.xlu0 %2819
          %2821 = vrot.lane.b32.xlu0 %v2800, 32
          %v2822 = vpop.permute.xlu0 %2821
          %2823 = vrot.lane.b32.xlu0 %v2801, 32
          %v2824 = vpop.permute.xlu0 %2823
          %2825 = vrot.lane.b32.xlu0 %v2802, 32
          %v2826 = vpop.permute.xlu0 %2825
          %2835 = vst.msk [vmem:[%s701 + $0x20] sm:$0xff] %vm2032, %v2812
          %2836 = vst.msk [vmem:[%s701 + $0x60] sm:$0xff] %vm2032, %v2814
          %2837 = vst.msk [vmem:[%s701 + $0xa0] sm:$0xff] %vm2032, %v2816
          %2838 = vst.msk [vmem:[%s701 + $0xe0] sm:$0xff] %vm2032, %v2818
          %2839 = vst.msk [vmem:[%s701 + $0x120] sm:$0xff] %vm2032, %v2820
          %2840 = vst.msk [vmem:[%s701 + $0x160] sm:$0xff] %vm2032, %v2822
          %2841 = vst.msk [vmem:[%s701 + $0x1a0] sm:$0xff] %vm2032, %v2824
          %2842 = vst.msk [vmem:[%s701 + $0x1e0] sm:$0xff] %vm2032, %v2826
          %v2843 = vmul.f32 %v1679, 0.125
          %v2844 = vmul.f32 %v1684, 0.125
          %v2845 = vmul.f32 %v1689, 0.125
          %v2846 = vmul.f32 %v1694, 0.125
          %v2847 = vmul.f32 %v1699, 0.125
          %v2848 = vmul.f32 %v1704, 0.125
          %v2849 = vmul.f32 %v1709, 0.125
          %v2850 = vmul.f32 %v1714, 0.125
          %v2851 = vadd.f32 %v2787, %v2843
          %v2852 = vadd.f32 %v2788, %v2844
          %v2853 = vadd.f32 %v2789, %v2845
          %v2854 = vadd.f32 %v2790, %v2846
          %v2855 = vadd.f32 %v2791, %v2847
          %v2856 = vadd.f32 %v2792, %v2848
          %v2857 = vadd.f32 %v2793, %v2849
          %v2858 = vadd.f32 %v2794, %v2850
          %2867 = vrot.lane.b32.xlu0 %v2851, 64
          %v2868 = vpop.permute.xlu0 %2867
          %2869 = vrot.lane.b32.xlu0 %v2852, 64
          %v2870 = vpop.permute.xlu0 %2869
          %2871 = vrot.lane.b32.xlu0 %v2853, 64
          %v2872 = vpop.permute.xlu0 %2871
          %2873 = vrot.lane.b32.xlu0 %v2854, 64
          %v2874 = vpop.permute.xlu0 %2873
          %2875 = vrot.lane.b32.xlu0 %v2855, 64
          %v2876 = vpop.permute.xlu0 %2875
          %2877 = vrot.lane.b32.xlu0 %v2856, 64
          %v2878 = vpop.permute.xlu0 %2877
          %2879 = vrot.lane.b32.xlu0 %v2857, 64
          %v2880 = vpop.permute.xlu0 %2879
          %2881 = vrot.lane.b32.xlu0 %v2858, 64
          %v2882 = vpop.permute.xlu0 %2881
          %2891 = vst.msk [vmem:[%s701 + $0x20] sm:$0xff] %vm2097, %v2868
          %2892 = vst.msk [vmem:[%s701 + $0x60] sm:$0xff] %vm2097, %v2870
          %2893 = vst.msk [vmem:[%s701 + $0xa0] sm:$0xff] %vm2097, %v2872
          %2894 = vst.msk [vmem:[%s701 + $0xe0] sm:$0xff] %vm2097, %v2874
          %2895 = vst.msk [vmem:[%s701 + $0x120] sm:$0xff] %vm2097, %v2876
          %2896 = vst.msk [vmem:[%s701 + $0x160] sm:$0xff] %vm2097, %v2878
          %2897 = vst.msk [vmem:[%s701 + $0x1a0] sm:$0xff] %vm2097, %v2880
          %2898 = vst.msk [vmem:[%s701 + $0x1e0] sm:$0xff] %vm2097, %v2882
          %v2899 = vmul.f32 %v1679, 0.375
          %v2900 = vmul.f32 %v1684, 0.375
          %v2901 = vmul.f32 %v1689, 0.375
          %v2902 = vmul.f32 %v1694, 0.375
          %v2903 = vmul.f32 %v1699, 0.375
          %v2904 = vmul.f32 %v1704, 0.375
          %v2905 = vmul.f32 %v1709, 0.375
          %v2906 = vmul.f32 %v1714, 0.375
          %v2907 = vadd.f32 %v2763, %v2899
          %v2908 = vadd.f32 %v2764, %v2900
          %v2909 = vadd.f32 %v2765, %v2901
          %v2910 = vadd.f32 %v2766, %v2902
          %v2911 = vadd.f32 %v2767, %v2903
          %v2912 = vadd.f32 %v2768, %v2904
          %v2913 = vadd.f32 %v2769, %v2905
          %v2914 = vadd.f32 %v2770, %v2906
          %2923 = vrot.lane.b32.xlu0 %v2907, 96
          %v2924 = vpop.permute.xlu0 %2923
          %2925 = vrot.lane.b32.xlu0 %v2908, 96
          %v2926 = vpop.permute.xlu0 %2925
          %2927 = vrot.lane.b32.xlu0 %v2909, 96
          %v2928 = vpop.permute.xlu0 %2927
          %2929 = vrot.lane.b32.xlu0 %v2910, 96
          %v2930 = vpop.permute.xlu0 %2929
          %2931 = vrot.lane.b32.xlu0 %v2911, 96
          %v2932 = vpop.permute.xlu0 %2931
          %2933 = vrot.lane.b32.xlu0 %v2912, 96
          %v2934 = vpop.permute.xlu0 %2933
          %2935 = vrot.lane.b32.xlu0 %v2913, 96
          %v2936 = vpop.permute.xlu0 %2935
          %2937 = vrot.lane.b32.xlu0 %v2914, 96
          %v2938 = vpop.permute.xlu0 %2937
          %2947 = vst.msk [vmem:[%s701 + $0x20] sm:$0xff] %vm2162, %v2924
          %2948 = vst.msk [vmem:[%s701 + $0x60] sm:$0xff] %vm2162, %v2926
          %2949 = vst.msk [vmem:[%s701 + $0xa0] sm:$0xff] %vm2162, %v2928
          %2950 = vst.msk [vmem:[%s701 + $0xe0] sm:$0xff] %vm2162, %v2930
          %2951 = vst.msk [vmem:[%s701 + $0x120] sm:$0xff] %vm2162, %v2932
          %2952 = vst.msk [vmem:[%s701 + $0x160] sm:$0xff] %vm2162, %v2934
          %2953 = vst.msk [vmem:[%s701 + $0x1a0] sm:$0xff] %vm2162, %v2936
          %2954 = vst.msk [vmem:[%s701 + $0x1e0] sm:$0xff] %vm2162, %v2938
          %v2955 = vmul.f32 %v1679, 0.625
          %v2956 = vmul.f32 %v1684, 0.625
          %v2957 = vmul.f32 %v1689, 0.625
          %v2958 = vmul.f32 %v1694, 0.625
          %v2959 = vmul.f32 %v1699, 0.625
          %v2960 = vmul.f32 %v1704, 0.625
          %v2961 = vmul.f32 %v1709, 0.625
          %v2962 = vmul.f32 %v1714, 0.625
          %v2963 = vadd.f32 %v2707, %v2955
          %v2964 = vadd.f32 %v2708, %v2956
          %v2965 = vadd.f32 %v2709, %v2957
          %v2966 = vadd.f32 %v2710, %v2958
          %v2967 = vadd.f32 %v2711, %v2959
          %v2968 = vadd.f32 %v2712, %v2960
          %v2969 = vadd.f32 %v2713, %v2961
          %v2970 = vadd.f32 %v2714, %v2962
          %2971 = vst.msk [vmem:[%s701 + $0x28] sm:$0xff] %vm1991, %v2963
          %2972 = vst.msk [vmem:[%s701 + $0x68] sm:$0xff] %vm1991, %v2964
          %2973 = vst.msk [vmem:[%s701 + $0xa8] sm:$0xff] %vm1991, %v2965
          %2974 = vst.msk [vmem:[%s701 + $0xe8] sm:$0xff] %vm1991, %v2966
          %2975 = vst.msk [vmem:[%s701 + $0x128] sm:$0xff] %vm1991, %v2967
          %2976 = vst.msk [vmem:[%s701 + $0x168] sm:$0xff] %vm1991, %v2968
          %2977 = vst.msk [vmem:[%s701 + $0x1a8] sm:$0xff] %vm1991, %v2969
          %2978 = vst.msk [vmem:[%s701 + $0x1e8] sm:$0xff] %vm1991, %v2970
          %v2979 = vmul.f32 %v1679, 0.875
          %v2980 = vmul.f32 %v1684, 0.875
          %v2981 = vmul.f32 %v1689, 0.875
          %v2982 = vmul.f32 %v1694, 0.875
          %v2983 = vmul.f32 %v1699, 0.875
          %v2984 = vmul.f32 %v1704, 0.875
          %v2985 = vmul.f32 %v1709, 0.875
          %v2986 = vmul.f32 %v1714, 0.875
          %v2987 = vadd.f32 %v2651, %v2979
          %v2988 = vadd.f32 %v2652, %v2980
          %v2989 = vadd.f32 %v2653, %v2981
          %v2990 = vadd.f32 %v2654, %v2982
          %v2991 = vadd.f32 %v2655, %v2983
          %v2992 = vadd.f32 %v2656, %v2984
          %v2993 = vadd.f32 %v2657, %v2985
          %v2994 = vadd.f32 %v2658, %v2986
          %3003 = vrot.lane.b32.xlu0 %v2987, 32
          %v3004 = vpop.permute.xlu0 %3003
          %3005 = vrot.lane.b32.xlu0 %v2988, 32
          %v3006 = vpop.permute.xlu0 %3005
          %3007 = vrot.lane.b32.xlu0 %v2989, 32
          %v3008 = vpop.permute.xlu0 %3007
          %3009 = vrot.lane.b32.xlu0 %v2990, 32
          %v3010 = vpop.permute.xlu0 %3009
          %3011 = vrot.lane.b32.xlu0 %v2991, 32
          %v3012 = vpop.permute.xlu0 %3011
          %3013 = vrot.lane.b32.xlu0 %v2992, 32
          %v3014 = vpop.permute.xlu0 %3013
          %3015 = vrot.lane.b32.xlu0 %v2993, 32
          %v3016 = vpop.permute.xlu0 %3015
          %3017 = vrot.lane.b32.xlu0 %v2994, 32
          %v3018 = vpop.permute.xlu0 %3017
          %3027 = vst.msk [vmem:[%s701 + $0x28] sm:$0xff] %vm2032, %v3004
          %3028 = vst.msk [vmem:[%s701 + $0x68] sm:$0xff] %vm2032, %v3006
          %3029 = vst.msk [vmem:[%s701 + $0xa8] sm:$0xff] %vm2032, %v3008
          %3030 = vst.msk [vmem:[%s701 + $0xe8] sm:$0xff] %vm2032, %v3010
          %3031 = vst.msk [vmem:[%s701 + $0x128] sm:$0xff] %vm2032, %v3012
          %3032 = vst.msk [vmem:[%s701 + $0x168] sm:$0xff] %vm2032, %v3014
          %3033 = vst.msk [vmem:[%s701 + $0x1a8] sm:$0xff] %vm2032, %v3016
          %3034 = vst.msk [vmem:[%s701 + $0x1e8] sm:$0xff] %vm2032, %v3018
          %v3035 = vmul.f32 %v1816, 0.125
          %v3036 = vmul.f32 %v1821, 0.125
          %v3037 = vmul.f32 %v1826, 0.125
          %v3038 = vmul.f32 %v1831, 0.125
          %v3039 = vmul.f32 %v1836, 0.125
          %v3040 = vmul.f32 %v1841, 0.125
          %v3041 = vmul.f32 %v1846, 0.125
          %v3042 = vmul.f32 %v1851, 0.125
          %v3043 = vadd.f32 %v2979, %v3035
          %v3044 = vadd.f32 %v2980, %v3036
          %v3045 = vadd.f32 %v2981, %v3037
          %v3046 = vadd.f32 %v2982, %v3038
          %v3047 = vadd.f32 %v2983, %v3039
          %v3048 = vadd.f32 %v2984, %v3040
          %v3049 = vadd.f32 %v2985, %v3041
          %v3050 = vadd.f32 %v2986, %v3042
          %3059 = vrot.lane.b32.xlu0 %v3043, 64
          %v3060 = vpop.permute.xlu0 %3059
          %3061 = vrot.lane.b32.xlu0 %v3044, 64
          %v3062 = vpop.permute.xlu0 %3061
          %3063 = vrot.lane.b32.xlu0 %v3045, 64
          %v3064 = vpop.permute.xlu0 %3063
          %3065 = vrot.lane.b32.xlu0 %v3046, 64
          %v3066 = vpop.permute.xlu0 %3065
          %3067 = vrot.lane.b32.xlu0 %v3047, 64
          %v3068 = vpop.permute.xlu0 %3067
          %3069 = vrot.lane.b32.xlu0 %v3048, 64
          %v3070 = vpop.permute.xlu0 %3069
          %3071 = vrot.lane.b32.xlu0 %v3049, 64
          %v3072 = vpop.permute.xlu0 %3071
          %3073 = vrot.lane.b32.xlu0 %v3050, 64
          %v3074 = vpop.permute.xlu0 %3073
          %3083 = vst.msk [vmem:[%s701 + $0x28] sm:$0xff] %vm2097, %v3060
          %3084 = vst.msk [vmem:[%s701 + $0x68] sm:$0xff] %vm2097, %v3062
          %3085 = vst.msk [vmem:[%s701 + $0xa8] sm:$0xff] %vm2097, %v3064
          %3086 = vst.msk [vmem:[%s701 + $0xe8] sm:$0xff] %vm2097, %v3066
          %3087 = vst.msk [vmem:[%s701 + $0x128] sm:$0xff] %vm2097, %v3068
          %3088 = vst.msk [vmem:[%s701 + $0x168] sm:$0xff] %vm2097, %v3070
          %3089 = vst.msk [vmem:[%s701 + $0x1a8] sm:$0xff] %vm2097, %v3072
          %3090 = vst.msk [vmem:[%s701 + $0x1e8] sm:$0xff] %vm2097, %v3074
          %v3091 = vmul.f32 %v1816, 0.375
          %v3092 = vmul.f32 %v1821, 0.375
          %v3093 = vmul.f32 %v1826, 0.375
          %v3094 = vmul.f32 %v1831, 0.375
          %v3095 = vmul.f32 %v1836, 0.375
          %v3096 = vmul.f32 %v1841, 0.375
          %v3097 = vmul.f32 %v1846, 0.375
          %v3098 = vmul.f32 %v1851, 0.375
          %v3099 = vadd.f32 %v2955, %v3091
          %v3100 = vadd.f32 %v2956, %v3092
          %v3101 = vadd.f32 %v2957, %v3093
          %v3102 = vadd.f32 %v2958, %v3094
          %v3103 = vadd.f32 %v2959, %v3095
          %v3104 = vadd.f32 %v2960, %v3096
          %v3105 = vadd.f32 %v2961, %v3097
          %v3106 = vadd.f32 %v2962, %v3098
          %3115 = vrot.lane.b32.xlu0 %v3099, 96
          %v3116 = vpop.permute.xlu0 %3115
          %3117 = vrot.lane.b32.xlu0 %v3100, 96
          %v3118 = vpop.permute.xlu0 %3117
          %3119 = vrot.lane.b32.xlu0 %v3101, 96
          %v3120 = vpop.permute.xlu0 %3119
          %3121 = vrot.lane.b32.xlu0 %v3102, 96
          %v3122 = vpop.permute.xlu0 %3121
          %3123 = vrot.lane.b32.xlu0 %v3103, 96
          %v3124 = vpop.permute.xlu0 %3123
          %3125 = vrot.lane.b32.xlu0 %v3104, 96
          %v3126 = vpop.permute.xlu0 %3125
          %3127 = vrot.lane.b32.xlu0 %v3105, 96
          %v3128 = vpop.permute.xlu0 %3127
          %3129 = vrot.lane.b32.xlu0 %v3106, 96
          %v3130 = vpop.permute.xlu0 %3129
          %3139 = vst.msk [vmem:[%s701 + $0x28] sm:$0xff] %vm2162, %v3116
          %3140 = vst.msk [vmem:[%s701 + $0x68] sm:$0xff] %vm2162, %v3118
          %3141 = vst.msk [vmem:[%s701 + $0xa8] sm:$0xff] %vm2162, %v3120
          %3142 = vst.msk [vmem:[%s701 + $0xe8] sm:$0xff] %vm2162, %v3122
          %3143 = vst.msk [vmem:[%s701 + $0x128] sm:$0xff] %vm2162, %v3124
          %3144 = vst.msk [vmem:[%s701 + $0x168] sm:$0xff] %vm2162, %v3126
          %3145 = vst.msk [vmem:[%s701 + $0x1a8] sm:$0xff] %vm2162, %v3128
          %3146 = vst.msk [vmem:[%s701 + $0x1e8] sm:$0xff] %vm2162, %v3130
          %v3147 = vmul.f32 %v1816, 0.625
          %v3148 = vmul.f32 %v1821, 0.625
          %v3149 = vmul.f32 %v1826, 0.625
          %v3150 = vmul.f32 %v1831, 0.625
          %v3151 = vmul.f32 %v1836, 0.625
          %v3152 = vmul.f32 %v1841, 0.625
          %v3153 = vmul.f32 %v1846, 0.625
          %v3154 = vmul.f32 %v1851, 0.625
          %v3155 = vadd.f32 %v2899, %v3147
          %v3156 = vadd.f32 %v2900, %v3148
          %v3157 = vadd.f32 %v2901, %v3149
          %v3158 = vadd.f32 %v2902, %v3150
          %v3159 = vadd.f32 %v2903, %v3151
          %v3160 = vadd.f32 %v2904, %v3152
          %v3161 = vadd.f32 %v2905, %v3153
          %v3162 = vadd.f32 %v2906, %v3154
          %3163 = vst.msk [vmem:[%s701 + $0x30] sm:$0xff] %vm1991, %v3155
          %3164 = vst.msk [vmem:[%s701 + $0x70] sm:$0xff] %vm1991, %v3156
          %3165 = vst.msk [vmem:[%s701 + $0xb0] sm:$0xff] %vm1991, %v3157
          %3166 = vst.msk [vmem:[%s701 + $0xf0] sm:$0xff] %vm1991, %v3158
          %3167 = vst.msk [vmem:[%s701 + $0x130] sm:$0xff] %vm1991, %v3159
          %3168 = vst.msk [vmem:[%s701 + $0x170] sm:$0xff] %vm1991, %v3160
          %3169 = vst.msk [vmem:[%s701 + $0x1b0] sm:$0xff] %vm1991, %v3161
          %3170 = vst.msk [vmem:[%s701 + $0x1f0] sm:$0xff] %vm1991, %v3162
          %v3171 = vmul.f32 %v1816, 0.875
          %v3172 = vmul.f32 %v1821, 0.875
          %v3173 = vmul.f32 %v1826, 0.875
          %v3174 = vmul.f32 %v1831, 0.875
          %v3175 = vmul.f32 %v1836, 0.875
          %v3176 = vmul.f32 %v1841, 0.875
          %v3177 = vmul.f32 %v1846, 0.875
          %v3178 = vmul.f32 %v1851, 0.875
          %v3179 = vadd.f32 %v2843, %v3171
          %v3180 = vadd.f32 %v2844, %v3172
          %v3181 = vadd.f32 %v2845, %v3173
          %v3182 = vadd.f32 %v2846, %v3174
          %v3183 = vadd.f32 %v2847, %v3175
          %v3184 = vadd.f32 %v2848, %v3176
          %v3185 = vadd.f32 %v2849, %v3177
          %v3186 = vadd.f32 %v2850, %v3178
          %3195 = vrot.lane.b32.xlu0 %v3179, 32
          %v3196 = vpop.permute.xlu0 %3195
          %3197 = vrot.lane.b32.xlu0 %v3180, 32
          %v3198 = vpop.permute.xlu0 %3197
          %3199 = vrot.lane.b32.xlu0 %v3181, 32
          %v3200 = vpop.permute.xlu0 %3199
          %3201 = vrot.lane.b32.xlu0 %v3182, 32
          %v3202 = vpop.permute.xlu0 %3201
          %3203 = vrot.lane.b32.xlu0 %v3183, 32
          %v3204 = vpop.permute.xlu0 %3203
          %3205 = vrot.lane.b32.xlu0 %v3184, 32
          %v3206 = vpop.permute.xlu0 %3205
          %3207 = vrot.lane.b32.xlu0 %v3185, 32
          %v3208 = vpop.permute.xlu0 %3207
          %3209 = vrot.lane.b32.xlu0 %v3186, 32
          %v3210 = vpop.permute.xlu0 %3209
          %3219 = vst.msk [vmem:[%s701 + $0x30] sm:$0xff] %vm2032, %v3196
          %3220 = vst.msk [vmem:[%s701 + $0x70] sm:$0xff] %vm2032, %v3198
          %3221 = vst.msk [vmem:[%s701 + $0xb0] sm:$0xff] %vm2032, %v3200
          %3222 = vst.msk [vmem:[%s701 + $0xf0] sm:$0xff] %vm2032, %v3202
          %3223 = vst.msk [vmem:[%s701 + $0x130] sm:$0xff] %vm2032, %v3204
          %3224 = vst.msk [vmem:[%s701 + $0x170] sm:$0xff] %vm2032, %v3206
          %3225 = vst.msk [vmem:[%s701 + $0x1b0] sm:$0xff] %vm2032, %v3208
          %3226 = vst.msk [vmem:[%s701 + $0x1f0] sm:$0xff] %vm2032, %v3210
          %v3227 = vmul.f32 %v1953, 0.125
          %v3228 = vmul.f32 %v1958, 0.125
          %v3229 = vmul.f32 %v1963, 0.125
          %v3230 = vmul.f32 %v1968, 0.125
          %v3231 = vmul.f32 %v1973, 0.125
          %v3232 = vmul.f32 %v1978, 0.125
          %v3233 = vmul.f32 %v1983, 0.125
          %v3234 = vmul.f32 %v1988, 0.125
          %v3235 = vadd.f32 %v3171, %v3227
          %v3236 = vadd.f32 %v3172, %v3228
          %v3237 = vadd.f32 %v3173, %v3229
          %v3238 = vadd.f32 %v3174, %v3230
          %v3239 = vadd.f32 %v3175, %v3231
          %v3240 = vadd.f32 %v3176, %v3232
          %v3241 = vadd.f32 %v3177, %v3233
          %v3242 = vadd.f32 %v3178, %v3234
          %3251 = vrot.lane.b32.xlu0 %v3235, 64
          %v3252 = vpop.permute.xlu0 %3251
          %3253 = vrot.lane.b32.xlu0 %v3236, 64
          %v3254 = vpop.permute.xlu0 %3253
          %3255 = vrot.lane.b32.xlu0 %v3237, 64
          %v3256 = vpop.permute.xlu0 %3255
          %3257 = vrot.lane.b32.xlu0 %v3238, 64
          %v3258 = vpop.permute.xlu0 %3257
          %3259 = vrot.lane.b32.xlu0 %v3239, 64
          %v3260 = vpop.permute.xlu0 %3259
          %3261 = vrot.lane.b32.xlu0 %v3240, 64
          %v3262 = vpop.permute.xlu0 %3261
          %3263 = vrot.lane.b32.xlu0 %v3241, 64
          %v3264 = vpop.permute.xlu0 %3263
          %3265 = vrot.lane.b32.xlu0 %v3242, 64
          %v3266 = vpop.permute.xlu0 %3265
          %3275 = vst.msk [vmem:[%s701 + $0x30] sm:$0xff] %vm2097, %v3252
          %3276 = vst.msk [vmem:[%s701 + $0x70] sm:$0xff] %vm2097, %v3254
          %3277 = vst.msk [vmem:[%s701 + $0xb0] sm:$0xff] %vm2097, %v3256
          %3278 = vst.msk [vmem:[%s701 + $0xf0] sm:$0xff] %vm2097, %v3258
          %3279 = vst.msk [vmem:[%s701 + $0x130] sm:$0xff] %vm2097, %v3260
          %3280 = vst.msk [vmem:[%s701 + $0x170] sm:$0xff] %vm2097, %v3262
          %3281 = vst.msk [vmem:[%s701 + $0x1b0] sm:$0xff] %vm2097, %v3264
          %3282 = vst.msk [vmem:[%s701 + $0x1f0] sm:$0xff] %vm2097, %v3266
          %v3283 = vmul.f32 %v1953, 0.375
          %v3284 = vmul.f32 %v1958, 0.375
          %v3285 = vmul.f32 %v1963, 0.375
          %v3286 = vmul.f32 %v1968, 0.375
          %v3287 = vmul.f32 %v1973, 0.375
          %v3288 = vmul.f32 %v1978, 0.375
          %v3289 = vmul.f32 %v1983, 0.375
          %v3290 = vmul.f32 %v1988, 0.375
          %v3291 = vadd.f32 %v3147, %v3283
          %v3292 = vadd.f32 %v3148, %v3284
          %v3293 = vadd.f32 %v3149, %v3285
          %v3294 = vadd.f32 %v3150, %v3286
          %v3295 = vadd.f32 %v3151, %v3287
          %v3296 = vadd.f32 %v3152, %v3288
          %v3297 = vadd.f32 %v3153, %v3289
          %v3298 = vadd.f32 %v3154, %v3290
          %3307 = vrot.lane.b32.xlu0 %v3291, 96
          %v3308 = vpop.permute.xlu0 %3307
          %3309 = vrot.lane.b32.xlu0 %v3292, 96
          %v3310 = vpop.permute.xlu0 %3309
          %3311 = vrot.lane.b32.xlu0 %v3293, 96
          %v3312 = vpop.permute.xlu0 %3311
          %3313 = vrot.lane.b32.xlu0 %v3294, 96
          %v3314 = vpop.permute.xlu0 %3313
          %3315 = vrot.lane.b32.xlu0 %v3295, 96
          %v3316 = vpop.permute.xlu0 %3315
          %3317 = vrot.lane.b32.xlu0 %v3296, 96
          %v3318 = vpop.permute.xlu0 %3317
          %3319 = vrot.lane.b32.xlu0 %v3297, 96
          %v3320 = vpop.permute.xlu0 %3319
          %3321 = vrot.lane.b32.xlu0 %v3298, 96
          %v3322 = vpop.permute.xlu0 %3321
          %3331 = vst.msk [vmem:[%s701 + $0x30] sm:$0xff] %vm2162, %v3308
          %3332 = vst.msk [vmem:[%s701 + $0x70] sm:$0xff] %vm2162, %v3310
          %3333 = vst.msk [vmem:[%s701 + $0xb0] sm:$0xff] %vm2162, %v3312
          %3334 = vst.msk [vmem:[%s701 + $0xf0] sm:$0xff] %vm2162, %v3314
          %3335 = vst.msk [vmem:[%s701 + $0x130] sm:$0xff] %vm2162, %v3316
          %3336 = vst.msk [vmem:[%s701 + $0x170] sm:$0xff] %vm2162, %v3318
          %3337 = vst.msk [vmem:[%s701 + $0x1b0] sm:$0xff] %vm2162, %v3320
          %3338 = vst.msk [vmem:[%s701 + $0x1f0] sm:$0xff] %vm2162, %v3322
          %v3339 = vmul.f32 %v1953, 0.625
          %v3340 = vmul.f32 %v1958, 0.625
          %v3341 = vmul.f32 %v1963, 0.625
          %v3342 = vmul.f32 %v1968, 0.625
          %v3343 = vmul.f32 %v1973, 0.625
          %v3344 = vmul.f32 %v1978, 0.625
          %v3345 = vmul.f32 %v1983, 0.625
          %v3346 = vmul.f32 %v1988, 0.625
          %v3347 = vadd.f32 %v3091, %v3339
          %v3348 = vadd.f32 %v3092, %v3340
          %v3349 = vadd.f32 %v3093, %v3341
          %v3350 = vadd.f32 %v3094, %v3342
          %v3351 = vadd.f32 %v3095, %v3343
          %v3352 = vadd.f32 %v3096, %v3344
          %v3353 = vadd.f32 %v3097, %v3345
          %v3354 = vadd.f32 %v3098, %v3346
          %3355 = vst.msk [vmem:[%s701 + $0x38] sm:$0xff] %vm1991, %v3347
          %3356 = vst.msk [vmem:[%s701 + $0x78] sm:$0xff] %vm1991, %v3348
          %3357 = vst.msk [vmem:[%s701 + $0xb8] sm:$0xff] %vm1991, %v3349
          %3358 = vst.msk [vmem:[%s701 + $0xf8] sm:$0xff] %vm1991, %v3350
          %3359 = vst.msk [vmem:[%s701 + $0x138] sm:$0xff] %vm1991, %v3351
          %3360 = vst.msk [vmem:[%s701 + $0x178] sm:$0xff] %vm1991, %v3352
          %3361 = vst.msk [vmem:[%s701 + $0x1b8] sm:$0xff] %vm1991, %v3353
          %3362 = vst.msk [vmem:[%s701 + $0x1f8] sm:$0xff] %vm1991, %v3354
          %v3363 = vmul.f32 %v1953, 0.875
          %v3364 = vmul.f32 %v1958, 0.875
          %v3365 = vmul.f32 %v1963, 0.875
          %v3366 = vmul.f32 %v1968, 0.875
          %v3367 = vmul.f32 %v1973, 0.875
          %v3368 = vmul.f32 %v1978, 0.875
          %v3369 = vmul.f32 %v1983, 0.875
          %v3370 = vmul.f32 %v1988, 0.875
          %v3371 = vadd.f32 %v3035, %v3363
          %v3372 = vadd.f32 %v3036, %v3364
          %v3373 = vadd.f32 %v3037, %v3365
          %v3374 = vadd.f32 %v3038, %v3366
          %v3375 = vadd.f32 %v3039, %v3367
          %v3376 = vadd.f32 %v3040, %v3368
          %v3377 = vadd.f32 %v3041, %v3369
          %v3378 = vadd.f32 %v3042, %v3370
          %3387 = vrot.lane.b32.xlu0 %v3371, 32
          %v3388 = vpop.permute.xlu0 %3387
          %3389 = vrot.lane.b32.xlu0 %v3372, 32
          %v3390 = vpop.permute.xlu0 %3389
          %3391 = vrot.lane.b32.xlu0 %v3373, 32
          %v3392 = vpop.permute.xlu0 %3391
          %3393 = vrot.lane.b32.xlu0 %v3374, 32
          %v3394 = vpop.permute.xlu0 %3393
          %3395 = vrot.lane.b32.xlu0 %v3375, 32
          %v3396 = vpop.permute.xlu0 %3395
          %3397 = vrot.lane.b32.xlu0 %v3376, 32
          %v3398 = vpop.permute.xlu0 %3397
          %3399 = vrot.lane.b32.xlu0 %v3377, 32
          %v3400 = vpop.permute.xlu0 %3399
          %3401 = vrot.lane.b32.xlu0 %v3378, 32
          %v3402 = vpop.permute.xlu0 %3401
          %3411 = vst.msk [vmem:[%s701 + $0x38] sm:$0xff] %vm2032, %v3388
          %3412 = vst.msk [vmem:[%s701 + $0x78] sm:$0xff] %vm2032, %v3390
          %3413 = vst.msk [vmem:[%s701 + $0xb8] sm:$0xff] %vm2032, %v3392
          %3414 = vst.msk [vmem:[%s701 + $0xf8] sm:$0xff] %vm2032, %v3394
          %3415 = vst.msk [vmem:[%s701 + $0x138] sm:$0xff] %vm2032, %v3396
          %3416 = vst.msk [vmem:[%s701 + $0x178] sm:$0xff] %vm2032, %v3398
          %3417 = vst.msk [vmem:[%s701 + $0x1b8] sm:$0xff] %vm2032, %v3400
          %3418 = vst.msk [vmem:[%s701 + $0x1f8] sm:$0xff] %vm2032, %v3402
          %3427 = vrot.lane.b32.xlu0 %v1953, 64
          %v3428 = vpop.permute.xlu0 %3427
          %3429 = vrot.lane.b32.xlu0 %v1958, 64
          %v3430 = vpop.permute.xlu0 %3429
          %3431 = vrot.lane.b32.xlu0 %v1963, 64
          %v3432 = vpop.permute.xlu0 %3431
          %3433 = vrot.lane.b32.xlu0 %v1968, 64
          %v3434 = vpop.permute.xlu0 %3433
          %3435 = vrot.lane.b32.xlu0 %v1973, 64
          %v3436 = vpop.permute.xlu0 %3435
          %3437 = vrot.lane.b32.xlu0 %v1978, 64
          %v3438 = vpop.permute.xlu0 %3437
          %3439 = vrot.lane.b32.xlu0 %v1983, 64
          %v3440 = vpop.permute.xlu0 %3439
          %3441 = vrot.lane.b32.xlu0 %v1988, 64
          %v3442 = vpop.permute.xlu0 %3441
          %3451 = vst.msk [vmem:[%s701 + $0x38] sm:$0xff] %vm2097, %v3428
          %3452 = vst.msk [vmem:[%s701 + $0x78] sm:$0xff] %vm2097, %v3430
          %3453 = vst.msk [vmem:[%s701 + $0xb8] sm:$0xff] %vm2097, %v3432
          %3454 = vst.msk [vmem:[%s701 + $0xf8] sm:$0xff] %vm2097, %v3434
          %3455 = vst.msk [vmem:[%s701 + $0x138] sm:$0xff] %vm2097, %v3436
          %3456 = vst.msk [vmem:[%s701 + $0x178] sm:$0xff] %vm2097, %v3438
          %3457 = vst.msk [vmem:[%s701 + $0x1b8] sm:$0xff] %vm2097, %v3440
          %3458 = vst.msk [vmem:[%s701 + $0x1f8] sm:$0xff] %vm2097, %v3442
          %3459 = vrot.lane.b32.xlu0 %v1953, 96
          %v3460 = vpop.permute.xlu0 %3459
          %3461 = vrot.lane.b32.xlu0 %v1958, 96
          %v3462 = vpop.permute.xlu0 %3461
          %3463 = vrot.lane.b32.xlu0 %v1963, 96
          %v3464 = vpop.permute.xlu0 %3463
          %3465 = vrot.lane.b32.xlu0 %v1968, 96
          %v3466 = vpop.permute.xlu0 %3465
          %3467 = vrot.lane.b32.xlu0 %v1973, 96
          %v3468 = vpop.permute.xlu0 %3467
          %3469 = vrot.lane.b32.xlu0 %v1978, 96
          %v3470 = vpop.permute.xlu0 %3469
          %3471 = vrot.lane.b32.xlu0 %v1983, 96
          %v3472 = vpop.permute.xlu0 %3471
          %3473 = vrot.lane.b32.xlu0 %v1988, 96
          %v3474 = vpop.permute.xlu0 %3473
          %3483 = vst.msk [vmem:[%s701 + $0x38] sm:$0xff] %vm2162, %v3460
          %3484 = vst.msk [vmem:[%s701 + $0x78] sm:$0xff] %vm2162, %v3462
          %3485 = vst.msk [vmem:[%s701 + $0xb8] sm:$0xff] %vm2162, %v3464
          %3486 = vst.msk [vmem:[%s701 + $0xf8] sm:$0xff] %vm2162, %v3466
          %3487 = vst.msk [vmem:[%s701 + $0x138] sm:$0xff] %vm2162, %v3468
          %3488 = vst.msk [vmem:[%s701 + $0x178] sm:$0xff] %vm2162, %v3470
          %3489 = vst.msk [vmem:[%s701 + $0x1b8] sm:$0xff] %vm2162, %v3472
          %3490 = vst.msk [vmem:[%s701 + $0x1f8] sm:$0xff] %vm2162, %v3474
        $region116: #{up_cat_branch.1} parent=83 // pred_fallthru
          _
        %p3491 = scmp.eq.s32.totalorder %s36, 1
        // Predicated region
        $region117: #{up_cat_branch.1} parent=83 // pred_check
          %p3492 = pneg %p3491
        $region118: #{up_cat_branch.1} parent=83 // pred_check_branch
          %3494 = sbr.rel (%p3492) target = $region120
        $region119: #{up_cat_branch.1} parent=83 // pred_region
          %v3495 = vld [vmem:[%s681] sm:$0xff]
          %v3496 = vld [vmem:[%s681 + $0x8] sm:$0xff]
          %v3497 = vld [vmem:[%s681 + $0x10] sm:$0xff]
          %v3498 = vld [vmem:[%s681 + $0x18] sm:$0xff]
          %v3499 = vld [vmem:[%s681 + $0x20] sm:$0xff]
          %v3500 = vld [vmem:[%s681 + $0x28] sm:$0xff]
          %v3501 = vld [vmem:[%s681 + $0x30] sm:$0xff]
          %v3502 = vld [vmem:[%s681 + $0x38] sm:$0xff]
          %v3503 = vld [vmem:[%s681 + $0x40] sm:$0xff]
          %v3504 = vld [vmem:[%s681 + $0x48] sm:$0xff]
          %v3505 = vld [vmem:[%s681 + $0x50] sm:$0xff]
          %v3506 = vld [vmem:[%s681 + $0x58] sm:$0xff]
          %v3507 = vld [vmem:[%s681 + $0x60] sm:$0xff]
          %v3508 = vld [vmem:[%s681 + $0x68] sm:$0xff]
          %v3509 = vld [vmem:[%s681 + $0x70] sm:$0xff]
          %v3510 = vld [vmem:[%s681 + $0x78] sm:$0xff]
          %v3511 = vld [vmem:[#allocation4] sm:$0xff]
          %v3512 = vld [vmem:[#allocation4 + $0x8] sm:$0xff]
          %v3513 = vld [vmem:[#allocation4 + $0x10] sm:$0xff]
          %v3514 = vld [vmem:[#allocation4 + $0x18] sm:$0xff]
          %v3515 = vld [vmem:[#allocation4 + $0x20] sm:$0xff]
          %v3516 = vld [vmem:[#allocation4 + $0x28] sm:$0xff]
          %v3517 = vld [vmem:[#allocation4 + $0x30] sm:$0xff]
          %v3518 = vld [vmem:[#allocation4 + $0x38] sm:$0xff]
          %v3519 = vld [vmem:[%s9] sm:$0xff]
          %v3520 = vld [vmem:[%s9 + $0x8] sm:$0xff]
          %v3521 = vld [vmem:[%s9 + $0x10] sm:$0xff]
          %v3522 = vld [vmem:[%s9 + $0x18] sm:$0xff]
          %v3523 = vld [vmem:[%s9 + $0x20] sm:$0xff]
          %v3524 = vld [vmem:[%s9 + $0x28] sm:$0xff]
          %v3525 = vld [vmem:[%s9 + $0x30] sm:$0xff]
          %v3526 = vld [vmem:[%s9 + $0x38] sm:$0xff]
          %3528 = vset.pattern.permute.xlu0 0
          %3529 = vperm.xlu0 %3528, %v3519
          %v3530 = vpop.permute.xlu0 %3529
          %3533 = vset.pattern.permute.xlu0 0
          %3534 = vperm.xlu0 %3533, %v3520
          %v3535 = vpop.permute.xlu0 %3534
          %3538 = vset.pattern.permute.xlu0 0
          %3539 = vperm.xlu0 %3538, %v3521
          %v3540 = vpop.permute.xlu0 %3539
          %3543 = vset.pattern.permute.xlu0 0
          %3544 = vperm.xlu0 %3543, %v3522
          %v3545 = vpop.permute.xlu0 %3544
          %3548 = vset.pattern.permute.xlu0 0
          %3549 = vperm.xlu0 %3548, %v3523
          %v3550 = vpop.permute.xlu0 %3549
          %3553 = vset.pattern.permute.xlu0 0
          %3554 = vperm.xlu0 %3553, %v3524
          %v3555 = vpop.permute.xlu0 %3554
          %3558 = vset.pattern.permute.xlu0 0
          %3559 = vperm.xlu0 %3558, %v3525
          %v3560 = vpop.permute.xlu0 %3559
          %3563 = vset.pattern.permute.xlu0 0
          %3564 = vperm.xlu0 %3563, %v3526
          %v3565 = vpop.permute.xlu0 %3564
          %3567 = vmatprep.subr.mxu0 0.0
          %3568 = vmatpush1.msra.mxu0 %v3495
          %3569 = vmatprep.subr.mxu0 0.0
          %3570 = vmatpush1.msra.mxu0 %v3496
          %3571 = vmatprep.subr.mxu0 0.0
          %3572 = vmatpush1.msra.mxu0 %v3497
          %3573 = vmatprep.subr.mxu0 0.0
          %3574 = vmatpush1.msra.mxu0 %v3498
          %3575 = vmatprep.subr.mxu0 0.0
          %3576 = vmatpush1.msra.mxu0 %v3499
          %3577 = vmatprep.subr.mxu0 0.0
          %3578 = vmatpush1.msra.mxu0 %v3500
          %3579 = vmatprep.subr.mxu0 0.0
          %3580 = vmatpush1.msra.mxu0 %v3501
          %3581 = vmatprep.subr.mxu0 0.0
          %3582 = vmatpush1.msra.mxu0 %v3502
          %3583 = vmatprep.subr.mxu0 0.0
          %3584 = vmatpush1.msra.mxu0 %v3503
          %3585 = vmatprep.subr.mxu0 0.0
          %3586 = vmatpush1.msra.mxu0 %v3504
          %3587 = vmatprep.subr.mxu0 0.0
          %3588 = vmatpush1.msra.mxu0 %v3505
          %3589 = vmatprep.subr.mxu0 0.0
          %3590 = vmatpush1.msra.mxu0 %v3506
          %3591 = vmatprep.subr.mxu0 0.0
          %3592 = vmatpush1.msra.mxu0 %v3507
          %3593 = vmatprep.subr.mxu0 0.0
          %3594 = vmatpush1.msra.mxu0 %v3508
          %3595 = vmatprep.subr.mxu0 0.0
          %3596 = vmatpush1.msra.mxu0 %v3509
          %3597 = vmatprep.subr.mxu0 0.0
          %3598 = vmatpush1.msra.mxu0 %v3510
          %3599 = vmatprep.subr.mxu0 0.0
          %3600 = vmatpush1.msra.mxu0 0.0
          %3601 = vmatprep.subr.mxu0 0.0
          %3602 = vmatpush1.msra.mxu0 0.0
          %3603 = vmatprep.subr.mxu0 0.0
          %3604 = vmatpush1.msra.mxu0 0.0
          %3605 = vmatprep.subr.mxu0 0.0
          %3606 = vmatpush1.msra.mxu0 0.0
          %3607 = vmatprep.subr.mxu0 0.0
          %3608 = vmatpush1.msra.mxu0 0.0
          %3609 = vmatprep.subr.mxu0 0.0
          %3610 = vmatpush1.msra.mxu0 0.0
          %3611 = vmatprep.subr.mxu0 0.0
          %3612 = vmatpush1.msra.mxu0 0.0
          %3613 = vmatprep.subr.mxu0 0.0
          %3614 = vmatpush1.msra.mxu0 0.0
          %3615 = vmatprep.subr.mxu0 0.0
          %3616 = vmatpush1.msra.mxu0 0.0
          %3617 = vmatprep.subr.mxu0 0.0
          %3618 = vmatpush1.msra.mxu0 0.0
          %3619 = vmatprep.subr.mxu0 0.0
          %3620 = vmatpush1.msra.mxu0 0.0
          %3621 = vmatprep.subr.mxu0 0.0
          %3622 = vmatpush1.msra.mxu0 0.0
          %3623 = vmatprep.subr.mxu0 0.0
          %3624 = vmatpush1.msra.mxu0 0.0
          %3625 = vmatprep.subr.mxu0 0.0
          %3626 = vmatpush1.msra.mxu0 0.0
          %3627 = vmatprep.subr.mxu0 0.0
          %3628 = vmatpush1.msra.mxu0 0.0
          %3629 = vmatprep.subr.mxu0 0.0
          %3630 = vmatpush1.msra.mxu0 0.0
          %3631 = vmatprep.mubr.f32.mxu0 0.0
          %3632 = vmatmul.mubr.f32.gmra.mrb[0].mxu0 %v3511
          %v3633 = vpop.f32.mrb[0].mxu0
          %v3634 = vadd.f32 %v3530, %v3633
          %v3635 = vpop.f32.mrb[0].mxu0
          %3636 = vmatprep.mubr.f32.mxu0 0.0
          %3637 = vmatmul.mubr.f32.gmra.mrb[0].mxu0 %v3512
          %v3638 = vpop.f32.mrb[0].mxu0
          %v3639 = vadd.f32 %v3535, %v3638
          %v3640 = vpop.f32.mrb[0].mxu0
          %3641 = vmatprep.mubr.f32.mxu0 0.0
          %3642 = vmatmul.mubr.f32.gmra.mrb[0].mxu0 %v3513
          %v3643 = vpop.f32.mrb[0].mxu0
          %v3644 = vadd.f32 %v3540, %v3643
          %v3645 = vpop.f32.mrb[0].mxu0
          %3646 = vmatprep.mubr.f32.mxu0 0.0
          %3647 = vmatmul.mubr.f32.gmra.mrb[0].mxu0 %v3514
          %v3648 = vpop.f32.mrb[0].mxu0
          %v3649 = vadd.f32 %v3545, %v3648
          %v3650 = vpop.f32.mrb[0].mxu0
          %3651 = vmatprep.mubr.f32.mxu0 0.0
          %3652 = vmatmul.mubr.f32.gmra.mrb[0].mxu0 %v3515
          %v3653 = vpop.f32.mrb[0].mxu0
          %v3654 = vadd.f32 %v3550, %v3653
          %v3655 = vpop.f32.mrb[0].mxu0
          %3656 = vmatprep.mubr.f32.mxu0 0.0
          %3657 = vmatmul.mubr.f32.gmra.mrb[0].mxu0 %v3516
          %v3658 = vpop.f32.mrb[0].mxu0
          %v3659 = vadd.f32 %v3555, %v3658
          %v3660 = vpop.f32.mrb[0].mxu0
          %3661 = vmatprep.mubr.f32.mxu0 0.0
          %3662 = vmatmul.mubr.f32.gmra.mrb[0].mxu0 %v3517
          %v3663 = vpop.f32.mrb[0].mxu0
          %v3664 = vadd.f32 %v3560, %v3663
          %v3665 = vpop.f32.mrb[0].mxu0
          %3666 = vmatprep.mubr.f32.mxu0 0.0
          %3667 = vmatmul.mubr.f32.gmra.mrb[0].mxu0 %v3518
          %v3668 = vpop.f32.mrb[0].mxu0
          %v3669 = vadd.f32 %v3565, %v3668
          %v3670 = vpop.f32.mrb[0].mxu0
          %3671 = vdwg.mxu0
          %v3672 = vld [vmem:[#allocation10] sm:$0xf]
          %vm3673 = vcmask 31744
          %v3675 = vsel %vm3673, %v3634, 0
          %v3678 = vsel %vm3673, %v3639, 0
          %v3681 = vsel %vm3673, %v3644, 0
          %v3684 = vsel %vm3673, %v3649, 0
          %v3687 = vsel %vm3673, %v3654, 0
          %v3690 = vsel %vm3673, %v3659, 0
          %v3693 = vsel %vm3673, %v3664, 0
          %v3696 = vsel %vm3673, %v3669, 0
          %vm3698 = vcmask 1043456
          %v3700 = vsel %vm3698, %v3672, 0
          %3702 = vmatprep.subr.mxu0 0.0
          %3703 = vmatpush1.msra.mxu0 %v3700
          %3704 = vmatprep.subr.mxu0 0.0
          %3705 = vmatpush1.msra.mxu0 0.0
          %3706 = vmatprep.subr.mxu0 0.0
          %3707 = vmatpush1.msra.mxu0 0.0
          %3708 = vmatprep.subr.mxu0 0.0
          %3709 = vmatpush1.msra.mxu0 0.0
          %3710 = vmatprep.subr.mxu0 0.0
          %3711 = vmatpush1.msra.mxu0 0.0
          %3712 = vmatprep.subr.mxu0 0.0
          %3713 = vmatpush1.msra.mxu0 0.0
          %3714 = vmatprep.subr.mxu0 0.0
          %3715 = vmatpush1.msra.mxu0 0.0
          %3716 = vmatprep.subr.mxu0 0.0
          %3717 = vmatpush1.msra.mxu0 0.0
          %3718 = vmatprep.subr.mxu0 0.0
          %3719 = vmatpush1.msra.mxu0 0.0
          %3720 = vmatprep.subr.mxu0 0.0
          %3721 = vmatpush1.msra.mxu0 0.0
          %3722 = vmatprep.subr.mxu0 0.0
          %3723 = vmatpush1.msra.mxu0 0.0
          %3724 = vmatprep.subr.mxu0 0.0
          %3725 = vmatpush1.msra.mxu0 0.0
          %3726 = vmatprep.subr.mxu0 0.0
          %3727 = vmatpush1.msra.mxu0 0.0
          %3728 = vmatprep.subr.mxu0 0.0
          %3729 = vmatpush1.msra.mxu0 0.0
          %3730 = vmatprep.subr.mxu0 0.0
          %3731 = vmatpush1.msra.mxu0 0.0
          %3732 = vmatprep.subr.mxu0 0.0
          %3733 = vmatpush1.msra.mxu0 0.0
          %3734 = vmatprep.subr.mxu0 0.0
          %3735 = vmatpush1.msra.mxu0 0.0
          %3736 = vmatprep.subr.mxu0 0.0
          %3737 = vmatpush1.msra.mxu0 0.0
          %3738 = vmatprep.subr.mxu0 0.0
          %3739 = vmatpush1.msra.mxu0 0.0
          %3740 = vmatprep.subr.mxu0 0.0
          %3741 = vmatpush1.msra.mxu0 0.0
          %3742 = vmatprep.subr.mxu0 0.0
          %3743 = vmatpush1.msra.mxu0 0.0
          %3744 = vmatprep.subr.mxu0 0.0
          %3745 = vmatpush1.msra.mxu0 0.0
          %3746 = vmatprep.subr.mxu0 0.0
          %3747 = vmatpush1.msra.mxu0 0.0
          %3748 = vmatprep.subr.mxu0 0.0
          %3749 = vmatpush1.msra.mxu0 0.0
          %3750 = vmatprep.subr.mxu0 0.0
          %3751 = vmatpush1.msra.mxu0 0.0
          %3752 = vmatprep.subr.mxu0 0.0
          %3753 = vmatpush1.msra.mxu0 0.0
          %3754 = vmatprep.subr.mxu0 0.0
          %3755 = vmatpush1.msra.mxu0 0.0
          %3756 = vmatprep.subr.mxu0 0.0
          %3757 = vmatpush1.msra.mxu0 0.0
          %3758 = vmatprep.subr.mxu0 0.0
          %3759 = vmatpush1.msra.mxu0 0.0
          %3760 = vmatprep.subr.mxu0 0.0
          %3761 = vmatpush1.msra.mxu0 0.0
          %3762 = vmatprep.subr.mxu0 0.0
          %3763 = vmatpush1.msra.mxu0 0.0
          %3764 = vmatprep.subr.mxu0 0.0
          %3765 = vmatpush1.msra.mxu0 0.0
          %3766 = vmatprep.mubr.f32.mxu0 0.0
          %3767 = vmatmul.mubr.f32.gmra.mrb[0].mxu0 %v3675
          %v3768 = vpop.f32.mrb[0].mxu0
          %v3769 = vadd.f32 0.0, %v3768
          %v3770 = vpop.f32.mrb[0].mxu0
          %3771 = vmatprep.mubr.f32.mxu0 0.0
          %3772 = vmatmul.mubr.f32.gmra.mrb[0].mxu0 %v3678
          %v3773 = vpop.f32.mrb[0].mxu0
          %v3774 = vadd.f32 0.0, %v3773
          %v3775 = vpop.f32.mrb[0].mxu0
          %3776 = vmatprep.mubr.f32.mxu0 0.0
          %3777 = vmatmul.mubr.f32.gmra.mrb[0].mxu0 %v3681
          %v3778 = vpop.f32.mrb[0].mxu0
          %v3779 = vadd.f32 0.0, %v3778
          %v3780 = vpop.f32.mrb[0].mxu0
          %3781 = vmatprep.mubr.f32.mxu0 0.0
          %3782 = vmatmul.mubr.f32.gmra.mrb[0].mxu0 %v3684
          %v3783 = vpop.f32.mrb[0].mxu0
          %v3784 = vadd.f32 0.0, %v3783
          %v3785 = vpop.f32.mrb[0].mxu0
          %3786 = vmatprep.mubr.f32.mxu0 0.0
          %3787 = vmatmul.mubr.f32.gmra.mrb[0].mxu0 %v3687
          %v3788 = vpop.f32.mrb[0].mxu0
          %v3789 = vadd.f32 0.0, %v3788
          %v3790 = vpop.f32.mrb[0].mxu0
          %3791 = vmatprep.mubr.f32.mxu0 0.0
          %3792 = vmatmul.mubr.f32.gmra.mrb[0].mxu0 %v3690
          %v3793 = vpop.f32.mrb[0].mxu0
          %v3794 = vadd.f32 0.0, %v3793
          %v3795 = vpop.f32.mrb[0].mxu0
          %3796 = vmatprep.mubr.f32.mxu0 0.0
          %3797 = vmatmul.mubr.f32.gmra.mrb[0].mxu0 %v3693
          %v3798 = vpop.f32.mrb[0].mxu0
          %v3799 = vadd.f32 0.0, %v3798
          %v3800 = vpop.f32.mrb[0].mxu0
          %3801 = vmatprep.mubr.f32.mxu0 0.0
          %3802 = vmatmul.mubr.f32.gmra.mrb[0].mxu0 %v3696
          %v3803 = vpop.f32.mrb[0].mxu0
          %v3804 = vadd.f32 0.0, %v3803
          %v3805 = vpop.f32.mrb[0].mxu0
          %3806 = vdwg.mxu0
          %3807 = vrot.lane.b32.xlu0 %v3634, 124
          %v3808 = vpop.permute.xlu0 %3807
          %3809 = vrot.lane.b32.xlu0 %v3639, 124
          %v3810 = vpop.permute.xlu0 %3809
          %3811 = vrot.lane.b32.xlu0 %v3644, 124
          %v3812 = vpop.permute.xlu0 %3811
          %3813 = vrot.lane.b32.xlu0 %v3649, 124
          %v3814 = vpop.permute.xlu0 %3813
          %3815 = vrot.lane.b32.xlu0 %v3654, 124
          %v3816 = vpop.permute.xlu0 %3815
          %3817 = vrot.lane.b32.xlu0 %v3659, 124
          %v3818 = vpop.permute.xlu0 %3817
          %3819 = vrot.lane.b32.xlu0 %v3664, 124
          %v3820 = vpop.permute.xlu0 %3819
          %3821 = vrot.lane.b32.xlu0 %v3669, 124
          %v3822 = vpop.permute.xlu0 %3821
          %v3823 = vsel %vm3673, %v3808, 0
          %v3825 = vsel %vm3673, %v3810, 0
          %v3827 = vsel %vm3673, %v3812, 0
          %v3829 = vsel %vm3673, %v3814, 0
          %v3831 = vsel %vm3673, %v3816, 0
          %v3833 = vsel %vm3673, %v3818, 0
          %v3835 = vsel %vm3673, %v3820, 0
          %v3837 = vsel %vm3673, %v3822, 0
          %3839 = vmatprep.subr.mxu0 0.0
          %3840 = vmatpush1.msra.mxu0 %v3700
          %3841 = vmatprep.subr.mxu0 0.0
          %3842 = vmatpush1.msra.mxu0 0.0
          %3843 = vmatprep.subr.mxu0 0.0
          %3844 = vmatpush1.msra.mxu0 0.0
          %3845 = vmatprep.subr.mxu0 0.0
          %3846 = vmatpush1.msra.mxu0 0.0
          %3847 = vmatprep.subr.mxu0 0.0
          %3848 = vmatpush1.msra.mxu0 0.0
          %3849 = vmatprep.subr.mxu0 0.0
          %3850 = vmatpush1.msra.mxu0 0.0
          %3851 = vmatprep.subr.mxu0 0.0
          %3852 = vmatpush1.msra.mxu0 0.0
          %3853 = vmatprep.subr.mxu0 0.0
          %3854 = vmatpush1.msra.mxu0 0.0
          %3855 = vmatprep.subr.mxu0 0.0
          %3856 = vmatpush1.msra.mxu0 0.0
          %3857 = vmatprep.subr.mxu0 0.0
          %3858 = vmatpush1.msra.mxu0 0.0
          %3859 = vmatprep.subr.mxu0 0.0
          %3860 = vmatpush1.msra.mxu0 0.0
          %3861 = vmatprep.subr.mxu0 0.0
          %3862 = vmatpush1.msra.mxu0 0.0
          %3863 = vmatprep.subr.mxu0 0.0
          %3864 = vmatpush1.msra.mxu0 0.0
          %3865 = vmatprep.subr.mxu0 0.0
          %3866 = vmatpush1.msra.mxu0 0.0
          %3867 = vmatprep.subr.mxu0 0.0
          %3868 = vmatpush1.msra.mxu0 0.0
          %3869 = vmatprep.subr.mxu0 0.0
          %3870 = vmatpush1.msra.mxu0 0.0
          %3871 = vmatprep.subr.mxu0 0.0
          %3872 = vmatpush1.msra.mxu0 0.0
          %3873 = vmatprep.subr.mxu0 0.0
          %3874 = vmatpush1.msra.mxu0 0.0
          %3875 = vmatprep.subr.mxu0 0.0
          %3876 = vmatpush1.msra.mxu0 0.0
          %3877 = vmatprep.subr.mxu0 0.0
          %3878 = vmatpush1.msra.mxu0 0.0
          %3879 = vmatprep.subr.mxu0 0.0
          %3880 = vmatpush1.msra.mxu0 0.0
          %3881 = vmatprep.subr.mxu0 0.0
          %3882 = vmatpush1.msra.mxu0 0.0
          %3883 = vmatprep.subr.mxu0 0.0
          %3884 = vmatpush1.msra.mxu0 0.0
          %3885 = vmatprep.subr.mxu0 0.0
          %3886 = vmatpush1.msra.mxu0 0.0
          %3887 = vmatprep.subr.mxu0 0.0
          %3888 = vmatpush1.msra.mxu0 0.0
          %3889 = vmatprep.subr.mxu0 0.0
          %3890 = vmatpush1.msra.mxu0 0.0
          %3891 = vmatprep.subr.mxu0 0.0
          %3892 = vmatpush1.msra.mxu0 0.0
          %3893 = vmatprep.subr.mxu0 0.0
          %3894 = vmatpush1.msra.mxu0 0.0
          %3895 = vmatprep.subr.mxu0 0.0
          %3896 = vmatpush1.msra.mxu0 0.0
          %3897 = vmatprep.subr.mxu0 0.0
          %3898 = vmatpush1.msra.mxu0 0.0
          %3899 = vmatprep.subr.mxu0 0.0
          %3900 = vmatpush1.msra.mxu0 0.0
          %3901 = vmatprep.subr.mxu0 0.0
          %3902 = vmatpush1.msra.mxu0 0.0
          %3903 = vmatprep.mubr.f32.mxu0 0.0
          %3904 = vmatmul.mubr.f32.gmra.mrb[0].mxu0 %v3823
          %v3905 = vpop.f32.mrb[0].mxu0
          %v3906 = vadd.f32 0.0, %v3905
          %v3907 = vpop.f32.mrb[0].mxu0
          %3908 = vmatprep.mubr.f32.mxu0 0.0
          %3909 = vmatmul.mubr.f32.gmra.mrb[0].mxu0 %v3825
          %v3910 = vpop.f32.mrb[0].mxu0
          %v3911 = vadd.f32 0.0, %v3910
          %v3912 = vpop.f32.mrb[0].mxu0
          %3913 = vmatprep.mubr.f32.mxu0 0.0
          %3914 = vmatmul.mubr.f32.gmra.mrb[0].mxu0 %v3827
          %v3915 = vpop.f32.mrb[0].mxu0
          %v3916 = vadd.f32 0.0, %v3915
          %v3917 = vpop.f32.mrb[0].mxu0
          %3918 = vmatprep.mubr.f32.mxu0 0.0
          %3919 = vmatmul.mubr.f32.gmra.mrb[0].mxu0 %v3829
          %v3920 = vpop.f32.mrb[0].mxu0
          %v3921 = vadd.f32 0.0, %v3920
          %v3922 = vpop.f32.mrb[0].mxu0
          %3923 = vmatprep.mubr.f32.mxu0 0.0
          %3924 = vmatmul.mubr.f32.gmra.mrb[0].mxu0 %v3831
          %v3925 = vpop.f32.mrb[0].mxu0
          %v3926 = vadd.f32 0.0, %v3925
          %v3927 = vpop.f32.mrb[0].mxu0
          %3928 = vmatprep.mubr.f32.mxu0 0.0
          %3929 = vmatmul.mubr.f32.gmra.mrb[0].mxu0 %v3833
          %v3930 = vpop.f32.mrb[0].mxu0
          %v3931 = vadd.f32 0.0, %v3930
          %v3932 = vpop.f32.mrb[0].mxu0
          %3933 = vmatprep.mubr.f32.mxu0 0.0
          %3934 = vmatmul.mubr.f32.gmra.mrb[0].mxu0 %v3835
          %v3935 = vpop.f32.mrb[0].mxu0
          %v3936 = vadd.f32 0.0, %v3935
          %v3937 = vpop.f32.mrb[0].mxu0
          %3938 = vmatprep.mubr.f32.mxu0 0.0
          %3939 = vmatmul.mubr.f32.gmra.mrb[0].mxu0 %v3837
          %v3940 = vpop.f32.mrb[0].mxu0
          %v3941 = vadd.f32 0.0, %v3940
          %v3942 = vpop.f32.mrb[0].mxu0
          %3943 = vdwg.mxu0
          %3944 = vrot.lane.b32.xlu0 %v3634, 120
          %v3945 = vpop.permute.xlu0 %3944
          %3946 = vrot.lane.b32.xlu0 %v3639, 120
          %v3947 = vpop.permute.xlu0 %3946
          %3948 = vrot.lane.b32.xlu0 %v3644, 120
          %v3949 = vpop.permute.xlu0 %3948
          %3950 = vrot.lane.b32.xlu0 %v3649, 120
          %v3951 = vpop.permute.xlu0 %3950
          %3952 = vrot.lane.b32.xlu0 %v3654, 120
          %v3953 = vpop.permute.xlu0 %3952
          %3954 = vrot.lane.b32.xlu0 %v3659, 120
          %v3955 = vpop.permute.xlu0 %3954
          %3956 = vrot.lane.b32.xlu0 %v3664, 120
          %v3957 = vpop.permute.xlu0 %3956
          %3958 = vrot.lane.b32.xlu0 %v3669, 120
          %v3959 = vpop.permute.xlu0 %3958
          %v3960 = vsel %vm3673, %v3945, 0
          %v3962 = vsel %vm3673, %v3947, 0
          %v3964 = vsel %vm3673, %v3949, 0
          %v3966 = vsel %vm3673, %v3951, 0
          %v3968 = vsel %vm3673, %v3953, 0
          %v3970 = vsel %vm3673, %v3955, 0
          %v3972 = vsel %vm3673, %v3957, 0
          %v3974 = vsel %vm3673, %v3959, 0
          %3976 = vmatprep.subr.mxu0 0.0
          %3977 = vmatpush1.msra.mxu0 %v3700
          %3978 = vmatprep.subr.mxu0 0.0
          %3979 = vmatpush1.msra.mxu0 0.0
          %3980 = vmatprep.subr.mxu0 0.0
          %3981 = vmatpush1.msra.mxu0 0.0
          %3982 = vmatprep.subr.mxu0 0.0
          %3983 = vmatpush1.msra.mxu0 0.0
          %3984 = vmatprep.subr.mxu0 0.0
          %3985 = vmatpush1.msra.mxu0 0.0
          %3986 = vmatprep.subr.mxu0 0.0
          %3987 = vmatpush1.msra.mxu0 0.0
          %3988 = vmatprep.subr.mxu0 0.0
          %3989 = vmatpush1.msra.mxu0 0.0
          %3990 = vmatprep.subr.mxu0 0.0
          %3991 = vmatpush1.msra.mxu0 0.0
          %3992 = vmatprep.subr.mxu0 0.0
          %3993 = vmatpush1.msra.mxu0 0.0
          %3994 = vmatprep.subr.mxu0 0.0
          %3995 = vmatpush1.msra.mxu0 0.0
          %3996 = vmatprep.subr.mxu0 0.0
          %3997 = vmatpush1.msra.mxu0 0.0
          %3998 = vmatprep.subr.mxu0 0.0
          %3999 = vmatpush1.msra.mxu0 0.0
          %4000 = vmatprep.subr.mxu0 0.0
          %4001 = vmatpush1.msra.mxu0 0.0
          %4002 = vmatprep.subr.mxu0 0.0
          %4003 = vmatpush1.msra.mxu0 0.0
          %4004 = vmatprep.subr.mxu0 0.0
          %4005 = vmatpush1.msra.mxu0 0.0
          %4006 = vmatprep.subr.mxu0 0.0
          %4007 = vmatpush1.msra.mxu0 0.0
          %4008 = vmatprep.subr.mxu0 0.0
          %4009 = vmatpush1.msra.mxu0 0.0
          %4010 = vmatprep.subr.mxu0 0.0
          %4011 = vmatpush1.msra.mxu0 0.0
          %4012 = vmatprep.subr.mxu0 0.0
          %4013 = vmatpush1.msra.mxu0 0.0
          %4014 = vmatprep.subr.mxu0 0.0
          %4015 = vmatpush1.msra.mxu0 0.0
          %4016 = vmatprep.subr.mxu0 0.0
          %4017 = vmatpush1.msra.mxu0 0.0
          %4018 = vmatprep.subr.mxu0 0.0
          %4019 = vmatpush1.msra.mxu0 0.0
          %4020 = vmatprep.subr.mxu0 0.0
          %4021 = vmatpush1.msra.mxu0 0.0
          %4022 = vmatprep.subr.mxu0 0.0
          %4023 = vmatpush1.msra.mxu0 0.0
          %4024 = vmatprep.subr.mxu0 0.0
          %4025 = vmatpush1.msra.mxu0 0.0
          %4026 = vmatprep.subr.mxu0 0.0
          %4027 = vmatpush1.msra.mxu0 0.0
          %4028 = vmatprep.subr.mxu0 0.0
          %4029 = vmatpush1.msra.mxu0 0.0
          %4030 = vmatprep.subr.mxu0 0.0
          %4031 = vmatpush1.msra.mxu0 0.0
          %4032 = vmatprep.subr.mxu0 0.0
          %4033 = vmatpush1.msra.mxu0 0.0
          %4034 = vmatprep.subr.mxu0 0.0
          %4035 = vmatpush1.msra.mxu0 0.0
          %4036 = vmatprep.subr.mxu0 0.0
          %4037 = vmatpush1.msra.mxu0 0.0
          %4038 = vmatprep.subr.mxu0 0.0
          %4039 = vmatpush1.msra.mxu0 0.0
          %4040 = vmatprep.mubr.f32.mxu0 0.0
          %4041 = vmatmul.mubr.f32.gmra.mrb[0].mxu0 %v3960
          %v4042 = vpop.f32.mrb[0].mxu0
          %v4043 = vadd.f32 0.0, %v4042
          %v4044 = vpop.f32.mrb[0].mxu0
          %4045 = vmatprep.mubr.f32.mxu0 0.0
          %4046 = vmatmul.mubr.f32.gmra.mrb[0].mxu0 %v3962
          %v4047 = vpop.f32.mrb[0].mxu0
          %v4048 = vadd.f32 0.0, %v4047
          %v4049 = vpop.f32.mrb[0].mxu0
          %4050 = vmatprep.mubr.f32.mxu0 0.0
          %4051 = vmatmul.mubr.f32.gmra.mrb[0].mxu0 %v3964
          %v4052 = vpop.f32.mrb[0].mxu0
          %v4053 = vadd.f32 0.0, %v4052
          %v4054 = vpop.f32.mrb[0].mxu0
          %4055 = vmatprep.mubr.f32.mxu0 0.0
          %4056 = vmatmul.mubr.f32.gmra.mrb[0].mxu0 %v3966
          %v4057 = vpop.f32.mrb[0].mxu0
          %v4058 = vadd.f32 0.0, %v4057
          %v4059 = vpop.f32.mrb[0].mxu0
          %4060 = vmatprep.mubr.f32.mxu0 0.0
          %4061 = vmatmul.mubr.f32.gmra.mrb[0].mxu0 %v3968
          %v4062 = vpop.f32.mrb[0].mxu0
          %v4063 = vadd.f32 0.0, %v4062
          %v4064 = vpop.f32.mrb[0].mxu0
          %4065 = vmatprep.mubr.f32.mxu0 0.0
          %4066 = vmatmul.mubr.f32.gmra.mrb[0].mxu0 %v3970
          %v4067 = vpop.f32.mrb[0].mxu0
          %v4068 = vadd.f32 0.0, %v4067
          %v4069 = vpop.f32.mrb[0].mxu0
          %4070 = vmatprep.mubr.f32.mxu0 0.0
          %4071 = vmatmul.mubr.f32.gmra.mrb[0].mxu0 %v3972
          %v4072 = vpop.f32.mrb[0].mxu0
          %v4073 = vadd.f32 0.0, %v4072
          %v4074 = vpop.f32.mrb[0].mxu0
          %4075 = vmatprep.mubr.f32.mxu0 0.0
          %4076 = vmatmul.mubr.f32.gmra.mrb[0].mxu0 %v3974
          %v4077 = vpop.f32.mrb[0].mxu0
          %v4078 = vadd.f32 0.0, %v4077
          %v4079 = vpop.f32.mrb[0].mxu0
          %4080 = vdwg.mxu0
          %4081 = vrot.lane.b32.xlu0 %v3634, 116
          %v4082 = vpop.permute.xlu0 %4081
          %4083 = vrot.lane.b32.xlu0 %v3639, 116
          %v4084 = vpop.permute.xlu0 %4083
          %4085 = vrot.lane.b32.xlu0 %v3644, 116
          %v4086 = vpop.permute.xlu0 %4085
          %4087 = vrot.lane.b32.xlu0 %v3649, 116
          %v4088 = vpop.permute.xlu0 %4087
          %4089 = vrot.lane.b32.xlu0 %v3654, 116
          %v4090 = vpop.permute.xlu0 %4089
          %4091 = vrot.lane.b32.xlu0 %v3659, 116
          %v4092 = vpop.permute.xlu0 %4091
          %4093 = vrot.lane.b32.xlu0 %v3664, 116
          %v4094 = vpop.permute.xlu0 %4093
          %4095 = vrot.lane.b32.xlu0 %v3669, 116
          %v4096 = vpop.permute.xlu0 %4095
          %v4097 = vsel %vm3673, %v4082, 0
          %v4099 = vsel %vm3673, %v4084, 0
          %v4101 = vsel %vm3673, %v4086, 0
          %v4103 = vsel %vm3673, %v4088, 0
          %v4105 = vsel %vm3673, %v4090, 0
          %v4107 = vsel %vm3673, %v4092, 0
          %v4109 = vsel %vm3673, %v4094, 0
          %v4111 = vsel %vm3673, %v4096, 0
          %4113 = vmatprep.subr.mxu0 0.0
          %4114 = vmatpush1.msra.mxu0 %v3700
          %4115 = vmatprep.subr.mxu0 0.0
          %4116 = vmatpush1.msra.mxu0 0.0
          %4117 = vmatprep.subr.mxu0 0.0
          %4118 = vmatpush1.msra.mxu0 0.0
          %4119 = vmatprep.subr.mxu0 0.0
          %4120 = vmatpush1.msra.mxu0 0.0
          %4121 = vmatprep.subr.mxu0 0.0
          %4122 = vmatpush1.msra.mxu0 0.0
          %4123 = vmatprep.subr.mxu0 0.0
          %4124 = vmatpush1.msra.mxu0 0.0
          %4125 = vmatprep.subr.mxu0 0.0
          %4126 = vmatpush1.msra.mxu0 0.0
          %4127 = vmatprep.subr.mxu0 0.0
          %4128 = vmatpush1.msra.mxu0 0.0
          %4129 = vmatprep.subr.mxu0 0.0
          %4130 = vmatpush1.msra.mxu0 0.0
          %4131 = vmatprep.subr.mxu0 0.0
          %4132 = vmatpush1.msra.mxu0 0.0
          %4133 = vmatprep.subr.mxu0 0.0
          %4134 = vmatpush1.msra.mxu0 0.0
          %4135 = vmatprep.subr.mxu0 0.0
          %4136 = vmatpush1.msra.mxu0 0.0
          %4137 = vmatprep.subr.mxu0 0.0
          %4138 = vmatpush1.msra.mxu0 0.0
          %4139 = vmatprep.subr.mxu0 0.0
          %4140 = vmatpush1.msra.mxu0 0.0
          %4141 = vmatprep.subr.mxu0 0.0
          %4142 = vmatpush1.msra.mxu0 0.0
          %4143 = vmatprep.subr.mxu0 0.0
          %4144 = vmatpush1.msra.mxu0 0.0
          %4145 = vmatprep.subr.mxu0 0.0
          %4146 = vmatpush1.msra.mxu0 0.0
          %4147 = vmatprep.subr.mxu0 0.0
          %4148 = vmatpush1.msra.mxu0 0.0
          %4149 = vmatprep.subr.mxu0 0.0
          %4150 = vmatpush1.msra.mxu0 0.0
          %4151 = vmatprep.subr.mxu0 0.0
          %4152 = vmatpush1.msra.mxu0 0.0
          %4153 = vmatprep.subr.mxu0 0.0
          %4154 = vmatpush1.msra.mxu0 0.0
          %4155 = vmatprep.subr.mxu0 0.0
          %4156 = vmatpush1.msra.mxu0 0.0
          %4157 = vmatprep.subr.mxu0 0.0
          %4158 = vmatpush1.msra.mxu0 0.0
          %4159 = vmatprep.subr.mxu0 0.0
          %4160 = vmatpush1.msra.mxu0 0.0
          %4161 = vmatprep.subr.mxu0 0.0
          %4162 = vmatpush1.msra.mxu0 0.0
          %4163 = vmatprep.subr.mxu0 0.0
          %4164 = vmatpush1.msra.mxu0 0.0
          %4165 = vmatprep.subr.mxu0 0.0
          %4166 = vmatpush1.msra.mxu0 0.0
          %4167 = vmatprep.subr.mxu0 0.0
          %4168 = vmatpush1.msra.mxu0 0.0
          %4169 = vmatprep.subr.mxu0 0.0
          %4170 = vmatpush1.msra.mxu0 0.0
          %4171 = vmatprep.subr.mxu0 0.0
          %4172 = vmatpush1.msra.mxu0 0.0
          %4173 = vmatprep.subr.mxu0 0.0
          %4174 = vmatpush1.msra.mxu0 0.0
          %4175 = vmatprep.subr.mxu0 0.0
          %4176 = vmatpush1.msra.mxu0 0.0
          %4177 = vmatprep.mubr.f32.mxu0 0.0
          %4178 = vmatmul.mubr.f32.gmra.mrb[0].mxu0 %v4097
          %v4179 = vpop.f32.mrb[0].mxu0
          %v4180 = vadd.f32 0.0, %v4179
          %v4181 = vpop.f32.mrb[0].mxu0
          %4182 = vmatprep.mubr.f32.mxu0 0.0
          %4183 = vmatmul.mubr.f32.gmra.mrb[0].mxu0 %v4099
          %v4184 = vpop.f32.mrb[0].mxu0
          %v4185 = vadd.f32 0.0, %v4184
          %v4186 = vpop.f32.mrb[0].mxu0
          %4187 = vmatprep.mubr.f32.mxu0 0.0
          %4188 = vmatmul.mubr.f32.gmra.mrb[0].mxu0 %v4101
          %v4189 = vpop.f32.mrb[0].mxu0
          %v4190 = vadd.f32 0.0, %v4189
          %v4191 = vpop.f32.mrb[0].mxu0
          %4192 = vmatprep.mubr.f32.mxu0 0.0
          %4193 = vmatmul.mubr.f32.gmra.mrb[0].mxu0 %v4103
          %v4194 = vpop.f32.mrb[0].mxu0
          %v4195 = vadd.f32 0.0, %v4194
          %v4196 = vpop.f32.mrb[0].mxu0
          %4197 = vmatprep.mubr.f32.mxu0 0.0
          %4198 = vmatmul.mubr.f32.gmra.mrb[0].mxu0 %v4105
          %v4199 = vpop.f32.mrb[0].mxu0
          %v4200 = vadd.f32 0.0, %v4199
          %v4201 = vpop.f32.mrb[0].mxu0
          %4202 = vmatprep.mubr.f32.mxu0 0.0
          %4203 = vmatmul.mubr.f32.gmra.mrb[0].mxu0 %v4107
          %v4204 = vpop.f32.mrb[0].mxu0
          %v4205 = vadd.f32 0.0, %v4204
          %v4206 = vpop.f32.mrb[0].mxu0
          %4207 = vmatprep.mubr.f32.mxu0 0.0
          %4208 = vmatmul.mubr.f32.gmra.mrb[0].mxu0 %v4109
          %v4209 = vpop.f32.mrb[0].mxu0
          %v4210 = vadd.f32 0.0, %v4209
          %v4211 = vpop.f32.mrb[0].mxu0
          %4212 = vmatprep.mubr.f32.mxu0 0.0
          %4213 = vmatmul.mubr.f32.gmra.mrb[0].mxu0 %v4111
          %v4214 = vpop.f32.mrb[0].mxu0
          %v4215 = vadd.f32 0.0, %v4214
          %v4216 = vpop.f32.mrb[0].mxu0
          %4217 = vdwg.mxu0
          %vm4218 = vcmask 261120
          %4219 = vst.msk [vmem:[%s701] sm:$0xff] %vm4218, %v3769
          %4220 = vst.msk [vmem:[%s701 + $0x40] sm:$0xff] %vm4218, %v3774
          %4221 = vst.msk [vmem:[%s701 + $0x80] sm:$0xff] %vm4218, %v3779
          %4222 = vst.msk [vmem:[%s701 + $0xc0] sm:$0xff] %vm4218, %v3784
          %4223 = vst.msk [vmem:[%s701 + $0x100] sm:$0xff] %vm4218, %v3789
          %4224 = vst.msk [vmem:[%s701 + $0x140] sm:$0xff] %vm4218, %v3794
          %4225 = vst.msk [vmem:[%s701 + $0x180] sm:$0xff] %vm4218, %v3799
          %4226 = vst.msk [vmem:[%s701 + $0x1c0] sm:$0xff] %vm4218, %v3804
          %4235 = vrot.lane.b32.xlu0 %v3769, 32
          %v4236 = vpop.permute.xlu0 %4235
          %4237 = vrot.lane.b32.xlu0 %v3774, 32
          %v4238 = vpop.permute.xlu0 %4237
          %4239 = vrot.lane.b32.xlu0 %v3779, 32
          %v4240 = vpop.permute.xlu0 %4239
          %4241 = vrot.lane.b32.xlu0 %v3784, 32
          %v4242 = vpop.permute.xlu0 %4241
          %4243 = vrot.lane.b32.xlu0 %v3789, 32
          %v4244 = vpop.permute.xlu0 %4243
          %4245 = vrot.lane.b32.xlu0 %v3794, 32
          %v4246 = vpop.permute.xlu0 %4245
          %4247 = vrot.lane.b32.xlu0 %v3799, 32
          %v4248 = vpop.permute.xlu0 %4247
          %4249 = vrot.lane.b32.xlu0 %v3804, 32
          %v4250 = vpop.permute.xlu0 %4249
          %vm4259 = vcmask 523520
          %4260 = vst.msk [vmem:[%s701] sm:$0xff] %vm4259, %v4236
          %4261 = vst.msk [vmem:[%s701 + $0x40] sm:$0xff] %vm4259, %v4238
          %4262 = vst.msk [vmem:[%s701 + $0x80] sm:$0xff] %vm4259, %v4240
          %4263 = vst.msk [vmem:[%s701 + $0xc0] sm:$0xff] %vm4259, %v4242
          %4264 = vst.msk [vmem:[%s701 + $0x100] sm:$0xff] %vm4259, %v4244
          %4265 = vst.msk [vmem:[%s701 + $0x140] sm:$0xff] %vm4259, %v4246
          %4266 = vst.msk [vmem:[%s701 + $0x180] sm:$0xff] %vm4259, %v4248
          %4267 = vst.msk [vmem:[%s701 + $0x1c0] sm:$0xff] %vm4259, %v4250
          %4268 = vrot.lane.b32.xlu0 %v3769, 64
          %v4269 = vpop.permute.xlu0 %4268
          %4270 = vrot.lane.b32.xlu0 %v3774, 64
          %v4271 = vpop.permute.xlu0 %4270
          %4272 = vrot.lane.b32.xlu0 %v3779, 64
          %v4273 = vpop.permute.xlu0 %4272
          %4274 = vrot.lane.b32.xlu0 %v3784, 64
          %v4275 = vpop.permute.xlu0 %4274
          %4276 = vrot.lane.b32.xlu0 %v3789, 64
          %v4277 = vpop.permute.xlu0 %4276
          %4278 = vrot.lane.b32.xlu0 %v3794, 64
          %v4279 = vpop.permute.xlu0 %4278
          %4280 = vrot.lane.b32.xlu0 %v3799, 64
          %v4281 = vpop.permute.xlu0 %4280
          %4282 = vrot.lane.b32.xlu0 %v3804, 64
          %v4283 = vpop.permute.xlu0 %4282
          %vm4292 = vcmask 785920
          %4293 = vst.msk [vmem:[%s701] sm:$0xff] %vm4292, %v4269
          %4294 = vst.msk [vmem:[%s701 + $0x40] sm:$0xff] %vm4292, %v4271
          %4295 = vst.msk [vmem:[%s701 + $0x80] sm:$0xff] %vm4292, %v4273
          %4296 = vst.msk [vmem:[%s701 + $0xc0] sm:$0xff] %vm4292, %v4275
          %4297 = vst.msk [vmem:[%s701 + $0x100] sm:$0xff] %vm4292, %v4277
          %4298 = vst.msk [vmem:[%s701 + $0x140] sm:$0xff] %vm4292, %v4279
          %4299 = vst.msk [vmem:[%s701 + $0x180] sm:$0xff] %vm4292, %v4281
          %4300 = vst.msk [vmem:[%s701 + $0x1c0] sm:$0xff] %vm4292, %v4283
          %4301 = vrot.lane.b32.xlu0 %v3769, 96
          %v4302 = vpop.permute.xlu0 %4301
          %4303 = vrot.lane.b32.xlu0 %v3774, 96
          %v4304 = vpop.permute.xlu0 %4303
          %4305 = vrot.lane.b32.xlu0 %v3779, 96
          %v4306 = vpop.permute.xlu0 %4305
          %4307 = vrot.lane.b32.xlu0 %v3784, 96
          %v4308 = vpop.permute.xlu0 %4307
          %4309 = vrot.lane.b32.xlu0 %v3789, 96
          %v4310 = vpop.permute.xlu0 %4309
          %4311 = vrot.lane.b32.xlu0 %v3794, 96
          %v4312 = vpop.permute.xlu0 %4311
          %4313 = vrot.lane.b32.xlu0 %v3799, 96
          %v4314 = vpop.permute.xlu0 %4313
          %4315 = vrot.lane.b32.xlu0 %v3804, 96
          %v4316 = vpop.permute.xlu0 %4315
          %vm4325 = vcmask 1048320
          %4326 = vst.msk [vmem:[%s701] sm:$0xff] %vm4325, %v4302
          %4327 = vst.msk [vmem:[%s701 + $0x40] sm:$0xff] %vm4325, %v4304
          %4328 = vst.msk [vmem:[%s701 + $0x80] sm:$0xff] %vm4325, %v4306
          %4329 = vst.msk [vmem:[%s701 + $0xc0] sm:$0xff] %vm4325, %v4308
          %4330 = vst.msk [vmem:[%s701 + $0x100] sm:$0xff] %vm4325, %v4310
          %4331 = vst.msk [vmem:[%s701 + $0x140] sm:$0xff] %vm4325, %v4312
          %4332 = vst.msk [vmem:[%s701 + $0x180] sm:$0xff] %vm4325, %v4314
          %4333 = vst.msk [vmem:[%s701 + $0x1c0] sm:$0xff] %vm4325, %v4316
          %v4334 = vmul.f32 %v3769, 0.9375
          %v4335 = vmul.f32 %v3774, 0.9375
          %v4336 = vmul.f32 %v3779, 0.9375
          %v4337 = vmul.f32 %v3784, 0.9375
          %v4338 = vmul.f32 %v3789, 0.9375
          %v4339 = vmul.f32 %v3794, 0.9375
          %v4340 = vmul.f32 %v3799, 0.9375
          %v4341 = vmul.f32 %v3804, 0.9375
          %v4342 = vmul.f32 %v3906, 0.0625
          %v4343 = vmul.f32 %v3911, 0.0625
          %v4344 = vmul.f32 %v3916, 0.0625
          %v4345 = vmul.f32 %v3921, 0.0625
          %v4346 = vmul.f32 %v3926, 0.0625
          %v4347 = vmul.f32 %v3931, 0.0625
          %v4348 = vmul.f32 %v3936, 0.0625
          %v4349 = vmul.f32 %v3941, 0.0625
          %v4350 = vadd.f32 %v4334, %v4342
          %v4351 = vadd.f32 %v4335, %v4343
          %v4352 = vadd.f32 %v4336, %v4344
          %v4353 = vadd.f32 %v4337, %v4345
          %v4354 = vadd.f32 %v4338, %v4346
          %v4355 = vadd.f32 %v4339, %v4347
          %v4356 = vadd.f32 %v4340, %v4348
          %v4357 = vadd.f32 %v4341, %v4349
          %4358 = vst.msk [vmem:[%s701 + $0x8] sm:$0xff] %vm4218, %v4350
          %4359 = vst.msk [vmem:[%s701 + $0x48] sm:$0xff] %vm4218, %v4351
          %4360 = vst.msk [vmem:[%s701 + $0x88] sm:$0xff] %vm4218, %v4352
          %4361 = vst.msk [vmem:[%s701 + $0xc8] sm:$0xff] %vm4218, %v4353
          %4362 = vst.msk [vmem:[%s701 + $0x108] sm:$0xff] %vm4218, %v4354
          %4363 = vst.msk [vmem:[%s701 + $0x148] sm:$0xff] %vm4218, %v4355
          %4364 = vst.msk [vmem:[%s701 + $0x188] sm:$0xff] %vm4218, %v4356
          %4365 = vst.msk [vmem:[%s701 + $0x1c8] sm:$0xff] %vm4218, %v4357
          %v4366 = vmul.f32 %v3769, 0.8125
          %v4367 = vmul.f32 %v3774, 0.8125
          %v4368 = vmul.f32 %v3779, 0.8125
          %v4369 = vmul.f32 %v3784, 0.8125
          %v4370 = vmul.f32 %v3789, 0.8125
          %v4371 = vmul.f32 %v3794, 0.8125
          %v4372 = vmul.f32 %v3799, 0.8125
          %v4373 = vmul.f32 %v3804, 0.8125
          %v4374 = vmul.f32 %v3906, 0.1875
          %v4375 = vmul.f32 %v3911, 0.1875
          %v4376 = vmul.f32 %v3916, 0.1875
          %v4377 = vmul.f32 %v3921, 0.1875
          %v4378 = vmul.f32 %v3926, 0.1875
          %v4379 = vmul.f32 %v3931, 0.1875
          %v4380 = vmul.f32 %v3936, 0.1875
          %v4381 = vmul.f32 %v3941, 0.1875
          %v4382 = vadd.f32 %v4366, %v4374
          %v4383 = vadd.f32 %v4367, %v4375
          %v4384 = vadd.f32 %v4368, %v4376
          %v4385 = vadd.f32 %v4369, %v4377
          %v4386 = vadd.f32 %v4370, %v4378
          %v4387 = vadd.f32 %v4371, %v4379
          %v4388 = vadd.f32 %v4372, %v4380
          %v4389 = vadd.f32 %v4373, %v4381
          %4398 = vrot.lane.b32.xlu0 %v4382, 32
          %v4399 = vpop.permute.xlu0 %4398
          %4400 = vrot.lane.b32.xlu0 %v4383, 32
          %v4401 = vpop.permute.xlu0 %4400
          %4402 = vrot.lane.b32.xlu0 %v4384, 32
          %v4403 = vpop.permute.xlu0 %4402
          %4404 = vrot.lane.b32.xlu0 %v4385, 32
          %v4405 = vpop.permute.xlu0 %4404
          %4406 = vrot.lane.b32.xlu0 %v4386, 32
          %v4407 = vpop.permute.xlu0 %4406
          %4408 = vrot.lane.b32.xlu0 %v4387, 32
          %v4409 = vpop.permute.xlu0 %4408
          %4410 = vrot.lane.b32.xlu0 %v4388, 32
          %v4411 = vpop.permute.xlu0 %4410
          %4412 = vrot.lane.b32.xlu0 %v4389, 32
          %v4413 = vpop.permute.xlu0 %4412
          %4422 = vst.msk [vmem:[%s701 + $0x8] sm:$0xff] %vm4259, %v4399
          %4423 = vst.msk [vmem:[%s701 + $0x48] sm:$0xff] %vm4259, %v4401
          %4424 = vst.msk [vmem:[%s701 + $0x88] sm:$0xff] %vm4259, %v4403
          %4425 = vst.msk [vmem:[%s701 + $0xc8] sm:$0xff] %vm4259, %v4405
          %4426 = vst.msk [vmem:[%s701 + $0x108] sm:$0xff] %vm4259, %v4407
          %4427 = vst.msk [vmem:[%s701 + $0x148] sm:$0xff] %vm4259, %v4409
          %4428 = vst.msk [vmem:[%s701 + $0x188] sm:$0xff] %vm4259, %v4411
          %4429 = vst.msk [vmem:[%s701 + $0x1c8] sm:$0xff] %vm4259, %v4413
          %v4430 = vmul.f32 %v3769, 0.6875
          %v4431 = vmul.f32 %v3774, 0.6875
          %v4432 = vmul.f32 %v3779, 0.6875
          %v4433 = vmul.f32 %v3784, 0.6875
          %v4434 = vmul.f32 %v3789, 0.6875
          %v4435 = vmul.f32 %v3794, 0.6875
          %v4436 = vmul.f32 %v3799, 0.6875
          %v4437 = vmul.f32 %v3804, 0.6875
          %v4438 = vmul.f32 %v3906, 0.3125
          %v4439 = vmul.f32 %v3911, 0.3125
          %v4440 = vmul.f32 %v3916, 0.3125
          %v4441 = vmul.f32 %v3921, 0.3125
          %v4442 = vmul.f32 %v3926, 0.3125
          %v4443 = vmul.f32 %v3931, 0.3125
          %v4444 = vmul.f32 %v3936, 0.3125
          %v4445 = vmul.f32 %v3941, 0.3125
          %v4446 = vadd.f32 %v4430, %v4438
          %v4447 = vadd.f32 %v4431, %v4439
          %v4448 = vadd.f32 %v4432, %v4440
          %v4449 = vadd.f32 %v4433, %v4441
          %v4450 = vadd.f32 %v4434, %v4442
          %v4451 = vadd.f32 %v4435, %v4443
          %v4452 = vadd.f32 %v4436, %v4444
          %v4453 = vadd.f32 %v4437, %v4445
          %4462 = vrot.lane.b32.xlu0 %v4446, 64
          %v4463 = vpop.permute.xlu0 %4462
          %4464 = vrot.lane.b32.xlu0 %v4447, 64
          %v4465 = vpop.permute.xlu0 %4464
          %4466 = vrot.lane.b32.xlu0 %v4448, 64
          %v4467 = vpop.permute.xlu0 %4466
          %4468 = vrot.lane.b32.xlu0 %v4449, 64
          %v4469 = vpop.permute.xlu0 %4468
          %4470 = vrot.lane.b32.xlu0 %v4450, 64
          %v4471 = vpop.permute.xlu0 %4470
          %4472 = vrot.lane.b32.xlu0 %v4451, 64
          %v4473 = vpop.permute.xlu0 %4472
          %4474 = vrot.lane.b32.xlu0 %v4452, 64
          %v4475 = vpop.permute.xlu0 %4474
          %4476 = vrot.lane.b32.xlu0 %v4453, 64
          %v4477 = vpop.permute.xlu0 %4476
          %4486 = vst.msk [vmem:[%s701 + $0x8] sm:$0xff] %vm4292, %v4463
          %4487 = vst.msk [vmem:[%s701 + $0x48] sm:$0xff] %vm4292, %v4465
          %4488 = vst.msk [vmem:[%s701 + $0x88] sm:$0xff] %vm4292, %v4467
          %4489 = vst.msk [vmem:[%s701 + $0xc8] sm:$0xff] %vm4292, %v4469
          %4490 = vst.msk [vmem:[%s701 + $0x108] sm:$0xff] %vm4292, %v4471
          %4491 = vst.msk [vmem:[%s701 + $0x148] sm:$0xff] %vm4292, %v4473
          %4492 = vst.msk [vmem:[%s701 + $0x188] sm:$0xff] %vm4292, %v4475
          %4493 = vst.msk [vmem:[%s701 + $0x1c8] sm:$0xff] %vm4292, %v4477
          %v4494 = vmul.f32 %v3769, 0.5625
          %v4495 = vmul.f32 %v3774, 0.5625
          %v4496 = vmul.f32 %v3779, 0.5625
          %v4497 = vmul.f32 %v3784, 0.5625
          %v4498 = vmul.f32 %v3789, 0.5625
          %v4499 = vmul.f32 %v3794, 0.5625
          %v4500 = vmul.f32 %v3799, 0.5625
          %v4501 = vmul.f32 %v3804, 0.5625
          %v4502 = vmul.f32 %v3906, 0.4375
          %v4503 = vmul.f32 %v3911, 0.4375
          %v4504 = vmul.f32 %v3916, 0.4375
          %v4505 = vmul.f32 %v3921, 0.4375
          %v4506 = vmul.f32 %v3926, 0.4375
          %v4507 = vmul.f32 %v3931, 0.4375
          %v4508 = vmul.f32 %v3936, 0.4375
          %v4509 = vmul.f32 %v3941, 0.4375
          %v4510 = vadd.f32 %v4494, %v4502
          %v4511 = vadd.f32 %v4495, %v4503
          %v4512 = vadd.f32 %v4496, %v4504
          %v4513 = vadd.f32 %v4497, %v4505
          %v4514 = vadd.f32 %v4498, %v4506
          %v4515 = vadd.f32 %v4499, %v4507
          %v4516 = vadd.f32 %v4500, %v4508
          %v4517 = vadd.f32 %v4501, %v4509
          %4526 = vrot.lane.b32.xlu0 %v4510, 96
          %v4527 = vpop.permute.xlu0 %4526
          %4528 = vrot.lane.b32.xlu0 %v4511, 96
          %v4529 = vpop.permute.xlu0 %4528
          %4530 = vrot.lane.b32.xlu0 %v4512, 96
          %v4531 = vpop.permute.xlu0 %4530
          %4532 = vrot.lane.b32.xlu0 %v4513, 96
          %v4533 = vpop.permute.xlu0 %4532
          %4534 = vrot.lane.b32.xlu0 %v4514, 96
          %v4535 = vpop.permute.xlu0 %4534
          %4536 = vrot.lane.b32.xlu0 %v4515, 96
          %v4537 = vpop.permute.xlu0 %4536
          %4538 = vrot.lane.b32.xlu0 %v4516, 96
          %v4539 = vpop.permute.xlu0 %4538
          %4540 = vrot.lane.b32.xlu0 %v4517, 96
          %v4541 = vpop.permute.xlu0 %4540
          %4550 = vst.msk [vmem:[%s701 + $0x8] sm:$0xff] %vm4325, %v4527
          %4551 = vst.msk [vmem:[%s701 + $0x48] sm:$0xff] %vm4325, %v4529
          %4552 = vst.msk [vmem:[%s701 + $0x88] sm:$0xff] %vm4325, %v4531
          %4553 = vst.msk [vmem:[%s701 + $0xc8] sm:$0xff] %vm4325, %v4533
          %4554 = vst.msk [vmem:[%s701 + $0x108] sm:$0xff] %vm4325, %v4535
          %4555 = vst.msk [vmem:[%s701 + $0x148] sm:$0xff] %vm4325, %v4537
          %4556 = vst.msk [vmem:[%s701 + $0x188] sm:$0xff] %vm4325, %v4539
          %4557 = vst.msk [vmem:[%s701 + $0x1c8] sm:$0xff] %vm4325, %v4541
          %v4558 = vmul.f32 %v3769, 0.4375
          %v4559 = vmul.f32 %v3774, 0.4375
          %v4560 = vmul.f32 %v3779, 0.4375
          %v4561 = vmul.f32 %v3784, 0.4375
          %v4562 = vmul.f32 %v3789, 0.4375
          %v4563 = vmul.f32 %v3794, 0.4375
          %v4564 = vmul.f32 %v3799, 0.4375
          %v4565 = vmul.f32 %v3804, 0.4375
          %v4566 = vmul.f32 %v3906, 0.5625
          %v4567 = vmul.f32 %v3911, 0.5625
          %v4568 = vmul.f32 %v3916, 0.5625
          %v4569 = vmul.f32 %v3921, 0.5625
          %v4570 = vmul.f32 %v3926, 0.5625
          %v4571 = vmul.f32 %v3931, 0.5625
          %v4572 = vmul.f32 %v3936, 0.5625
          %v4573 = vmul.f32 %v3941, 0.5625
          %v4574 = vadd.f32 %v4558, %v4566
          %v4575 = vadd.f32 %v4559, %v4567
          %v4576 = vadd.f32 %v4560, %v4568
          %v4577 = vadd.f32 %v4561, %v4569
          %v4578 = vadd.f32 %v4562, %v4570
          %v4579 = vadd.f32 %v4563, %v4571
          %v4580 = vadd.f32 %v4564, %v4572
          %v4581 = vadd.f32 %v4565, %v4573
          %4582 = vst.msk [vmem:[%s701 + $0x10] sm:$0xff] %vm4218, %v4574
          %4583 = vst.msk [vmem:[%s701 + $0x50] sm:$0xff] %vm4218, %v4575
          %4584 = vst.msk [vmem:[%s701 + $0x90] sm:$0xff] %vm4218, %v4576
          %4585 = vst.msk [vmem:[%s701 + $0xd0] sm:$0xff] %vm4218, %v4577
          %4586 = vst.msk [vmem:[%s701 + $0x110] sm:$0xff] %vm4218, %v4578
          %4587 = vst.msk [vmem:[%s701 + $0x150] sm:$0xff] %vm4218, %v4579
          %4588 = vst.msk [vmem:[%s701 + $0x190] sm:$0xff] %vm4218, %v4580
          %4589 = vst.msk [vmem:[%s701 + $0x1d0] sm:$0xff] %vm4218, %v4581
          %v4590 = vmul.f32 %v3769, 0.3125
          %v4591 = vmul.f32 %v3774, 0.3125
          %v4592 = vmul.f32 %v3779, 0.3125
          %v4593 = vmul.f32 %v3784, 0.3125
          %v4594 = vmul.f32 %v3789, 0.3125
          %v4595 = vmul.f32 %v3794, 0.3125
          %v4596 = vmul.f32 %v3799, 0.3125
          %v4597 = vmul.f32 %v3804, 0.3125
          %v4598 = vmul.f32 %v3906, 0.6875
          %v4599 = vmul.f32 %v3911, 0.6875
          %v4600 = vmul.f32 %v3916, 0.6875
          %v4601 = vmul.f32 %v3921, 0.6875
          %v4602 = vmul.f32 %v3926, 0.6875
          %v4603 = vmul.f32 %v3931, 0.6875
          %v4604 = vmul.f32 %v3936, 0.6875
          %v4605 = vmul.f32 %v3941, 0.6875
          %v4606 = vadd.f32 %v4590, %v4598
          %v4607 = vadd.f32 %v4591, %v4599
          %v4608 = vadd.f32 %v4592, %v4600
          %v4609 = vadd.f32 %v4593, %v4601
          %v4610 = vadd.f32 %v4594, %v4602
          %v4611 = vadd.f32 %v4595, %v4603
          %v4612 = vadd.f32 %v4596, %v4604
          %v4613 = vadd.f32 %v4597, %v4605
          %4622 = vrot.lane.b32.xlu0 %v4606, 32
          %v4623 = vpop.permute.xlu0 %4622
          %4624 = vrot.lane.b32.xlu0 %v4607, 32
          %v4625 = vpop.permute.xlu0 %4624
          %4626 = vrot.lane.b32.xlu0 %v4608, 32
          %v4627 = vpop.permute.xlu0 %4626
          %4628 = vrot.lane.b32.xlu0 %v4609, 32
          %v4629 = vpop.permute.xlu0 %4628
          %4630 = vrot.lane.b32.xlu0 %v4610, 32
          %v4631 = vpop.permute.xlu0 %4630
          %4632 = vrot.lane.b32.xlu0 %v4611, 32
          %v4633 = vpop.permute.xlu0 %4632
          %4634 = vrot.lane.b32.xlu0 %v4612, 32
          %v4635 = vpop.permute.xlu0 %4634
          %4636 = vrot.lane.b32.xlu0 %v4613, 32
          %v4637 = vpop.permute.xlu0 %4636
          %4646 = vst.msk [vmem:[%s701 + $0x10] sm:$0xff] %vm4259, %v4623
          %4647 = vst.msk [vmem:[%s701 + $0x50] sm:$0xff] %vm4259, %v4625
          %4648 = vst.msk [vmem:[%s701 + $0x90] sm:$0xff] %vm4259, %v4627
          %4649 = vst.msk [vmem:[%s701 + $0xd0] sm:$0xff] %vm4259, %v4629
          %4650 = vst.msk [vmem:[%s701 + $0x110] sm:$0xff] %vm4259, %v4631
          %4651 = vst.msk [vmem:[%s701 + $0x150] sm:$0xff] %vm4259, %v4633
          %4652 = vst.msk [vmem:[%s701 + $0x190] sm:$0xff] %vm4259, %v4635
          %4653 = vst.msk [vmem:[%s701 + $0x1d0] sm:$0xff] %vm4259, %v4637
          %v4654 = vmul.f32 %v3769, 0.1875
          %v4655 = vmul.f32 %v3774, 0.1875
          %v4656 = vmul.f32 %v3779, 0.1875
          %v4657 = vmul.f32 %v3784, 0.1875
          %v4658 = vmul.f32 %v3789, 0.1875
          %v4659 = vmul.f32 %v3794, 0.1875
          %v4660 = vmul.f32 %v3799, 0.1875
          %v4661 = vmul.f32 %v3804, 0.1875
          %v4662 = vmul.f32 %v3906, 0.8125
          %v4663 = vmul.f32 %v3911, 0.8125
          %v4664 = vmul.f32 %v3916, 0.8125
          %v4665 = vmul.f32 %v3921, 0.8125
          %v4666 = vmul.f32 %v3926, 0.8125
          %v4667 = vmul.f32 %v3931, 0.8125
          %v4668 = vmul.f32 %v3936, 0.8125
          %v4669 = vmul.f32 %v3941, 0.8125
          %v4670 = vadd.f32 %v4654, %v4662
          %v4671 = vadd.f32 %v4655, %v4663
          %v4672 = vadd.f32 %v4656, %v4664
          %v4673 = vadd.f32 %v4657, %v4665
          %v4674 = vadd.f32 %v4658, %v4666
          %v4675 = vadd.f32 %v4659, %v4667
          %v4676 = vadd.f32 %v4660, %v4668
          %v4677 = vadd.f32 %v4661, %v4669
          %4686 = vrot.lane.b32.xlu0 %v4670, 64
          %v4687 = vpop.permute.xlu0 %4686
          %4688 = vrot.lane.b32.xlu0 %v4671, 64
          %v4689 = vpop.permute.xlu0 %4688
          %4690 = vrot.lane.b32.xlu0 %v4672, 64
          %v4691 = vpop.permute.xlu0 %4690
          %4692 = vrot.lane.b32.xlu0 %v4673, 64
          %v4693 = vpop.permute.xlu0 %4692
          %4694 = vrot.lane.b32.xlu0 %v4674, 64
          %v4695 = vpop.permute.xlu0 %4694
          %4696 = vrot.lane.b32.xlu0 %v4675, 64
          %v4697 = vpop.permute.xlu0 %4696
          %4698 = vrot.lane.b32.xlu0 %v4676, 64
          %v4699 = vpop.permute.xlu0 %4698
          %4700 = vrot.lane.b32.xlu0 %v4677, 64
          %v4701 = vpop.permute.xlu0 %4700
          %4710 = vst.msk [vmem:[%s701 + $0x10] sm:$0xff] %vm4292, %v4687
          %4711 = vst.msk [vmem:[%s701 + $0x50] sm:$0xff] %vm4292, %v4689
          %4712 = vst.msk [vmem:[%s701 + $0x90] sm:$0xff] %vm4292, %v4691
          %4713 = vst.msk [vmem:[%s701 + $0xd0] sm:$0xff] %vm4292, %v4693
          %4714 = vst.msk [vmem:[%s701 + $0x110] sm:$0xff] %vm4292, %v4695
          %4715 = vst.msk [vmem:[%s701 + $0x150] sm:$0xff] %vm4292, %v4697
          %4716 = vst.msk [vmem:[%s701 + $0x190] sm:$0xff] %vm4292, %v4699
          %4717 = vst.msk [vmem:[%s701 + $0x1d0] sm:$0xff] %vm4292, %v4701
          %v4718 = vmul.f32 %v3769, 0.0625
          %v4719 = vmul.f32 %v3774, 0.0625
          %v4720 = vmul.f32 %v3779, 0.0625
          %v4721 = vmul.f32 %v3784, 0.0625
          %v4722 = vmul.f32 %v3789, 0.0625
          %v4723 = vmul.f32 %v3794, 0.0625
          %v4724 = vmul.f32 %v3799, 0.0625
          %v4725 = vmul.f32 %v3804, 0.0625
          %v4726 = vmul.f32 %v3906, 0.9375
          %v4727 = vmul.f32 %v3911, 0.9375
          %v4728 = vmul.f32 %v3916, 0.9375
          %v4729 = vmul.f32 %v3921, 0.9375
          %v4730 = vmul.f32 %v3926, 0.9375
          %v4731 = vmul.f32 %v3931, 0.9375
          %v4732 = vmul.f32 %v3936, 0.9375
          %v4733 = vmul.f32 %v3941, 0.9375
          %v4734 = vadd.f32 %v4718, %v4726
          %v4735 = vadd.f32 %v4719, %v4727
          %v4736 = vadd.f32 %v4720, %v4728
          %v4737 = vadd.f32 %v4721, %v4729
          %v4738 = vadd.f32 %v4722, %v4730
          %v4739 = vadd.f32 %v4723, %v4731
          %v4740 = vadd.f32 %v4724, %v4732
          %v4741 = vadd.f32 %v4725, %v4733
          %4750 = vrot.lane.b32.xlu0 %v4734, 96
          %v4751 = vpop.permute.xlu0 %4750
          %4752 = vrot.lane.b32.xlu0 %v4735, 96
          %v4753 = vpop.permute.xlu0 %4752
          %4754 = vrot.lane.b32.xlu0 %v4736, 96
          %v4755 = vpop.permute.xlu0 %4754
          %4756 = vrot.lane.b32.xlu0 %v4737, 96
          %v4757 = vpop.permute.xlu0 %4756
          %4758 = vrot.lane.b32.xlu0 %v4738, 96
          %v4759 = vpop.permute.xlu0 %4758
          %4760 = vrot.lane.b32.xlu0 %v4739, 96
          %v4761 = vpop.permute.xlu0 %4760
          %4762 = vrot.lane.b32.xlu0 %v4740, 96
          %v4763 = vpop.permute.xlu0 %4762
          %4764 = vrot.lane.b32.xlu0 %v4741, 96
          %v4765 = vpop.permute.xlu0 %4764
          %4774 = vst.msk [vmem:[%s701 + $0x10] sm:$0xff] %vm4325, %v4751
          %4775 = vst.msk [vmem:[%s701 + $0x50] sm:$0xff] %vm4325, %v4753
          %4776 = vst.msk [vmem:[%s701 + $0x90] sm:$0xff] %vm4325, %v4755
          %4777 = vst.msk [vmem:[%s701 + $0xd0] sm:$0xff] %vm4325, %v4757
          %4778 = vst.msk [vmem:[%s701 + $0x110] sm:$0xff] %vm4325, %v4759
          %4779 = vst.msk [vmem:[%s701 + $0x150] sm:$0xff] %vm4325, %v4761
          %4780 = vst.msk [vmem:[%s701 + $0x190] sm:$0xff] %vm4325, %v4763
          %4781 = vst.msk [vmem:[%s701 + $0x1d0] sm:$0xff] %vm4325, %v4765
          %v4782 = vmul.f32 %v4043, 0.0625
          %v4783 = vmul.f32 %v4048, 0.0625
          %v4784 = vmul.f32 %v4053, 0.0625
          %v4785 = vmul.f32 %v4058, 0.0625
          %v4786 = vmul.f32 %v4063, 0.0625
          %v4787 = vmul.f32 %v4068, 0.0625
          %v4788 = vmul.f32 %v4073, 0.0625
          %v4789 = vmul.f32 %v4078, 0.0625
          %v4790 = vadd.f32 %v4726, %v4782
          %v4791 = vadd.f32 %v4727, %v4783
          %v4792 = vadd.f32 %v4728, %v4784
          %v4793 = vadd.f32 %v4729, %v4785
          %v4794 = vadd.f32 %v4730, %v4786
          %v4795 = vadd.f32 %v4731, %v4787
          %v4796 = vadd.f32 %v4732, %v4788
          %v4797 = vadd.f32 %v4733, %v4789
          %4798 = vst.msk [vmem:[%s701 + $0x18] sm:$0xff] %vm4218, %v4790
          %4799 = vst.msk [vmem:[%s701 + $0x58] sm:$0xff] %vm4218, %v4791
          %4800 = vst.msk [vmem:[%s701 + $0x98] sm:$0xff] %vm4218, %v4792
          %4801 = vst.msk [vmem:[%s701 + $0xd8] sm:$0xff] %vm4218, %v4793
          %4802 = vst.msk [vmem:[%s701 + $0x118] sm:$0xff] %vm4218, %v4794
          %4803 = vst.msk [vmem:[%s701 + $0x158] sm:$0xff] %vm4218, %v4795
          %4804 = vst.msk [vmem:[%s701 + $0x198] sm:$0xff] %vm4218, %v4796
          %4805 = vst.msk [vmem:[%s701 + $0x1d8] sm:$0xff] %vm4218, %v4797
          %v4806 = vmul.f32 %v4043, 0.1875
          %v4807 = vmul.f32 %v4048, 0.1875
          %v4808 = vmul.f32 %v4053, 0.1875
          %v4809 = vmul.f32 %v4058, 0.1875
          %v4810 = vmul.f32 %v4063, 0.1875
          %v4811 = vmul.f32 %v4068, 0.1875
          %v4812 = vmul.f32 %v4073, 0.1875
          %v4813 = vmul.f32 %v4078, 0.1875
          %v4814 = vadd.f32 %v4662, %v4806
          %v4815 = vadd.f32 %v4663, %v4807
          %v4816 = vadd.f32 %v4664, %v4808
          %v4817 = vadd.f32 %v4665, %v4809
          %v4818 = vadd.f32 %v4666, %v4810
          %v4819 = vadd.f32 %v4667, %v4811
          %v4820 = vadd.f32 %v4668, %v4812
          %v4821 = vadd.f32 %v4669, %v4813
          %4830 = vrot.lane.b32.xlu0 %v4814, 32
          %v4831 = vpop.permute.xlu0 %4830
          %4832 = vrot.lane.b32.xlu0 %v4815, 32
          %v4833 = vpop.permute.xlu0 %4832
          %4834 = vrot.lane.b32.xlu0 %v4816, 32
          %v4835 = vpop.permute.xlu0 %4834
          %4836 = vrot.lane.b32.xlu0 %v4817, 32
          %v4837 = vpop.permute.xlu0 %4836
          %4838 = vrot.lane.b32.xlu0 %v4818, 32
          %v4839 = vpop.permute.xlu0 %4838
          %4840 = vrot.lane.b32.xlu0 %v4819, 32
          %v4841 = vpop.permute.xlu0 %4840
          %4842 = vrot.lane.b32.xlu0 %v4820, 32
          %v4843 = vpop.permute.xlu0 %4842
          %4844 = vrot.lane.b32.xlu0 %v4821, 32
          %v4845 = vpop.permute.xlu0 %4844
          %4854 = vst.msk [vmem:[%s701 + $0x18] sm:$0xff] %vm4259, %v4831
          %4855 = vst.msk [vmem:[%s701 + $0x58] sm:$0xff] %vm4259, %v4833
          %4856 = vst.msk [vmem:[%s701 + $0x98] sm:$0xff] %vm4259, %v4835
          %4857 = vst.msk [vmem:[%s701 + $0xd8] sm:$0xff] %vm4259, %v4837
          %4858 = vst.msk [vmem:[%s701 + $0x118] sm:$0xff] %vm4259, %v4839
          %4859 = vst.msk [vmem:[%s701 + $0x158] sm:$0xff] %vm4259, %v4841
          %4860 = vst.msk [vmem:[%s701 + $0x198] sm:$0xff] %vm4259, %v4843
          %4861 = vst.msk [vmem:[%s701 + $0x1d8] sm:$0xff] %vm4259, %v4845
          %v4862 = vmul.f32 %v4043, 0.3125
          %v4863 = vmul.f32 %v4048, 0.3125
          %v4864 = vmul.f32 %v4053, 0.3125
          %v4865 = vmul.f32 %v4058, 0.3125
          %v4866 = vmul.f32 %v4063, 0.3125
          %v4867 = vmul.f32 %v4068, 0.3125
          %v4868 = vmul.f32 %v4073, 0.3125
          %v4869 = vmul.f32 %v4078, 0.3125
          %v4870 = vadd.f32 %v4598, %v4862
          %v4871 = vadd.f32 %v4599, %v4863
          %v4872 = vadd.f32 %v4600, %v4864
          %v4873 = vadd.f32 %v4601, %v4865
          %v4874 = vadd.f32 %v4602, %v4866
          %v4875 = vadd.f32 %v4603, %v4867
          %v4876 = vadd.f32 %v4604, %v4868
          %v4877 = vadd.f32 %v4605, %v4869
          %4886 = vrot.lane.b32.xlu0 %v4870, 64
          %v4887 = vpop.permute.xlu0 %4886
          %4888 = vrot.lane.b32.xlu0 %v4871, 64
          %v4889 = vpop.permute.xlu0 %4888
          %4890 = vrot.lane.b32.xlu0 %v4872, 64
          %v4891 = vpop.permute.xlu0 %4890
          %4892 = vrot.lane.b32.xlu0 %v4873, 64
          %v4893 = vpop.permute.xlu0 %4892
          %4894 = vrot.lane.b32.xlu0 %v4874, 64
          %v4895 = vpop.permute.xlu0 %4894
          %4896 = vrot.lane.b32.xlu0 %v4875, 64
          %v4897 = vpop.permute.xlu0 %4896
          %4898 = vrot.lane.b32.xlu0 %v4876, 64
          %v4899 = vpop.permute.xlu0 %4898
          %4900 = vrot.lane.b32.xlu0 %v4877, 64
          %v4901 = vpop.permute.xlu0 %4900
          %4910 = vst.msk [vmem:[%s701 + $0x18] sm:$0xff] %vm4292, %v4887
          %4911 = vst.msk [vmem:[%s701 + $0x58] sm:$0xff] %vm4292, %v4889
          %4912 = vst.msk [vmem:[%s701 + $0x98] sm:$0xff] %vm4292, %v4891
          %4913 = vst.msk [vmem:[%s701 + $0xd8] sm:$0xff] %vm4292, %v4893
          %4914 = vst.msk [vmem:[%s701 + $0x118] sm:$0xff] %vm4292, %v4895
          %4915 = vst.msk [vmem:[%s701 + $0x158] sm:$0xff] %vm4292, %v4897
          %4916 = vst.msk [vmem:[%s701 + $0x198] sm:$0xff] %vm4292, %v4899
          %4917 = vst.msk [vmem:[%s701 + $0x1d8] sm:$0xff] %vm4292, %v4901
          %v4918 = vmul.f32 %v4043, 0.4375
          %v4919 = vmul.f32 %v4048, 0.4375
          %v4920 = vmul.f32 %v4053, 0.4375
          %v4921 = vmul.f32 %v4058, 0.4375
          %v4922 = vmul.f32 %v4063, 0.4375
          %v4923 = vmul.f32 %v4068, 0.4375
          %v4924 = vmul.f32 %v4073, 0.4375
          %v4925 = vmul.f32 %v4078, 0.4375
          %v4926 = vadd.f32 %v4566, %v4918
          %v4927 = vadd.f32 %v4567, %v4919
          %v4928 = vadd.f32 %v4568, %v4920
          %v4929 = vadd.f32 %v4569, %v4921
          %v4930 = vadd.f32 %v4570, %v4922
          %v4931 = vadd.f32 %v4571, %v4923
          %v4932 = vadd.f32 %v4572, %v4924
          %v4933 = vadd.f32 %v4573, %v4925
          %4942 = vrot.lane.b32.xlu0 %v4926, 96
          %v4943 = vpop.permute.xlu0 %4942
          %4944 = vrot.lane.b32.xlu0 %v4927, 96
          %v4945 = vpop.permute.xlu0 %4944
          %4946 = vrot.lane.b32.xlu0 %v4928, 96
          %v4947 = vpop.permute.xlu0 %4946
          %4948 = vrot.lane.b32.xlu0 %v4929, 96
          %v4949 = vpop.permute.xlu0 %4948
          %4950 = vrot.lane.b32.xlu0 %v4930, 96
          %v4951 = vpop.permute.xlu0 %4950
          %4952 = vrot.lane.b32.xlu0 %v4931, 96
          %v4953 = vpop.permute.xlu0 %4952
          %4954 = vrot.lane.b32.xlu0 %v4932, 96
          %v4955 = vpop.permute.xlu0 %4954
          %4956 = vrot.lane.b32.xlu0 %v4933, 96
          %v4957 = vpop.permute.xlu0 %4956
          %4966 = vst.msk [vmem:[%s701 + $0x18] sm:$0xff] %vm4325, %v4943
          %4967 = vst.msk [vmem:[%s701 + $0x58] sm:$0xff] %vm4325, %v4945
          %4968 = vst.msk [vmem:[%s701 + $0x98] sm:$0xff] %vm4325, %v4947
          %4969 = vst.msk [vmem:[%s701 + $0xd8] sm:$0xff] %vm4325, %v4949
          %4970 = vst.msk [vmem:[%s701 + $0x118] sm:$0xff] %vm4325, %v4951
          %4971 = vst.msk [vmem:[%s701 + $0x158] sm:$0xff] %vm4325, %v4953
          %4972 = vst.msk [vmem:[%s701 + $0x198] sm:$0xff] %vm4325, %v4955
          %4973 = vst.msk [vmem:[%s701 + $0x1d8] sm:$0xff] %vm4325, %v4957
          %v4974 = vmul.f32 %v4043, 0.5625
          %v4975 = vmul.f32 %v4048, 0.5625
          %v4976 = vmul.f32 %v4053, 0.5625
          %v4977 = vmul.f32 %v4058, 0.5625
          %v4978 = vmul.f32 %v4063, 0.5625
          %v4979 = vmul.f32 %v4068, 0.5625
          %v4980 = vmul.f32 %v4073, 0.5625
          %v4981 = vmul.f32 %v4078, 0.5625
          %v4982 = vadd.f32 %v4502, %v4974
          %v4983 = vadd.f32 %v4503, %v4975
          %v4984 = vadd.f32 %v4504, %v4976
          %v4985 = vadd.f32 %v4505, %v4977
          %v4986 = vadd.f32 %v4506, %v4978
          %v4987 = vadd.f32 %v4507, %v4979
          %v4988 = vadd.f32 %v4508, %v4980
          %v4989 = vadd.f32 %v4509, %v4981
          %4990 = vst.msk [vmem:[%s701 + $0x20] sm:$0xff] %vm4218, %v4982
          %4991 = vst.msk [vmem:[%s701 + $0x60] sm:$0xff] %vm4218, %v4983
          %4992 = vst.msk [vmem:[%s701 + $0xa0] sm:$0xff] %vm4218, %v4984
          %4993 = vst.msk [vmem:[%s701 + $0xe0] sm:$0xff] %vm4218, %v4985
          %4994 = vst.msk [vmem:[%s701 + $0x120] sm:$0xff] %vm4218, %v4986
          %4995 = vst.msk [vmem:[%s701 + $0x160] sm:$0xff] %vm4218, %v4987
          %4996 = vst.msk [vmem:[%s701 + $0x1a0] sm:$0xff] %vm4218, %v4988
          %4997 = vst.msk [vmem:[%s701 + $0x1e0] sm:$0xff] %vm4218, %v4989
          %v4998 = vmul.f32 %v4043, 0.6875
          %v4999 = vmul.f32 %v4048, 0.6875
          %v5000 = vmul.f32 %v4053, 0.6875
          %v5001 = vmul.f32 %v4058, 0.6875
          %v5002 = vmul.f32 %v4063, 0.6875
          %v5003 = vmul.f32 %v4068, 0.6875
          %v5004 = vmul.f32 %v4073, 0.6875
          %v5005 = vmul.f32 %v4078, 0.6875
          %v5006 = vadd.f32 %v4438, %v4998
          %v5007 = vadd.f32 %v4439, %v4999
          %v5008 = vadd.f32 %v4440, %v5000
          %v5009 = vadd.f32 %v4441, %v5001
          %v5010 = vadd.f32 %v4442, %v5002
          %v5011 = vadd.f32 %v4443, %v5003
          %v5012 = vadd.f32 %v4444, %v5004
          %v5013 = vadd.f32 %v4445, %v5005
          %5022 = vrot.lane.b32.xlu0 %v5006, 32
          %v5023 = vpop.permute.xlu0 %5022
          %5024 = vrot.lane.b32.xlu0 %v5007, 32
          %v5025 = vpop.permute.xlu0 %5024
          %5026 = vrot.lane.b32.xlu0 %v5008, 32
          %v5027 = vpop.permute.xlu0 %5026
          %5028 = vrot.lane.b32.xlu0 %v5009, 32
          %v5029 = vpop.permute.xlu0 %5028
          %5030 = vrot.lane.b32.xlu0 %v5010, 32
          %v5031 = vpop.permute.xlu0 %5030
          %5032 = vrot.lane.b32.xlu0 %v5011, 32
          %v5033 = vpop.permute.xlu0 %5032
          %5034 = vrot.lane.b32.xlu0 %v5012, 32
          %v5035 = vpop.permute.xlu0 %5034
          %5036 = vrot.lane.b32.xlu0 %v5013, 32
          %v5037 = vpop.permute.xlu0 %5036
          %5046 = vst.msk [vmem:[%s701 + $0x20] sm:$0xff] %vm4259, %v5023
          %5047 = vst.msk [vmem:[%s701 + $0x60] sm:$0xff] %vm4259, %v5025
          %5048 = vst.msk [vmem:[%s701 + $0xa0] sm:$0xff] %vm4259, %v5027
          %5049 = vst.msk [vmem:[%s701 + $0xe0] sm:$0xff] %vm4259, %v5029
          %5050 = vst.msk [vmem:[%s701 + $0x120] sm:$0xff] %vm4259, %v5031
          %5051 = vst.msk [vmem:[%s701 + $0x160] sm:$0xff] %vm4259, %v5033
          %5052 = vst.msk [vmem:[%s701 + $0x1a0] sm:$0xff] %vm4259, %v5035
          %5053 = vst.msk [vmem:[%s701 + $0x1e0] sm:$0xff] %vm4259, %v5037
          %v5054 = vmul.f32 %v4043, 0.8125
          %v5055 = vmul.f32 %v4048, 0.8125
          %v5056 = vmul.f32 %v4053, 0.8125
          %v5057 = vmul.f32 %v4058, 0.8125
          %v5058 = vmul.f32 %v4063, 0.8125
          %v5059 = vmul.f32 %v4068, 0.8125
          %v5060 = vmul.f32 %v4073, 0.8125
          %v5061 = vmul.f32 %v4078, 0.8125
          %v5062 = vadd.f32 %v4374, %v5054
          %v5063 = vadd.f32 %v4375, %v5055
          %v5064 = vadd.f32 %v4376, %v5056
          %v5065 = vadd.f32 %v4377, %v5057
          %v5066 = vadd.f32 %v4378, %v5058
          %v5067 = vadd.f32 %v4379, %v5059
          %v5068 = vadd.f32 %v4380, %v5060
          %v5069 = vadd.f32 %v4381, %v5061
          %5078 = vrot.lane.b32.xlu0 %v5062, 64
          %v5079 = vpop.permute.xlu0 %5078
          %5080 = vrot.lane.b32.xlu0 %v5063, 64
          %v5081 = vpop.permute.xlu0 %5080
          %5082 = vrot.lane.b32.xlu0 %v5064, 64
          %v5083 = vpop.permute.xlu0 %5082
          %5084 = vrot.lane.b32.xlu0 %v5065, 64
          %v5085 = vpop.permute.xlu0 %5084
          %5086 = vrot.lane.b32.xlu0 %v5066, 64
          %v5087 = vpop.permute.xlu0 %5086
          %5088 = vrot.lane.b32.xlu0 %v5067, 64
          %v5089 = vpop.permute.xlu0 %5088
          %5090 = vrot.lane.b32.xlu0 %v5068, 64
          %v5091 = vpop.permute.xlu0 %5090
          %5092 = vrot.lane.b32.xlu0 %v5069, 64
          %v5093 = vpop.permute.xlu0 %5092
          %5102 = vst.msk [vmem:[%s701 + $0x20] sm:$0xff] %vm4292, %v5079
          %5103 = vst.msk [vmem:[%s701 + $0x60] sm:$0xff] %vm4292, %v5081
          %5104 = vst.msk [vmem:[%s701 + $0xa0] sm:$0xff] %vm4292, %v5083
          %5105 = vst.msk [vmem:[%s701 + $0xe0] sm:$0xff] %vm4292, %v5085
          %5106 = vst.msk [vmem:[%s701 + $0x120] sm:$0xff] %vm4292, %v5087
          %5107 = vst.msk [vmem:[%s701 + $0x160] sm:$0xff] %vm4292, %v5089
          %5108 = vst.msk [vmem:[%s701 + $0x1a0] sm:$0xff] %vm4292, %v5091
          %5109 = vst.msk [vmem:[%s701 + $0x1e0] sm:$0xff] %vm4292, %v5093
          %v5110 = vmul.f32 %v4043, 0.9375
          %v5111 = vmul.f32 %v4048, 0.9375
          %v5112 = vmul.f32 %v4053, 0.9375
          %v5113 = vmul.f32 %v4058, 0.9375
          %v5114 = vmul.f32 %v4063, 0.9375
          %v5115 = vmul.f32 %v4068, 0.9375
          %v5116 = vmul.f32 %v4073, 0.9375
          %v5117 = vmul.f32 %v4078, 0.9375
          %v5118 = vadd.f32 %v4342, %v5110
          %v5119 = vadd.f32 %v4343, %v5111
          %v5120 = vadd.f32 %v4344, %v5112
          %v5121 = vadd.f32 %v4345, %v5113
          %v5122 = vadd.f32 %v4346, %v5114
          %v5123 = vadd.f32 %v4347, %v5115
          %v5124 = vadd.f32 %v4348, %v5116
          %v5125 = vadd.f32 %v4349, %v5117
          %5134 = vrot.lane.b32.xlu0 %v5118, 96
          %v5135 = vpop.permute.xlu0 %5134
          %5136 = vrot.lane.b32.xlu0 %v5119, 96
          %v5137 = vpop.permute.xlu0 %5136
          %5138 = vrot.lane.b32.xlu0 %v5120, 96
          %v5139 = vpop.permute.xlu0 %5138
          %5140 = vrot.lane.b32.xlu0 %v5121, 96
          %v5141 = vpop.permute.xlu0 %5140
          %5142 = vrot.lane.b32.xlu0 %v5122, 96
          %v5143 = vpop.permute.xlu0 %5142
          %5144 = vrot.lane.b32.xlu0 %v5123, 96
          %v5145 = vpop.permute.xlu0 %5144
          %5146 = vrot.lane.b32.xlu0 %v5124, 96
          %v5147 = vpop.permute.xlu0 %5146
          %5148 = vrot.lane.b32.xlu0 %v5125, 96
          %v5149 = vpop.permute.xlu0 %5148
          %5158 = vst.msk [vmem:[%s701 + $0x20] sm:$0xff] %vm4325, %v5135
          %5159 = vst.msk [vmem:[%s701 + $0x60] sm:$0xff] %vm4325, %v5137
          %5160 = vst.msk [vmem:[%s701 + $0xa0] sm:$0xff] %vm4325, %v5139
          %5161 = vst.msk [vmem:[%s701 + $0xe0] sm:$0xff] %vm4325, %v5141
          %5162 = vst.msk [vmem:[%s701 + $0x120] sm:$0xff] %vm4325, %v5143
          %5163 = vst.msk [vmem:[%s701 + $0x160] sm:$0xff] %vm4325, %v5145
          %5164 = vst.msk [vmem:[%s701 + $0x1a0] sm:$0xff] %vm4325, %v5147
          %5165 = vst.msk [vmem:[%s701 + $0x1e0] sm:$0xff] %vm4325, %v5149
          %v5166 = vmul.f32 %v4180, 0.0625
          %v5167 = vmul.f32 %v4185, 0.0625
          %v5168 = vmul.f32 %v4190, 0.0625
          %v5169 = vmul.f32 %v4195, 0.0625
          %v5170 = vmul.f32 %v4200, 0.0625
          %v5171 = vmul.f32 %v4205, 0.0625
          %v5172 = vmul.f32 %v4210, 0.0625
          %v5173 = vmul.f32 %v4215, 0.0625
          %v5174 = vadd.f32 %v5110, %v5166
          %v5175 = vadd.f32 %v5111, %v5167
          %v5176 = vadd.f32 %v5112, %v5168
          %v5177 = vadd.f32 %v5113, %v5169
          %v5178 = vadd.f32 %v5114, %v5170
          %v5179 = vadd.f32 %v5115, %v5171
          %v5180 = vadd.f32 %v5116, %v5172
          %v5181 = vadd.f32 %v5117, %v5173
          %5182 = vst.msk [vmem:[%s701 + $0x28] sm:$0xff] %vm4218, %v5174
          %5183 = vst.msk [vmem:[%s701 + $0x68] sm:$0xff] %vm4218, %v5175
          %5184 = vst.msk [vmem:[%s701 + $0xa8] sm:$0xff] %vm4218, %v5176
          %5185 = vst.msk [vmem:[%s701 + $0xe8] sm:$0xff] %vm4218, %v5177
          %5186 = vst.msk [vmem:[%s701 + $0x128] sm:$0xff] %vm4218, %v5178
          %5187 = vst.msk [vmem:[%s701 + $0x168] sm:$0xff] %vm4218, %v5179
          %5188 = vst.msk [vmem:[%s701 + $0x1a8] sm:$0xff] %vm4218, %v5180
          %5189 = vst.msk [vmem:[%s701 + $0x1e8] sm:$0xff] %vm4218, %v5181
          %v5190 = vmul.f32 %v4180, 0.1875
          %v5191 = vmul.f32 %v4185, 0.1875
          %v5192 = vmul.f32 %v4190, 0.1875
          %v5193 = vmul.f32 %v4195, 0.1875
          %v5194 = vmul.f32 %v4200, 0.1875
          %v5195 = vmul.f32 %v4205, 0.1875
          %v5196 = vmul.f32 %v4210, 0.1875
          %v5197 = vmul.f32 %v4215, 0.1875
          %v5198 = vadd.f32 %v5054, %v5190
          %v5199 = vadd.f32 %v5055, %v5191
          %v5200 = vadd.f32 %v5056, %v5192
          %v5201 = vadd.f32 %v5057, %v5193
          %v5202 = vadd.f32 %v5058, %v5194
          %v5203 = vadd.f32 %v5059, %v5195
          %v5204 = vadd.f32 %v5060, %v5196
          %v5205 = vadd.f32 %v5061, %v5197
          %5214 = vrot.lane.b32.xlu0 %v5198, 32
          %v5215 = vpop.permute.xlu0 %5214
          %5216 = vrot.lane.b32.xlu0 %v5199, 32
          %v5217 = vpop.permute.xlu0 %5216
          %5218 = vrot.lane.b32.xlu0 %v5200, 32
          %v5219 = vpop.permute.xlu0 %5218
          %5220 = vrot.lane.b32.xlu0 %v5201, 32
          %v5221 = vpop.permute.xlu0 %5220
          %5222 = vrot.lane.b32.xlu0 %v5202, 32
          %v5223 = vpop.permute.xlu0 %5222
          %5224 = vrot.lane.b32.xlu0 %v5203, 32
          %v5225 = vpop.permute.xlu0 %5224
          %5226 = vrot.lane.b32.xlu0 %v5204, 32
          %v5227 = vpop.permute.xlu0 %5226
          %5228 = vrot.lane.b32.xlu0 %v5205, 32
          %v5229 = vpop.permute.xlu0 %5228
          %5238 = vst.msk [vmem:[%s701 + $0x28] sm:$0xff] %vm4259, %v5215
          %5239 = vst.msk [vmem:[%s701 + $0x68] sm:$0xff] %vm4259, %v5217
          %5240 = vst.msk [vmem:[%s701 + $0xa8] sm:$0xff] %vm4259, %v5219
          %5241 = vst.msk [vmem:[%s701 + $0xe8] sm:$0xff] %vm4259, %v5221
          %5242 = vst.msk [vmem:[%s701 + $0x128] sm:$0xff] %vm4259, %v5223
          %5243 = vst.msk [vmem:[%s701 + $0x168] sm:$0xff] %vm4259, %v5225
          %5244 = vst.msk [vmem:[%s701 + $0x1a8] sm:$0xff] %vm4259, %v5227
          %5245 = vst.msk [vmem:[%s701 + $0x1e8] sm:$0xff] %vm4259, %v5229
          %v5246 = vmul.f32 %v4180, 0.3125
          %v5247 = vmul.f32 %v4185, 0.3125
          %v5248 = vmul.f32 %v4190, 0.3125
          %v5249 = vmul.f32 %v4195, 0.3125
          %v5250 = vmul.f32 %v4200, 0.3125
          %v5251 = vmul.f32 %v4205, 0.3125
          %v5252 = vmul.f32 %v4210, 0.3125
          %v5253 = vmul.f32 %v4215, 0.3125
          %v5254 = vadd.f32 %v4998, %v5246
          %v5255 = vadd.f32 %v4999, %v5247
          %v5256 = vadd.f32 %v5000, %v5248
          %v5257 = vadd.f32 %v5001, %v5249
          %v5258 = vadd.f32 %v5002, %v5250
          %v5259 = vadd.f32 %v5003, %v5251
          %v5260 = vadd.f32 %v5004, %v5252
          %v5261 = vadd.f32 %v5005, %v5253
          %5270 = vrot.lane.b32.xlu0 %v5254, 64
          %v5271 = vpop.permute.xlu0 %5270
          %5272 = vrot.lane.b32.xlu0 %v5255, 64
          %v5273 = vpop.permute.xlu0 %5272
          %5274 = vrot.lane.b32.xlu0 %v5256, 64
          %v5275 = vpop.permute.xlu0 %5274
          %5276 = vrot.lane.b32.xlu0 %v5257, 64
          %v5277 = vpop.permute.xlu0 %5276
          %5278 = vrot.lane.b32.xlu0 %v5258, 64
          %v5279 = vpop.permute.xlu0 %5278
          %5280 = vrot.lane.b32.xlu0 %v5259, 64
          %v5281 = vpop.permute.xlu0 %5280
          %5282 = vrot.lane.b32.xlu0 %v5260, 64
          %v5283 = vpop.permute.xlu0 %5282
          %5284 = vrot.lane.b32.xlu0 %v5261, 64
          %v5285 = vpop.permute.xlu0 %5284
          %5294 = vst.msk [vmem:[%s701 + $0x28] sm:$0xff] %vm4292, %v5271
          %5295 = vst.msk [vmem:[%s701 + $0x68] sm:$0xff] %vm4292, %v5273
          %5296 = vst.msk [vmem:[%s701 + $0xa8] sm:$0xff] %vm4292, %v5275
          %5297 = vst.msk [vmem:[%s701 + $0xe8] sm:$0xff] %vm4292, %v5277
          %5298 = vst.msk [vmem:[%s701 + $0x128] sm:$0xff] %vm4292, %v5279
          %5299 = vst.msk [vmem:[%s701 + $0x168] sm:$0xff] %vm4292, %v5281
          %5300 = vst.msk [vmem:[%s701 + $0x1a8] sm:$0xff] %vm4292, %v5283
          %5301 = vst.msk [vmem:[%s701 + $0x1e8] sm:$0xff] %vm4292, %v5285
          %v5302 = vmul.f32 %v4180, 0.4375
          %v5303 = vmul.f32 %v4185, 0.4375
          %v5304 = vmul.f32 %v4190, 0.4375
          %v5305 = vmul.f32 %v4195, 0.4375
          %v5306 = vmul.f32 %v4200, 0.4375
          %v5307 = vmul.f32 %v4205, 0.4375
          %v5308 = vmul.f32 %v4210, 0.4375
          %v5309 = vmul.f32 %v4215, 0.4375
          %v5310 = vadd.f32 %v4974, %v5302
          %v5311 = vadd.f32 %v4975, %v5303
          %v5312 = vadd.f32 %v4976, %v5304
          %v5313 = vadd.f32 %v4977, %v5305
          %v5314 = vadd.f32 %v4978, %v5306
          %v5315 = vadd.f32 %v4979, %v5307
          %v5316 = vadd.f32 %v4980, %v5308
          %v5317 = vadd.f32 %v4981, %v5309
          %5326 = vrot.lane.b32.xlu0 %v5310, 96
          %v5327 = vpop.permute.xlu0 %5326
          %5328 = vrot.lane.b32.xlu0 %v5311, 96
          %v5329 = vpop.permute.xlu0 %5328
          %5330 = vrot.lane.b32.xlu0 %v5312, 96
          %v5331 = vpop.permute.xlu0 %5330
          %5332 = vrot.lane.b32.xlu0 %v5313, 96
          %v5333 = vpop.permute.xlu0 %5332
          %5334 = vrot.lane.b32.xlu0 %v5314, 96
          %v5335 = vpop.permute.xlu0 %5334
          %5336 = vrot.lane.b32.xlu0 %v5315, 96
          %v5337 = vpop.permute.xlu0 %5336
          %5338 = vrot.lane.b32.xlu0 %v5316, 96
          %v5339 = vpop.permute.xlu0 %5338
          %5340 = vrot.lane.b32.xlu0 %v5317, 96
          %v5341 = vpop.permute.xlu0 %5340
          %5350 = vst.msk [vmem:[%s701 + $0x28] sm:$0xff] %vm4325, %v5327
          %5351 = vst.msk [vmem:[%s701 + $0x68] sm:$0xff] %vm4325, %v5329
          %5352 = vst.msk [vmem:[%s701 + $0xa8] sm:$0xff] %vm4325, %v5331
          %5353 = vst.msk [vmem:[%s701 + $0xe8] sm:$0xff] %vm4325, %v5333
          %5354 = vst.msk [vmem:[%s701 + $0x128] sm:$0xff] %vm4325, %v5335
          %5355 = vst.msk [vmem:[%s701 + $0x168] sm:$0xff] %vm4325, %v5337
          %5356 = vst.msk [vmem:[%s701 + $0x1a8] sm:$0xff] %vm4325, %v5339
          %5357 = vst.msk [vmem:[%s701 + $0x1e8] sm:$0xff] %vm4325, %v5341
          %v5358 = vmul.f32 %v4180, 0.5625
          %v5359 = vmul.f32 %v4185, 0.5625
          %v5360 = vmul.f32 %v4190, 0.5625
          %v5361 = vmul.f32 %v4195, 0.5625
          %v5362 = vmul.f32 %v4200, 0.5625
          %v5363 = vmul.f32 %v4205, 0.5625
          %v5364 = vmul.f32 %v4210, 0.5625
          %v5365 = vmul.f32 %v4215, 0.5625
          %v5366 = vadd.f32 %v4918, %v5358
          %v5367 = vadd.f32 %v4919, %v5359
          %v5368 = vadd.f32 %v4920, %v5360
          %v5369 = vadd.f32 %v4921, %v5361
          %v5370 = vadd.f32 %v4922, %v5362
          %v5371 = vadd.f32 %v4923, %v5363
          %v5372 = vadd.f32 %v4924, %v5364
          %v5373 = vadd.f32 %v4925, %v5365
          %5374 = vst.msk [vmem:[%s701 + $0x30] sm:$0xff] %vm4218, %v5366
          %5375 = vst.msk [vmem:[%s701 + $0x70] sm:$0xff] %vm4218, %v5367
          %5376 = vst.msk [vmem:[%s701 + $0xb0] sm:$0xff] %vm4218, %v5368
          %5377 = vst.msk [vmem:[%s701 + $0xf0] sm:$0xff] %vm4218, %v5369
          %5378 = vst.msk [vmem:[%s701 + $0x130] sm:$0xff] %vm4218, %v5370
          %5379 = vst.msk [vmem:[%s701 + $0x170] sm:$0xff] %vm4218, %v5371
          %5380 = vst.msk [vmem:[%s701 + $0x1b0] sm:$0xff] %vm4218, %v5372
          %5381 = vst.msk [vmem:[%s701 + $0x1f0] sm:$0xff] %vm4218, %v5373
          %v5382 = vmul.f32 %v4180, 0.6875
          %v5383 = vmul.f32 %v4185, 0.6875
          %v5384 = vmul.f32 %v4190, 0.6875
          %v5385 = vmul.f32 %v4195, 0.6875
          %v5386 = vmul.f32 %v4200, 0.6875
          %v5387 = vmul.f32 %v4205, 0.6875
          %v5388 = vmul.f32 %v4210, 0.6875
          %v5389 = vmul.f32 %v4215, 0.6875
          %v5390 = vadd.f32 %v4862, %v5382
          %v5391 = vadd.f32 %v4863, %v5383
          %v5392 = vadd.f32 %v4864, %v5384
          %v5393 = vadd.f32 %v4865, %v5385
          %v5394 = vadd.f32 %v4866, %v5386
          %v5395 = vadd.f32 %v4867, %v5387
          %v5396 = vadd.f32 %v4868, %v5388
          %v5397 = vadd.f32 %v4869, %v5389
          %5406 = vrot.lane.b32.xlu0 %v5390, 32
          %v5407 = vpop.permute.xlu0 %5406
          %5408 = vrot.lane.b32.xlu0 %v5391, 32
          %v5409 = vpop.permute.xlu0 %5408
          %5410 = vrot.lane.b32.xlu0 %v5392, 32
          %v5411 = vpop.permute.xlu0 %5410
          %5412 = vrot.lane.b32.xlu0 %v5393, 32
          %v5413 = vpop.permute.xlu0 %5412
          %5414 = vrot.lane.b32.xlu0 %v5394, 32
          %v5415 = vpop.permute.xlu0 %5414
          %5416 = vrot.lane.b32.xlu0 %v5395, 32
          %v5417 = vpop.permute.xlu0 %5416
          %5418 = vrot.lane.b32.xlu0 %v5396, 32
          %v5419 = vpop.permute.xlu0 %5418
          %5420 = vrot.lane.b32.xlu0 %v5397, 32
          %v5421 = vpop.permute.xlu0 %5420
          %5430 = vst.msk [vmem:[%s701 + $0x30] sm:$0xff] %vm4259, %v5407
          %5431 = vst.msk [vmem:[%s701 + $0x70] sm:$0xff] %vm4259, %v5409
          %5432 = vst.msk [vmem:[%s701 + $0xb0] sm:$0xff] %vm4259, %v5411
          %5433 = vst.msk [vmem:[%s701 + $0xf0] sm:$0xff] %vm4259, %v5413
          %5434 = vst.msk [vmem:[%s701 + $0x130] sm:$0xff] %vm4259, %v5415
          %5435 = vst.msk [vmem:[%s701 + $0x170] sm:$0xff] %vm4259, %v5417
          %5436 = vst.msk [vmem:[%s701 + $0x1b0] sm:$0xff] %vm4259, %v5419
          %5437 = vst.msk [vmem:[%s701 + $0x1f0] sm:$0xff] %vm4259, %v5421
          %v5438 = vmul.f32 %v4180, 0.8125
          %v5439 = vmul.f32 %v4185, 0.8125
          %v5440 = vmul.f32 %v4190, 0.8125
          %v5441 = vmul.f32 %v4195, 0.8125
          %v5442 = vmul.f32 %v4200, 0.8125
          %v5443 = vmul.f32 %v4205, 0.8125
          %v5444 = vmul.f32 %v4210, 0.8125
          %v5445 = vmul.f32 %v4215, 0.8125
          %v5446 = vadd.f32 %v4806, %v5438
          %v5447 = vadd.f32 %v4807, %v5439
          %v5448 = vadd.f32 %v4808, %v5440
          %v5449 = vadd.f32 %v4809, %v5441
          %v5450 = vadd.f32 %v4810, %v5442
          %v5451 = vadd.f32 %v4811, %v5443
          %v5452 = vadd.f32 %v4812, %v5444
          %v5453 = vadd.f32 %v4813, %v5445
          %5462 = vrot.lane.b32.xlu0 %v5446, 64
          %v5463 = vpop.permute.xlu0 %5462
          %5464 = vrot.lane.b32.xlu0 %v5447, 64
          %v5465 = vpop.permute.xlu0 %5464
          %5466 = vrot.lane.b32.xlu0 %v5448, 64
          %v5467 = vpop.permute.xlu0 %5466
          %5468 = vrot.lane.b32.xlu0 %v5449, 64
          %v5469 = vpop.permute.xlu0 %5468
          %5470 = vrot.lane.b32.xlu0 %v5450, 64
          %v5471 = vpop.permute.xlu0 %5470
          %5472 = vrot.lane.b32.xlu0 %v5451, 64
          %v5473 = vpop.permute.xlu0 %5472
          %5474 = vrot.lane.b32.xlu0 %v5452, 64
          %v5475 = vpop.permute.xlu0 %5474
          %5476 = vrot.lane.b32.xlu0 %v5453, 64
          %v5477 = vpop.permute.xlu0 %5476
          %5486 = vst.msk [vmem:[%s701 + $0x30] sm:$0xff] %vm4292, %v5463
          %5487 = vst.msk [vmem:[%s701 + $0x70] sm:$0xff] %vm4292, %v5465
          %5488 = vst.msk [vmem:[%s701 + $0xb0] sm:$0xff] %vm4292, %v5467
          %5489 = vst.msk [vmem:[%s701 + $0xf0] sm:$0xff] %vm4292, %v5469
          %5490 = vst.msk [vmem:[%s701 + $0x130] sm:$0xff] %vm4292, %v5471
          %5491 = vst.msk [vmem:[%s701 + $0x170] sm:$0xff] %vm4292, %v5473
          %5492 = vst.msk [vmem:[%s701 + $0x1b0] sm:$0xff] %vm4292, %v5475
          %5493 = vst.msk [vmem:[%s701 + $0x1f0] sm:$0xff] %vm4292, %v5477
          %v5494 = vmul.f32 %v4180, 0.9375
          %v5495 = vmul.f32 %v4185, 0.9375
          %v5496 = vmul.f32 %v4190, 0.9375
          %v5497 = vmul.f32 %v4195, 0.9375
          %v5498 = vmul.f32 %v4200, 0.9375
          %v5499 = vmul.f32 %v4205, 0.9375
          %v5500 = vmul.f32 %v4210, 0.9375
          %v5501 = vmul.f32 %v4215, 0.9375
          %v5502 = vadd.f32 %v4782, %v5494
          %v5503 = vadd.f32 %v4783, %v5495
          %v5504 = vadd.f32 %v4784, %v5496
          %v5505 = vadd.f32 %v4785, %v5497
          %v5506 = vadd.f32 %v4786, %v5498
          %v5507 = vadd.f32 %v4787, %v5499
          %v5508 = vadd.f32 %v4788, %v5500
          %v5509 = vadd.f32 %v4789, %v5501
          %5518 = vrot.lane.b32.xlu0 %v5502, 96
          %v5519 = vpop.permute.xlu0 %5518
          %5520 = vrot.lane.b32.xlu0 %v5503, 96
          %v5521 = vpop.permute.xlu0 %5520
          %5522 = vrot.lane.b32.xlu0 %v5504, 96
          %v5523 = vpop.permute.xlu0 %5522
          %5524 = vrot.lane.b32.xlu0 %v5505, 96
          %v5525 = vpop.permute.xlu0 %5524
          %5526 = vrot.lane.b32.xlu0 %v5506, 96
          %v5527 = vpop.permute.xlu0 %5526
          %5528 = vrot.lane.b32.xlu0 %v5507, 96
          %v5529 = vpop.permute.xlu0 %5528
          %5530 = vrot.lane.b32.xlu0 %v5508, 96
          %v5531 = vpop.permute.xlu0 %5530
          %5532 = vrot.lane.b32.xlu0 %v5509, 96
          %v5533 = vpop.permute.xlu0 %5532
          %5542 = vst.msk [vmem:[%s701 + $0x30] sm:$0xff] %vm4325, %v5519
          %5543 = vst.msk [vmem:[%s701 + $0x70] sm:$0xff] %vm4325, %v5521
          %5544 = vst.msk [vmem:[%s701 + $0xb0] sm:$0xff] %vm4325, %v5523
          %5545 = vst.msk [vmem:[%s701 + $0xf0] sm:$0xff] %vm4325, %v5525
          %5546 = vst.msk [vmem:[%s701 + $0x130] sm:$0xff] %vm4325, %v5527
          %5547 = vst.msk [vmem:[%s701 + $0x170] sm:$0xff] %vm4325, %v5529
          %5548 = vst.msk [vmem:[%s701 + $0x1b0] sm:$0xff] %vm4325, %v5531
          %5549 = vst.msk [vmem:[%s701 + $0x1f0] sm:$0xff] %vm4325, %v5533
          %5550 = vst.msk [vmem:[%s701 + $0x38] sm:$0xff] %vm4218, %v4180
          %5551 = vst.msk [vmem:[%s701 + $0x78] sm:$0xff] %vm4218, %v4185
          %5552 = vst.msk [vmem:[%s701 + $0xb8] sm:$0xff] %vm4218, %v4190
          %5553 = vst.msk [vmem:[%s701 + $0xf8] sm:$0xff] %vm4218, %v4195
          %5554 = vst.msk [vmem:[%s701 + $0x138] sm:$0xff] %vm4218, %v4200
          %5555 = vst.msk [vmem:[%s701 + $0x178] sm:$0xff] %vm4218, %v4205
          %5556 = vst.msk [vmem:[%s701 + $0x1b8] sm:$0xff] %vm4218, %v4210
          %5557 = vst.msk [vmem:[%s701 + $0x1f8] sm:$0xff] %vm4218, %v4215
          %5566 = vrot.lane.b32.xlu0 %v4180, 32
          %v5567 = vpop.permute.xlu0 %5566
          %5568 = vrot.lane.b32.xlu0 %v4185, 32
          %v5569 = vpop.permute.xlu0 %5568
          %5570 = vrot.lane.b32.xlu0 %v4190, 32
          %v5571 = vpop.permute.xlu0 %5570
          %5572 = vrot.lane.b32.xlu0 %v4195, 32
          %v5573 = vpop.permute.xlu0 %5572
          %5574 = vrot.lane.b32.xlu0 %v4200, 32
          %v5575 = vpop.permute.xlu0 %5574
          %5576 = vrot.lane.b32.xlu0 %v4205, 32
          %v5577 = vpop.permute.xlu0 %5576
          %5578 = vrot.lane.b32.xlu0 %v4210, 32
          %v5579 = vpop.permute.xlu0 %5578
          %5580 = vrot.lane.b32.xlu0 %v4215, 32
          %v5581 = vpop.permute.xlu0 %5580
          %5590 = vst.msk [vmem:[%s701 + $0x38] sm:$0xff] %vm4259, %v5567
          %5591 = vst.msk [vmem:[%s701 + $0x78] sm:$0xff] %vm4259, %v5569
          %5592 = vst.msk [vmem:[%s701 + $0xb8] sm:$0xff] %vm4259, %v5571
          %5593 = vst.msk [vmem:[%s701 + $0xf8] sm:$0xff] %vm4259, %v5573
          %5594 = vst.msk [vmem:[%s701 + $0x138] sm:$0xff] %vm4259, %v5575
          %5595 = vst.msk [vmem:[%s701 + $0x178] sm:$0xff] %vm4259, %v5577
          %5596 = vst.msk [vmem:[%s701 + $0x1b8] sm:$0xff] %vm4259, %v5579
          %5597 = vst.msk [vmem:[%s701 + $0x1f8] sm:$0xff] %vm4259, %v5581
          %5598 = vrot.lane.b32.xlu0 %v4180, 64
          %v5599 = vpop.permute.xlu0 %5598
          %5600 = vrot.lane.b32.xlu0 %v4185, 64
          %v5601 = vpop.permute.xlu0 %5600
          %5602 = vrot.lane.b32.xlu0 %v4190, 64
          %v5603 = vpop.permute.xlu0 %5602
          %5604 = vrot.lane.b32.xlu0 %v4195, 64
          %v5605 = vpop.permute.xlu0 %5604
          %5606 = vrot.lane.b32.xlu0 %v4200, 64
          %v5607 = vpop.permute.xlu0 %5606
          %5608 = vrot.lane.b32.xlu0 %v4205, 64
          %v5609 = vpop.permute.xlu0 %5608
          %5610 = vrot.lane.b32.xlu0 %v4210, 64
          %v5611 = vpop.permute.xlu0 %5610
          %5612 = vrot.lane.b32.xlu0 %v4215, 64
          %v5613 = vpop.permute.xlu0 %5612
          %5622 = vst.msk [vmem:[%s701 + $0x38] sm:$0xff] %vm4292, %v5599
          %5623 = vst.msk [vmem:[%s701 + $0x78] sm:$0xff] %vm4292, %v5601
          %5624 = vst.msk [vmem:[%s701 + $0xb8] sm:$0xff] %vm4292, %v5603
          %5625 = vst.msk [vmem:[%s701 + $0xf8] sm:$0xff] %vm4292, %v5605
          %5626 = vst.msk [vmem:[%s701 + $0x138] sm:$0xff] %vm4292, %v5607
          %5627 = vst.msk [vmem:[%s701 + $0x178] sm:$0xff] %vm4292, %v5609
          %5628 = vst.msk [vmem:[%s701 + $0x1b8] sm:$0xff] %vm4292, %v5611
          %5629 = vst.msk [vmem:[%s701 + $0x1f8] sm:$0xff] %vm4292, %v5613
          %5630 = vrot.lane.b32.xlu0 %v4180, 96
          %v5631 = vpop.permute.xlu0 %5630
          %5632 = vrot.lane.b32.xlu0 %v4185, 96
          %v5633 = vpop.permute.xlu0 %5632
          %5634 = vrot.lane.b32.xlu0 %v4190, 96
          %v5635 = vpop.permute.xlu0 %5634
          %5636 = vrot.lane.b32.xlu0 %v4195, 96
          %v5637 = vpop.permute.xlu0 %5636
          %5638 = vrot.lane.b32.xlu0 %v4200, 96
          %v5639 = vpop.permute.xlu0 %5638
          %5640 = vrot.lane.b32.xlu0 %v4205, 96
          %v5641 = vpop.permute.xlu0 %5640
          %5642 = vrot.lane.b32.xlu0 %v4210, 96
          %v5643 = vpop.permute.xlu0 %5642
          %5644 = vrot.lane.b32.xlu0 %v4215, 96
          %v5645 = vpop.permute.xlu0 %5644
          %5654 = vst.msk [vmem:[%s701 + $0x38] sm:$0xff] %vm4325, %v5631
          %5655 = vst.msk [vmem:[%s701 + $0x78] sm:$0xff] %vm4325, %v5633
          %5656 = vst.msk [vmem:[%s701 + $0xb8] sm:$0xff] %vm4325, %v5635
          %5657 = vst.msk [vmem:[%s701 + $0xf8] sm:$0xff] %vm4325, %v5637
          %5658 = vst.msk [vmem:[%s701 + $0x138] sm:$0xff] %vm4325, %v5639
          %5659 = vst.msk [vmem:[%s701 + $0x178] sm:$0xff] %vm4325, %v5641
          %5660 = vst.msk [vmem:[%s701 + $0x1b8] sm:$0xff] %vm4325, %v5643
          %5661 = vst.msk [vmem:[%s701 + $0x1f8] sm:$0xff] %vm4325, %v5645
        $region120: #{up_cat_branch.1} parent=83 // pred_fallthru
          _
        %p5662 = scmp.eq.s32.totalorder %s36, 2
        // Predicated region
        $region121: #{up_cat_branch.1} parent=83 // pred_check
          %p5663 = pneg %p5662
        $region122: #{up_cat_branch.1} parent=83 // pred_check_branch
          %5665 = sbr.rel (%p5663) target = $region124
        $region123: #{up_cat_branch.1} parent=83 // pred_region
          %v5666 = vld [vmem:[%s686] sm:$0xff]
          %v5667 = vld [vmem:[%s686 + $0x8] sm:$0xff]
          %v5668 = vld [vmem:[%s686 + $0x10] sm:$0xff]
          %v5669 = vld [vmem:[%s686 + $0x18] sm:$0xff]
          %v5670 = vld [vmem:[%s686 + $0x20] sm:$0xff]
          %v5671 = vld [vmem:[%s686 + $0x28] sm:$0xff]
          %v5672 = vld [vmem:[%s686 + $0x30] sm:$0xff]
          %v5673 = vld [vmem:[%s686 + $0x38] sm:$0xff]
          %v5674 = vld [vmem:[%s686 + $0x40] sm:$0xff]
          %v5675 = vld [vmem:[%s686 + $0x48] sm:$0xff]
          %v5676 = vld [vmem:[%s686 + $0x50] sm:$0xff]
          %v5677 = vld [vmem:[%s686 + $0x58] sm:$0xff]
          %v5678 = vld [vmem:[%s686 + $0x60] sm:$0xff]
          %v5679 = vld [vmem:[%s686 + $0x68] sm:$0xff]
          %v5680 = vld [vmem:[%s686 + $0x70] sm:$0xff]
          %v5681 = vld [vmem:[%s686 + $0x78] sm:$0xff]
          %v5682 = vld [vmem:[%s686 + $0x80] sm:$0xff]
          %v5683 = vld [vmem:[%s686 + $0x88] sm:$0xff]
          %v5684 = vld [vmem:[%s686 + $0x90] sm:$0xff]
          %v5685 = vld [vmem:[%s686 + $0x98] sm:$0xff]
          %v5686 = vld [vmem:[%s686 + $0xa0] sm:$0xff]
          %v5687 = vld [vmem:[%s686 + $0xa8] sm:$0xff]
          %v5688 = vld [vmem:[%s686 + $0xb0] sm:$0xff]
          %v5689 = vld [vmem:[%s686 + $0xb8] sm:$0xff]
          %v5690 = vld [vmem:[%s686 + $0xc0] sm:$0xff]
          %v5691 = vld [vmem:[%s686 + $0xc8] sm:$0xff]
          %v5692 = vld [vmem:[%s686 + $0xd0] sm:$0xff]
          %v5693 = vld [vmem:[%s686 + $0xd8] sm:$0xff]
          %v5694 = vld [vmem:[%s686 + $0xe0] sm:$0xff]
          %v5695 = vld [vmem:[%s686 + $0xe8] sm:$0xff]
          %v5696 = vld [vmem:[%s686 + $0xf0] sm:$0xff]
          %v5697 = vld [vmem:[%s686 + $0xf8] sm:$0xff]
          %v5698 = vld [vmem:[#allocation6] sm:$0xff]
          %v5699 = vld [vmem:[#allocation6 + $0x8] sm:$0xff]
          %v5700 = vld [vmem:[#allocation6 + $0x10] sm:$0xff]
          %v5701 = vld [vmem:[#allocation6 + $0x18] sm:$0xff]
          %v5702 = vld [vmem:[#allocation6 + $0x20] sm:$0xff]
          %v5703 = vld [vmem:[#allocation6 + $0x28] sm:$0xff]
          %v5704 = vld [vmem:[#allocation6 + $0x30] sm:$0xff]
          %v5705 = vld [vmem:[#allocation6 + $0x38] sm:$0xff]
          %v5706 = vld [vmem:[#allocation6 + $0x40] sm:$0xff]
          %v5707 = vld [vmem:[#allocation6 + $0x48] sm:$0xff]
          %v5708 = vld [vmem:[#allocation6 + $0x50] sm:$0xff]
          %v5709 = vld [vmem:[#allocation6 + $0x58] sm:$0xff]
          %v5710 = vld [vmem:[#allocation6 + $0x60] sm:$0xff]
          %v5711 = vld [vmem:[#allocation6 + $0x68] sm:$0xff]
          %v5712 = vld [vmem:[#allocation6 + $0x70] sm:$0xff]
          %v5713 = vld [vmem:[#allocation6 + $0x78] sm:$0xff]
          %v5714 = vld [vmem:[%s10] sm:$0xff]
          %v5715 = vld [vmem:[%s10 + $0x8] sm:$0xff]
          %v5716 = vld [vmem:[%s10 + $0x10] sm:$0xff]
          %v5717 = vld [vmem:[%s10 + $0x18] sm:$0xff]
          %v5718 = vld [vmem:[%s10 + $0x20] sm:$0xff]
          %v5719 = vld [vmem:[%s10 + $0x28] sm:$0xff]
          %v5720 = vld [vmem:[%s10 + $0x30] sm:$0xff]
          %v5721 = vld [vmem:[%s10 + $0x38] sm:$0xff]
          %5723 = vset.pattern.permute.xlu0 0
          %5724 = vperm.xlu0 %5723, %v5714
          %v5725 = vpop.permute.xlu0 %5724
          %5728 = vset.pattern.permute.xlu0 0
          %5729 = vperm.xlu0 %5728, %v5715
          %v5730 = vpop.permute.xlu0 %5729
          %5733 = vset.pattern.permute.xlu0 0
          %5734 = vperm.xlu0 %5733, %v5716
          %v5735 = vpop.permute.xlu0 %5734
          %5738 = vset.pattern.permute.xlu0 0
          %5739 = vperm.xlu0 %5738, %v5717
          %v5740 = vpop.permute.xlu0 %5739
          %5743 = vset.pattern.permute.xlu0 0
          %5744 = vperm.xlu0 %5743, %v5718
          %v5745 = vpop.permute.xlu0 %5744
          %5748 = vset.pattern.permute.xlu0 0
          %5749 = vperm.xlu0 %5748, %v5719
          %v5750 = vpop.permute.xlu0 %5749
          %5753 = vset.pattern.permute.xlu0 0
          %5754 = vperm.xlu0 %5753, %v5720
          %v5755 = vpop.permute.xlu0 %5754
          %5758 = vset.pattern.permute.xlu0 0
          %5759 = vperm.xlu0 %5758, %v5721
          %v5760 = vpop.permute.xlu0 %5759
          %5762 = vmatprep.subr.mxu0 0.0
          %5763 = vmatpush1.msra.mxu0 %v5666
          %5764 = vmatprep.subr.mxu0 0.0
          %5765 = vmatpush1.msra.mxu0 %v5667
          %5766 = vmatprep.subr.mxu0 0.0
          %5767 = vmatpush1.msra.mxu0 %v5668
          %5768 = vmatprep.subr.mxu0 0.0
          %5769 = vmatpush1.msra.mxu0 %v5669
          %5770 = vmatprep.subr.mxu0 0.0
          %5771 = vmatpush1.msra.mxu0 %v5670
          %5772 = vmatprep.subr.mxu0 0.0
          %5773 = vmatpush1.msra.mxu0 %v5671
          %5774 = vmatprep.subr.mxu0 0.0
          %5775 = vmatpush1.msra.mxu0 %v5672
          %5776 = vmatprep.subr.mxu0 0.0
          %5777 = vmatpush1.msra.mxu0 %v5673
          %5778 = vmatprep.subr.mxu0 0.0
          %5779 = vmatpush1.msra.mxu0 %v5674
          %5780 = vmatprep.subr.mxu0 0.0
          %5781 = vmatpush1.msra.mxu0 %v5675
          %5782 = vmatprep.subr.mxu0 0.0
          %5783 = vmatpush1.msra.mxu0 %v5676
          %5784 = vmatprep.subr.mxu0 0.0
          %5785 = vmatpush1.msra.mxu0 %v5677
          %5786 = vmatprep.subr.mxu0 0.0
          %5787 = vmatpush1.msra.mxu0 %v5678
          %5788 = vmatprep.subr.mxu0 0.0
          %5789 = vmatpush1.msra.mxu0 %v5679
          %5790 = vmatprep.subr.mxu0 0.0
          %5791 = vmatpush1.msra.mxu0 %v5680
          %5792 = vmatprep.subr.mxu0 0.0
          %5793 = vmatpush1.msra.mxu0 %v5681
          %5794 = vmatprep.subr.mxu0 0.0
          %5795 = vmatpush1.msra.mxu0 %v5682
          %5796 = vmatprep.subr.mxu0 0.0
          %5797 = vmatpush1.msra.mxu0 %v5683
          %5798 = vmatprep.subr.mxu0 0.0
          %5799 = vmatpush1.msra.mxu0 %v5684
          %5800 = vmatprep.subr.mxu0 0.0
          %5801 = vmatpush1.msra.mxu0 %v5685
          %5802 = vmatprep.subr.mxu0 0.0
          %5803 = vmatpush1.msra.mxu0 %v5686
          %5804 = vmatprep.subr.mxu0 0.0
          %5805 = vmatpush1.msra.mxu0 %v5687
          %5806 = vmatprep.subr.mxu0 0.0
          %5807 = vmatpush1.msra.mxu0 %v5688
          %5808 = vmatprep.subr.mxu0 0.0
          %5809 = vmatpush1.msra.mxu0 %v5689
          %5810 = vmatprep.subr.mxu0 0.0
          %5811 = vmatpush1.msra.mxu0 %v5690
          %5812 = vmatprep.subr.mxu0 0.0
          %5813 = vmatpush1.msra.mxu0 %v5691
          %5814 = vmatprep.subr.mxu0 0.0
          %5815 = vmatpush1.msra.mxu0 %v5692
          %5816 = vmatprep.subr.mxu0 0.0
          %5817 = vmatpush1.msra.mxu0 %v5693
          %5818 = vmatprep.subr.mxu0 0.0
          %5819 = vmatpush1.msra.mxu0 %v5694
          %5820 = vmatprep.subr.mxu0 0.0
          %5821 = vmatpush1.msra.mxu0 %v5695
          %5822 = vmatprep.subr.mxu0 0.0
          %5823 = vmatpush1.msra.mxu0 %v5696
          %5824 = vmatprep.subr.mxu0 0.0
          %5825 = vmatpush1.msra.mxu0 %v5697
          %5826 = vmatprep.mubr.f32.mxu0 %v5699
          %5827 = vmatmul.mubr.f32.gmra.mrb[0].mxu0 %v5698
          %v5828 = vpop.f32.mrb[0].mxu0
          %v5829 = vadd.f32 %v5725, %v5828
          %v5830 = vpop.f32.mrb[0].mxu0
          %5831 = vmatprep.mubr.f32.mxu0 %v5701
          %5832 = vmatmul.mubr.f32.gmra.mrb[0].mxu0 %v5700
          %v5833 = vpop.f32.mrb[0].mxu0
          %v5834 = vadd.f32 %v5730, %v5833
          %v5835 = vpop.f32.mrb[0].mxu0
          %5836 = vmatprep.mubr.f32.mxu0 %v5703
          %5837 = vmatmul.mubr.f32.gmra.mrb[0].mxu0 %v5702
          %v5838 = vpop.f32.mrb[0].mxu0
          %v5839 = vadd.f32 %v5735, %v5838
          %v5840 = vpop.f32.mrb[0].mxu0
          %5841 = vmatprep.mubr.f32.mxu0 %v5705
          %5842 = vmatmul.mubr.f32.gmra.mrb[0].mxu0 %v5704
          %v5843 = vpop.f32.mrb[0].mxu0
          %v5844 = vadd.f32 %v5740, %v5843
          %v5845 = vpop.f32.mrb[0].mxu0
          %5846 = vmatprep.mubr.f32.mxu0 %v5707
          %5847 = vmatmul.mubr.f32.gmra.mrb[0].mxu0 %v5706
          %v5848 = vpop.f32.mrb[0].mxu0
          %v5849 = vadd.f32 %v5745, %v5848
          %v5850 = vpop.f32.mrb[0].mxu0
          %5851 = vmatprep.mubr.f32.mxu0 %v5709
          %5852 = vmatmul.mubr.f32.gmra.mrb[0].mxu0 %v5708
          %v5853 = vpop.f32.mrb[0].mxu0
          %v5854 = vadd.f32 %v5750, %v5853
          %v5855 = vpop.f32.mrb[0].mxu0
          %5856 = vmatprep.mubr.f32.mxu0 %v5711
          %5857 = vmatmul.mubr.f32.gmra.mrb[0].mxu0 %v5710
          %v5858 = vpop.f32.mrb[0].mxu0
          %v5859 = vadd.f32 %v5755, %v5858
          %v5860 = vpop.f32.mrb[0].mxu0
          %5861 = vmatprep.mubr.f32.mxu0 %v5713
          %5862 = vmatmul.mubr.f32.gmra.mrb[0].mxu0 %v5712
          %v5863 = vpop.f32.mrb[0].mxu0
          %v5864 = vadd.f32 %v5760, %v5863
          %v5865 = vpop.f32.mrb[0].mxu0
          %5866 = vdwg.mxu0
          %v5867 = vld [vmem:[#allocation12] sm:$0x3]
          %vm5868 = vcmask 15360
          %v5870 = vsel %vm5868, %v5829, 0
          %v5873 = vsel %vm5868, %v5834, 0
          %v5876 = vsel %vm5868, %v5839, 0
          %v5879 = vsel %vm5868, %v5844, 0
          %v5882 = vsel %vm5868, %v5849, 0
          %v5885 = vsel %vm5868, %v5854, 0
          %v5888 = vsel %vm5868, %v5859, 0
          %v5891 = vsel %vm5868, %v5864, 0
          %vm5893 = vcmask 1041408
          %v5895 = vsel %vm5893, %v5867, 0
          %5897 = vmatprep.subr.mxu0 0.0
          %5898 = vmatpush1.msra.mxu0 %v5895
          %5899 = vmatprep.subr.mxu0 0.0
          %5900 = vmatpush1.msra.mxu0 0.0
          %5901 = vmatprep.subr.mxu0 0.0
          %5902 = vmatpush1.msra.mxu0 0.0
          %5903 = vmatprep.subr.mxu0 0.0
          %5904 = vmatpush1.msra.mxu0 0.0
          %5905 = vmatprep.subr.mxu0 0.0
          %5906 = vmatpush1.msra.mxu0 0.0
          %5907 = vmatprep.subr.mxu0 0.0
          %5908 = vmatpush1.msra.mxu0 0.0
          %5909 = vmatprep.subr.mxu0 0.0
          %5910 = vmatpush1.msra.mxu0 0.0
          %5911 = vmatprep.subr.mxu0 0.0
          %5912 = vmatpush1.msra.mxu0 0.0
          %5913 = vmatprep.subr.mxu0 0.0
          %5914 = vmatpush1.msra.mxu0 0.0
          %5915 = vmatprep.subr.mxu0 0.0
          %5916 = vmatpush1.msra.mxu0 0.0
          %5917 = vmatprep.subr.mxu0 0.0
          %5918 = vmatpush1.msra.mxu0 0.0
          %5919 = vmatprep.subr.mxu0 0.0
          %5920 = vmatpush1.msra.mxu0 0.0
          %5921 = vmatprep.subr.mxu0 0.0
          %5922 = vmatpush1.msra.mxu0 0.0
          %5923 = vmatprep.subr.mxu0 0.0
          %5924 = vmatpush1.msra.mxu0 0.0
          %5925 = vmatprep.subr.mxu0 0.0
          %5926 = vmatpush1.msra.mxu0 0.0
          %5927 = vmatprep.subr.mxu0 0.0
          %5928 = vmatpush1.msra.mxu0 0.0
          %5929 = vmatprep.subr.mxu0 0.0
          %5930 = vmatpush1.msra.mxu0 0.0
          %5931 = vmatprep.subr.mxu0 0.0
          %5932 = vmatpush1.msra.mxu0 0.0
          %5933 = vmatprep.subr.mxu0 0.0
          %5934 = vmatpush1.msra.mxu0 0.0
          %5935 = vmatprep.subr.mxu0 0.0
          %5936 = vmatpush1.msra.mxu0 0.0
          %5937 = vmatprep.subr.mxu0 0.0
          %5938 = vmatpush1.msra.mxu0 0.0
          %5939 = vmatprep.subr.mxu0 0.0
          %5940 = vmatpush1.msra.mxu0 0.0
          %5941 = vmatprep.subr.mxu0 0.0
          %5942 = vmatpush1.msra.mxu0 0.0
          %5943 = vmatprep.subr.mxu0 0.0
          %5944 = vmatpush1.msra.mxu0 0.0
          %5945 = vmatprep.subr.mxu0 0.0
          %5946 = vmatpush1.msra.mxu0 0.0
          %5947 = vmatprep.subr.mxu0 0.0
          %5948 = vmatpush1.msra.mxu0 0.0
          %5949 = vmatprep.subr.mxu0 0.0
          %5950 = vmatpush1.msra.mxu0 0.0
          %5951 = vmatprep.subr.mxu0 0.0
          %5952 = vmatpush1.msra.mxu0 0.0
          %5953 = vmatprep.subr.mxu0 0.0
          %5954 = vmatpush1.msra.mxu0 0.0
          %5955 = vmatprep.subr.mxu0 0.0
          %5956 = vmatpush1.msra.mxu0 0.0
          %5957 = vmatprep.subr.mxu0 0.0
          %5958 = vmatpush1.msra.mxu0 0.0
          %5959 = vmatprep.subr.mxu0 0.0
          %5960 = vmatpush1.msra.mxu0 0.0
          %5961 = vmatprep.mubr.f32.mxu0 0.0
          %5962 = vmatmul.mubr.f32.gmra.mrb[0].mxu0 %v5870
          %v5963 = vpop.f32.mrb[0].mxu0
          %v5964 = vadd.f32 0.0, %v5963
          %v5965 = vpop.f32.mrb[0].mxu0
          %5966 = vmatprep.mubr.f32.mxu0 0.0
          %5967 = vmatmul.mubr.f32.gmra.mrb[0].mxu0 %v5873
          %v5968 = vpop.f32.mrb[0].mxu0
          %v5969 = vadd.f32 0.0, %v5968
          %v5970 = vpop.f32.mrb[0].mxu0
          %5971 = vmatprep.mubr.f32.mxu0 0.0
          %5972 = vmatmul.mubr.f32.gmra.mrb[0].mxu0 %v5876
          %v5973 = vpop.f32.mrb[0].mxu0
          %v5974 = vadd.f32 0.0, %v5973
          %v5975 = vpop.f32.mrb[0].mxu0
          %5976 = vmatprep.mubr.f32.mxu0 0.0
          %5977 = vmatmul.mubr.f32.gmra.mrb[0].mxu0 %v5879
          %v5978 = vpop.f32.mrb[0].mxu0
          %v5979 = vadd.f32 0.0, %v5978
          %v5980 = vpop.f32.mrb[0].mxu0
          %5981 = vmatprep.mubr.f32.mxu0 0.0
          %5982 = vmatmul.mubr.f32.gmra.mrb[0].mxu0 %v5882
          %v5983 = vpop.f32.mrb[0].mxu0
          %v5984 = vadd.f32 0.0, %v5983
          %v5985 = vpop.f32.mrb[0].mxu0
          %5986 = vmatprep.mubr.f32.mxu0 0.0
          %5987 = vmatmul.mubr.f32.gmra.mrb[0].mxu0 %v5885
          %v5988 = vpop.f32.mrb[0].mxu0
          %v5989 = vadd.f32 0.0, %v5988
          %v5990 = vpop.f32.mrb[0].mxu0
          %5991 = vmatprep.mubr.f32.mxu0 0.0
          %5992 = vmatmul.mubr.f32.gmra.mrb[0].mxu0 %v5888
          %v5993 = vpop.f32.mrb[0].mxu0
          %v5994 = vadd.f32 0.0, %v5993
          %v5995 = vpop.f32.mrb[0].mxu0
          %5996 = vmatprep.mubr.f32.mxu0 0.0
          %5997 = vmatmul.mubr.f32.gmra.mrb[0].mxu0 %v5891
          %v5998 = vpop.f32.mrb[0].mxu0
          %v5999 = vadd.f32 0.0, %v5998
          %v6000 = vpop.f32.mrb[0].mxu0
          %6001 = vdwg.mxu0
          %6002 = vrot.lane.b32.xlu0 %v5829, 126
          %v6003 = vpop.permute.xlu0 %6002
          %6004 = vrot.lane.b32.xlu0 %v5834, 126
          %v6005 = vpop.permute.xlu0 %6004
          %6006 = vrot.lane.b32.xlu0 %v5839, 126
          %v6007 = vpop.permute.xlu0 %6006
          %6008 = vrot.lane.b32.xlu0 %v5844, 126
          %v6009 = vpop.permute.xlu0 %6008
          %6010 = vrot.lane.b32.xlu0 %v5849, 126
          %v6011 = vpop.permute.xlu0 %6010
          %6012 = vrot.lane.b32.xlu0 %v5854, 126
          %v6013 = vpop.permute.xlu0 %6012
          %6014 = vrot.lane.b32.xlu0 %v5859, 126
          %v6015 = vpop.permute.xlu0 %6014
          %6016 = vrot.lane.b32.xlu0 %v5864, 126
          %v6017 = vpop.permute.xlu0 %6016
          %v6018 = vsel %vm5868, %v6003, 0
          %v6020 = vsel %vm5868, %v6005, 0
          %v6022 = vsel %vm5868, %v6007, 0
          %v6024 = vsel %vm5868, %v6009, 0
          %v6026 = vsel %vm5868, %v6011, 0
          %v6028 = vsel %vm5868, %v6013, 0
          %v6030 = vsel %vm5868, %v6015, 0
          %v6032 = vsel %vm5868, %v6017, 0
          %6034 = vmatprep.subr.mxu0 0.0
          %6035 = vmatpush1.msra.mxu0 %v5895
          %6036 = vmatprep.subr.mxu0 0.0
          %6037 = vmatpush1.msra.mxu0 0.0
          %6038 = vmatprep.subr.mxu0 0.0
          %6039 = vmatpush1.msra.mxu0 0.0
          %6040 = vmatprep.subr.mxu0 0.0
          %6041 = vmatpush1.msra.mxu0 0.0
          %6042 = vmatprep.subr.mxu0 0.0
          %6043 = vmatpush1.msra.mxu0 0.0
          %6044 = vmatprep.subr.mxu0 0.0
          %6045 = vmatpush1.msra.mxu0 0.0
          %6046 = vmatprep.subr.mxu0 0.0
          %6047 = vmatpush1.msra.mxu0 0.0
          %6048 = vmatprep.subr.mxu0 0.0
          %6049 = vmatpush1.msra.mxu0 0.0
          %6050 = vmatprep.subr.mxu0 0.0
          %6051 = vmatpush1.msra.mxu0 0.0
          %6052 = vmatprep.subr.mxu0 0.0
          %6053 = vmatpush1.msra.mxu0 0.0
          %6054 = vmatprep.subr.mxu0 0.0
          %6055 = vmatpush1.msra.mxu0 0.0
          %6056 = vmatprep.subr.mxu0 0.0
          %6057 = vmatpush1.msra.mxu0 0.0
          %6058 = vmatprep.subr.mxu0 0.0
          %6059 = vmatpush1.msra.mxu0 0.0
          %6060 = vmatprep.subr.mxu0 0.0
          %6061 = vmatpush1.msra.mxu0 0.0
          %6062 = vmatprep.subr.mxu0 0.0
          %6063 = vmatpush1.msra.mxu0 0.0
          %6064 = vmatprep.subr.mxu0 0.0
          %6065 = vmatpush1.msra.mxu0 0.0
          %6066 = vmatprep.subr.mxu0 0.0
          %6067 = vmatpush1.msra.mxu0 0.0
          %6068 = vmatprep.subr.mxu0 0.0
          %6069 = vmatpush1.msra.mxu0 0.0
          %6070 = vmatprep.subr.mxu0 0.0
          %6071 = vmatpush1.msra.mxu0 0.0
          %6072 = vmatprep.subr.mxu0 0.0
          %6073 = vmatpush1.msra.mxu0 0.0
          %6074 = vmatprep.subr.mxu0 0.0
          %6075 = vmatpush1.msra.mxu0 0.0
          %6076 = vmatprep.subr.mxu0 0.0
          %6077 = vmatpush1.msra.mxu0 0.0
          %6078 = vmatprep.subr.mxu0 0.0
          %6079 = vmatpush1.msra.mxu0 0.0
          %6080 = vmatprep.subr.mxu0 0.0
          %6081 = vmatpush1.msra.mxu0 0.0
          %6082 = vmatprep.subr.mxu0 0.0
          %6083 = vmatpush1.msra.mxu0 0.0
          %6084 = vmatprep.subr.mxu0 0.0
          %6085 = vmatpush1.msra.mxu0 0.0
          %6086 = vmatprep.subr.mxu0 0.0
          %6087 = vmatpush1.msra.mxu0 0.0
          %6088 = vmatprep.subr.mxu0 0.0
          %6089 = vmatpush1.msra.mxu0 0.0
          %6090 = vmatprep.subr.mxu0 0.0
          %6091 = vmatpush1.msra.mxu0 0.0
          %6092 = vmatprep.subr.mxu0 0.0
          %6093 = vmatpush1.msra.mxu0 0.0
          %6094 = vmatprep.subr.mxu0 0.0
          %6095 = vmatpush1.msra.mxu0 0.0
          %6096 = vmatprep.subr.mxu0 0.0
          %6097 = vmatpush1.msra.mxu0 0.0
          %6098 = vmatprep.mubr.f32.mxu0 0.0
          %6099 = vmatmul.mubr.f32.gmra.mrb[0].mxu0 %v6018
          %v6100 = vpop.f32.mrb[0].mxu0
          %v6101 = vadd.f32 0.0, %v6100
          %v6102 = vpop.f32.mrb[0].mxu0
          %6103 = vmatprep.mubr.f32.mxu0 0.0
          %6104 = vmatmul.mubr.f32.gmra.mrb[0].mxu0 %v6020
          %v6105 = vpop.f32.mrb[0].mxu0
          %v6106 = vadd.f32 0.0, %v6105
          %v6107 = vpop.f32.mrb[0].mxu0
          %6108 = vmatprep.mubr.f32.mxu0 0.0
          %6109 = vmatmul.mubr.f32.gmra.mrb[0].mxu0 %v6022
          %v6110 = vpop.f32.mrb[0].mxu0
          %v6111 = vadd.f32 0.0, %v6110
          %v6112 = vpop.f32.mrb[0].mxu0
          %6113 = vmatprep.mubr.f32.mxu0 0.0
          %6114 = vmatmul.mubr.f32.gmra.mrb[0].mxu0 %v6024
          %v6115 = vpop.f32.mrb[0].mxu0
          %v6116 = vadd.f32 0.0, %v6115
          %v6117 = vpop.f32.mrb[0].mxu0
          %6118 = vmatprep.mubr.f32.mxu0 0.0
          %6119 = vmatmul.mubr.f32.gmra.mrb[0].mxu0 %v6026
          %v6120 = vpop.f32.mrb[0].mxu0
          %v6121 = vadd.f32 0.0, %v6120
          %v6122 = vpop.f32.mrb[0].mxu0
          %6123 = vmatprep.mubr.f32.mxu0 0.0
          %6124 = vmatmul.mubr.f32.gmra.mrb[0].mxu0 %v6028
          %v6125 = vpop.f32.mrb[0].mxu0
          %v6126 = vadd.f32 0.0, %v6125
          %v6127 = vpop.f32.mrb[0].mxu0
          %6128 = vmatprep.mubr.f32.mxu0 0.0
          %6129 = vmatmul.mubr.f32.gmra.mrb[0].mxu0 %v6030
          %v6130 = vpop.f32.mrb[0].mxu0
          %v6131 = vadd.f32 0.0, %v6130
          %v6132 = vpop.f32.mrb[0].mxu0
          %6133 = vmatprep.mubr.f32.mxu0 0.0
          %6134 = vmatmul.mubr.f32.gmra.mrb[0].mxu0 %v6032
          %v6135 = vpop.f32.mrb[0].mxu0
          %v6136 = vadd.f32 0.0, %v6135
          %v6137 = vpop.f32.mrb[0].mxu0
          %6138 = vdwg.mxu0
          %vm6139 = vcmask 261120
          %6140 = vst.msk [vmem:[%s701] sm:$0xff] %vm6139, %v5964
          %6141 = vst.msk [vmem:[%s701 + $0x40] sm:$0xff] %vm6139, %v5969
          %6142 = vst.msk [vmem:[%s701 + $0x80] sm:$0xff] %vm6139, %v5974
          %6143 = vst.msk [vmem:[%s701 + $0xc0] sm:$0xff] %vm6139, %v5979
          %6144 = vst.msk [vmem:[%s701 + $0x100] sm:$0xff] %vm6139, %v5984
          %6145 = vst.msk [vmem:[%s701 + $0x140] sm:$0xff] %vm6139, %v5989
          %6146 = vst.msk [vmem:[%s701 + $0x180] sm:$0xff] %vm6139, %v5994
          %6147 = vst.msk [vmem:[%s701 + $0x1c0] sm:$0xff] %vm6139, %v5999
          %6156 = vrot.lane.b32.xlu0 %v5964, 32
          %v6157 = vpop.permute.xlu0 %6156
          %6158 = vrot.lane.b32.xlu0 %v5969, 32
          %v6159 = vpop.permute.xlu0 %6158
          %6160 = vrot.lane.b32.xlu0 %v5974, 32
          %v6161 = vpop.permute.xlu0 %6160
          %6162 = vrot.lane.b32.xlu0 %v5979, 32
          %v6163 = vpop.permute.xlu0 %6162
          %6164 = vrot.lane.b32.xlu0 %v5984, 32
          %v6165 = vpop.permute.xlu0 %6164
          %6166 = vrot.lane.b32.xlu0 %v5989, 32
          %v6167 = vpop.permute.xlu0 %6166
          %6168 = vrot.lane.b32.xlu0 %v5994, 32
          %v6169 = vpop.permute.xlu0 %6168
          %6170 = vrot.lane.b32.xlu0 %v5999, 32
          %v6171 = vpop.permute.xlu0 %6170
          %vm6180 = vcmask 523520
          %6181 = vst.msk [vmem:[%s701] sm:$0xff] %vm6180, %v6157
          %6182 = vst.msk [vmem:[%s701 + $0x40] sm:$0xff] %vm6180, %v6159
          %6183 = vst.msk [vmem:[%s701 + $0x80] sm:$0xff] %vm6180, %v6161
          %6184 = vst.msk [vmem:[%s701 + $0xc0] sm:$0xff] %vm6180, %v6163
          %6185 = vst.msk [vmem:[%s701 + $0x100] sm:$0xff] %vm6180, %v6165
          %6186 = vst.msk [vmem:[%s701 + $0x140] sm:$0xff] %vm6180, %v6167
          %6187 = vst.msk [vmem:[%s701 + $0x180] sm:$0xff] %vm6180, %v6169
          %6188 = vst.msk [vmem:[%s701 + $0x1c0] sm:$0xff] %vm6180, %v6171
          %6189 = vrot.lane.b32.xlu0 %v5964, 64
          %v6190 = vpop.permute.xlu0 %6189
          %6191 = vrot.lane.b32.xlu0 %v5969, 64
          %v6192 = vpop.permute.xlu0 %6191
          %6193 = vrot.lane.b32.xlu0 %v5974, 64
          %v6194 = vpop.permute.xlu0 %6193
          %6195 = vrot.lane.b32.xlu0 %v5979, 64
          %v6196 = vpop.permute.xlu0 %6195
          %6197 = vrot.lane.b32.xlu0 %v5984, 64
          %v6198 = vpop.permute.xlu0 %6197
          %6199 = vrot.lane.b32.xlu0 %v5989, 64
          %v6200 = vpop.permute.xlu0 %6199
          %6201 = vrot.lane.b32.xlu0 %v5994, 64
          %v6202 = vpop.permute.xlu0 %6201
          %6203 = vrot.lane.b32.xlu0 %v5999, 64
          %v6204 = vpop.permute.xlu0 %6203
          %vm6213 = vcmask 785920
          %6214 = vst.msk [vmem:[%s701] sm:$0xff] %vm6213, %v6190
          %6215 = vst.msk [vmem:[%s701 + $0x40] sm:$0xff] %vm6213, %v6192
          %6216 = vst.msk [vmem:[%s701 + $0x80] sm:$0xff] %vm6213, %v6194
          %6217 = vst.msk [vmem:[%s701 + $0xc0] sm:$0xff] %vm6213, %v6196
          %6218 = vst.msk [vmem:[%s701 + $0x100] sm:$0xff] %vm6213, %v6198
          %6219 = vst.msk [vmem:[%s701 + $0x140] sm:$0xff] %vm6213, %v6200
          %6220 = vst.msk [vmem:[%s701 + $0x180] sm:$0xff] %vm6213, %v6202
          %6221 = vst.msk [vmem:[%s701 + $0x1c0] sm:$0xff] %vm6213, %v6204
          %6222 = vrot.lane.b32.xlu0 %v5964, 96
          %v6223 = vpop.permute.xlu0 %6222
          %6224 = vrot.lane.b32.xlu0 %v5969, 96
          %v6225 = vpop.permute.xlu0 %6224
          %6226 = vrot.lane.b32.xlu0 %v5974, 96
          %v6227 = vpop.permute.xlu0 %6226
          %6228 = vrot.lane.b32.xlu0 %v5979, 96
          %v6229 = vpop.permute.xlu0 %6228
          %6230 = vrot.lane.b32.xlu0 %v5984, 96
          %v6231 = vpop.permute.xlu0 %6230
          %6232 = vrot.lane.b32.xlu0 %v5989, 96
          %v6233 = vpop.permute.xlu0 %6232
          %6234 = vrot.lane.b32.xlu0 %v5994, 96
          %v6235 = vpop.permute.xlu0 %6234
          %6236 = vrot.lane.b32.xlu0 %v5999, 96
          %v6237 = vpop.permute.xlu0 %6236
          %vm6246 = vcmask 1048320
          %6247 = vst.msk [vmem:[%s701] sm:$0xff] %vm6246, %v6223
          %6248 = vst.msk [vmem:[%s701 + $0x40] sm:$0xff] %vm6246, %v6225
          %6249 = vst.msk [vmem:[%s701 + $0x80] sm:$0xff] %vm6246, %v6227
          %6250 = vst.msk [vmem:[%s701 + $0xc0] sm:$0xff] %vm6246, %v6229
          %6251 = vst.msk [vmem:[%s701 + $0x100] sm:$0xff] %vm6246, %v6231
          %6252 = vst.msk [vmem:[%s701 + $0x140] sm:$0xff] %vm6246, %v6233
          %6253 = vst.msk [vmem:[%s701 + $0x180] sm:$0xff] %vm6246, %v6235
          %6254 = vst.msk [vmem:[%s701 + $0x1c0] sm:$0xff] %vm6246, %v6237
          %6255 = vst.msk [vmem:[%s701 + $0x8] sm:$0xff] %vm6139, %v5964
          %6256 = vst.msk [vmem:[%s701 + $0x48] sm:$0xff] %vm6139, %v5969
          %6257 = vst.msk [vmem:[%s701 + $0x88] sm:$0xff] %vm6139, %v5974
          %6258 = vst.msk [vmem:[%s701 + $0xc8] sm:$0xff] %vm6139, %v5979
          %6259 = vst.msk [vmem:[%s701 + $0x108] sm:$0xff] %vm6139, %v5984
          %6260 = vst.msk [vmem:[%s701 + $0x148] sm:$0xff] %vm6139, %v5989
          %6261 = vst.msk [vmem:[%s701 + $0x188] sm:$0xff] %vm6139, %v5994
          %6262 = vst.msk [vmem:[%s701 + $0x1c8] sm:$0xff] %vm6139, %v5999
          %6263 = vst.msk [vmem:[%s701 + $0x8] sm:$0xff] %vm6180, %v6157
          %6264 = vst.msk [vmem:[%s701 + $0x48] sm:$0xff] %vm6180, %v6159
          %6265 = vst.msk [vmem:[%s701 + $0x88] sm:$0xff] %vm6180, %v6161
          %6266 = vst.msk [vmem:[%s701 + $0xc8] sm:$0xff] %vm6180, %v6163
          %6267 = vst.msk [vmem:[%s701 + $0x108] sm:$0xff] %vm6180, %v6165
          %6268 = vst.msk [vmem:[%s701 + $0x148] sm:$0xff] %vm6180, %v6167
          %6269 = vst.msk [vmem:[%s701 + $0x188] sm:$0xff] %vm6180, %v6169
          %6270 = vst.msk [vmem:[%s701 + $0x1c8] sm:$0xff] %vm6180, %v6171
          %6271 = vst.msk [vmem:[%s701 + $0x8] sm:$0xff] %vm6213, %v6190
          %6272 = vst.msk [vmem:[%s701 + $0x48] sm:$0xff] %vm6213, %v6192
          %6273 = vst.msk [vmem:[%s701 + $0x88] sm:$0xff] %vm6213, %v6194
          %6274 = vst.msk [vmem:[%s701 + $0xc8] sm:$0xff] %vm6213, %v6196
          %6275 = vst.msk [vmem:[%s701 + $0x108] sm:$0xff] %vm6213, %v6198
          %6276 = vst.msk [vmem:[%s701 + $0x148] sm:$0xff] %vm6213, %v6200
          %6277 = vst.msk [vmem:[%s701 + $0x188] sm:$0xff] %vm6213, %v6202
          %6278 = vst.msk [vmem:[%s701 + $0x1c8] sm:$0xff] %vm6213, %v6204
          %6279 = vst.msk [vmem:[%s701 + $0x8] sm:$0xff] %vm6246, %v6223
          %6280 = vst.msk [vmem:[%s701 + $0x48] sm:$0xff] %vm6246, %v6225
          %6281 = vst.msk [vmem:[%s701 + $0x88] sm:$0xff] %vm6246, %v6227
          %6282 = vst.msk [vmem:[%s701 + $0xc8] sm:$0xff] %vm6246, %v6229
          %6283 = vst.msk [vmem:[%s701 + $0x108] sm:$0xff] %vm6246, %v6231
          %6284 = vst.msk [vmem:[%s701 + $0x148] sm:$0xff] %vm6246, %v6233
          %6285 = vst.msk [vmem:[%s701 + $0x188] sm:$0xff] %vm6246, %v6235
          %6286 = vst.msk [vmem:[%s701 + $0x1c8] sm:$0xff] %vm6246, %v6237
          %v6287 = vmul.f32 %v5964, 0.96875
          %v6288 = vmul.f32 %v5969, 0.96875
          %v6289 = vmul.f32 %v5974, 0.96875
          %v6290 = vmul.f32 %v5979, 0.96875
          %v6291 = vmul.f32 %v5984, 0.96875
          %v6292 = vmul.f32 %v5989, 0.96875
          %v6293 = vmul.f32 %v5994, 0.96875
          %v6294 = vmul.f32 %v5999, 0.96875
          %v6295 = vmul.f32 %v6101, 0.03125
          %v6296 = vmul.f32 %v6106, 0.03125
          %v6297 = vmul.f32 %v6111, 0.03125
          %v6298 = vmul.f32 %v6116, 0.03125
          %v6299 = vmul.f32 %v6121, 0.03125
          %v6300 = vmul.f32 %v6126, 0.03125
          %v6301 = vmul.f32 %v6131, 0.03125
          %v6302 = vmul.f32 %v6136, 0.03125
          %v6303 = vadd.f32 %v6287, %v6295
          %v6304 = vadd.f32 %v6288, %v6296
          %v6305 = vadd.f32 %v6289, %v6297
          %v6306 = vadd.f32 %v6290, %v6298
          %v6307 = vadd.f32 %v6291, %v6299
          %v6308 = vadd.f32 %v6292, %v6300
          %v6309 = vadd.f32 %v6293, %v6301
          %v6310 = vadd.f32 %v6294, %v6302
          %6311 = vst.msk [vmem:[%s701 + $0x10] sm:$0xff] %vm6139, %v6303
          %6312 = vst.msk [vmem:[%s701 + $0x50] sm:$0xff] %vm6139, %v6304
          %6313 = vst.msk [vmem:[%s701 + $0x90] sm:$0xff] %vm6139, %v6305
          %6314 = vst.msk [vmem:[%s701 + $0xd0] sm:$0xff] %vm6139, %v6306
          %6315 = vst.msk [vmem:[%s701 + $0x110] sm:$0xff] %vm6139, %v6307
          %6316 = vst.msk [vmem:[%s701 + $0x150] sm:$0xff] %vm6139, %v6308
          %6317 = vst.msk [vmem:[%s701 + $0x190] sm:$0xff] %vm6139, %v6309
          %6318 = vst.msk [vmem:[%s701 + $0x1d0] sm:$0xff] %vm6139, %v6310
          %v6319 = vmul.f32 %v5964, 0.90625
          %v6320 = vmul.f32 %v5969, 0.90625
          %v6321 = vmul.f32 %v5974, 0.90625
          %v6322 = vmul.f32 %v5979, 0.90625
          %v6323 = vmul.f32 %v5984, 0.90625
          %v6324 = vmul.f32 %v5989, 0.90625
          %v6325 = vmul.f32 %v5994, 0.90625
          %v6326 = vmul.f32 %v5999, 0.90625
          %v6327 = vmul.f32 %v6101, 0.09375
          %v6328 = vmul.f32 %v6106, 0.09375
          %v6329 = vmul.f32 %v6111, 0.09375
          %v6330 = vmul.f32 %v6116, 0.09375
          %v6331 = vmul.f32 %v6121, 0.09375
          %v6332 = vmul.f32 %v6126, 0.09375
          %v6333 = vmul.f32 %v6131, 0.09375
          %v6334 = vmul.f32 %v6136, 0.09375
          %v6335 = vadd.f32 %v6319, %v6327
          %v6336 = vadd.f32 %v6320, %v6328
          %v6337 = vadd.f32 %v6321, %v6329
          %v6338 = vadd.f32 %v6322, %v6330
          %v6339 = vadd.f32 %v6323, %v6331
          %v6340 = vadd.f32 %v6324, %v6332
          %v6341 = vadd.f32 %v6325, %v6333
          %v6342 = vadd.f32 %v6326, %v6334
          %6351 = vrot.lane.b32.xlu0 %v6335, 32
          %v6352 = vpop.permute.xlu0 %6351
          %6353 = vrot.lane.b32.xlu0 %v6336, 32
          %v6354 = vpop.permute.xlu0 %6353
          %6355 = vrot.lane.b32.xlu0 %v6337, 32
          %v6356 = vpop.permute.xlu0 %6355
          %6357 = vrot.lane.b32.xlu0 %v6338, 32
          %v6358 = vpop.permute.xlu0 %6357
          %6359 = vrot.lane.b32.xlu0 %v6339, 32
          %v6360 = vpop.permute.xlu0 %6359
          %6361 = vrot.lane.b32.xlu0 %v6340, 32
          %v6362 = vpop.permute.xlu0 %6361
          %6363 = vrot.lane.b32.xlu0 %v6341, 32
          %v6364 = vpop.permute.xlu0 %6363
          %6365 = vrot.lane.b32.xlu0 %v6342, 32
          %v6366 = vpop.permute.xlu0 %6365
          %6375 = vst.msk [vmem:[%s701 + $0x10] sm:$0xff] %vm6180, %v6352
          %6376 = vst.msk [vmem:[%s701 + $0x50] sm:$0xff] %vm6180, %v6354
          %6377 = vst.msk [vmem:[%s701 + $0x90] sm:$0xff] %vm6180, %v6356
          %6378 = vst.msk [vmem:[%s701 + $0xd0] sm:$0xff] %vm6180, %v6358
          %6379 = vst.msk [vmem:[%s701 + $0x110] sm:$0xff] %vm6180, %v6360
          %6380 = vst.msk [vmem:[%s701 + $0x150] sm:$0xff] %vm6180, %v6362
          %6381 = vst.msk [vmem:[%s701 + $0x190] sm:$0xff] %vm6180, %v6364
          %6382 = vst.msk [vmem:[%s701 + $0x1d0] sm:$0xff] %vm6180, %v6366
          %v6383 = vmul.f32 %v5964, 0.84375
          %v6384 = vmul.f32 %v5969, 0.84375
          %v6385 = vmul.f32 %v5974, 0.84375
          %v6386 = vmul.f32 %v5979, 0.84375
          %v6387 = vmul.f32 %v5984, 0.84375
          %v6388 = vmul.f32 %v5989, 0.84375
          %v6389 = vmul.f32 %v5994, 0.84375
          %v6390 = vmul.f32 %v5999, 0.84375
          %v6391 = vmul.f32 %v6101, 0.15625
          %v6392 = vmul.f32 %v6106, 0.15625
          %v6393 = vmul.f32 %v6111, 0.15625
          %v6394 = vmul.f32 %v6116, 0.15625
          %v6395 = vmul.f32 %v6121, 0.15625
          %v6396 = vmul.f32 %v6126, 0.15625
          %v6397 = vmul.f32 %v6131, 0.15625
          %v6398 = vmul.f32 %v6136, 0.15625
          %v6399 = vadd.f32 %v6383, %v6391
          %v6400 = vadd.f32 %v6384, %v6392
          %v6401 = vadd.f32 %v6385, %v6393
          %v6402 = vadd.f32 %v6386, %v6394
          %v6403 = vadd.f32 %v6387, %v6395
          %v6404 = vadd.f32 %v6388, %v6396
          %v6405 = vadd.f32 %v6389, %v6397
          %v6406 = vadd.f32 %v6390, %v6398
          %6415 = vrot.lane.b32.xlu0 %v6399, 64
          %v6416 = vpop.permute.xlu0 %6415
          %6417 = vrot.lane.b32.xlu0 %v6400, 64
          %v6418 = vpop.permute.xlu0 %6417
          %6419 = vrot.lane.b32.xlu0 %v6401, 64
          %v6420 = vpop.permute.xlu0 %6419
          %6421 = vrot.lane.b32.xlu0 %v6402, 64
          %v6422 = vpop.permute.xlu0 %6421
          %6423 = vrot.lane.b32.xlu0 %v6403, 64
          %v6424 = vpop.permute.xlu0 %6423
          %6425 = vrot.lane.b32.xlu0 %v6404, 64
          %v6426 = vpop.permute.xlu0 %6425
          %6427 = vrot.lane.b32.xlu0 %v6405, 64
          %v6428 = vpop.permute.xlu0 %6427
          %6429 = vrot.lane.b32.xlu0 %v6406, 64
          %v6430 = vpop.permute.xlu0 %6429
          %6439 = vst.msk [vmem:[%s701 + $0x10] sm:$0xff] %vm6213, %v6416
          %6440 = vst.msk [vmem:[%s701 + $0x50] sm:$0xff] %vm6213, %v6418
          %6441 = vst.msk [vmem:[%s701 + $0x90] sm:$0xff] %vm6213, %v6420
          %6442 = vst.msk [vmem:[%s701 + $0xd0] sm:$0xff] %vm6213, %v6422
          %6443 = vst.msk [vmem:[%s701 + $0x110] sm:$0xff] %vm6213, %v6424
          %6444 = vst.msk [vmem:[%s701 + $0x150] sm:$0xff] %vm6213, %v6426
          %6445 = vst.msk [vmem:[%s701 + $0x190] sm:$0xff] %vm6213, %v6428
          %6446 = vst.msk [vmem:[%s701 + $0x1d0] sm:$0xff] %vm6213, %v6430
          %v6447 = vmul.f32 %v5964, 0.78125
          %v6448 = vmul.f32 %v5969, 0.78125
          %v6449 = vmul.f32 %v5974, 0.78125
          %v6450 = vmul.f32 %v5979, 0.78125
          %v6451 = vmul.f32 %v5984, 0.78125
          %v6452 = vmul.f32 %v5989, 0.78125
          %v6453 = vmul.f32 %v5994, 0.78125
          %v6454 = vmul.f32 %v5999, 0.78125
          %v6455 = vmul.f32 %v6101, 0.21875
          %v6456 = vmul.f32 %v6106, 0.21875
          %v6457 = vmul.f32 %v6111, 0.21875
          %v6458 = vmul.f32 %v6116, 0.21875
          %v6459 = vmul.f32 %v6121, 0.21875
          %v6460 = vmul.f32 %v6126, 0.21875
          %v6461 = vmul.f32 %v6131, 0.21875
          %v6462 = vmul.f32 %v6136, 0.21875
          %v6463 = vadd.f32 %v6447, %v6455
          %v6464 = vadd.f32 %v6448, %v6456
          %v6465 = vadd.f32 %v6449, %v6457
          %v6466 = vadd.f32 %v6450, %v6458
          %v6467 = vadd.f32 %v6451, %v6459
          %v6468 = vadd.f32 %v6452, %v6460
          %v6469 = vadd.f32 %v6453, %v6461
          %v6470 = vadd.f32 %v6454, %v6462
          %6479 = vrot.lane.b32.xlu0 %v6463, 96
          %v6480 = vpop.permute.xlu0 %6479
          %6481 = vrot.lane.b32.xlu0 %v6464, 96
          %v6482 = vpop.permute.xlu0 %6481
          %6483 = vrot.lane.b32.xlu0 %v6465, 96
          %v6484 = vpop.permute.xlu0 %6483
          %6485 = vrot.lane.b32.xlu0 %v6466, 96
          %v6486 = vpop.permute.xlu0 %6485
          %6487 = vrot.lane.b32.xlu0 %v6467, 96
          %v6488 = vpop.permute.xlu0 %6487
          %6489 = vrot.lane.b32.xlu0 %v6468, 96
          %v6490 = vpop.permute.xlu0 %6489
          %6491 = vrot.lane.b32.xlu0 %v6469, 96
          %v6492 = vpop.permute.xlu0 %6491
          %6493 = vrot.lane.b32.xlu0 %v6470, 96
          %v6494 = vpop.permute.xlu0 %6493
          %6503 = vst.msk [vmem:[%s701 + $0x10] sm:$0xff] %vm6246, %v6480
          %6504 = vst.msk [vmem:[%s701 + $0x50] sm:$0xff] %vm6246, %v6482
          %6505 = vst.msk [vmem:[%s701 + $0x90] sm:$0xff] %vm6246, %v6484
          %6506 = vst.msk [vmem:[%s701 + $0xd0] sm:$0xff] %vm6246, %v6486
          %6507 = vst.msk [vmem:[%s701 + $0x110] sm:$0xff] %vm6246, %v6488
          %6508 = vst.msk [vmem:[%s701 + $0x150] sm:$0xff] %vm6246, %v6490
          %6509 = vst.msk [vmem:[%s701 + $0x190] sm:$0xff] %vm6246, %v6492
          %6510 = vst.msk [vmem:[%s701 + $0x1d0] sm:$0xff] %vm6246, %v6494
          %v6511 = vmul.f32 %v5964, 0.71875
          %v6512 = vmul.f32 %v5969, 0.71875
          %v6513 = vmul.f32 %v5974, 0.71875
          %v6514 = vmul.f32 %v5979, 0.71875
          %v6515 = vmul.f32 %v5984, 0.71875
          %v6516 = vmul.f32 %v5989, 0.71875
          %v6517 = vmul.f32 %v5994, 0.71875
          %v6518 = vmul.f32 %v5999, 0.71875
          %v6519 = vmul.f32 %v6101, 0.28125
          %v6520 = vmul.f32 %v6106, 0.28125
          %v6521 = vmul.f32 %v6111, 0.28125
          %v6522 = vmul.f32 %v6116, 0.28125
          %v6523 = vmul.f32 %v6121, 0.28125
          %v6524 = vmul.f32 %v6126, 0.28125
          %v6525 = vmul.f32 %v6131, 0.28125
          %v6526 = vmul.f32 %v6136, 0.28125
          %v6527 = vadd.f32 %v6511, %v6519
          %v6528 = vadd.f32 %v6512, %v6520
          %v6529 = vadd.f32 %v6513, %v6521
          %v6530 = vadd.f32 %v6514, %v6522
          %v6531 = vadd.f32 %v6515, %v6523
          %v6532 = vadd.f32 %v6516, %v6524
          %v6533 = vadd.f32 %v6517, %v6525
          %v6534 = vadd.f32 %v6518, %v6526
          %6535 = vst.msk [vmem:[%s701 + $0x18] sm:$0xff] %vm6139, %v6527
          %6536 = vst.msk [vmem:[%s701 + $0x58] sm:$0xff] %vm6139, %v6528
          %6537 = vst.msk [vmem:[%s701 + $0x98] sm:$0xff] %vm6139, %v6529
          %6538 = vst.msk [vmem:[%s701 + $0xd8] sm:$0xff] %vm6139, %v6530
          %6539 = vst.msk [vmem:[%s701 + $0x118] sm:$0xff] %vm6139, %v6531
          %6540 = vst.msk [vmem:[%s701 + $0x158] sm:$0xff] %vm6139, %v6532
          %6541 = vst.msk [vmem:[%s701 + $0x198] sm:$0xff] %vm6139, %v6533
          %6542 = vst.msk [vmem:[%s701 + $0x1d8] sm:$0xff] %vm6139, %v6534
          %v6543 = vmul.f32 %v5964, 0.65625
          %v6544 = vmul.f32 %v5969, 0.65625
          %v6545 = vmul.f32 %v5974, 0.65625
          %v6546 = vmul.f32 %v5979, 0.65625
          %v6547 = vmul.f32 %v5984, 0.65625
          %v6548 = vmul.f32 %v5989, 0.65625
          %v6549 = vmul.f32 %v5994, 0.65625
          %v6550 = vmul.f32 %v5999, 0.65625
          %v6551 = vmul.f32 %v6101, 0.34375
          %v6552 = vmul.f32 %v6106, 0.34375
          %v6553 = vmul.f32 %v6111, 0.34375
          %v6554 = vmul.f32 %v6116, 0.34375
          %v6555 = vmul.f32 %v6121, 0.34375
          %v6556 = vmul.f32 %v6126, 0.34375
          %v6557 = vmul.f32 %v6131, 0.34375
          %v6558 = vmul.f32 %v6136, 0.34375
          %v6559 = vadd.f32 %v6543, %v6551
          %v6560 = vadd.f32 %v6544, %v6552
          %v6561 = vadd.f32 %v6545, %v6553
          %v6562 = vadd.f32 %v6546, %v6554
          %v6563 = vadd.f32 %v6547, %v6555
          %v6564 = vadd.f32 %v6548, %v6556
          %v6565 = vadd.f32 %v6549, %v6557
          %v6566 = vadd.f32 %v6550, %v6558
          %6575 = vrot.lane.b32.xlu0 %v6559, 32
          %v6576 = vpop.permute.xlu0 %6575
          %6577 = vrot.lane.b32.xlu0 %v6560, 32
          %v6578 = vpop.permute.xlu0 %6577
          %6579 = vrot.lane.b32.xlu0 %v6561, 32
          %v6580 = vpop.permute.xlu0 %6579
          %6581 = vrot.lane.b32.xlu0 %v6562, 32
          %v6582 = vpop.permute.xlu0 %6581
          %6583 = vrot.lane.b32.xlu0 %v6563, 32
          %v6584 = vpop.permute.xlu0 %6583
          %6585 = vrot.lane.b32.xlu0 %v6564, 32
          %v6586 = vpop.permute.xlu0 %6585
          %6587 = vrot.lane.b32.xlu0 %v6565, 32
          %v6588 = vpop.permute.xlu0 %6587
          %6589 = vrot.lane.b32.xlu0 %v6566, 32
          %v6590 = vpop.permute.xlu0 %6589
          %6599 = vst.msk [vmem:[%s701 + $0x18] sm:$0xff] %vm6180, %v6576
          %6600 = vst.msk [vmem:[%s701 + $0x58] sm:$0xff] %vm6180, %v6578
          %6601 = vst.msk [vmem:[%s701 + $0x98] sm:$0xff] %vm6180, %v6580
          %6602 = vst.msk [vmem:[%s701 + $0xd8] sm:$0xff] %vm6180, %v6582
          %6603 = vst.msk [vmem:[%s701 + $0x118] sm:$0xff] %vm6180, %v6584
          %6604 = vst.msk [vmem:[%s701 + $0x158] sm:$0xff] %vm6180, %v6586
          %6605 = vst.msk [vmem:[%s701 + $0x198] sm:$0xff] %vm6180, %v6588
          %6606 = vst.msk [vmem:[%s701 + $0x1d8] sm:$0xff] %vm6180, %v6590
          %v6607 = vmul.f32 %v5964, 0.59375
          %v6608 = vmul.f32 %v5969, 0.59375
          %v6609 = vmul.f32 %v5974, 0.59375
          %v6610 = vmul.f32 %v5979, 0.59375
          %v6611 = vmul.f32 %v5984, 0.59375
          %v6612 = vmul.f32 %v5989, 0.59375
          %v6613 = vmul.f32 %v5994, 0.59375
          %v6614 = vmul.f32 %v5999, 0.59375
          %v6615 = vmul.f32 %v6101, 0.40625
          %v6616 = vmul.f32 %v6106, 0.40625
          %v6617 = vmul.f32 %v6111, 0.40625
          %v6618 = vmul.f32 %v6116, 0.40625
          %v6619 = vmul.f32 %v6121, 0.40625
          %v6620 = vmul.f32 %v6126, 0.40625
          %v6621 = vmul.f32 %v6131, 0.40625
          %v6622 = vmul.f32 %v6136, 0.40625
          %v6623 = vadd.f32 %v6607, %v6615
          %v6624 = vadd.f32 %v6608, %v6616
          %v6625 = vadd.f32 %v6609, %v6617
          %v6626 = vadd.f32 %v6610, %v6618
          %v6627 = vadd.f32 %v6611, %v6619
          %v6628 = vadd.f32 %v6612, %v6620
          %v6629 = vadd.f32 %v6613, %v6621
          %v6630 = vadd.f32 %v6614, %v6622
          %6639 = vrot.lane.b32.xlu0 %v6623, 64
          %v6640 = vpop.permute.xlu0 %6639
          %6641 = vrot.lane.b32.xlu0 %v6624, 64
          %v6642 = vpop.permute.xlu0 %6641
          %6643 = vrot.lane.b32.xlu0 %v6625, 64
          %v6644 = vpop.permute.xlu0 %6643
          %6645 = vrot.lane.b32.xlu0 %v6626, 64
          %v6646 = vpop.permute.xlu0 %6645
          %6647 = vrot.lane.b32.xlu0 %v6627, 64
          %v6648 = vpop.permute.xlu0 %6647
          %6649 = vrot.lane.b32.xlu0 %v6628, 64
          %v6650 = vpop.permute.xlu0 %6649
          %6651 = vrot.lane.b32.xlu0 %v6629, 64
          %v6652 = vpop.permute.xlu0 %6651
          %6653 = vrot.lane.b32.xlu0 %v6630, 64
          %v6654 = vpop.permute.xlu0 %6653
          %6663 = vst.msk [vmem:[%s701 + $0x18] sm:$0xff] %vm6213, %v6640
          %6664 = vst.msk [vmem:[%s701 + $0x58] sm:$0xff] %vm6213, %v6642
          %6665 = vst.msk [vmem:[%s701 + $0x98] sm:$0xff] %vm6213, %v6644
          %6666 = vst.msk [vmem:[%s701 + $0xd8] sm:$0xff] %vm6213, %v6646
          %6667 = vst.msk [vmem:[%s701 + $0x118] sm:$0xff] %vm6213, %v6648
          %6668 = vst.msk [vmem:[%s701 + $0x158] sm:$0xff] %vm6213, %v6650
          %6669 = vst.msk [vmem:[%s701 + $0x198] sm:$0xff] %vm6213, %v6652
          %6670 = vst.msk [vmem:[%s701 + $0x1d8] sm:$0xff] %vm6213, %v6654
          %v6671 = vmul.f32 %v5964, 0.53125
          %v6672 = vmul.f32 %v5969, 0.53125
          %v6673 = vmul.f32 %v5974, 0.53125
          %v6674 = vmul.f32 %v5979, 0.53125
          %v6675 = vmul.f32 %v5984, 0.53125
          %v6676 = vmul.f32 %v5989, 0.53125
          %v6677 = vmul.f32 %v5994, 0.53125
          %v6678 = vmul.f32 %v5999, 0.53125
          %v6679 = vmul.f32 %v6101, 0.46875
          %v6680 = vmul.f32 %v6106, 0.46875
          %v6681 = vmul.f32 %v6111, 0.46875
          %v6682 = vmul.f32 %v6116, 0.46875
          %v6683 = vmul.f32 %v6121, 0.46875
          %v6684 = vmul.f32 %v6126, 0.46875
          %v6685 = vmul.f32 %v6131, 0.46875
          %v6686 = vmul.f32 %v6136, 0.46875
          %v6687 = vadd.f32 %v6671, %v6679
          %v6688 = vadd.f32 %v6672, %v6680
          %v6689 = vadd.f32 %v6673, %v6681
          %v6690 = vadd.f32 %v6674, %v6682
          %v6691 = vadd.f32 %v6675, %v6683
          %v6692 = vadd.f32 %v6676, %v6684
          %v6693 = vadd.f32 %v6677, %v6685
          %v6694 = vadd.f32 %v6678, %v6686
          %6703 = vrot.lane.b32.xlu0 %v6687, 96
          %v6704 = vpop.permute.xlu0 %6703
          %6705 = vrot.lane.b32.xlu0 %v6688, 96
          %v6706 = vpop.permute.xlu0 %6705
          %6707 = vrot.lane.b32.xlu0 %v6689, 96
          %v6708 = vpop.permute.xlu0 %6707
          %6709 = vrot.lane.b32.xlu0 %v6690, 96
          %v6710 = vpop.permute.xlu0 %6709
          %6711 = vrot.lane.b32.xlu0 %v6691, 96
          %v6712 = vpop.permute.xlu0 %6711
          %6713 = vrot.lane.b32.xlu0 %v6692, 96
          %v6714 = vpop.permute.xlu0 %6713
          %6715 = vrot.lane.b32.xlu0 %v6693, 96
          %v6716 = vpop.permute.xlu0 %6715
          %6717 = vrot.lane.b32.xlu0 %v6694, 96
          %v6718 = vpop.permute.xlu0 %6717
          %6727 = vst.msk [vmem:[%s701 + $0x18] sm:$0xff] %vm6246, %v6704
          %6728 = vst.msk [vmem:[%s701 + $0x58] sm:$0xff] %vm6246, %v6706
          %6729 = vst.msk [vmem:[%s701 + $0x98] sm:$0xff] %vm6246, %v6708
          %6730 = vst.msk [vmem:[%s701 + $0xd8] sm:$0xff] %vm6246, %v6710
          %6731 = vst.msk [vmem:[%s701 + $0x118] sm:$0xff] %vm6246, %v6712
          %6732 = vst.msk [vmem:[%s701 + $0x158] sm:$0xff] %vm6246, %v6714
          %6733 = vst.msk [vmem:[%s701 + $0x198] sm:$0xff] %vm6246, %v6716
          %6734 = vst.msk [vmem:[%s701 + $0x1d8] sm:$0xff] %vm6246, %v6718
          %v6735 = vmul.f32 %v5964, 0.46875
          %v6736 = vmul.f32 %v5969, 0.46875
          %v6737 = vmul.f32 %v5974, 0.46875
          %v6738 = vmul.f32 %v5979, 0.46875
          %v6739 = vmul.f32 %v5984, 0.46875
          %v6740 = vmul.f32 %v5989, 0.46875
          %v6741 = vmul.f32 %v5994, 0.46875
          %v6742 = vmul.f32 %v5999, 0.46875
          %v6743 = vmul.f32 %v6101, 0.53125
          %v6744 = vmul.f32 %v6106, 0.53125
          %v6745 = vmul.f32 %v6111, 0.53125
          %v6746 = vmul.f32 %v6116, 0.53125
          %v6747 = vmul.f32 %v6121, 0.53125
          %v6748 = vmul.f32 %v6126, 0.53125
          %v6749 = vmul.f32 %v6131, 0.53125
          %v6750 = vmul.f32 %v6136, 0.53125
          %v6751 = vadd.f32 %v6735, %v6743
          %v6752 = vadd.f32 %v6736, %v6744
          %v6753 = vadd.f32 %v6737, %v6745
          %v6754 = vadd.f32 %v6738, %v6746
          %v6755 = vadd.f32 %v6739, %v6747
          %v6756 = vadd.f32 %v6740, %v6748
          %v6757 = vadd.f32 %v6741, %v6749
          %v6758 = vadd.f32 %v6742, %v6750
          %6759 = vst.msk [vmem:[%s701 + $0x20] sm:$0xff] %vm6139, %v6751
          %6760 = vst.msk [vmem:[%s701 + $0x60] sm:$0xff] %vm6139, %v6752
          %6761 = vst.msk [vmem:[%s701 + $0xa0] sm:$0xff] %vm6139, %v6753
          %6762 = vst.msk [vmem:[%s701 + $0xe0] sm:$0xff] %vm6139, %v6754
          %6763 = vst.msk [vmem:[%s701 + $0x120] sm:$0xff] %vm6139, %v6755
          %6764 = vst.msk [vmem:[%s701 + $0x160] sm:$0xff] %vm6139, %v6756
          %6765 = vst.msk [vmem:[%s701 + $0x1a0] sm:$0xff] %vm6139, %v6757
          %6766 = vst.msk [vmem:[%s701 + $0x1e0] sm:$0xff] %vm6139, %v6758
          %v6767 = vmul.f32 %v5964, 0.40625
          %v6768 = vmul.f32 %v5969, 0.40625
          %v6769 = vmul.f32 %v5974, 0.40625
          %v6770 = vmul.f32 %v5979, 0.40625
          %v6771 = vmul.f32 %v5984, 0.40625
          %v6772 = vmul.f32 %v5989, 0.40625
          %v6773 = vmul.f32 %v5994, 0.40625
          %v6774 = vmul.f32 %v5999, 0.40625
          %v6775 = vmul.f32 %v6101, 0.59375
          %v6776 = vmul.f32 %v6106, 0.59375
          %v6777 = vmul.f32 %v6111, 0.59375
          %v6778 = vmul.f32 %v6116, 0.59375
          %v6779 = vmul.f32 %v6121, 0.59375
          %v6780 = vmul.f32 %v6126, 0.59375
          %v6781 = vmul.f32 %v6131, 0.59375
          %v6782 = vmul.f32 %v6136, 0.59375
          %v6783 = vadd.f32 %v6767, %v6775
          %v6784 = vadd.f32 %v6768, %v6776
          %v6785 = vadd.f32 %v6769, %v6777
          %v6786 = vadd.f32 %v6770, %v6778
          %v6787 = vadd.f32 %v6771, %v6779
          %v6788 = vadd.f32 %v6772, %v6780
          %v6789 = vadd.f32 %v6773, %v6781
          %v6790 = vadd.f32 %v6774, %v6782
          %6799 = vrot.lane.b32.xlu0 %v6783, 32
          %v6800 = vpop.permute.xlu0 %6799
          %6801 = vrot.lane.b32.xlu0 %v6784, 32
          %v6802 = vpop.permute.xlu0 %6801
          %6803 = vrot.lane.b32.xlu0 %v6785, 32
          %v6804 = vpop.permute.xlu0 %6803
          %6805 = vrot.lane.b32.xlu0 %v6786, 32
          %v6806 = vpop.permute.xlu0 %6805
          %6807 = vrot.lane.b32.xlu0 %v6787, 32
          %v6808 = vpop.permute.xlu0 %6807
          %6809 = vrot.lane.b32.xlu0 %v6788, 32
          %v6810 = vpop.permute.xlu0 %6809
          %6811 = vrot.lane.b32.xlu0 %v6789, 32
          %v6812 = vpop.permute.xlu0 %6811
          %6813 = vrot.lane.b32.xlu0 %v6790, 32
          %v6814 = vpop.permute.xlu0 %6813
          %6823 = vst.msk [vmem:[%s701 + $0x20] sm:$0xff] %vm6180, %v6800
          %6824 = vst.msk [vmem:[%s701 + $0x60] sm:$0xff] %vm6180, %v6802
          %6825 = vst.msk [vmem:[%s701 + $0xa0] sm:$0xff] %vm6180, %v6804
          %6826 = vst.msk [vmem:[%s701 + $0xe0] sm:$0xff] %vm6180, %v6806
          %6827 = vst.msk [vmem:[%s701 + $0x120] sm:$0xff] %vm6180, %v6808
          %6828 = vst.msk [vmem:[%s701 + $0x160] sm:$0xff] %vm6180, %v6810
          %6829 = vst.msk [vmem:[%s701 + $0x1a0] sm:$0xff] %vm6180, %v6812
          %6830 = vst.msk [vmem:[%s701 + $0x1e0] sm:$0xff] %vm6180, %v6814
          %v6831 = vmul.f32 %v5964, 0.34375
          %v6832 = vmul.f32 %v5969, 0.34375
          %v6833 = vmul.f32 %v5974, 0.34375
          %v6834 = vmul.f32 %v5979, 0.34375
          %v6835 = vmul.f32 %v5984, 0.34375
          %v6836 = vmul.f32 %v5989, 0.34375
          %v6837 = vmul.f32 %v5994, 0.34375
          %v6838 = vmul.f32 %v5999, 0.34375
          %v6839 = vmul.f32 %v6101, 0.65625
          %v6840 = vmul.f32 %v6106, 0.65625
          %v6841 = vmul.f32 %v6111, 0.65625
          %v6842 = vmul.f32 %v6116, 0.65625
          %v6843 = vmul.f32 %v6121, 0.65625
          %v6844 = vmul.f32 %v6126, 0.65625
          %v6845 = vmul.f32 %v6131, 0.65625
          %v6846 = vmul.f32 %v6136, 0.65625
          %v6847 = vadd.f32 %v6831, %v6839
          %v6848 = vadd.f32 %v6832, %v6840
          %v6849 = vadd.f32 %v6833, %v6841
          %v6850 = vadd.f32 %v6834, %v6842
          %v6851 = vadd.f32 %v6835, %v6843
          %v6852 = vadd.f32 %v6836, %v6844
          %v6853 = vadd.f32 %v6837, %v6845
          %v6854 = vadd.f32 %v6838, %v6846
          %6863 = vrot.lane.b32.xlu0 %v6847, 64
          %v6864 = vpop.permute.xlu0 %6863
          %6865 = vrot.lane.b32.xlu0 %v6848, 64
          %v6866 = vpop.permute.xlu0 %6865
          %6867 = vrot.lane.b32.xlu0 %v6849, 64
          %v6868 = vpop.permute.xlu0 %6867
          %6869 = vrot.lane.b32.xlu0 %v6850, 64
          %v6870 = vpop.permute.xlu0 %6869
          %6871 = vrot.lane.b32.xlu0 %v6851, 64
          %v6872 = vpop.permute.xlu0 %6871
          %6873 = vrot.lane.b32.xlu0 %v6852, 64
          %v6874 = vpop.permute.xlu0 %6873
          %6875 = vrot.lane.b32.xlu0 %v6853, 64
          %v6876 = vpop.permute.xlu0 %6875
          %6877 = vrot.lane.b32.xlu0 %v6854, 64
          %v6878 = vpop.permute.xlu0 %6877
          %6887 = vst.msk [vmem:[%s701 + $0x20] sm:$0xff] %vm6213, %v6864
          %6888 = vst.msk [vmem:[%s701 + $0x60] sm:$0xff] %vm6213, %v6866
          %6889 = vst.msk [vmem:[%s701 + $0xa0] sm:$0xff] %vm6213, %v6868
          %6890 = vst.msk [vmem:[%s701 + $0xe0] sm:$0xff] %vm6213, %v6870
          %6891 = vst.msk [vmem:[%s701 + $0x120] sm:$0xff] %vm6213, %v6872
          %6892 = vst.msk [vmem:[%s701 + $0x160] sm:$0xff] %vm6213, %v6874
          %6893 = vst.msk [vmem:[%s701 + $0x1a0] sm:$0xff] %vm6213, %v6876
          %6894 = vst.msk [vmem:[%s701 + $0x1e0] sm:$0xff] %vm6213, %v6878
          %v6895 = vmul.f32 %v5964, 0.28125
          %v6896 = vmul.f32 %v5969, 0.28125
          %v6897 = vmul.f32 %v5974, 0.28125
          %v6898 = vmul.f32 %v5979, 0.28125
          %v6899 = vmul.f32 %v5984, 0.28125
          %v6900 = vmul.f32 %v5989, 0.28125
          %v6901 = vmul.f32 %v5994, 0.28125
          %v6902 = vmul.f32 %v5999, 0.28125
          %v6903 = vmul.f32 %v6101, 0.71875
          %v6904 = vmul.f32 %v6106, 0.71875
          %v6905 = vmul.f32 %v6111, 0.71875
          %v6906 = vmul.f32 %v6116, 0.71875
          %v6907 = vmul.f32 %v6121, 0.71875
          %v6908 = vmul.f32 %v6126, 0.71875
          %v6909 = vmul.f32 %v6131, 0.71875
          %v6910 = vmul.f32 %v6136, 0.71875
          %v6911 = vadd.f32 %v6895, %v6903
          %v6912 = vadd.f32 %v6896, %v6904
          %v6913 = vadd.f32 %v6897, %v6905
          %v6914 = vadd.f32 %v6898, %v6906
          %v6915 = vadd.f32 %v6899, %v6907
          %v6916 = vadd.f32 %v6900, %v6908
          %v6917 = vadd.f32 %v6901, %v6909
          %v6918 = vadd.f32 %v6902, %v6910
          %6927 = vrot.lane.b32.xlu0 %v6911, 96
          %v6928 = vpop.permute.xlu0 %6927
          %6929 = vrot.lane.b32.xlu0 %v6912, 96
          %v6930 = vpop.permute.xlu0 %6929
          %6931 = vrot.lane.b32.xlu0 %v6913, 96
          %v6932 = vpop.permute.xlu0 %6931
          %6933 = vrot.lane.b32.xlu0 %v6914, 96
          %v6934 = vpop.permute.xlu0 %6933
          %6935 = vrot.lane.b32.xlu0 %v6915, 96
          %v6936 = vpop.permute.xlu0 %6935
          %6937 = vrot.lane.b32.xlu0 %v6916, 96
          %v6938 = vpop.permute.xlu0 %6937
          %6939 = vrot.lane.b32.xlu0 %v6917, 96
          %v6940 = vpop.permute.xlu0 %6939
          %6941 = vrot.lane.b32.xlu0 %v6918, 96
          %v6942 = vpop.permute.xlu0 %6941
          %6951 = vst.msk [vmem:[%s701 + $0x20] sm:$0xff] %vm6246, %v6928
          %6952 = vst.msk [vmem:[%s701 + $0x60] sm:$0xff] %vm6246, %v6930
          %6953 = vst.msk [vmem:[%s701 + $0xa0] sm:$0xff] %vm6246, %v6932
          %6954 = vst.msk [vmem:[%s701 + $0xe0] sm:$0xff] %vm6246, %v6934
          %6955 = vst.msk [vmem:[%s701 + $0x120] sm:$0xff] %vm6246, %v6936
          %6956 = vst.msk [vmem:[%s701 + $0x160] sm:$0xff] %vm6246, %v6938
          %6957 = vst.msk [vmem:[%s701 + $0x1a0] sm:$0xff] %vm6246, %v6940
          %6958 = vst.msk [vmem:[%s701 + $0x1e0] sm:$0xff] %vm6246, %v6942
          %v6959 = vmul.f32 %v5964, 0.21875
          %v6960 = vmul.f32 %v5969, 0.21875
          %v6961 = vmul.f32 %v5974, 0.21875
          %v6962 = vmul.f32 %v5979, 0.21875
          %v6963 = vmul.f32 %v5984, 0.21875
          %v6964 = vmul.f32 %v5989, 0.21875
          %v6965 = vmul.f32 %v5994, 0.21875
          %v6966 = vmul.f32 %v5999, 0.21875
          %v6967 = vmul.f32 %v6101, 0.78125
          %v6968 = vmul.f32 %v6106, 0.78125
          %v6969 = vmul.f32 %v6111, 0.78125
          %v6970 = vmul.f32 %v6116, 0.78125
          %v6971 = vmul.f32 %v6121, 0.78125
          %v6972 = vmul.f32 %v6126, 0.78125
          %v6973 = vmul.f32 %v6131, 0.78125
          %v6974 = vmul.f32 %v6136, 0.78125
          %v6975 = vadd.f32 %v6959, %v6967
          %v6976 = vadd.f32 %v6960, %v6968
          %v6977 = vadd.f32 %v6961, %v6969
          %v6978 = vadd.f32 %v6962, %v6970
          %v6979 = vadd.f32 %v6963, %v6971
          %v6980 = vadd.f32 %v6964, %v6972
          %v6981 = vadd.f32 %v6965, %v6973
          %v6982 = vadd.f32 %v6966, %v6974
          %6983 = vst.msk [vmem:[%s701 + $0x28] sm:$0xff] %vm6139, %v6975
          %6984 = vst.msk [vmem:[%s701 + $0x68] sm:$0xff] %vm6139, %v6976
          %6985 = vst.msk [vmem:[%s701 + $0xa8] sm:$0xff] %vm6139, %v6977
          %6986 = vst.msk [vmem:[%s701 + $0xe8] sm:$0xff] %vm6139, %v6978
          %6987 = vst.msk [vmem:[%s701 + $0x128] sm:$0xff] %vm6139, %v6979
          %6988 = vst.msk [vmem:[%s701 + $0x168] sm:$0xff] %vm6139, %v6980
          %6989 = vst.msk [vmem:[%s701 + $0x1a8] sm:$0xff] %vm6139, %v6981
          %6990 = vst.msk [vmem:[%s701 + $0x1e8] sm:$0xff] %vm6139, %v6982
          %v6991 = vmul.f32 %v5964, 0.15625
          %v6992 = vmul.f32 %v5969, 0.15625
          %v6993 = vmul.f32 %v5974, 0.15625
          %v6994 = vmul.f32 %v5979, 0.15625
          %v6995 = vmul.f32 %v5984, 0.15625
          %v6996 = vmul.f32 %v5989, 0.15625
          %v6997 = vmul.f32 %v5994, 0.15625
          %v6998 = vmul.f32 %v5999, 0.15625
          %v6999 = vmul.f32 %v6101, 0.84375
          %v7000 = vmul.f32 %v6106, 0.84375
          %v7001 = vmul.f32 %v6111, 0.84375
          %v7002 = vmul.f32 %v6116, 0.84375
          %v7003 = vmul.f32 %v6121, 0.84375
          %v7004 = vmul.f32 %v6126, 0.84375
          %v7005 = vmul.f32 %v6131, 0.84375
          %v7006 = vmul.f32 %v6136, 0.84375
          %v7007 = vadd.f32 %v6991, %v6999
          %v7008 = vadd.f32 %v6992, %v7000
          %v7009 = vadd.f32 %v6993, %v7001
          %v7010 = vadd.f32 %v6994, %v7002
          %v7011 = vadd.f32 %v6995, %v7003
          %v7012 = vadd.f32 %v6996, %v7004
          %v7013 = vadd.f32 %v6997, %v7005
          %v7014 = vadd.f32 %v6998, %v7006
          %7023 = vrot.lane.b32.xlu0 %v7007, 32
          %v7024 = vpop.permute.xlu0 %7023
          %7025 = vrot.lane.b32.xlu0 %v7008, 32
          %v7026 = vpop.permute.xlu0 %7025
          %7027 = vrot.lane.b32.xlu0 %v7009, 32
          %v7028 = vpop.permute.xlu0 %7027
          %7029 = vrot.lane.b32.xlu0 %v7010, 32
          %v7030 = vpop.permute.xlu0 %7029
          %7031 = vrot.lane.b32.xlu0 %v7011, 32
          %v7032 = vpop.permute.xlu0 %7031
          %7033 = vrot.lane.b32.xlu0 %v7012, 32
          %v7034 = vpop.permute.xlu0 %7033
          %7035 = vrot.lane.b32.xlu0 %v7013, 32
          %v7036 = vpop.permute.xlu0 %7035
          %7037 = vrot.lane.b32.xlu0 %v7014, 32
          %v7038 = vpop.permute.xlu0 %7037
          %7047 = vst.msk [vmem:[%s701 + $0x28] sm:$0xff] %vm6180, %v7024
          %7048 = vst.msk [vmem:[%s701 + $0x68] sm:$0xff] %vm6180, %v7026
          %7049 = vst.msk [vmem:[%s701 + $0xa8] sm:$0xff] %vm6180, %v7028
          %7050 = vst.msk [vmem:[%s701 + $0xe8] sm:$0xff] %vm6180, %v7030
          %7051 = vst.msk [vmem:[%s701 + $0x128] sm:$0xff] %vm6180, %v7032
          %7052 = vst.msk [vmem:[%s701 + $0x168] sm:$0xff] %vm6180, %v7034
          %7053 = vst.msk [vmem:[%s701 + $0x1a8] sm:$0xff] %vm6180, %v7036
          %7054 = vst.msk [vmem:[%s701 + $0x1e8] sm:$0xff] %vm6180, %v7038
          %v7055 = vmul.f32 %v5964, 0.09375
          %v7056 = vmul.f32 %v5969, 0.09375
          %v7057 = vmul.f32 %v5974, 0.09375
          %v7058 = vmul.f32 %v5979, 0.09375
          %v7059 = vmul.f32 %v5984, 0.09375
          %v7060 = vmul.f32 %v5989, 0.09375
          %v7061 = vmul.f32 %v5994, 0.09375
          %v7062 = vmul.f32 %v5999, 0.09375
          %v7063 = vmul.f32 %v6101, 0.90625
          %v7064 = vmul.f32 %v6106, 0.90625
          %v7065 = vmul.f32 %v6111, 0.90625
          %v7066 = vmul.f32 %v6116, 0.90625
          %v7067 = vmul.f32 %v6121, 0.90625
          %v7068 = vmul.f32 %v6126, 0.90625
          %v7069 = vmul.f32 %v6131, 0.90625
          %v7070 = vmul.f32 %v6136, 0.90625
          %v7071 = vadd.f32 %v7055, %v7063
          %v7072 = vadd.f32 %v7056, %v7064
          %v7073 = vadd.f32 %v7057, %v7065
          %v7074 = vadd.f32 %v7058, %v7066
          %v7075 = vadd.f32 %v7059, %v7067
          %v7076 = vadd.f32 %v7060, %v7068
          %v7077 = vadd.f32 %v7061, %v7069
          %v7078 = vadd.f32 %v7062, %v7070
          %7087 = vrot.lane.b32.xlu0 %v7071, 64
          %v7088 = vpop.permute.xlu0 %7087
          %7089 = vrot.lane.b32.xlu0 %v7072, 64
          %v7090 = vpop.permute.xlu0 %7089
          %7091 = vrot.lane.b32.xlu0 %v7073, 64
          %v7092 = vpop.permute.xlu0 %7091
          %7093 = vrot.lane.b32.xlu0 %v7074, 64
          %v7094 = vpop.permute.xlu0 %7093
          %7095 = vrot.lane.b32.xlu0 %v7075, 64
          %v7096 = vpop.permute.xlu0 %7095
          %7097 = vrot.lane.b32.xlu0 %v7076, 64
          %v7098 = vpop.permute.xlu0 %7097
          %7099 = vrot.lane.b32.xlu0 %v7077, 64
          %v7100 = vpop.permute.xlu0 %7099
          %7101 = vrot.lane.b32.xlu0 %v7078, 64
          %v7102 = vpop.permute.xlu0 %7101
          %7111 = vst.msk [vmem:[%s701 + $0x28] sm:$0xff] %vm6213, %v7088
          %7112 = vst.msk [vmem:[%s701 + $0x68] sm:$0xff] %vm6213, %v7090
          %7113 = vst.msk [vmem:[%s701 + $0xa8] sm:$0xff] %vm6213, %v7092
          %7114 = vst.msk [vmem:[%s701 + $0xe8] sm:$0xff] %vm6213, %v7094
          %7115 = vst.msk [vmem:[%s701 + $0x128] sm:$0xff] %vm6213, %v7096
          %7116 = vst.msk [vmem:[%s701 + $0x168] sm:$0xff] %vm6213, %v7098
          %7117 = vst.msk [vmem:[%s701 + $0x1a8] sm:$0xff] %vm6213, %v7100
          %7118 = vst.msk [vmem:[%s701 + $0x1e8] sm:$0xff] %vm6213, %v7102
          %v7119 = vmul.f32 %v5964, 0.03125
          %v7120 = vmul.f32 %v5969, 0.03125
          %v7121 = vmul.f32 %v5974, 0.03125
          %v7122 = vmul.f32 %v5979, 0.03125
          %v7123 = vmul.f32 %v5984, 0.03125
          %v7124 = vmul.f32 %v5989, 0.03125
          %v7125 = vmul.f32 %v5994, 0.03125
          %v7126 = vmul.f32 %v5999, 0.03125
          %v7127 = vmul.f32 %v6101, 0.96875
          %v7128 = vmul.f32 %v6106, 0.96875
          %v7129 = vmul.f32 %v6111, 0.96875
          %v7130 = vmul.f32 %v6116, 0.96875
          %v7131 = vmul.f32 %v6121, 0.96875
          %v7132 = vmul.f32 %v6126, 0.96875
          %v7133 = vmul.f32 %v6131, 0.96875
          %v7134 = vmul.f32 %v6136, 0.96875
          %v7135 = vadd.f32 %v7119, %v7127
          %v7136 = vadd.f32 %v7120, %v7128
          %v7137 = vadd.f32 %v7121, %v7129
          %v7138 = vadd.f32 %v7122, %v7130
          %v7139 = vadd.f32 %v7123, %v7131
          %v7140 = vadd.f32 %v7124, %v7132
          %v7141 = vadd.f32 %v7125, %v7133
          %v7142 = vadd.f32 %v7126, %v7134
          %7151 = vrot.lane.b32.xlu0 %v7135, 96
          %v7152 = vpop.permute.xlu0 %7151
          %7153 = vrot.lane.b32.xlu0 %v7136, 96
          %v7154 = vpop.permute.xlu0 %7153
          %7155 = vrot.lane.b32.xlu0 %v7137, 96
          %v7156 = vpop.permute.xlu0 %7155
          %7157 = vrot.lane.b32.xlu0 %v7138, 96
          %v7158 = vpop.permute.xlu0 %7157
          %7159 = vrot.lane.b32.xlu0 %v7139, 96
          %v7160 = vpop.permute.xlu0 %7159
          %7161 = vrot.lane.b32.xlu0 %v7140, 96
          %v7162 = vpop.permute.xlu0 %7161
          %7163 = vrot.lane.b32.xlu0 %v7141, 96
          %v7164 = vpop.permute.xlu0 %7163
          %7165 = vrot.lane.b32.xlu0 %v7142, 96
          %v7166 = vpop.permute.xlu0 %7165
          %7175 = vst.msk [vmem:[%s701 + $0x28] sm:$0xff] %vm6246, %v7152
          %7176 = vst.msk [vmem:[%s701 + $0x68] sm:$0xff] %vm6246, %v7154
          %7177 = vst.msk [vmem:[%s701 + $0xa8] sm:$0xff] %vm6246, %v7156
          %7178 = vst.msk [vmem:[%s701 + $0xe8] sm:$0xff] %vm6246, %v7158
          %7179 = vst.msk [vmem:[%s701 + $0x128] sm:$0xff] %vm6246, %v7160
          %7180 = vst.msk [vmem:[%s701 + $0x168] sm:$0xff] %vm6246, %v7162
          %7181 = vst.msk [vmem:[%s701 + $0x1a8] sm:$0xff] %vm6246, %v7164
          %7182 = vst.msk [vmem:[%s701 + $0x1e8] sm:$0xff] %vm6246, %v7166
          %7183 = vst.msk [vmem:[%s701 + $0x30] sm:$0xff] %vm6139, %v6101
          %7184 = vst.msk [vmem:[%s701 + $0x70] sm:$0xff] %vm6139, %v6106
          %7185 = vst.msk [vmem:[%s701 + $0xb0] sm:$0xff] %vm6139, %v6111
          %7186 = vst.msk [vmem:[%s701 + $0xf0] sm:$0xff] %vm6139, %v6116
          %7187 = vst.msk [vmem:[%s701 + $0x130] sm:$0xff] %vm6139, %v6121
          %7188 = vst.msk [vmem:[%s701 + $0x170] sm:$0xff] %vm6139, %v6126
          %7189 = vst.msk [vmem:[%s701 + $0x1b0] sm:$0xff] %vm6139, %v6131
          %7190 = vst.msk [vmem:[%s701 + $0x1f0] sm:$0xff] %vm6139, %v6136
          %7199 = vrot.lane.b32.xlu0 %v6101, 32
          %v7200 = vpop.permute.xlu0 %7199
          %7201 = vrot.lane.b32.xlu0 %v6106, 32
          %v7202 = vpop.permute.xlu0 %7201
          %7203 = vrot.lane.b32.xlu0 %v6111, 32
          %v7204 = vpop.permute.xlu0 %7203
          %7205 = vrot.lane.b32.xlu0 %v6116, 32
          %v7206 = vpop.permute.xlu0 %7205
          %7207 = vrot.lane.b32.xlu0 %v6121, 32
          %v7208 = vpop.permute.xlu0 %7207
          %7209 = vrot.lane.b32.xlu0 %v6126, 32
          %v7210 = vpop.permute.xlu0 %7209
          %7211 = vrot.lane.b32.xlu0 %v6131, 32
          %v7212 = vpop.permute.xlu0 %7211
          %7213 = vrot.lane.b32.xlu0 %v6136, 32
          %v7214 = vpop.permute.xlu0 %7213
          %7223 = vst.msk [vmem:[%s701 + $0x30] sm:$0xff] %vm6180, %v7200
          %7224 = vst.msk [vmem:[%s701 + $0x70] sm:$0xff] %vm6180, %v7202
          %7225 = vst.msk [vmem:[%s701 + $0xb0] sm:$0xff] %vm6180, %v7204
          %7226 = vst.msk [vmem:[%s701 + $0xf0] sm:$0xff] %vm6180, %v7206
          %7227 = vst.msk [vmem:[%s701 + $0x130] sm:$0xff] %vm6180, %v7208
          %7228 = vst.msk [vmem:[%s701 + $0x170] sm:$0xff] %vm6180, %v7210
          %7229 = vst.msk [vmem:[%s701 + $0x1b0] sm:$0xff] %vm6180, %v7212
          %7230 = vst.msk [vmem:[%s701 + $0x1f0] sm:$0xff] %vm6180, %v7214
          %7231 = vrot.lane.b32.xlu0 %v6101, 64
          %v7232 = vpop.permute.xlu0 %7231
          %7233 = vrot.lane.b32.xlu0 %v6106, 64
          %v7234 = vpop.permute.xlu0 %7233
          %7235 = vrot.lane.b32.xlu0 %v6111, 64
          %v7236 = vpop.permute.xlu0 %7235
          %7237 = vrot.lane.b32.xlu0 %v6116, 64
          %v7238 = vpop.permute.xlu0 %7237
          %7239 = vrot.lane.b32.xlu0 %v6121, 64
          %v7240 = vpop.permute.xlu0 %7239
          %7241 = vrot.lane.b32.xlu0 %v6126, 64
          %v7242 = vpop.permute.xlu0 %7241
          %7243 = vrot.lane.b32.xlu0 %v6131, 64
          %v7244 = vpop.permute.xlu0 %7243
          %7245 = vrot.lane.b32.xlu0 %v6136, 64
          %v7246 = vpop.permute.xlu0 %7245
          %7255 = vst.msk [vmem:[%s701 + $0x30] sm:$0xff] %vm6213, %v7232
          %7256 = vst.msk [vmem:[%s701 + $0x70] sm:$0xff] %vm6213, %v7234
          %7257 = vst.msk [vmem:[%s701 + $0xb0] sm:$0xff] %vm6213, %v7236
          %7258 = vst.msk [vmem:[%s701 + $0xf0] sm:$0xff] %vm6213, %v7238
          %7259 = vst.msk [vmem:[%s701 + $0x130] sm:$0xff] %vm6213, %v7240
          %7260 = vst.msk [vmem:[%s701 + $0x170] sm:$0xff] %vm6213, %v7242
          %7261 = vst.msk [vmem:[%s701 + $0x1b0] sm:$0xff] %vm6213, %v7244
          %7262 = vst.msk [vmem:[%s701 + $0x1f0] sm:$0xff] %vm6213, %v7246
          %7263 = vrot.lane.b32.xlu0 %v6101, 96
          %v7264 = vpop.permute.xlu0 %7263
          %7265 = vrot.lane.b32.xlu0 %v6106, 96
          %v7266 = vpop.permute.xlu0 %7265
          %7267 = vrot.lane.b32.xlu0 %v6111, 96
          %v7268 = vpop.permute.xlu0 %7267
          %7269 = vrot.lane.b32.xlu0 %v6116, 96
          %v7270 = vpop.permute.xlu0 %7269
          %7271 = vrot.lane.b32.xlu0 %v6121, 96
          %v7272 = vpop.permute.xlu0 %7271
          %7273 = vrot.lane.b32.xlu0 %v6126, 96
          %v7274 = vpop.permute.xlu0 %7273
          %7275 = vrot.lane.b32.xlu0 %v6131, 96
          %v7276 = vpop.permute.xlu0 %7275
          %7277 = vrot.lane.b32.xlu0 %v6136, 96
          %v7278 = vpop.permute.xlu0 %7277
          %7287 = vst.msk [vmem:[%s701 + $0x30] sm:$0xff] %vm6246, %v7264
          %7288 = vst.msk [vmem:[%s701 + $0x70] sm:$0xff] %vm6246, %v7266
          %7289 = vst.msk [vmem:[%s701 + $0xb0] sm:$0xff] %vm6246, %v7268
          %7290 = vst.msk [vmem:[%s701 + $0xf0] sm:$0xff] %vm6246, %v7270
          %7291 = vst.msk [vmem:[%s701 + $0x130] sm:$0xff] %vm6246, %v7272
          %7292 = vst.msk [vmem:[%s701 + $0x170] sm:$0xff] %vm6246, %v7274
          %7293 = vst.msk [vmem:[%s701 + $0x1b0] sm:$0xff] %vm6246, %v7276
          %7294 = vst.msk [vmem:[%s701 + $0x1f0] sm:$0xff] %vm6246, %v7278
          %7295 = vst.msk [vmem:[%s701 + $0x38] sm:$0xff] %vm6139, %v6101
          %7296 = vst.msk [vmem:[%s701 + $0x78] sm:$0xff] %vm6139, %v6106
          %7297 = vst.msk [vmem:[%s701 + $0xb8] sm:$0xff] %vm6139, %v6111
          %7298 = vst.msk [vmem:[%s701 + $0xf8] sm:$0xff] %vm6139, %v6116
          %7299 = vst.msk [vmem:[%s701 + $0x138] sm:$0xff] %vm6139, %v6121
          %7300 = vst.msk [vmem:[%s701 + $0x178] sm:$0xff] %vm6139, %v6126
          %7301 = vst.msk [vmem:[%s701 + $0x1b8] sm:$0xff] %vm6139, %v6131
          %7302 = vst.msk [vmem:[%s701 + $0x1f8] sm:$0xff] %vm6139, %v6136
          %7303 = vst.msk [vmem:[%s701 + $0x38] sm:$0xff] %vm6180, %v7200
          %7304 = vst.msk [vmem:[%s701 + $0x78] sm:$0xff] %vm6180, %v7202
          %7305 = vst.msk [vmem:[%s701 + $0xb8] sm:$0xff] %vm6180, %v7204
          %7306 = vst.msk [vmem:[%s701 + $0xf8] sm:$0xff] %vm6180, %v7206
          %7307 = vst.msk [vmem:[%s701 + $0x138] sm:$0xff] %vm6180, %v7208
          %7308 = vst.msk [vmem:[%s701 + $0x178] sm:$0xff] %vm6180, %v7210
          %7309 = vst.msk [vmem:[%s701 + $0x1b8] sm:$0xff] %vm6180, %v7212
          %7310 = vst.msk [vmem:[%s701 + $0x1f8] sm:$0xff] %vm6180, %v7214
          %7311 = vst.msk [vmem:[%s701 + $0x38] sm:$0xff] %vm6213, %v7232
          %7312 = vst.msk [vmem:[%s701 + $0x78] sm:$0xff] %vm6213, %v7234
          %7313 = vst.msk [vmem:[%s701 + $0xb8] sm:$0xff] %vm6213, %v7236
          %7314 = vst.msk [vmem:[%s701 + $0xf8] sm:$0xff] %vm6213, %v7238
          %7315 = vst.msk [vmem:[%s701 + $0x138] sm:$0xff] %vm6213, %v7240
          %7316 = vst.msk [vmem:[%s701 + $0x178] sm:$0xff] %vm6213, %v7242
          %7317 = vst.msk [vmem:[%s701 + $0x1b8] sm:$0xff] %vm6213, %v7244
          %7318 = vst.msk [vmem:[%s701 + $0x1f8] sm:$0xff] %vm6213, %v7246
          %7319 = vst.msk [vmem:[%s701 + $0x38] sm:$0xff] %vm6246, %v7264
          %7320 = vst.msk [vmem:[%s701 + $0x78] sm:$0xff] %vm6246, %v7266
          %7321 = vst.msk [vmem:[%s701 + $0xb8] sm:$0xff] %vm6246, %v7268
          %7322 = vst.msk [vmem:[%s701 + $0xf8] sm:$0xff] %vm6246, %v7270
          %7323 = vst.msk [vmem:[%s701 + $0x138] sm:$0xff] %vm6246, %v7272
          %7324 = vst.msk [vmem:[%s701 + $0x178] sm:$0xff] %vm6246, %v7274
          %7325 = vst.msk [vmem:[%s701 + $0x1b8] sm:$0xff] %vm6246, %v7276
          %7326 = vst.msk [vmem:[%s701 + $0x1f8] sm:$0xff] %vm6246, %v7278
        $region124: #{up_cat_branch.1} parent=83 // pred_fallthru
          _
        %p7327 = scmp.eq.s32.totalorder %s36, 3
        // Predicated region
        $region125: #{up_cat_branch.1} parent=83 // pred_check
          %p7328 = pneg %p7327
        $region126: #{up_cat_branch.1} parent=83 // pred_check_branch
          %7330 = sbr.rel (%p7328) target = $region128
        $region127: #{up_cat_branch.1} parent=83 // pred_region
          %v7331 = vld [vmem:[%s691] sm:$0xff]
          %v7332 = vld [vmem:[%s691 + $0x8] sm:$0xff]
          %v7333 = vld [vmem:[%s691 + $0x10] sm:$0xff]
          %v7334 = vld [vmem:[%s691 + $0x18] sm:$0xff]
          %v7335 = vld [vmem:[%s691 + $0x20] sm:$0xff]
          %v7336 = vld [vmem:[%s691 + $0x28] sm:$0xff]
          %v7337 = vld [vmem:[%s691 + $0x30] sm:$0xff]
          %v7338 = vld [vmem:[%s691 + $0x38] sm:$0xff]
          %v7339 = vld [vmem:[%s691 + $0x40] sm:$0xff]
          %v7340 = vld [vmem:[%s691 + $0x48] sm:$0xff]
          %v7341 = vld [vmem:[%s691 + $0x50] sm:$0xff]
          %v7342 = vld [vmem:[%s691 + $0x58] sm:$0xff]
          %v7343 = vld [vmem:[%s691 + $0x60] sm:$0xff]
          %v7344 = vld [vmem:[%s691 + $0x68] sm:$0xff]
          %v7345 = vld [vmem:[%s691 + $0x70] sm:$0xff]
          %v7346 = vld [vmem:[%s691 + $0x78] sm:$0xff]
          %v7347 = vld [vmem:[%s691 + $0x80] sm:$0xff]
          %v7348 = vld [vmem:[%s691 + $0x88] sm:$0xff]
          %v7349 = vld [vmem:[%s691 + $0x90] sm:$0xff]
          %v7350 = vld [vmem:[%s691 + $0x98] sm:$0xff]
          %v7351 = vld [vmem:[%s691 + $0xa0] sm:$0xff]
          %v7352 = vld [vmem:[%s691 + $0xa8] sm:$0xff]
          %v7353 = vld [vmem:[%s691 + $0xb0] sm:$0xff]
          %v7354 = vld [vmem:[%s691 + $0xb8] sm:$0xff]
          %v7355 = vld [vmem:[%s691 + $0xc0] sm:$0xff]
          %v7356 = vld [vmem:[%s691 + $0xc8] sm:$0xff]
          %v7357 = vld [vmem:[%s691 + $0xd0] sm:$0xff]
          %v7358 = vld [vmem:[%s691 + $0xd8] sm:$0xff]
          %v7359 = vld [vmem:[%s691 + $0xe0] sm:$0xff]
          %v7360 = vld [vmem:[%s691 + $0xe8] sm:$0xff]
          %v7361 = vld [vmem:[%s691 + $0xf0] sm:$0xff]
          %v7362 = vld [vmem:[%s691 + $0xf8] sm:$0xff]
          %v7363 = vld [vmem:[%s691 + $0x100] sm:$0xff]
          %v7364 = vld [vmem:[%s691 + $0x108] sm:$0xff]
          %v7365 = vld [vmem:[%s691 + $0x110] sm:$0xff]
          %v7366 = vld [vmem:[%s691 + $0x118] sm:$0xff]
          %v7367 = vld [vmem:[%s691 + $0x120] sm:$0xff]
          %v7368 = vld [vmem:[%s691 + $0x128] sm:$0xff]
          %v7369 = vld [vmem:[%s691 + $0x130] sm:$0xff]
          %v7370 = vld [vmem:[%s691 + $0x138] sm:$0xff]
          %v7371 = vld [vmem:[%s691 + $0x140] sm:$0xff]
          %v7372 = vld [vmem:[%s691 + $0x148] sm:$0xff]
          %v7373 = vld [vmem:[%s691 + $0x150] sm:$0xff]
          %v7374 = vld [vmem:[%s691 + $0x158] sm:$0xff]
          %v7375 = vld [vmem:[%s691 + $0x160] sm:$0xff]
          %v7376 = vld [vmem:[%s691 + $0x168] sm:$0xff]
          %v7377 = vld [vmem:[%s691 + $0x170] sm:$0xff]
          %v7378 = vld [vmem:[%s691 + $0x178] sm:$0xff]
          %v7379 = vld [vmem:[%s691 + $0x180] sm:$0xff]
          %v7380 = vld [vmem:[%s691 + $0x188] sm:$0xff]
          %v7381 = vld [vmem:[%s691 + $0x190] sm:$0xff]
          %v7382 = vld [vmem:[%s691 + $0x198] sm:$0xff]
          %v7383 = vld [vmem:[%s691 + $0x1a0] sm:$0xff]
          %v7384 = vld [vmem:[%s691 + $0x1a8] sm:$0xff]
          %v7385 = vld [vmem:[%s691 + $0x1b0] sm:$0xff]
          %v7386 = vld [vmem:[%s691 + $0x1b8] sm:$0xff]
          %v7387 = vld [vmem:[%s691 + $0x1c0] sm:$0xff]
          %v7388 = vld [vmem:[%s691 + $0x1c8] sm:$0xff]
          %v7389 = vld [vmem:[%s691 + $0x1d0] sm:$0xff]
          %v7390 = vld [vmem:[%s691 + $0x1d8] sm:$0xff]
          %v7391 = vld [vmem:[%s691 + $0x1e0] sm:$0xff]
          %v7392 = vld [vmem:[%s691 + $0x1e8] sm:$0xff]
          %v7393 = vld [vmem:[%s691 + $0x1f0] sm:$0xff]
          %v7394 = vld [vmem:[%s691 + $0x1f8] sm:$0xff]
          %v7395 = vld [vmem:[#allocation7] sm:$0xff]
          %v7396 = vld [vmem:[#allocation7 + $0x8] sm:$0xff]
          %v7397 = vld [vmem:[#allocation7 + $0x10] sm:$0xff]
          %v7398 = vld [vmem:[#allocation7 + $0x18] sm:$0xff]
          %v7399 = vld [vmem:[#allocation7 + $0x20] sm:$0xff]
          %v7400 = vld [vmem:[#allocation7 + $0x28] sm:$0xff]
          %v7401 = vld [vmem:[#allocation7 + $0x30] sm:$0xff]
          %v7402 = vld [vmem:[#allocation7 + $0x38] sm:$0xff]
          %v7403 = vld [vmem:[#allocation7 + $0x40] sm:$0xff]
          %v7404 = vld [vmem:[#allocation7 + $0x48] sm:$0xff]
          %v7405 = vld [vmem:[#allocation7 + $0x50] sm:$0xff]
          %v7406 = vld [vmem:[#allocation7 + $0x58] sm:$0xff]
          %v7407 = vld [vmem:[#allocation7 + $0x60] sm:$0xff]
          %v7408 = vld [vmem:[#allocation7 + $0x68] sm:$0xff]
          %v7409 = vld [vmem:[#allocation7 + $0x70] sm:$0xff]
          %v7410 = vld [vmem:[#allocation7 + $0x78] sm:$0xff]
          %v7411 = vld [vmem:[#allocation7 + $0x80] sm:$0xff]
          %v7412 = vld [vmem:[#allocation7 + $0x88] sm:$0xff]
          %v7413 = vld [vmem:[#allocation7 + $0x90] sm:$0xff]
          %v7414 = vld [vmem:[#allocation7 + $0x98] sm:$0xff]
          %v7415 = vld [vmem:[#allocation7 + $0xa0] sm:$0xff]
          %v7416 = vld [vmem:[#allocation7 + $0xa8] sm:$0xff]
          %v7417 = vld [vmem:[#allocation7 + $0xb0] sm:$0xff]
          %v7418 = vld [vmem:[#allocation7 + $0xb8] sm:$0xff]
          %v7419 = vld [vmem:[#allocation7 + $0xc0] sm:$0xff]
          %v7420 = vld [vmem:[#allocation7 + $0xc8] sm:$0xff]
          %v7421 = vld [vmem:[#allocation7 + $0xd0] sm:$0xff]
          %v7422 = vld [vmem:[#allocation7 + $0xd8] sm:$0xff]
          %v7423 = vld [vmem:[#allocation7 + $0xe0] sm:$0xff]
          %v7424 = vld [vmem:[#allocation7 + $0xe8] sm:$0xff]
          %v7425 = vld [vmem:[#allocation7 + $0xf0] sm:$0xff]
          %v7426 = vld [vmem:[#allocation7 + $0xf8] sm:$0xff]
          %v7427 = vld [vmem:[%s11] sm:$0xff]
          %v7428 = vld [vmem:[%s11 + $0x8] sm:$0xff]
          %v7429 = vld [vmem:[%s11 + $0x10] sm:$0xff]
          %v7430 = vld [vmem:[%s11 + $0x18] sm:$0xff]
          %v7431 = vld [vmem:[%s11 + $0x20] sm:$0xff]
          %v7432 = vld [vmem:[%s11 + $0x28] sm:$0xff]
          %v7433 = vld [vmem:[%s11 + $0x30] sm:$0xff]
          %v7434 = vld [vmem:[%s11 + $0x38] sm:$0xff]
          %7435 = vmatprep.subr.mxu0 0.0
          %7436 = vmatpush1.msra.mxu0 %v7331
          %7437 = vmatprep.subr.mxu0 0.0
          %7438 = vmatpush1.msra.mxu0 %v7332
          %7439 = vmatprep.subr.mxu0 0.0
          %7440 = vmatpush1.msra.mxu0 %v7333
          %7441 = vmatprep.subr.mxu0 0.0
          %7442 = vmatpush1.msra.mxu0 %v7334
          %7443 = vmatprep.subr.mxu0 0.0
          %7444 = vmatpush1.msra.mxu0 %v7335
          %7445 = vmatprep.subr.mxu0 0.0
          %7446 = vmatpush1.msra.mxu0 %v7336
          %7447 = vmatprep.subr.mxu0 0.0
          %7448 = vmatpush1.msra.mxu0 %v7337
          %7449 = vmatprep.subr.mxu0 0.0
          %7450 = vmatpush1.msra.mxu0 %v7338
          %7451 = vmatprep.subr.mxu0 0.0
          %7452 = vmatpush1.msra.mxu0 %v7339
          %7453 = vmatprep.subr.mxu0 0.0
          %7454 = vmatpush1.msra.mxu0 %v7340
          %7455 = vmatprep.subr.mxu0 0.0
          %7456 = vmatpush1.msra.mxu0 %v7341
          %7457 = vmatprep.subr.mxu0 0.0
          %7458 = vmatpush1.msra.mxu0 %v7342
          %7459 = vmatprep.subr.mxu0 0.0
          %7460 = vmatpush1.msra.mxu0 %v7343
          %7461 = vmatprep.subr.mxu0 0.0
          %7462 = vmatpush1.msra.mxu0 %v7344
          %7463 = vmatprep.subr.mxu0 0.0
          %7464 = vmatpush1.msra.mxu0 %v7345
          %7465 = vmatprep.subr.mxu0 0.0
          %7466 = vmatpush1.msra.mxu0 %v7346
          %7467 = vmatprep.subr.mxu0 0.0
          %7468 = vmatpush1.msra.mxu0 %v7347
          %7469 = vmatprep.subr.mxu0 0.0
          %7470 = vmatpush1.msra.mxu0 %v7348
          %7471 = vmatprep.subr.mxu0 0.0
          %7472 = vmatpush1.msra.mxu0 %v7349
          %7473 = vmatprep.subr.mxu0 0.0
          %7474 = vmatpush1.msra.mxu0 %v7350
          %7475 = vmatprep.subr.mxu0 0.0
          %7476 = vmatpush1.msra.mxu0 %v7351
          %7477 = vmatprep.subr.mxu0 0.0
          %7478 = vmatpush1.msra.mxu0 %v7352
          %7479 = vmatprep.subr.mxu0 0.0
          %7480 = vmatpush1.msra.mxu0 %v7353
          %7481 = vmatprep.subr.mxu0 0.0
          %7482 = vmatpush1.msra.mxu0 %v7354
          %7483 = vmatprep.subr.mxu0 0.0
          %7484 = vmatpush1.msra.mxu0 %v7355
          %7485 = vmatprep.subr.mxu0 0.0
          %7486 = vmatpush1.msra.mxu0 %v7356
          %7487 = vmatprep.subr.mxu0 0.0
          %7488 = vmatpush1.msra.mxu0 %v7357
          %7489 = vmatprep.subr.mxu0 0.0
          %7490 = vmatpush1.msra.mxu0 %v7358
          %7491 = vmatprep.subr.mxu0 0.0
          %7492 = vmatpush1.msra.mxu0 %v7359
          %7493 = vmatprep.subr.mxu0 0.0
          %7494 = vmatpush1.msra.mxu0 %v7360
          %7495 = vmatprep.subr.mxu0 0.0
          %7496 = vmatpush1.msra.mxu0 %v7361
          %7497 = vmatprep.subr.mxu0 0.0
          %7498 = vmatpush1.msra.mxu0 %v7362
          %7499 = vmatprep.mubr.f32.mxu0 %v7396
          %7500 = vmatmul.mubr.f32.gmra.mrb[0].mxu0 %v7395
          %v7501 = vpop.f32.mrb[0].mxu0
          %v7502 = vadd.f32 %v7427, %v7501
          %v7503 = vpop.f32.mrb[0].mxu0
          %7504 = vmatprep.mubr.f32.mxu0 %v7400
          %7505 = vmatmul.mubr.f32.gmra.mrb[0].mxu0 %v7399
          %v7506 = vpop.f32.mrb[0].mxu0
          %v7507 = vadd.f32 %v7428, %v7506
          %v7508 = vpop.f32.mrb[0].mxu0
          %7509 = vmatprep.mubr.f32.mxu0 %v7404
          %7510 = vmatmul.mubr.f32.gmra.mrb[0].mxu0 %v7403
          %v7511 = vpop.f32.mrb[0].mxu0
          %v7512 = vadd.f32 %v7429, %v7511
          %v7513 = vpop.f32.mrb[0].mxu0
          %7514 = vmatprep.mubr.f32.mxu0 %v7408
          %7515 = vmatmul.mubr.f32.gmra.mrb[0].mxu0 %v7407
          %v7516 = vpop.f32.mrb[0].mxu0
          %v7517 = vadd.f32 %v7430, %v7516
          %v7518 = vpop.f32.mrb[0].mxu0
          %7519 = vmatprep.mubr.f32.mxu0 %v7412
          %7520 = vmatmul.mubr.f32.gmra.mrb[0].mxu0 %v7411
          %v7521 = vpop.f32.mrb[0].mxu0
          %v7522 = vadd.f32 %v7431, %v7521
          %v7523 = vpop.f32.mrb[0].mxu0
          %7524 = vmatprep.mubr.f32.mxu0 %v7416
          %7525 = vmatmul.mubr.f32.gmra.mrb[0].mxu0 %v7415
          %v7526 = vpop.f32.mrb[0].mxu0
          %v7527 = vadd.f32 %v7432, %v7526
          %v7528 = vpop.f32.mrb[0].mxu0
          %7529 = vmatprep.mubr.f32.mxu0 %v7420
          %7530 = vmatmul.mubr.f32.gmra.mrb[0].mxu0 %v7419
          %v7531 = vpop.f32.mrb[0].mxu0
          %v7532 = vadd.f32 %v7433, %v7531
          %v7533 = vpop.f32.mrb[0].mxu0
          %7534 = vmatprep.mubr.f32.mxu0 %v7424
          %7535 = vmatmul.mubr.f32.gmra.mrb[0].mxu0 %v7423
          %v7536 = vpop.f32.mrb[0].mxu0
          %v7537 = vadd.f32 %v7434, %v7536
          %v7538 = vpop.f32.mrb[0].mxu0
          %7539 = vdwg.mxu0
          %7540 = vmatprep.subr.mxu0 0.0
          %7541 = vmatpush1.msra.mxu0 %v7363
          %7542 = vmatprep.subr.mxu0 0.0
          %7543 = vmatpush1.msra.mxu0 %v7364
          %7544 = vmatprep.subr.mxu0 0.0
          %7545 = vmatpush1.msra.mxu0 %v7365
          %7546 = vmatprep.subr.mxu0 0.0
          %7547 = vmatpush1.msra.mxu0 %v7366
          %7548 = vmatprep.subr.mxu0 0.0
          %7549 = vmatpush1.msra.mxu0 %v7367
          %7550 = vmatprep.subr.mxu0 0.0
          %7551 = vmatpush1.msra.mxu0 %v7368
          %7552 = vmatprep.subr.mxu0 0.0
          %7553 = vmatpush1.msra.mxu0 %v7369
          %7554 = vmatprep.subr.mxu0 0.0
          %7555 = vmatpush1.msra.mxu0 %v7370
          %7556 = vmatprep.subr.mxu0 0.0
          %7557 = vmatpush1.msra.mxu0 %v7371
          %7558 = vmatprep.subr.mxu0 0.0
          %7559 = vmatpush1.msra.mxu0 %v7372
          %7560 = vmatprep.subr.mxu0 0.0
          %7561 = vmatpush1.msra.mxu0 %v7373
          %7562 = vmatprep.subr.mxu0 0.0
          %7563 = vmatpush1.msra.mxu0 %v7374
          %7564 = vmatprep.subr.mxu0 0.0
          %7565 = vmatpush1.msra.mxu0 %v7375
          %7566 = vmatprep.subr.mxu0 0.0
          %7567 = vmatpush1.msra.mxu0 %v7376
          %7568 = vmatprep.subr.mxu0 0.0
          %7569 = vmatpush1.msra.mxu0 %v7377
          %7570 = vmatprep.subr.mxu0 0.0
          %7571 = vmatpush1.msra.mxu0 %v7378
          %7572 = vmatprep.subr.mxu0 0.0
          %7573 = vmatpush1.msra.mxu0 %v7379
          %7574 = vmatprep.subr.mxu0 0.0
          %7575 = vmatpush1.msra.mxu0 %v7380
          %7576 = vmatprep.subr.mxu0 0.0
          %7577 = vmatpush1.msra.mxu0 %v7381
          %7578 = vmatprep.subr.mxu0 0.0
          %7579 = vmatpush1.msra.mxu0 %v7382
          %7580 = vmatprep.subr.mxu0 0.0
          %7581 = vmatpush1.msra.mxu0 %v7383
          %7582 = vmatprep.subr.mxu0 0.0
          %7583 = vmatpush1.msra.mxu0 %v7384
          %7584 = vmatprep.subr.mxu0 0.0
          %7585 = vmatpush1.msra.mxu0 %v7385
          %7586 = vmatprep.subr.mxu0 0.0
          %7587 = vmatpush1.msra.mxu0 %v7386
          %7588 = vmatprep.subr.mxu0 0.0
          %7589 = vmatpush1.msra.mxu0 %v7387
          %7590 = vmatprep.subr.mxu0 0.0
          %7591 = vmatpush1.msra.mxu0 %v7388
          %7592 = vmatprep.subr.mxu0 0.0
          %7593 = vmatpush1.msra.mxu0 %v7389
          %7594 = vmatprep.subr.mxu0 0.0
          %7595 = vmatpush1.msra.mxu0 %v7390
          %7596 = vmatprep.subr.mxu0 0.0
          %7597 = vmatpush1.msra.mxu0 %v7391
          %7598 = vmatprep.subr.mxu0 0.0
          %7599 = vmatpush1.msra.mxu0 %v7392
          %7600 = vmatprep.subr.mxu0 0.0
          %7601 = vmatpush1.msra.mxu0 %v7393
          %7602 = vmatprep.subr.mxu0 0.0
          %7603 = vmatpush1.msra.mxu0 %v7394
          %7604 = vmatprep.mubr.f32.mxu0 %v7398
          %7605 = vmatmul.mubr.f32.gmra.mrb[0].mxu0 %v7397
          %v7606 = vpop.f32.mrb[0].mxu0
          %v7607 = vadd.f32 %v7502, %v7606
          %v7608 = vpop.f32.mrb[0].mxu0
          %7609 = vmatprep.mubr.f32.mxu0 %v7402
          %7610 = vmatmul.mubr.f32.gmra.mrb[0].mxu0 %v7401
          %v7611 = vpop.f32.mrb[0].mxu0
          %v7612 = vadd.f32 %v7507, %v7611
          %v7613 = vpop.f32.mrb[0].mxu0
          %7614 = vmatprep.mubr.f32.mxu0 %v7406
          %7615 = vmatmul.mubr.f32.gmra.mrb[0].mxu0 %v7405
          %v7616 = vpop.f32.mrb[0].mxu0
          %v7617 = vadd.f32 %v7512, %v7616
          %v7618 = vpop.f32.mrb[0].mxu0
          %7619 = vmatprep.mubr.f32.mxu0 %v7410
          %7620 = vmatmul.mubr.f32.gmra.mrb[0].mxu0 %v7409
          %v7621 = vpop.f32.mrb[0].mxu0
          %v7622 = vadd.f32 %v7517, %v7621
          %v7623 = vpop.f32.mrb[0].mxu0
          %7624 = vmatprep.mubr.f32.mxu0 %v7414
          %7625 = vmatmul.mubr.f32.gmra.mrb[0].mxu0 %v7413
          %v7626 = vpop.f32.mrb[0].mxu0
          %v7627 = vadd.f32 %v7522, %v7626
          %v7628 = vpop.f32.mrb[0].mxu0
          %7629 = vmatprep.mubr.f32.mxu0 %v7418
          %7630 = vmatmul.mubr.f32.gmra.mrb[0].mxu0 %v7417
          %v7631 = vpop.f32.mrb[0].mxu0
          %v7632 = vadd.f32 %v7527, %v7631
          %v7633 = vpop.f32.mrb[0].mxu0
          %7634 = vmatprep.mubr.f32.mxu0 %v7422
          %7635 = vmatmul.mubr.f32.gmra.mrb[0].mxu0 %v7421
          %v7636 = vpop.f32.mrb[0].mxu0
          %v7637 = vadd.f32 %v7532, %v7636
          %v7638 = vpop.f32.mrb[0].mxu0
          %7639 = vmatprep.mubr.f32.mxu0 %v7426
          %7640 = vmatmul.mubr.f32.gmra.mrb[0].mxu0 %v7425
          %v7641 = vpop.f32.mrb[0].mxu0
          %v7642 = vadd.f32 %v7537, %v7641
          %v7643 = vpop.f32.mrb[0].mxu0
          %7644 = vdwg.mxu0
          %v7645 = vld [vmem:[%s15] sm:$0x1]
          %7647 = vset.pattern.permute.xlu0 0
          %7648 = vperm.xlu0 %7647, %v7607
          %v7649 = vpop.permute.xlu0 %7648
          %7652 = vset.pattern.permute.xlu0 0
          %7653 = vperm.xlu0 %7652, %v7612
          %v7654 = vpop.permute.xlu0 %7653
          %7657 = vset.pattern.permute.xlu0 0
          %7658 = vperm.xlu0 %7657, %v7617
          %v7659 = vpop.permute.xlu0 %7658
          %7662 = vset.pattern.permute.xlu0 0
          %7663 = vperm.xlu0 %7662, %v7622
          %v7664 = vpop.permute.xlu0 %7663
          %7667 = vset.pattern.permute.xlu0 0
          %7668 = vperm.xlu0 %7667, %v7627
          %v7669 = vpop.permute.xlu0 %7668
          %7672 = vset.pattern.permute.xlu0 0
          %7673 = vperm.xlu0 %7672, %v7632
          %v7674 = vpop.permute.xlu0 %7673
          %7677 = vset.pattern.permute.xlu0 0
          %7678 = vperm.xlu0 %7677, %v7637
          %v7679 = vpop.permute.xlu0 %7678
          %7682 = vset.pattern.permute.xlu0 0
          %7683 = vperm.xlu0 %7682, %v7642
          %v7684 = vpop.permute.xlu0 %7683
          %v7687 = vlaneseq
          %v7688 = vshrl.u32 %v7687, 7
          %v7689 = vsub.s32 0, %v7688
          %v7690 = vrot.slane %v7645, %v7689
          %v7692 = vmul.f32 %v7649, %v7690
          %v7693 = vmul.f32 %v7654, %v7690
          %v7694 = vmul.f32 %v7659, %v7690
          %v7695 = vmul.f32 %v7664, %v7690
          %v7696 = vmul.f32 %v7669, %v7690
          %v7697 = vmul.f32 %v7674, %v7690
          %v7698 = vmul.f32 %v7679, %v7690
          %v7699 = vmul.f32 %v7684, %v7690
          %vm7700 = vcmask 261120
          %7701 = vst.msk [vmem:[%s701] sm:$0xff] %vm7700, %v7692
          %7702 = vst.msk [vmem:[%s701 + $0x40] sm:$0xff] %vm7700, %v7693
          %7703 = vst.msk [vmem:[%s701 + $0x80] sm:$0xff] %vm7700, %v7694
          %7704 = vst.msk [vmem:[%s701 + $0xc0] sm:$0xff] %vm7700, %v7695
          %7705 = vst.msk [vmem:[%s701 + $0x100] sm:$0xff] %vm7700, %v7696
          %7706 = vst.msk [vmem:[%s701 + $0x140] sm:$0xff] %vm7700, %v7697
          %7707 = vst.msk [vmem:[%s701 + $0x180] sm:$0xff] %vm7700, %v7698
          %7708 = vst.msk [vmem:[%s701 + $0x1c0] sm:$0xff] %vm7700, %v7699
          %7717 = vrot.lane.b32.xlu0 %v7692, 32
          %v7718 = vpop.permute.xlu0 %7717
          %7719 = vrot.lane.b32.xlu0 %v7693, 32
          %v7720 = vpop.permute.xlu0 %7719
          %7721 = vrot.lane.b32.xlu0 %v7694, 32
          %v7722 = vpop.permute.xlu0 %7721
          %7723 = vrot.lane.b32.xlu0 %v7695, 32
          %v7724 = vpop.permute.xlu0 %7723
          %7725 = vrot.lane.b32.xlu0 %v7696, 32
          %v7726 = vpop.permute.xlu0 %7725
          %7727 = vrot.lane.b32.xlu0 %v7697, 32
          %v7728 = vpop.permute.xlu0 %7727
          %7729 = vrot.lane.b32.xlu0 %v7698, 32
          %v7730 = vpop.permute.xlu0 %7729
          %7731 = vrot.lane.b32.xlu0 %v7699, 32
          %v7732 = vpop.permute.xlu0 %7731
          %vm7741 = vcmask 523520
          %7742 = vst.msk [vmem:[%s701] sm:$0xff] %vm7741, %v7718
          %7743 = vst.msk [vmem:[%s701 + $0x40] sm:$0xff] %vm7741, %v7720
          %7744 = vst.msk [vmem:[%s701 + $0x80] sm:$0xff] %vm7741, %v7722
          %7745 = vst.msk [vmem:[%s701 + $0xc0] sm:$0xff] %vm7741, %v7724
          %7746 = vst.msk [vmem:[%s701 + $0x100] sm:$0xff] %vm7741, %v7726
          %7747 = vst.msk [vmem:[%s701 + $0x140] sm:$0xff] %vm7741, %v7728
          %7748 = vst.msk [vmem:[%s701 + $0x180] sm:$0xff] %vm7741, %v7730
          %7749 = vst.msk [vmem:[%s701 + $0x1c0] sm:$0xff] %vm7741, %v7732
          %7750 = vrot.lane.b32.xlu0 %v7692, 64
          %v7751 = vpop.permute.xlu0 %7750
          %7752 = vrot.lane.b32.xlu0 %v7693, 64
          %v7753 = vpop.permute.xlu0 %7752
          %7754 = vrot.lane.b32.xlu0 %v7694, 64
          %v7755 = vpop.permute.xlu0 %7754
          %7756 = vrot.lane.b32.xlu0 %v7695, 64
          %v7757 = vpop.permute.xlu0 %7756
          %7758 = vrot.lane.b32.xlu0 %v7696, 64
          %v7759 = vpop.permute.xlu0 %7758
          %7760 = vrot.lane.b32.xlu0 %v7697, 64
          %v7761 = vpop.permute.xlu0 %7760
          %7762 = vrot.lane.b32.xlu0 %v7698, 64
          %v7763 = vpop.permute.xlu0 %7762
          %7764 = vrot.lane.b32.xlu0 %v7699, 64
          %v7765 = vpop.permute.xlu0 %7764
          %vm7774 = vcmask 785920
          %7775 = vst.msk [vmem:[%s701] sm:$0xff] %vm7774, %v7751
          %7776 = vst.msk [vmem:[%s701 + $0x40] sm:$0xff] %vm7774, %v7753
          %7777 = vst.msk [vmem:[%s701 + $0x80] sm:$0xff] %vm7774, %v7755
          %7778 = vst.msk [vmem:[%s701 + $0xc0] sm:$0xff] %vm7774, %v7757
          %7779 = vst.msk [vmem:[%s701 + $0x100] sm:$0xff] %vm7774, %v7759
          %7780 = vst.msk [vmem:[%s701 + $0x140] sm:$0xff] %vm7774, %v7761
          %7781 = vst.msk [vmem:[%s701 + $0x180] sm:$0xff] %vm7774, %v7763
          %7782 = vst.msk [vmem:[%s701 + $0x1c0] sm:$0xff] %vm7774, %v7765
          %7783 = vrot.lane.b32.xlu0 %v7692, 96
          %v7784 = vpop.permute.xlu0 %7783
          %7785 = vrot.lane.b32.xlu0 %v7693, 96
          %v7786 = vpop.permute.xlu0 %7785
          %7787 = vrot.lane.b32.xlu0 %v7694, 96
          %v7788 = vpop.permute.xlu0 %7787
          %7789 = vrot.lane.b32.xlu0 %v7695, 96
          %v7790 = vpop.permute.xlu0 %7789
          %7791 = vrot.lane.b32.xlu0 %v7696, 96
          %v7792 = vpop.permute.xlu0 %7791
          %7793 = vrot.lane.b32.xlu0 %v7697, 96
          %v7794 = vpop.permute.xlu0 %7793
          %7795 = vrot.lane.b32.xlu0 %v7698, 96
          %v7796 = vpop.permute.xlu0 %7795
          %7797 = vrot.lane.b32.xlu0 %v7699, 96
          %v7798 = vpop.permute.xlu0 %7797
          %vm7807 = vcmask 1048320
          %7808 = vst.msk [vmem:[%s701] sm:$0xff] %vm7807, %v7784
          %7809 = vst.msk [vmem:[%s701 + $0x40] sm:$0xff] %vm7807, %v7786
          %7810 = vst.msk [vmem:[%s701 + $0x80] sm:$0xff] %vm7807, %v7788
          %7811 = vst.msk [vmem:[%s701 + $0xc0] sm:$0xff] %vm7807, %v7790
          %7812 = vst.msk [vmem:[%s701 + $0x100] sm:$0xff] %vm7807, %v7792
          %7813 = vst.msk [vmem:[%s701 + $0x140] sm:$0xff] %vm7807, %v7794
          %7814 = vst.msk [vmem:[%s701 + $0x180] sm:$0xff] %vm7807, %v7796
          %7815 = vst.msk [vmem:[%s701 + $0x1c0] sm:$0xff] %vm7807, %v7798
          %7816 = vst.msk [vmem:[%s701 + $0x8] sm:$0xff] %vm7700, %v7692
          %7817 = vst.msk [vmem:[%s701 + $0x48] sm:$0xff] %vm7700, %v7693
          %7818 = vst.msk [vmem:[%s701 + $0x88] sm:$0xff] %vm7700, %v7694
          %7819 = vst.msk [vmem:[%s701 + $0xc8] sm:$0xff] %vm7700, %v7695
          %7820 = vst.msk [vmem:[%s701 + $0x108] sm:$0xff] %vm7700, %v7696
          %7821 = vst.msk [vmem:[%s701 + $0x148] sm:$0xff] %vm7700, %v7697
          %7822 = vst.msk [vmem:[%s701 + $0x188] sm:$0xff] %vm7700, %v7698
          %7823 = vst.msk [vmem:[%s701 + $0x1c8] sm:$0xff] %vm7700, %v7699
          %7824 = vst.msk [vmem:[%s701 + $0x8] sm:$0xff] %vm7741, %v7718
          %7825 = vst.msk [vmem:[%s701 + $0x48] sm:$0xff] %vm7741, %v7720
          %7826 = vst.msk [vmem:[%s701 + $0x88] sm:$0xff] %vm7741, %v7722
          %7827 = vst.msk [vmem:[%s701 + $0xc8] sm:$0xff] %vm7741, %v7724
          %7828 = vst.msk [vmem:[%s701 + $0x108] sm:$0xff] %vm7741, %v7726
          %7829 = vst.msk [vmem:[%s701 + $0x148] sm:$0xff] %vm7741, %v7728
          %7830 = vst.msk [vmem:[%s701 + $0x188] sm:$0xff] %vm7741, %v7730
          %7831 = vst.msk [vmem:[%s701 + $0x1c8] sm:$0xff] %vm7741, %v7732
          %7832 = vst.msk [vmem:[%s701 + $0x8] sm:$0xff] %vm7774, %v7751
          %7833 = vst.msk [vmem:[%s701 + $0x48] sm:$0xff] %vm7774, %v7753
          %7834 = vst.msk [vmem:[%s701 + $0x88] sm:$0xff] %vm7774, %v7755
          %7835 = vst.msk [vmem:[%s701 + $0xc8] sm:$0xff] %vm7774, %v7757
          %7836 = vst.msk [vmem:[%s701 + $0x108] sm:$0xff] %vm7774, %v7759
          %7837 = vst.msk [vmem:[%s701 + $0x148] sm:$0xff] %vm7774, %v7761
          %7838 = vst.msk [vmem:[%s701 + $0x188] sm:$0xff] %vm7774, %v7763
          %7839 = vst.msk [vmem:[%s701 + $0x1c8] sm:$0xff] %vm7774, %v7765
          %7840 = vst.msk [vmem:[%s701 + $0x8] sm:$0xff] %vm7807, %v7784
          %7841 = vst.msk [vmem:[%s701 + $0x48] sm:$0xff] %vm7807, %v7786
          %7842 = vst.msk [vmem:[%s701 + $0x88] sm:$0xff] %vm7807, %v7788
          %7843 = vst.msk [vmem:[%s701 + $0xc8] sm:$0xff] %vm7807, %v7790
          %7844 = vst.msk [vmem:[%s701 + $0x108] sm:$0xff] %vm7807, %v7792
          %7845 = vst.msk [vmem:[%s701 + $0x148] sm:$0xff] %vm7807, %v7794
          %7846 = vst.msk [vmem:[%s701 + $0x188] sm:$0xff] %vm7807, %v7796
          %7847 = vst.msk [vmem:[%s701 + $0x1c8] sm:$0xff] %vm7807, %v7798
          %7848 = vst.msk [vmem:[%s701 + $0x10] sm:$0xff] %vm7700, %v7692
          %7849 = vst.msk [vmem:[%s701 + $0x50] sm:$0xff] %vm7700, %v7693
          %7850 = vst.msk [vmem:[%s701 + $0x90] sm:$0xff] %vm7700, %v7694
          %7851 = vst.msk [vmem:[%s701 + $0xd0] sm:$0xff] %vm7700, %v7695
          %7852 = vst.msk [vmem:[%s701 + $0x110] sm:$0xff] %vm7700, %v7696
          %7853 = vst.msk [vmem:[%s701 + $0x150] sm:$0xff] %vm7700, %v7697
          %7854 = vst.msk [vmem:[%s701 + $0x190] sm:$0xff] %vm7700, %v7698
          %7855 = vst.msk [vmem:[%s701 + $0x1d0] sm:$0xff] %vm7700, %v7699
          %7856 = vst.msk [vmem:[%s701 + $0x10] sm:$0xff] %vm7741, %v7718
          %7857 = vst.msk [vmem:[%s701 + $0x50] sm:$0xff] %vm7741, %v7720
          %7858 = vst.msk [vmem:[%s701 + $0x90] sm:$0xff] %vm7741, %v7722
          %7859 = vst.msk [vmem:[%s701 + $0xd0] sm:$0xff] %vm7741, %v7724
          %7860 = vst.msk [vmem:[%s701 + $0x110] sm:$0xff] %vm7741, %v7726
          %7861 = vst.msk [vmem:[%s701 + $0x150] sm:$0xff] %vm7741, %v7728
          %7862 = vst.msk [vmem:[%s701 + $0x190] sm:$0xff] %vm7741, %v7730
          %7863 = vst.msk [vmem:[%s701 + $0x1d0] sm:$0xff] %vm7741, %v7732
          %7864 = vst.msk [vmem:[%s701 + $0x10] sm:$0xff] %vm7774, %v7751
          %7865 = vst.msk [vmem:[%s701 + $0x50] sm:$0xff] %vm7774, %v7753
          %7866 = vst.msk [vmem:[%s701 + $0x90] sm:$0xff] %vm7774, %v7755
          %7867 = vst.msk [vmem:[%s701 + $0xd0] sm:$0xff] %vm7774, %v7757
          %7868 = vst.msk [vmem:[%s701 + $0x110] sm:$0xff] %vm7774, %v7759
          %7869 = vst.msk [vmem:[%s701 + $0x150] sm:$0xff] %vm7774, %v7761
          %7870 = vst.msk [vmem:[%s701 + $0x190] sm:$0xff] %vm7774, %v7763
          %7871 = vst.msk [vmem:[%s701 + $0x1d0] sm:$0xff] %vm7774, %v7765
          %7872 = vst.msk [vmem:[%s701 + $0x10] sm:$0xff] %vm7807, %v7784
          %7873 = vst.msk [vmem:[%s701 + $0x50] sm:$0xff] %vm7807, %v7786
          %7874 = vst.msk [vmem:[%s701 + $0x90] sm:$0xff] %vm7807, %v7788
          %7875 = vst.msk [vmem:[%s701 + $0xd0] sm:$0xff] %vm7807, %v7790
          %7876 = vst.msk [vmem:[%s701 + $0x110] sm:$0xff] %vm7807, %v7792
          %7877 = vst.msk [vmem:[%s701 + $0x150] sm:$0xff] %vm7807, %v7794
          %7878 = vst.msk [vmem:[%s701 + $0x190] sm:$0xff] %vm7807, %v7796
          %7879 = vst.msk [vmem:[%s701 + $0x1d0] sm:$0xff] %vm7807, %v7798
          %7880 = vst.msk [vmem:[%s701 + $0x18] sm:$0xff] %vm7700, %v7692
          %7881 = vst.msk [vmem:[%s701 + $0x58] sm:$0xff] %vm7700, %v7693
          %7882 = vst.msk [vmem:[%s701 + $0x98] sm:$0xff] %vm7700, %v7694
          %7883 = vst.msk [vmem:[%s701 + $0xd8] sm:$0xff] %vm7700, %v7695
          %7884 = vst.msk [vmem:[%s701 + $0x118] sm:$0xff] %vm7700, %v7696
          %7885 = vst.msk [vmem:[%s701 + $0x158] sm:$0xff] %vm7700, %v7697
          %7886 = vst.msk [vmem:[%s701 + $0x198] sm:$0xff] %vm7700, %v7698
          %7887 = vst.msk [vmem:[%s701 + $0x1d8] sm:$0xff] %vm7700, %v7699
          %7888 = vst.msk [vmem:[%s701 + $0x18] sm:$0xff] %vm7741, %v7718
          %7889 = vst.msk [vmem:[%s701 + $0x58] sm:$0xff] %vm7741, %v7720
          %7890 = vst.msk [vmem:[%s701 + $0x98] sm:$0xff] %vm7741, %v7722
          %7891 = vst.msk [vmem:[%s701 + $0xd8] sm:$0xff] %vm7741, %v7724
          %7892 = vst.msk [vmem:[%s701 + $0x118] sm:$0xff] %vm7741, %v7726
          %7893 = vst.msk [vmem:[%s701 + $0x158] sm:$0xff] %vm7741, %v7728
          %7894 = vst.msk [vmem:[%s701 + $0x198] sm:$0xff] %vm7741, %v7730
          %7895 = vst.msk [vmem:[%s701 + $0x1d8] sm:$0xff] %vm7741, %v7732
          %7896 = vst.msk [vmem:[%s701 + $0x18] sm:$0xff] %vm7774, %v7751
          %7897 = vst.msk [vmem:[%s701 + $0x58] sm:$0xff] %vm7774, %v7753
          %7898 = vst.msk [vmem:[%s701 + $0x98] sm:$0xff] %vm7774, %v7755
          %7899 = vst.msk [vmem:[%s701 + $0xd8] sm:$0xff] %vm7774, %v7757
          %7900 = vst.msk [vmem:[%s701 + $0x118] sm:$0xff] %vm7774, %v7759
          %7901 = vst.msk [vmem:[%s701 + $0x158] sm:$0xff] %vm7774, %v7761
          %7902 = vst.msk [vmem:[%s701 + $0x198] sm:$0xff] %vm7774, %v7763
          %7903 = vst.msk [vmem:[%s701 + $0x1d8] sm:$0xff] %vm7774, %v7765
          %7904 = vst.msk [vmem:[%s701 + $0x18] sm:$0xff] %vm7807, %v7784
          %7905 = vst.msk [vmem:[%s701 + $0x58] sm:$0xff] %vm7807, %v7786
          %7906 = vst.msk [vmem:[%s701 + $0x98] sm:$0xff] %vm7807, %v7788
          %7907 = vst.msk [vmem:[%s701 + $0xd8] sm:$0xff] %vm7807, %v7790
          %7908 = vst.msk [vmem:[%s701 + $0x118] sm:$0xff] %vm7807, %v7792
          %7909 = vst.msk [vmem:[%s701 + $0x158] sm:$0xff] %vm7807, %v7794
          %7910 = vst.msk [vmem:[%s701 + $0x198] sm:$0xff] %vm7807, %v7796
          %7911 = vst.msk [vmem:[%s701 + $0x1d8] sm:$0xff] %vm7807, %v7798
          %7912 = vst.msk [vmem:[%s701 + $0x20] sm:$0xff] %vm7700, %v7692
          %7913 = vst.msk [vmem:[%s701 + $0x60] sm:$0xff] %vm7700, %v7693
          %7914 = vst.msk [vmem:[%s701 + $0xa0] sm:$0xff] %vm7700, %v7694
          %7915 = vst.msk [vmem:[%s701 + $0xe0] sm:$0xff] %vm7700, %v7695
          %7916 = vst.msk [vmem:[%s701 + $0x120] sm:$0xff] %vm7700, %v7696
          %7917 = vst.msk [vmem:[%s701 + $0x160] sm:$0xff] %vm7700, %v7697
          %7918 = vst.msk [vmem:[%s701 + $0x1a0] sm:$0xff] %vm7700, %v7698
          %7919 = vst.msk [vmem:[%s701 + $0x1e0] sm:$0xff] %vm7700, %v7699
          %7920 = vst.msk [vmem:[%s701 + $0x20] sm:$0xff] %vm7741, %v7718
          %7921 = vst.msk [vmem:[%s701 + $0x60] sm:$0xff] %vm7741, %v7720
          %7922 = vst.msk [vmem:[%s701 + $0xa0] sm:$0xff] %vm7741, %v7722
          %7923 = vst.msk [vmem:[%s701 + $0xe0] sm:$0xff] %vm7741, %v7724
          %7924 = vst.msk [vmem:[%s701 + $0x120] sm:$0xff] %vm7741, %v7726
          %7925 = vst.msk [vmem:[%s701 + $0x160] sm:$0xff] %vm7741, %v7728
          %7926 = vst.msk [vmem:[%s701 + $0x1a0] sm:$0xff] %vm7741, %v7730
          %7927 = vst.msk [vmem:[%s701 + $0x1e0] sm:$0xff] %vm7741, %v7732
          %7928 = vst.msk [vmem:[%s701 + $0x20] sm:$0xff] %vm7774, %v7751
          %7929 = vst.msk [vmem:[%s701 + $0x60] sm:$0xff] %vm7774, %v7753
          %7930 = vst.msk [vmem:[%s701 + $0xa0] sm:$0xff] %vm7774, %v7755
          %7931 = vst.msk [vmem:[%s701 + $0xe0] sm:$0xff] %vm7774, %v7757
          %7932 = vst.msk [vmem:[%s701 + $0x120] sm:$0xff] %vm7774, %v7759
          %7933 = vst.msk [vmem:[%s701 + $0x160] sm:$0xff] %vm7774, %v7761
          %7934 = vst.msk [vmem:[%s701 + $0x1a0] sm:$0xff] %vm7774, %v7763
          %7935 = vst.msk [vmem:[%s701 + $0x1e0] sm:$0xff] %vm7774, %v7765
          %7936 = vst.msk [vmem:[%s701 + $0x20] sm:$0xff] %vm7807, %v7784
          %7937 = vst.msk [vmem:[%s701 + $0x60] sm:$0xff] %vm7807, %v7786
          %7938 = vst.msk [vmem:[%s701 + $0xa0] sm:$0xff] %vm7807, %v7788
          %7939 = vst.msk [vmem:[%s701 + $0xe0] sm:$0xff] %vm7807, %v7790
          %7940 = vst.msk [vmem:[%s701 + $0x120] sm:$0xff] %vm7807, %v7792
          %7941 = vst.msk [vmem:[%s701 + $0x160] sm:$0xff] %vm7807, %v7794
          %7942 = vst.msk [vmem:[%s701 + $0x1a0] sm:$0xff] %vm7807, %v7796
          %7943 = vst.msk [vmem:[%s701 + $0x1e0] sm:$0xff] %vm7807, %v7798
          %7944 = vst.msk [vmem:[%s701 + $0x28] sm:$0xff] %vm7700, %v7692
          %7945 = vst.msk [vmem:[%s701 + $0x68] sm:$0xff] %vm7700, %v7693
          %7946 = vst.msk [vmem:[%s701 + $0xa8] sm:$0xff] %vm7700, %v7694
          %7947 = vst.msk [vmem:[%s701 + $0xe8] sm:$0xff] %vm7700, %v7695
          %7948 = vst.msk [vmem:[%s701 + $0x128] sm:$0xff] %vm7700, %v7696
          %7949 = vst.msk [vmem:[%s701 + $0x168] sm:$0xff] %vm7700, %v7697
          %7950 = vst.msk [vmem:[%s701 + $0x1a8] sm:$0xff] %vm7700, %v7698
          %7951 = vst.msk [vmem:[%s701 + $0x1e8] sm:$0xff] %vm7700, %v7699
          %7952 = vst.msk [vmem:[%s701 + $0x28] sm:$0xff] %vm7741, %v7718
          %7953 = vst.msk [vmem:[%s701 + $0x68] sm:$0xff] %vm7741, %v7720
          %7954 = vst.msk [vmem:[%s701 + $0xa8] sm:$0xff] %vm7741, %v7722
          %7955 = vst.msk [vmem:[%s701 + $0xe8] sm:$0xff] %vm7741, %v7724
          %7956 = vst.msk [vmem:[%s701 + $0x128] sm:$0xff] %vm7741, %v7726
          %7957 = vst.msk [vmem:[%s701 + $0x168] sm:$0xff] %vm7741, %v7728
          %7958 = vst.msk [vmem:[%s701 + $0x1a8] sm:$0xff] %vm7741, %v7730
          %7959 = vst.msk [vmem:[%s701 + $0x1e8] sm:$0xff] %vm7741, %v7732
          %7960 = vst.msk [vmem:[%s701 + $0x28] sm:$0xff] %vm7774, %v7751
          %7961 = vst.msk [vmem:[%s701 + $0x68] sm:$0xff] %vm7774, %v7753
          %7962 = vst.msk [vmem:[%s701 + $0xa8] sm:$0xff] %vm7774, %v7755
          %7963 = vst.msk [vmem:[%s701 + $0xe8] sm:$0xff] %vm7774, %v7757
          %7964 = vst.msk [vmem:[%s701 + $0x128] sm:$0xff] %vm7774, %v7759
          %7965 = vst.msk [vmem:[%s701 + $0x168] sm:$0xff] %vm7774, %v7761
          %7966 = vst.msk [vmem:[%s701 + $0x1a8] sm:$0xff] %vm7774, %v7763
          %7967 = vst.msk [vmem:[%s701 + $0x1e8] sm:$0xff] %vm7774, %v7765
          %7968 = vst.msk [vmem:[%s701 + $0x28] sm:$0xff] %vm7807, %v7784
          %7969 = vst.msk [vmem:[%s701 + $0x68] sm:$0xff] %vm7807, %v7786
          %7970 = vst.msk [vmem:[%s701 + $0xa8] sm:$0xff] %vm7807, %v7788
          %7971 = vst.msk [vmem:[%s701 + $0xe8] sm:$0xff] %vm7807, %v7790
          %7972 = vst.msk [vmem:[%s701 + $0x128] sm:$0xff] %vm7807, %v7792
          %7973 = vst.msk [vmem:[%s701 + $0x168] sm:$0xff] %vm7807, %v7794
          %7974 = vst.msk [vmem:[%s701 + $0x1a8] sm:$0xff] %vm7807, %v7796
          %7975 = vst.msk [vmem:[%s701 + $0x1e8] sm:$0xff] %vm7807, %v7798
          %7976 = vst.msk [vmem:[%s701 + $0x30] sm:$0xff] %vm7700, %v7692
          %7977 = vst.msk [vmem:[%s701 + $0x70] sm:$0xff] %vm7700, %v7693
          %7978 = vst.msk [vmem:[%s701 + $0xb0] sm:$0xff] %vm7700, %v7694
          %7979 = vst.msk [vmem:[%s701 + $0xf0] sm:$0xff] %vm7700, %v7695
          %7980 = vst.msk [vmem:[%s701 + $0x130] sm:$0xff] %vm7700, %v7696
          %7981 = vst.msk [vmem:[%s701 + $0x170] sm:$0xff] %vm7700, %v7697
          %7982 = vst.msk [vmem:[%s701 + $0x1b0] sm:$0xff] %vm7700, %v7698
          %7983 = vst.msk [vmem:[%s701 + $0x1f0] sm:$0xff] %vm7700, %v7699
          %7984 = vst.msk [vmem:[%s701 + $0x30] sm:$0xff] %vm7741, %v7718
          %7985 = vst.msk [vmem:[%s701 + $0x70] sm:$0xff] %vm7741, %v7720
          %7986 = vst.msk [vmem:[%s701 + $0xb0] sm:$0xff] %vm7741, %v7722
          %7987 = vst.msk [vmem:[%s701 + $0xf0] sm:$0xff] %vm7741, %v7724
          %7988 = vst.msk [vmem:[%s701 + $0x130] sm:$0xff] %vm7741, %v7726
          %7989 = vst.msk [vmem:[%s701 + $0x170] sm:$0xff] %vm7741, %v7728
          %7990 = vst.msk [vmem:[%s701 + $0x1b0] sm:$0xff] %vm7741, %v7730
          %7991 = vst.msk [vmem:[%s701 + $0x1f0] sm:$0xff] %vm7741, %v7732
          %7992 = vst.msk [vmem:[%s701 + $0x30] sm:$0xff] %vm7774, %v7751
          %7993 = vst.msk [vmem:[%s701 + $0x70] sm:$0xff] %vm7774, %v7753
          %7994 = vst.msk [vmem:[%s701 + $0xb0] sm:$0xff] %vm7774, %v7755
          %7995 = vst.msk [vmem:[%s701 + $0xf0] sm:$0xff] %vm7774, %v7757
          %7996 = vst.msk [vmem:[%s701 + $0x130] sm:$0xff] %vm7774, %v7759
          %7997 = vst.msk [vmem:[%s701 + $0x170] sm:$0xff] %vm7774, %v7761
          %7998 = vst.msk [vmem:[%s701 + $0x1b0] sm:$0xff] %vm7774, %v7763
          %7999 = vst.msk [vmem:[%s701 + $0x1f0] sm:$0xff] %vm7774, %v7765
          %8000 = vst.msk [vmem:[%s701 + $0x30] sm:$0xff] %vm7807, %v7784
          %8001 = vst.msk [vmem:[%s701 + $0x70] sm:$0xff] %vm7807, %v7786
          %8002 = vst.msk [vmem:[%s701 + $0xb0] sm:$0xff] %vm7807, %v7788
          %8003 = vst.msk [vmem:[%s701 + $0xf0] sm:$0xff] %vm7807, %v7790
          %8004 = vst.msk [vmem:[%s701 + $0x130] sm:$0xff] %vm7807, %v7792
          %8005 = vst.msk [vmem:[%s701 + $0x170] sm:$0xff] %vm7807, %v7794
          %8006 = vst.msk [vmem:[%s701 + $0x1b0] sm:$0xff] %vm7807, %v7796
          %8007 = vst.msk [vmem:[%s701 + $0x1f0] sm:$0xff] %vm7807, %v7798
          %8008 = vst.msk [vmem:[%s701 + $0x38] sm:$0xff] %vm7700, %v7692
          %8009 = vst.msk [vmem:[%s701 + $0x78] sm:$0xff] %vm7700, %v7693
          %8010 = vst.msk [vmem:[%s701 + $0xb8] sm:$0xff] %vm7700, %v7694
          %8011 = vst.msk [vmem:[%s701 + $0xf8] sm:$0xff] %vm7700, %v7695
          %8012 = vst.msk [vmem:[%s701 + $0x138] sm:$0xff] %vm7700, %v7696
          %8013 = vst.msk [vmem:[%s701 + $0x178] sm:$0xff] %vm7700, %v7697
          %8014 = vst.msk [vmem:[%s701 + $0x1b8] sm:$0xff] %vm7700, %v7698
          %8015 = vst.msk [vmem:[%s701 + $0x1f8] sm:$0xff] %vm7700, %v7699
          %8016 = vst.msk [vmem:[%s701 + $0x38] sm:$0xff] %vm7741, %v7718
          %8017 = vst.msk [vmem:[%s701 + $0x78] sm:$0xff] %vm7741, %v7720
          %8018 = vst.msk [vmem:[%s701 + $0xb8] sm:$0xff] %vm7741, %v7722
          %8019 = vst.msk [vmem:[%s701 + $0xf8] sm:$0xff] %vm7741, %v7724
          %8020 = vst.msk [vmem:[%s701 + $0x138] sm:$0xff] %vm7741, %v7726
          %8021 = vst.msk [vmem:[%s701 + $0x178] sm:$0xff] %vm7741, %v7728
          %8022 = vst.msk [vmem:[%s701 + $0x1b8] sm:$0xff] %vm7741, %v7730
          %8023 = vst.msk [vmem:[%s701 + $0x1f8] sm:$0xff] %vm7741, %v7732
          %8024 = vst.msk [vmem:[%s701 + $0x38] sm:$0xff] %vm7774, %v7751
          %8025 = vst.msk [vmem:[%s701 + $0x78] sm:$0xff] %vm7774, %v7753
          %8026 = vst.msk [vmem:[%s701 + $0xb8] sm:$0xff] %vm7774, %v7755
          %8027 = vst.msk [vmem:[%s701 + $0xf8] sm:$0xff] %vm7774, %v7757
          %8028 = vst.msk [vmem:[%s701 + $0x138] sm:$0xff] %vm7774, %v7759
          %8029 = vst.msk [vmem:[%s701 + $0x178] sm:$0xff] %vm7774, %v7761
          %8030 = vst.msk [vmem:[%s701 + $0x1b8] sm:$0xff] %vm7774, %v7763
          %8031 = vst.msk [vmem:[%s701 + $0x1f8] sm:$0xff] %vm7774, %v7765
          %8032 = vst.msk [vmem:[%s701 + $0x38] sm:$0xff] %vm7807, %v7784
          %8033 = vst.msk [vmem:[%s701 + $0x78] sm:$0xff] %vm7807, %v7786
          %8034 = vst.msk [vmem:[%s701 + $0xb8] sm:$0xff] %vm7807, %v7788
          %8035 = vst.msk [vmem:[%s701 + $0xf8] sm:$0xff] %vm7807, %v7790
          %8036 = vst.msk [vmem:[%s701 + $0x138] sm:$0xff] %vm7807, %v7792
          %8037 = vst.msk [vmem:[%s701 + $0x178] sm:$0xff] %vm7807, %v7794
          %8038 = vst.msk [vmem:[%s701 + $0x1b8] sm:$0xff] %vm7807, %v7796
          %8039 = vst.msk [vmem:[%s701 + $0x1f8] sm:$0xff] %vm7807, %v7798
        $region128: #{up_cat_branch.1} parent=83 // pred_fallthru
          _
        %s8040 = smul.u32 8, %s36
        %p8041 = scmp.lt.s32.totalorder %s35, 1
        %s8042 = scalar_select %p8041, %s35, 1
        %p8043 = scmp.lt.s32.totalorder %s8040, 31
        %s8044 = scalar_select %p8043, %s8040, 31
        %s8045 = smul.addr %s8044, 8
        %s8046 = smul.addr %s8042, 256
        %s8047 = sadd.s32 %s8045, %s8046
        %s8048 = smul.addr %s8047, 8
        %s8049 = scalar_lea.vmem %s16, %s8048
        // Predicated region
        $region129: #{up_cat_branch.1} parent=83 // pred_check
          %p8050 = pneg %p419
        $region130: #{up_cat_branch.1} parent=83 // pred_check_branch
          %8052 = sbr.rel (%p8050) target = $region132
        $region131: #{up_cat_branch.1} parent=83 // pred_region
          %s8053 = smul.u32 8, %s36
        $region132: #{up_cat_branch.1} parent=83 // pred_fallthru
          _
      $region84: #{up_cat_branch.1} parent=5 // pred_fallthru
        _
      %p8054 = scmp.le.s32.totalorder 2, %s26
      // Predicated region
      $region133: #{up_cat_branch.1} parent=5 // pred_check
        %p8055 = pneg %p8054
      $region134: #{up_cat_branch.1} parent=5 // pred_check_branch
        %8057 = sbr.rel (%p8055) target = $region136
      $region135: #{up_cat_branch.1} parent=5 // pred_region
        %s8058 = ssub.s32 %s26, 2
        // Predicated region
        $region137: #{up_cat_branch.1} parent=135 // pred_check
          %p8059 = pneg %p425
        $region138: #{up_cat_branch.1} parent=135 // pred_check_branch
          %8061 = sbr.rel (%p8059) target = $region140
        $region139: #{up_cat_branch.1} parent=135 // pred_region
          %s8062 = smul.u32 8, %s38
          %p8063 = scmp.lt.s32.totalorder %s37, 1
          %s8064 = scalar_select %p8063, %s37, 1
          %p8065 = scmp.lt.s32.totalorder %s8062, 31
          %s8066 = scalar_select %p8065, %s8062, 31
          %s8067 = smul.addr %s8066, 8
          %s8068 = smul.addr %s8064, 256
          %s8069 = sadd.s32 %s8067, %s8068
          %s8070 = smul.addr %s8069, 8
          %s8071 = scalar_lea.vmem %s16, %s8070
        $region140: #{up_cat_branch.1} parent=135 // pred_fallthru
          _
      $region136: #{up_cat_branch.1} parent=5 // pred_fallthru
        _
    $region6: #{up_cat_branch.1} parent=1 // loop_footer
      %s30 = sadd.s32 1, %s26
    $region7: #{up_cat_branch.1} parent=1 // loop_footer_branch
      %25 = sbr.rel target = $region3
    $region8: #{up_cat_branch.1} parent=1 // loop_exit
      _
    %8072 = vsyncpa [#allocation3], 1
    %s8073 = scalar_lea.sflag [#allocation3], 1
    %8074 = vsyncpa %s8073, 1
    %8075 = vsyncpa [#allocation5], 1
    %8076 = vsyncpa [#allocation8], 1
    %8077 = vsyncpa [#allocation11], 1

</llo_original>
